<compile_context>
chip_gen: v5e
topology: v5e:2x2
jax: 0.10.0
libtpu: 0.0.40
codegen_flags: <defaults>
</compile_context>

<pallas_src>
import functools

import jax
import jax.numpy as jnp
from jax.experimental import pallas as pl
from jax.experimental.pallas import tpu as pltpu

_ACT_DTYPE = jnp.bfloat16        # activation / MXU-operand dtype
_TM_TARGET = 1024                # rows per grid step (HBM-roofline sweet spot)
_BN_EPS = 1e-5
_LRELU_SLOPE = 0.01


def _round_up(x, m):
    return (x + m - 1) // m * m


def _pick_tile(m, target=_TM_TARGET):
    """Return (tile, padded_m).

    Largest multiple-of-16 divisor of m that is <= target; if none exists, pad
    m up to a multiple of `target` (never a giant un-pipelined full-M block).
    """
    if m <= target:
        return m, m
    top = (target // 16) * 16
    for t in range(top, 15, -16):
        if m % t == 0:
            return t, m
    return target, _round_up(m, target)


@functools.lru_cache(maxsize=None)
def _vmem_limit_bytes():
    """Generation-aware VMEM budget: ~3/4 of capacity, capped at 100 MiB."""
    cap = 128 * 1024 * 1024
    try:
        cap = int(pltpu.get_tpu_info().vmem_capacity_bytes)
    except Exception:
        pass
    return int(min(max(cap * 3 // 4, 32 * 1024 * 1024), 100 * 1024 * 1024))


# ----------------------------------------------------------------------------
# Pallas kernels
# ----------------------------------------------------------------------------
def _conv_stats_kernel(cols_ref, w_ref, y_ref, stats_ref):
    # cols: [TM, K] bf16, w: [K, cout] bf16 -> y: [TM, cout] bf16 (f32 accum).
    # stats: [2, cout] per-tile partial (sum, sum-of-squares) over the TM rows.
    acc = jnp.dot(cols_ref[...], w_ref[...], preferred_element_type=jnp.float32)
    y_ref[...] = acc.astype(y_ref.dtype)
    # Column reductions on the MXU (ones-row matmul); write rows separately.
    ones = jnp.ones((1, acc.shape[0]), jnp.float32)
    stats_ref[0:1, :] = jnp.dot(ones, acc, preferred_element_type=jnp.float32)
    stats_ref[1:2, :] = jnp.dot(ones, acc * acc,
                                preferred_element_type=jnp.float32)


def _bn_lrelu_kernel(y_ref, stats_ref, g_ref, b_ref, o_ref, *, inv_m):
    # Training-mode BatchNorm (biased variance, eps=1e-5) + LeakyReLU(0.01).
    s = jnp.sum(stats_ref[...], axis=0)              # reduce per-tile partials
    mean = s[0:1, :] * inv_m
    var = jnp.maximum(s[1:2, :] * inv_m - mean * mean, 0.0)
    scale = g_ref[...] * jax.lax.rsqrt(var + _BN_EPS)
    shift = b_ref[...] - mean * scale
    y = y_ref[...].astype(jnp.float32) * scale + shift
    o_ref[...] = jnp.maximum(y, _LRELU_SLOPE * y).astype(o_ref.dtype)


def _matmul_bias_kernel(x_ref, w_ref, b_ref, o_ref):
    o_ref[...] = (
        jnp.dot(x_ref[...], w_ref[...], preferred_element_type=jnp.float32)
        + b_ref[...]
    )


# ----------------------------------------------------------------------------
# Pallas wrappers
# ----------------------------------------------------------------------------
def conv_matmul_stats(cols, w):
    """Tiled bf16 (cols @ w) with per-tile per-channel (sum, sumsq) partials."""
    m, k = cols.shape
    cout = w.shape[1]
    tm, m_pad = _pick_tile(m)
    if m_pad != m:
        # Zero rows contribute nothing to sum / sumsq; inv_m uses the real M.
        cols = jnp.pad(cols, ((0, m_pad - m), (0, 0)))
    n_tiles = m_pad // tm
    ce = pl.CostEstimate(
        flops=2 * m_pad * k * cout + 4 * m_pad * cout,
        transcendentals=0,
        bytes_accessed=(m_pad * k + k * cout + m_pad * cout) * 2
        + n_tiles * 2 * cout * 4,
    )
    return pl.pallas_call(
        _conv_stats_kernel,
        out_shape=(
            jax.ShapeDtypeStruct((m_pad, cout), _ACT_DTYPE),
            jax.ShapeDtypeStruct((n_tiles, 2, cout), jnp.float32),
        ),
        grid=(n_tiles,),
        in_specs=[
            pl.BlockSpec((tm, k), lambda i: (i, 0)),
            pl.BlockSpec((k, cout), lambda i: (0, 0)),
        ],
        out_specs=(
            pl.BlockSpec((tm, cout), lambda i: (i, 0)),
            pl.BlockSpec((None, 2, cout), lambda i: (i, 0, 0)),
        ),
        compiler_params=pltpu.CompilerParams(
            dimension_semantics=("parallel",),      # no resident accumulator
            vmem_limit_bytes=_vmem_limit_bytes(),
        ),
        cost_estimate=ce,
    )(cols, w)


def pallas_bn_lrelu(y, stats, gamma2d, beta2d, m_real):
    m_pad, cout = y.shape
    n_tiles = stats.shape[0]
    tm, _ = _pick_tile(m_pad)
    kernel = functools.partial(_bn_lrelu_kernel, inv_m=float(1.0 / m_real))
    return pl.pallas_call(
        kernel,
        out_shape=jax.ShapeDtypeStruct((m_pad, cout), _ACT_DTYPE),
        grid=(m_pad // tm,),
        in_specs=[
            pl.BlockSpec((tm, cout), lambda i: (i, 0)),
            pl.BlockSpec((n_tiles, 2, cout), lambda i: (0, 0, 0)),
            pl.BlockSpec((1, cout), lambda i: (0, 0)),
            pl.BlockSpec((1, cout), lambda i: (0, 0)),
        ],
        out_specs=pl.BlockSpec((tm, cout), lambda i: (i, 0)),
        compiler_params=pltpu.CompilerParams(
            dimension_semantics=("parallel",),
            vmem_limit_bytes=_vmem_limit_bytes(),
        ),
    )(y, stats, gamma2d, beta2d)


def pallas_matmul_bias(x, w, b2d):
    m, k = x.shape
    nout = w.shape[1]
    tm, m_pad = _pick_tile(m)
    if m_pad != m:
        x = jnp.pad(x, ((0, m_pad - m), (0, 0)))
    out = pl.pallas_call(
        _matmul_bias_kernel,
        out_shape=jax.ShapeDtypeStruct((m_pad, nout), jnp.float32),
        grid=(m_pad // tm,),
        in_specs=[
            pl.BlockSpec((tm, k), lambda i: (i, 0)),
            pl.BlockSpec((k, nout), lambda i: (0, 0)),
            pl.BlockSpec((1, nout), lambda i: (0, 0)),
        ],
        out_specs=pl.BlockSpec((tm, nout), lambda i: (i, 0)),
        compiler_params=pltpu.CompilerParams(
            dimension_semantics=("parallel",),
            vmem_limit_bytes=_vmem_limit_bytes(),
        ),
    )(x, w, b2d)
    return out[:m] if m_pad != m else out


# ----------------------------------------------------------------------------
# Glue: channel-last im2col for Conv2d(kernel=4, stride=2, padding=1)
# ----------------------------------------------------------------------------
def im2col_nhwc_k4s2p1(x):
    # x: [N, H, W, C] (bf16) -> patches [N*Ho*Wo, 16*C], feature order (kh,kw,c)
    n, h, w, c = x.shape
    ho, wo = h // 2, w // 2
    xp = jnp.pad(x, ((0, 0), (1, 1), (1, 1), (0, 0)))
    taps = []
    for kh in range(4):
        for kw in range(4):
            taps.append(xp[:, kh:kh + 2 * ho:2, kw:kw + 2 * wo:2, :])
    patches = jnp.stack(taps, axis=3)                # [N, Ho, Wo, 16, C] bf16
    return patches.reshape(n * ho * wo, 16 * c), (n, ho, wo)


# ----------------------------------------------------------------------------
# Parameters (PyTorch-layout), prep (matmul-ready), forward
# ----------------------------------------------------------------------------
def init_params(key, latent_dim, channel_num, w_multi):
    ks = jax.random.split(key, 12)
    n = lambda k, shape: 0.02 * jax.random.normal(k, shape, dtype=jnp.float32)
    W = w_multi
    return {
        # from_rgb (conv bias exists but cancels under batch-stat BN)
        "w1": n(ks[0], (W, channel_num, 4, 4)), "b1": jnp.zeros((W,), jnp.float32),
        "g1": n(ks[1], (W,)), "be1": jnp.zeros((W,), jnp.float32),
        # disc1..disc3 (bias=False)
        "w2": n(ks[2], (2 * W, W, 4, 4)),
        "g2": n(ks[3], (2 * W,)), "be2": jnp.zeros((2 * W,), jnp.float32),
        "w3": n(ks[4], (4 * W, 2 * W, 4, 4)),
        "g3": n(ks[5], (4 * W,)), "be3": jnp.zeros((4 * W,), jnp.float32),
        "w4": n(ks[6], (8 * W, 4 * W, 4, 4)),
        "g4": n(ks[7], (8 * W,)), "be4": jnp.zeros((8 * W,), jnp.float32),
        # linear heads: [latent_dim, 8W*4*4]
        "wmu": n(ks[8], (latent_dim, 8 * W * 4 * 4)),
        "bmu": jnp.zeros((latent_dim,), jnp.float32),
        "wls": n(ks[9], (latent_dim, 8 * W * 4 * 4)),
        "bls": jnp.zeros((latent_dim,), jnp.float32),
    }


def prepare_params(p, latent_dim):
    """One-time conversion to matmul-ready layout (done outside the forward)."""
    layers = []
    for wk, gk, bk in (("w1", "g1", "be1"), ("w2", "g2", "be2"),
                       ("w3", "g3", "be3"), ("w4", "g4", "be4")):
        w = p[wk]                                        # [Cout, Cin, 4, 4]
        cout, cin = int(w.shape[0]), int(w.shape[1])
        wm = jnp.transpose(w, (2, 3, 1, 0)).reshape(16 * cin, cout)  # (kh,kw,ci)
        layers.append({
            "w": wm.astype(_ACT_DTYPE),
            "gamma": p[gk].reshape(1, cout).astype(jnp.float32),
            "beta": p[bk].reshape(1, cout).astype(jnp.float32),
        })
    # Fused Linear heads.  nn.Flatten on NCHW gives feature order (c, h, w);
    # permute the weight rows to the NHWC flatten order (h, w, c) so the
    # forward flattens the 4x4 feature map with zero data movement.
    c4 = int(p["w4"].shape[0])
    two_l = 2 * latent_dim
    wh = jnp.concatenate([p["wmu"].T, p["wls"].T], axis=1)          # [c4*16, 2L]
    wh = wh.reshape(c4, 4, 4, two_l).transpose(1, 2, 0, 3).reshape(16 * c4, two_l)
    bh = jnp.concatenate([p["bmu"], p["bls"]]).reshape(1, two_l)
    return {"layers": layers,
            "w_heads": wh.astype(_ACT_DTYPE),
            "b_heads": bh.astype(jnp.float32)}
    # NOTE: p["b1"] is dropped on purpose — exact no-op before batch-stat BN.


def encoder_forward(prep, x, *, latent_dim):
    # x: [N, channel_num, 64, 64] (NCHW, matching the PyTorch module)
    x = jnp.transpose(x, (0, 2, 3, 1)).astype(_ACT_DTYPE)   # NHWC + bf16 once
    for layer in prep["layers"]:
        cols, (n, ho, wo) = im2col_nhwc_k4s2p1(x)            # bf16 patches
        m_real = n * ho * wo
        y, stats = conv_matmul_stats(cols, layer["w"])
        y = pallas_bn_lrelu(y, stats, layer["gamma"], layer["beta"], m_real)
        x = y[:m_real].reshape(n, ho, wo, -1)                # slice only if padded
    # Head weights are pre-permuted to NHWC flatten order: reshape is free.
    n, ho, wo, c = x.shape
    feat = x.reshape(n, ho * wo * c)
    out = pallas_matmul_bias(feat, prep["w_heads"], prep["b_heads"])
    mu = out[:, :latent_dim]
    log_sigma = out[:, latent_dim:2 * latent_dim]
    return mu, log_sigma


if __name__ == "__main__":
    latent_dim, channel_num, w_multi = 16, 3, 8
    batch = 2
    key = jax.random.PRNGKey(0)
    kp, kx = jax.random.split(key)

    params = init_params(kp, latent_dim, channel_num, w_multi)
    prep = prepare_params(params, latent_dim)

    # Spatial must be 64: four stride-2 convs -> 4x4 before Flatten/Linear.
    x = jax.random.normal(kx, (batch, channel_num, 64, 64), dtype=jnp.float32)

    fwd = jax.jit(functools.partial(encoder_forward, latent_dim=latent_dim))
    mu, log_sigma = fwd(prep, x)
    jax.block_until_ready((mu, log_sigma))

    assert mu.shape == (batch, latent_dim)
    assert log_sigma.shape == (batch, latent_dim)
    assert bool(jnp.isfinite(mu).all()) and bool(jnp.isfinite(log_sigma).all())
    print("KERNEL_OK")
</pallas_src>

<mosaic_0001>
module attributes {stable_mosaic.version = 11 : i64} {
  func.func @_conv_stats_kernel(%arg0: i32, %arg1: memref<1024x48xbf16, #tpu.memory_space<vmem>>, %arg2: memref<48x8xbf16, #tpu.memory_space<vmem>>, %arg3: memref<1024x8xbf16, #tpu.memory_space<vmem>>, %arg4: memref<1x2x8xf32, #tpu.memory_space<vmem>>) attributes {dimension_semantics = [#tpu.dimension_semantics<parallel>], iteration_bounds = array<i64: 2>, scalar_prefetch = 0 : i64, scratch_operands = 0 : i64, tpu.core_type = #tpu.core_type<tc>, window_params = [{transform_indices = @transform_0, window_bounds = array<i64: 1024, 48>}, {pipeline_mode = #tpu.pipeline_mode<synchronous>, transform_indices = @transform_1, window_bounds = array<i64: 48, 8>}, {transform_indices = @transform_2, window_bounds = array<i64: 1024, 8>}, {transform_indices = @transform_3, window_bounds = array<i64: 1, 2, 8>}]} {
    %c0 = arith.constant 0 : index
    %c0_0 = arith.constant 0 : index
    %0 = vector.load %arg1[%c0, %c0_0] : memref<1024x48xbf16, #tpu.memory_space<vmem>>, vector<1024x48xbf16>
    %c0_1 = arith.constant 0 : index
    %c0_2 = arith.constant 0 : index
    %1 = vector.load %arg2[%c0_1, %c0_2] : memref<48x8xbf16, #tpu.memory_space<vmem>>, vector<48x8xbf16>
    %cst = arith.constant dense<0.000000e+00> : vector<1024x8xf32>
    %2 = tpu.matmul %0, %1, %cst {dimension_numbers = #tpu.dot_dimension_numbers<[1], [0], [0], [1], [0, 0, 1, 1], [], []>} : vector<1024x48xbf16>, vector<48x8xbf16>, vector<1024x8xf32> -> vector<1024x8xf32>
    %3 = arith.truncf %2 : vector<1024x8xf32> to vector<1024x8xbf16>
    %c0_3 = arith.constant 0 : index
    %c0_4 = arith.constant 0 : index
    %4 = vector.load %arg3[%c0_3, %c0_4] : memref<1024x8xbf16, #tpu.memory_space<vmem>>, vector<1024x8xbf16>
    tpu.vector_store %arg3[%c0_3, %c0_4], %3 {strides = array<i32>} : memref<1024x8xbf16, #tpu.memory_space<vmem>>, vector<1024x8xbf16>,
    %cst_5 = arith.constant 1.000000e+00 : f32
    %5 = vector.broadcast %cst_5 : f32 to vector<1x1024xf32>
    %cst_6 = arith.constant dense<0.000000e+00> : vector<1x8xf32>
    %6 = tpu.matmul %5, %2, %cst_6 {dimension_numbers = #tpu.dot_dimension_numbers<[1], [0], [0], [1], [0, 0, 1, 1], [], []>} : vector<1x1024xf32>, vector<1024x8xf32>, vector<1x8xf32> -> vector<1x8xf32>
    %c0_7 = arith.constant 0 : index
    %c0_8 = arith.constant 0 : index
    %c0_9 = arith.constant 0 : index
    %7 = vector.load %arg4[%c0_7, %c0_8, %c0_9] : memref<1x2x8xf32, #tpu.memory_space<vmem>>, vector<1x1x8xf32>
    %8 = vector.shape_cast %7 : vector<1x1x8xf32> to vector<1x8xf32>
    %9 = vector.shape_cast %6 : vector<1x8xf32> to vector<1x1x8xf32>
    tpu.vector_store %arg4[%c0_7, %c0_8, %c0_9], %9 {strides = array<i32>} : memref<1x2x8xf32, #tpu.memory_space<vmem>>, vector<1x1x8xf32>,
    %10 = arith.mulf %2, %2 : vector<1024x8xf32>
    %cst_10 = arith.constant dense<0.000000e+00> : vector<1x8xf32>
    %11 = tpu.matmul %5, %10, %cst_10 {dimension_numbers = #tpu.dot_dimension_numbers<[1], [0], [0], [1], [0, 0, 1, 1], [], []>} : vector<1x1024xf32>, vector<1024x8xf32>, vector<1x8xf32> -> vector<1x8xf32>
    %c0_11 = arith.constant 0 : index
    %c1 = arith.constant 1 : index
    %c0_12 = arith.constant 0 : index
    %12 = vector.load %arg4[%c0_11, %c1, %c0_12] : memref<1x2x8xf32, #tpu.memory_space<vmem>>, vector<1x1x8xf32>
    %13 = vector.shape_cast %12 : vector<1x1x8xf32> to vector<1x8xf32>
    %14 = vector.shape_cast %11 : vector<1x8xf32> to vector<1x1x8xf32>
    tpu.vector_store %arg4[%c0_11, %c1, %c0_12], %14 {strides = array<i32>} : memref<1x2x8xf32, #tpu.memory_space<vmem>>, vector<1x1x8xf32>,
    return
  }
  func.func @transform_0(%arg0: i32) -> (i32, i32) {
    %c0_i32 = arith.constant 0 : i32
    %c0_i32_0 = arith.constant 0 : i32
    return %arg0, %c0_i32 : i32, i32
  }
  func.func @transform_1(%arg0: i32) -> (i32, i32) {
    %c0_i32 = arith.constant 0 : i32
    %c0_i32_0 = arith.constant 0 : i32
    %c0_i32_1 = arith.constant 0 : i32
    return %c0_i32, %c0_i32_0 : i32, i32
  }
  func.func @transform_2(%arg0: i32) -> (i32, i32) {
    %c0_i32 = arith.constant 0 : i32
    %c0_i32_0 = arith.constant 0 : i32
    return %arg0, %c0_i32 : i32, i32
  }
  func.func @transform_3(%arg0: i32) -> (i32, i32, i32) {
    %c0_i32 = arith.constant 0 : i32
    %c0_i32_0 = arith.constant 0 : i32
    %c0_i32_1 = arith.constant 0 : i32
    return %arg0, %c0_i32, %c0_i32_0 : i32, i32, i32
  }
}

module attributes {stable_mosaic.version = 11 : i64} {
  func.func @_bn_lrelu_kernel(%arg0: i32, %arg1: memref<1024x8xbf16, #tpu.memory_space<vmem>>, %arg2: memref<2x2x8xf32, #tpu.memory_space<vmem>>, %arg3: memref<1x8xf32, #tpu.memory_space<vmem>>, %arg4: memref<1x8xf32, #tpu.memory_space<vmem>>, %arg5: memref<1024x8xbf16, #tpu.memory_space<vmem>>) attributes {dimension_semantics = [#tpu.dimension_semantics<parallel>], iteration_bounds = array<i64: 2>, scalar_prefetch = 0 : i64, scratch_operands = 0 : i64, tpu.core_type = #tpu.core_type<tc>, window_params = [{transform_indices = @transform_0, window_bounds = array<i64: 1024, 8>}, {pipeline_mode = #tpu.pipeline_mode<synchronous>, transform_indices = @transform_1, window_bounds = array<i64: 2, 2, 8>}, {pipeline_mode = #tpu.pipeline_mode<synchronous>, transform_indices = @transform_2, window_bounds = array<i64: 1, 8>}, {pipeline_mode = #tpu.pipeline_mode<synchronous>, transform_indices = @transform_3, window_bounds = array<i64: 1, 8>}, {transform_indices = @transform_4, window_bounds = array<i64: 1024, 8>}]} {
    %c0 = arith.constant 0 : index
    %c0_0 = arith.constant 0 : index
    %c0_1 = arith.constant 0 : index
    %0 = vector.load %arg2[%c0, %c0_0, %c0_1] : memref<2x2x8xf32, #tpu.memory_space<vmem>>, vector<2x2x8xf32>
    %cst = arith.constant dense<0.000000e+00> : vector<2x8xf32>
    %1 = vector.multi_reduction <add>, %0, %cst [0] : vector<2x2x8xf32> to vector<2x8xf32>
    %2 = vector.extract_strided_slice %1 {offsets = [0, 0], sizes = [1, 8], strides = [1, 1]} : vector<2x8xf32> to vector<1x8xf32>
    %cst_2 = arith.constant 4.8828125E-4 : f32
    %3 = vector.broadcast %cst_2 : f32 to vector<1x8xf32>
    %4 = arith.mulf %2, %3 : vector<1x8xf32>
    %5 = vector.extract_strided_slice %1 {offsets = [1, 0], sizes = [1, 8], strides = [1, 1]} : vector<2x8xf32> to vector<1x8xf32>
    %cst_3 = arith.constant 4.8828125E-4 : f32
    %6 = vector.broadcast %cst_3 : f32 to vector<1x8xf32>
    %7 = arith.mulf %5, %6 : vector<1x8xf32>
    %8 = arith.mulf %4, %4 : vector<1x8xf32>
    %9 = arith.subf %7, %8 : vector<1x8xf32>
    %cst_4 = arith.constant 0.000000e+00 : f32
    %10 = vector.broadcast %cst_4 : f32 to vector<1x8xf32>
    %11 = arith.maximumf %9, %10 : vector<1x8xf32>
    %c0_5 = arith.constant 0 : index
    %c0_6 = arith.constant 0 : index
    %12 = vector.load %arg3[%c0_5, %c0_6] : memref<1x8xf32, #tpu.memory_space<vmem>>, vector<1x8xf32>
    %cst_7 = arith.constant 9.99999974E-6 : f32
    %13 = vector.broadcast %cst_7 : f32 to vector<1x8xf32>
    %14 = arith.addf %11, %13 : vector<1x8xf32>
    %15 = math.rsqrt %14 : vector<1x8xf32>
    %16 = arith.mulf %12, %15 : vector<1x8xf32>
    %c0_8 = arith.constant 0 : index
    %c0_9 = arith.constant 0 : index
    %17 = vector.load %arg4[%c0_8, %c0_9] : memref<1x8xf32, #tpu.memory_space<vmem>>, vector<1x8xf32>
    %18 = arith.mulf %4, %16 : vector<1x8xf32>
    %19 = arith.subf %17, %18 : vector<1x8xf32>
    %c0_10 = arith.constant 0 : index
    %c0_11 = arith.constant 0 : index
    %20 = vector.load %arg1[%c0_10, %c0_11] : memref<1024x8xbf16, #tpu.memory_space<vmem>>, vector<1024x8xbf16>
    %21 = arith.extf %20 : vector<1024x8xbf16> to vector<1024x8xf32>
    %22 = vector.broadcast %16 : vector<1x8xf32> to vector<1024x8xf32>
    %23 = arith.mulf %21, %22 : vector<1024x8xf32>
    %24 = vector.broadcast %19 : vector<1x8xf32> to vector<1024x8xf32>
    %25 = arith.addf %23, %24 : vector<1024x8xf32>
    %cst_12 = arith.constant 0.00999999977 : f32
    %26 = vector.broadcast %cst_12 : f32 to vector<1024x8xf32>
    %27 = arith.mulf %26, %25 : vector<1024x8xf32>
    %28 = arith.maximumf %25, %27 : vector<1024x8xf32>
    %29 = arith.truncf %28 : vector<1024x8xf32> to vector<1024x8xbf16>
    %c0_13 = arith.constant 0 : index
    %c0_14 = arith.constant 0 : index
    %30 = vector.load %arg5[%c0_13, %c0_14] : memref<1024x8xbf16, #tpu.memory_space<vmem>>, vector<1024x8xbf16>
    tpu.vector_store %arg5[%c0_13, %c0_14], %29 {strides = array<i32>} : memref<1024x8xbf16, #tpu.memory_space<vmem>>, vector<1024x8xbf16>,
    return
  }
  func.func @transform_0(%arg0: i32) -> (i32, i32) {
    %c0_i32 = arith.constant 0 : i32
    %c0_i32_0 = arith.constant 0 : i32
    return %arg0, %c0_i32 : i32, i32
  }
  func.func @transform_1(%arg0: i32) -> (i32, i32, i32) {
    %c0_i32 = arith.constant 0 : i32
    %c0_i32_0 = arith.constant 0 : i32
    %c0_i32_1 = arith.constant 0 : i32
    %c0_i32_2 = arith.constant 0 : i32
    return %c0_i32, %c0_i32_0, %c0_i32_1 : i32, i32, i32
  }
  func.func @transform_2(%arg0: i32) -> (i32, i32) {
    %c0_i32 = arith.constant 0 : i32
    %c0_i32_0 = arith.constant 0 : i32
    %c0_i32_1 = arith.constant 0 : i32
    return %c0_i32, %c0_i32_0 : i32, i32
  }
  func.func @transform_3(%arg0: i32) -> (i32, i32) {
    %c0_i32 = arith.constant 0 : i32
    %c0_i32_0 = arith.constant 0 : i32
    %c0_i32_1 = arith.constant 0 : i32
    return %c0_i32, %c0_i32_0 : i32, i32
  }
  func.func @transform_4(%arg0: i32) -> (i32, i32) {
    %c0_i32 = arith.constant 0 : i32
    %c0_i32_0 = arith.constant 0 : i32
    return %arg0, %c0_i32 : i32, i32
  }
}

module attributes {stable_mosaic.version = 11 : i64} {
  func.func @_conv_stats_kernel(%arg0: i32, %arg1: memref<512x128xbf16, #tpu.memory_space<vmem>>, %arg2: memref<128x16xbf16, #tpu.memory_space<vmem>>, %arg3: memref<512x16xbf16, #tpu.memory_space<vmem>>, %arg4: memref<1x2x16xf32, #tpu.memory_space<vmem>>) attributes {dimension_semantics = [#tpu.dimension_semantics<parallel>], iteration_bounds = array<i64: 1>, scalar_prefetch = 0 : i64, scratch_operands = 0 : i64, tpu.core_type = #tpu.core_type<tc>, window_params = [{transform_indices = @transform_0, window_bounds = array<i64: 512, 128>}, {pipeline_mode = #tpu.pipeline_mode<synchronous>, transform_indices = @transform_1, window_bounds = array<i64: 128, 16>}, {transform_indices = @transform_2, window_bounds = array<i64: 512, 16>}, {transform_indices = @transform_3, window_bounds = array<i64: 1, 2, 16>}]} {
    %c0 = arith.constant 0 : index
    %c0_0 = arith.constant 0 : index
    %0 = vector.load %arg1[%c0, %c0_0] : memref<512x128xbf16, #tpu.memory_space<vmem>>, vector<512x128xbf16>
    %c0_1 = arith.constant 0 : index
    %c0_2 = arith.constant 0 : index
    %1 = vector.load %arg2[%c0_1, %c0_2] : memref<128x16xbf16, #tpu.memory_space<vmem>>, vector<128x16xbf16>
    %cst = arith.constant dense<0.000000e+00> : vector<512x16xf32>
    %2 = tpu.matmul %0, %1, %cst {dimension_numbers = #tpu.dot_dimension_numbers<[1], [0], [0], [1], [0, 0, 1, 1], [], []>} : vector<512x128xbf16>, vector<128x16xbf16>, vector<512x16xf32> -> vector<512x16xf32>
    %3 = arith.truncf %2 : vector<512x16xf32> to vector<512x16xbf16>
    %c0_3 = arith.constant 0 : index
    %c0_4 = arith.constant 0 : index
    %4 = vector.load %arg3[%c0_3, %c0_4] : memref<512x16xbf16, #tpu.memory_space<vmem>>, vector<512x16xbf16>
    tpu.vector_store %arg3[%c0_3, %c0_4], %3 {strides = array<i32>} : memref<512x16xbf16, #tpu.memory_space<vmem>>, vector<512x16xbf16>,
    %cst_5 = arith.constant 1.000000e+00 : f32
    %5 = vector.broadcast %cst_5 : f32 to vector<1x512xf32>
    %cst_6 = arith.constant dense<0.000000e+00> : vector<1x16xf32>
    %6 = tpu.matmul %5, %2, %cst_6 {dimension_numbers = #tpu.dot_dimension_numbers<[1], [0], [0], [1], [0, 0, 1, 1], [], []>} : vector<1x512xf32>, vector<512x16xf32>, vector<1x16xf32> -> vector<1x16xf32>
    %c0_7 = arith.constant 0 : index
    %c0_8 = arith.constant 0 : index
    %c0_9 = arith.constant 0 : index
    %7 = vector.load %arg4[%c0_7, %c0_8, %c0_9] : memref<1x2x16xf32, #tpu.memory_space<vmem>>, vector<1x1x16xf32>
    %8 = vector.shape_cast %7 : vector<1x1x16xf32> to vector<1x16xf32>
    %9 = vector.shape_cast %6 : vector<1x16xf32> to vector<1x1x16xf32>
    tpu.vector_store %arg4[%c0_7, %c0_8, %c0_9], %9 {strides = array<i32>} : memref<1x2x16xf32, #tpu.memory_space<vmem>>, vector<1x1x16xf32>,
    %10 = arith.mulf %2, %2 : vector<512x16xf32>
    %cst_10 = arith.constant dense<0.000000e+00> : vector<1x16xf32>
    %11 = tpu.matmul %5, %10, %cst_10 {dimension_numbers = #tpu.dot_dimension_numbers<[1], [0], [0], [1], [0, 0, 1, 1], [], []>} : vector<1x512xf32>, vector<512x16xf32>, vector<1x16xf32> -> vector<1x16xf32>
    %c0_11 = arith.constant 0 : index
    %c1 = arith.constant 1 : index
    %c0_12 = arith.constant 0 : index
    %12 = vector.load %arg4[%c0_11, %c1, %c0_12] : memref<1x2x16xf32, #tpu.memory_space<vmem>>, vector<1x1x16xf32>
    %13 = vector.shape_cast %12 : vector<1x1x16xf32> to vector<1x16xf32>
    %14 = vector.shape_cast %11 : vector<1x16xf32> to vector<1x1x16xf32>
    tpu.vector_store %arg4[%c0_11, %c1, %c0_12], %14 {strides = array<i32>} : memref<1x2x16xf32, #tpu.memory_space<vmem>>, vector<1x1x16xf32>,
    return
  }
  func.func @transform_0(%arg0: i32) -> (i32, i32) {
    %c0_i32 = arith.constant 0 : i32
    %c0_i32_0 = arith.constant 0 : i32
    return %arg0, %c0_i32 : i32, i32
  }
  func.func @transform_1(%arg0: i32) -> (i32, i32) {
    %c0_i32 = arith.constant 0 : i32
    %c0_i32_0 = arith.constant 0 : i32
    %c0_i32_1 = arith.constant 0 : i32
    return %c0_i32, %c0_i32_0 : i32, i32
  }
  func.func @transform_2(%arg0: i32) -> (i32, i32) {
    %c0_i32 = arith.constant 0 : i32
    %c0_i32_0 = arith.constant 0 : i32
    return %arg0, %c0_i32 : i32, i32
  }
  func.func @transform_3(%arg0: i32) -> (i32, i32, i32) {
    %c0_i32 = arith.constant 0 : i32
    %c0_i32_0 = arith.constant 0 : i32
    %c0_i32_1 = arith.constant 0 : i32
    return %arg0, %c0_i32, %c0_i32_0 : i32, i32, i32
  }
}

module attributes {stable_mosaic.version = 11 : i64} {
  func.func @_bn_lrelu_kernel(%arg0: i32, %arg1: memref<512x16xbf16, #tpu.memory_space<vmem>>, %arg2: memref<1x2x16xf32, #tpu.memory_space<vmem>>, %arg3: memref<1x16xf32, #tpu.memory_space<vmem>>, %arg4: memref<1x16xf32, #tpu.memory_space<vmem>>, %arg5: memref<512x16xbf16, #tpu.memory_space<vmem>>) attributes {dimension_semantics = [#tpu.dimension_semantics<parallel>], iteration_bounds = array<i64: 1>, scalar_prefetch = 0 : i64, scratch_operands = 0 : i64, tpu.core_type = #tpu.core_type<tc>, window_params = [{transform_indices = @transform_0, window_bounds = array<i64: 512, 16>}, {pipeline_mode = #tpu.pipeline_mode<synchronous>, transform_indices = @transform_1, window_bounds = array<i64: 1, 2, 16>}, {pipeline_mode = #tpu.pipeline_mode<synchronous>, transform_indices = @transform_2, window_bounds = array<i64: 1, 16>}, {pipeline_mode = #tpu.pipeline_mode<synchronous>, transform_indices = @transform_3, window_bounds = array<i64: 1, 16>}, {transform_indices = @transform_4, window_bounds = array<i64: 512, 16>}]} {
    %c0 = arith.constant 0 : index
    %c0_0 = arith.constant 0 : index
    %c0_1 = arith.constant 0 : index
    %0 = vector.load %arg2[%c0, %c0_0, %c0_1] : memref<1x2x16xf32, #tpu.memory_space<vmem>>, vector<1x2x16xf32>
    %cst = arith.constant dense<0.000000e+00> : vector<2x16xf32>
    %1 = vector.multi_reduction <add>, %0, %cst [0] : vector<1x2x16xf32> to vector<2x16xf32>
    %2 = vector.extract_strided_slice %1 {offsets = [0, 0], sizes = [1, 16], strides = [1, 1]} : vector<2x16xf32> to vector<1x16xf32>
    %cst_2 = arith.constant 0.001953125 : f32
    %3 = vector.broadcast %cst_2 : f32 to vector<1x16xf32>
    %4 = arith.mulf %2, %3 : vector<1x16xf32>
    %5 = vector.extract_strided_slice %1 {offsets = [1, 0], sizes = [1, 16], strides = [1, 1]} : vector<2x16xf32> to vector<1x16xf32>
    %cst_3 = arith.constant 0.001953125 : f32
    %6 = vector.broadcast %cst_3 : f32 to vector<1x16xf32>
    %7 = arith.mulf %5, %6 : vector<1x16xf32>
    %8 = arith.mulf %4, %4 : vector<1x16xf32>
    %9 = arith.subf %7, %8 : vector<1x16xf32>
    %cst_4 = arith.constant 0.000000e+00 : f32
    %10 = vector.broadcast %cst_4 : f32 to vector<1x16xf32>
    %11 = arith.maximumf %9, %10 : vector<1x16xf32>
    %c0_5 = arith.constant 0 : index
    %c0_6 = arith.constant 0 : index
    %12 = vector.load %arg3[%c0_5, %c0_6] : memref<1x16xf32, #tpu.memory_space<vmem>>, vector<1x16xf32>
    %cst_7 = arith.constant 9.99999974E-6 : f32
    %13 = vector.broadcast %cst_7 : f32 to vector<1x16xf32>
    %14 = arith.addf %11, %13 : vector<1x16xf32>
    %15 = math.rsqrt %14 : vector<1x16xf32>
    %16 = arith.mulf %12, %15 : vector<1x16xf32>
    %c0_8 = arith.constant 0 : index
    %c0_9 = arith.constant 0 : index
    %17 = vector.load %arg4[%c0_8, %c0_9] : memref<1x16xf32, #tpu.memory_space<vmem>>, vector<1x16xf32>
    %18 = arith.mulf %4, %16 : vector<1x16xf32>
    %19 = arith.subf %17, %18 : vector<1x16xf32>
    %c0_10 = arith.constant 0 : index
    %c0_11 = arith.constant 0 : index
    %20 = vector.load %arg1[%c0_10, %c0_11] : memref<512x16xbf16, #tpu.memory_space<vmem>>, vector<512x16xbf16>
    %21 = arith.extf %20 : vector<512x16xbf16> to vector<512x16xf32>
    %22 = vector.broadcast %16 : vector<1x16xf32> to vector<512x16xf32>
    %23 = arith.mulf %21, %22 : vector<512x16xf32>
    %24 = vector.broadcast %19 : vector<1x16xf32> to vector<512x16xf32>
    %25 = arith.addf %23, %24 : vector<512x16xf32>
    %cst_12 = arith.constant 0.00999999977 : f32
    %26 = vector.broadcast %cst_12 : f32 to vector<512x16xf32>
    %27 = arith.mulf %26, %25 : vector<512x16xf32>
    %28 = arith.maximumf %25, %27 : vector<512x16xf32>
    %29 = arith.truncf %28 : vector<512x16xf32> to vector<512x16xbf16>
    %c0_13 = arith.constant 0 : index
    %c0_14 = arith.constant 0 : index
    %30 = vector.load %arg5[%c0_13, %c0_14] : memref<512x16xbf16, #tpu.memory_space<vmem>>, vector<512x16xbf16>
    tpu.vector_store %arg5[%c0_13, %c0_14], %29 {strides = array<i32>} : memref<512x16xbf16, #tpu.memory_space<vmem>>, vector<512x16xbf16>,
    return
  }
  func.func @transform_0(%arg0: i32) -> (i32, i32) {
    %c0_i32 = arith.constant 0 : i32
    %c0_i32_0 = arith.constant 0 : i32
    return %arg0, %c0_i32 : i32, i32
  }
  func.func @transform_1(%arg0: i32) -> (i32, i32, i32) {
    %c0_i32 = arith.constant 0 : i32
    %c0_i32_0 = arith.constant 0 : i32
    %c0_i32_1 = arith.constant 0 : i32
    %c0_i32_2 = arith.constant 0 : i32
    return %c0_i32, %c0_i32_0, %c0_i32_1 : i32, i32, i32
  }
  func.func @transform_2(%arg0: i32) -> (i32, i32) {
    %c0_i32 = arith.constant 0 : i32
    %c0_i32_0 = arith.constant 0 : i32
    %c0_i32_1 = arith.constant 0 : i32
    return %c0_i32, %c0_i32_0 : i32, i32
  }
  func.func @transform_3(%arg0: i32) -> (i32, i32) {
    %c0_i32 = arith.constant 0 : i32
    %c0_i32_0 = arith.constant 0 : i32
    %c0_i32_1 = arith.constant 0 : i32
    return %c0_i32, %c0_i32_0 : i32, i32
  }
  func.func @transform_4(%arg0: i32) -> (i32, i32) {
    %c0_i32 = arith.constant 0 : i32
    %c0_i32_0 = arith.constant 0 : i32
    return %arg0, %c0_i32 : i32, i32
  }
}

module attributes {stable_mosaic.version = 11 : i64} {
  func.func @_conv_stats_kernel(%arg0: i32, %arg1: memref<128x256xbf16, #tpu.memory_space<vmem>>, %arg2: memref<256x32xbf16, #tpu.memory_space<vmem>>, %arg3: memref<128x32xbf16, #tpu.memory_space<vmem>>, %arg4: memref<1x2x32xf32, #tpu.memory_space<vmem>>) attributes {dimension_semantics = [#tpu.dimension_semantics<parallel>], iteration_bounds = array<i64: 1>, scalar_prefetch = 0 : i64, scratch_operands = 0 : i64, tpu.core_type = #tpu.core_type<tc>, window_params = [{transform_indices = @transform_0, window_bounds = array<i64: 128, 256>}, {pipeline_mode = #tpu.pipeline_mode<synchronous>, transform_indices = @transform_1, window_bounds = array<i64: 256, 32>}, {transform_indices = @transform_2, window_bounds = array<i64: 128, 32>}, {transform_indices = @transform_3, window_bounds = array<i64: 1, 2, 32>}]} {
    %c0 = arith.constant 0 : index
    %c0_0 = arith.constant 0 : index
    %0 = vector.load %arg1[%c0, %c0_0] : memref<128x256xbf16, #tpu.memory_space<vmem>>, vector<128x256xbf16>
    %c0_1 = arith.constant 0 : index
    %c0_2 = arith.constant 0 : index
    %1 = vector.load %arg2[%c0_1, %c0_2] : memref<256x32xbf16, #tpu.memory_space<vmem>>, vector<256x32xbf16>
    %cst = arith.constant dense<0.000000e+00> : vector<128x32xf32>
    %2 = tpu.matmul %0, %1, %cst {dimension_numbers = #tpu.dot_dimension_numbers<[1], [0], [0], [1], [0, 0, 1, 1], [], []>} : vector<128x256xbf16>, vector<256x32xbf16>, vector<128x32xf32> -> vector<128x32xf32>
    %3 = arith.truncf %2 : vector<128x32xf32> to vector<128x32xbf16>
    %c0_3 = arith.constant 0 : index
    %c0_4 = arith.constant 0 : index
    %4 = vector.load %arg3[%c0_3, %c0_4] : memref<128x32xbf16, #tpu.memory_space<vmem>>, vector<128x32xbf16>
    tpu.vector_store %arg3[%c0_3, %c0_4], %3 {strides = array<i32>} : memref<128x32xbf16, #tpu.memory_space<vmem>>, vector<128x32xbf16>,
    %cst_5 = arith.constant 1.000000e+00 : f32
    %5 = vector.broadcast %cst_5 : f32 to vector<1x128xf32>
    %cst_6 = arith.constant dense<0.000000e+00> : vector<1x32xf32>
    %6 = tpu.matmul %5, %2, %cst_6 {dimension_numbers = #tpu.dot_dimension_numbers<[1], [0], [0], [1], [0, 0, 1, 1], [], []>} : vector<1x128xf32>, vector<128x32xf32>, vector<1x32xf32> -> vector<1x32xf32>
    %c0_7 = arith.constant 0 : index
    %c0_8 = arith.constant 0 : index
    %c0_9 = arith.constant 0 : index
    %7 = vector.load %arg4[%c0_7, %c0_8, %c0_9] : memref<1x2x32xf32, #tpu.memory_space<vmem>>, vector<1x1x32xf32>
    %8 = vector.shape_cast %7 : vector<1x1x32xf32> to vector<1x32xf32>
    %9 = vector.shape_cast %6 : vector<1x32xf32> to vector<1x1x32xf32>
    tpu.vector_store %arg4[%c0_7, %c0_8, %c0_9], %9 {strides = array<i32>} : memref<1x2x32xf32, #tpu.memory_space<vmem>>, vector<1x1x32xf32>,
    %10 = arith.mulf %2, %2 : vector<128x32xf32>
    %cst_10 = arith.constant dense<0.000000e+00> : vector<1x32xf32>
    %11 = tpu.matmul %5, %10, %cst_10 {dimension_numbers = #tpu.dot_dimension_numbers<[1], [0], [0], [1], [0, 0, 1, 1], [], []>} : vector<1x128xf32>, vector<128x32xf32>, vector<1x32xf32> -> vector<1x32xf32>
    %c0_11 = arith.constant 0 : index
    %c1 = arith.constant 1 : index
    %c0_12 = arith.constant 0 : index
    %12 = vector.load %arg4[%c0_11, %c1, %c0_12] : memref<1x2x32xf32, #tpu.memory_space<vmem>>, vector<1x1x32xf32>
    %13 = vector.shape_cast %12 : vector<1x1x32xf32> to vector<1x32xf32>
    %14 = vector.shape_cast %11 : vector<1x32xf32> to vector<1x1x32xf32>
    tpu.vector_store %arg4[%c0_11, %c1, %c0_12], %14 {strides = array<i32>} : memref<1x2x32xf32, #tpu.memory_space<vmem>>, vector<1x1x32xf32>,
    return
  }
  func.func @transform_0(%arg0: i32) -> (i32, i32) {
    %c0_i32 = arith.constant 0 : i32
    %c0_i32_0 = arith.constant 0 : i32
    return %arg0, %c0_i32 : i32, i32
  }
  func.func @transform_1(%arg0: i32) -> (i32, i32) {
    %c0_i32 = arith.constant 0 : i32
    %c0_i32_0 = arith.constant 0 : i32
    %c0_i32_1 = arith.constant 0 : i32
    return %c0_i32, %c0_i32_0 : i32, i32
  }
  func.func @transform_2(%arg0: i32) -> (i32, i32) {
    %c0_i32 = arith.constant 0 : i32
    %c0_i32_0 = arith.constant 0 : i32
    return %arg0, %c0_i32 : i32, i32
  }
  func.func @transform_3(%arg0: i32) -> (i32, i32, i32) {
    %c0_i32 = arith.constant 0 : i32
    %c0_i32_0 = arith.constant 0 : i32
    %c0_i32_1 = arith.constant 0 : i32
    return %arg0, %c0_i32, %c0_i32_0 : i32, i32, i32
  }
}

module attributes {stable_mosaic.version = 11 : i64} {
  func.func @_bn_lrelu_kernel(%arg0: i32, %arg1: memref<128x32xbf16, #tpu.memory_space<vmem>>, %arg2: memref<1x2x32xf32, #tpu.memory_space<vmem>>, %arg3: memref<1x32xf32, #tpu.memory_space<vmem>>, %arg4: memref<1x32xf32, #tpu.memory_space<vmem>>, %arg5: memref<128x32xbf16, #tpu.memory_space<vmem>>) attributes {dimension_semantics = [#tpu.dimension_semantics<parallel>], iteration_bounds = array<i64: 1>, scalar_prefetch = 0 : i64, scratch_operands = 0 : i64, tpu.core_type = #tpu.core_type<tc>, window_params = [{transform_indices = @transform_0, window_bounds = array<i64: 128, 32>}, {pipeline_mode = #tpu.pipeline_mode<synchronous>, transform_indices = @transform_1, window_bounds = array<i64: 1, 2, 32>}, {pipeline_mode = #tpu.pipeline_mode<synchronous>, transform_indices = @transform_2, window_bounds = array<i64: 1, 32>}, {pipeline_mode = #tpu.pipeline_mode<synchronous>, transform_indices = @transform_3, window_bounds = array<i64: 1, 32>}, {transform_indices = @transform_4, window_bounds = array<i64: 128, 32>}]} {
    %c0 = arith.constant 0 : index
    %c0_0 = arith.constant 0 : index
    %c0_1 = arith.constant 0 : index
    %0 = vector.load %arg2[%c0, %c0_0, %c0_1] : memref<1x2x32xf32, #tpu.memory_space<vmem>>, vector<1x2x32xf32>
    %cst = arith.constant dense<0.000000e+00> : vector<2x32xf32>
    %1 = vector.multi_reduction <add>, %0, %cst [0] : vector<1x2x32xf32> to vector<2x32xf32>
    %2 = vector.extract_strided_slice %1 {offsets = [0, 0], sizes = [1, 32], strides = [1, 1]} : vector<2x32xf32> to vector<1x32xf32>
    %cst_2 = arith.constant 7.812500e-03 : f32
    %3 = vector.broadcast %cst_2 : f32 to vector<1x32xf32>
    %4 = arith.mulf %2, %3 : vector<1x32xf32>
    %5 = vector.extract_strided_slice %1 {offsets = [1, 0], sizes = [1, 32], strides = [1, 1]} : vector<2x32xf32> to vector<1x32xf32>
    %cst_3 = arith.constant 7.812500e-03 : f32
    %6 = vector.broadcast %cst_3 : f32 to vector<1x32xf32>
    %7 = arith.mulf %5, %6 : vector<1x32xf32>
    %8 = arith.mulf %4, %4 : vector<1x32xf32>
    %9 = arith.subf %7, %8 : vector<1x32xf32>
    %cst_4 = arith.constant 0.000000e+00 : f32
    %10 = vector.broadcast %cst_4 : f32 to vector<1x32xf32>
    %11 = arith.maximumf %9, %10 : vector<1x32xf32>
    %c0_5 = arith.constant 0 : index
    %c0_6 = arith.constant 0 : index
    %12 = vector.load %arg3[%c0_5, %c0_6] : memref<1x32xf32, #tpu.memory_space<vmem>>, vector<1x32xf32>
    %cst_7 = arith.constant 9.99999974E-6 : f32
    %13 = vector.broadcast %cst_7 : f32 to vector<1x32xf32>
    %14 = arith.addf %11, %13 : vector<1x32xf32>
    %15 = math.rsqrt %14 : vector<1x32xf32>
    %16 = arith.mulf %12, %15 : vector<1x32xf32>
    %c0_8 = arith.constant 0 : index
    %c0_9 = arith.constant 0 : index
    %17 = vector.load %arg4[%c0_8, %c0_9] : memref<1x32xf32, #tpu.memory_space<vmem>>, vector<1x32xf32>
    %18 = arith.mulf %4, %16 : vector<1x32xf32>
    %19 = arith.subf %17, %18 : vector<1x32xf32>
    %c0_10 = arith.constant 0 : index
    %c0_11 = arith.constant 0 : index
    %20 = vector.load %arg1[%c0_10, %c0_11] : memref<128x32xbf16, #tpu.memory_space<vmem>>, vector<128x32xbf16>
    %21 = arith.extf %20 : vector<128x32xbf16> to vector<128x32xf32>
    %22 = vector.broadcast %16 : vector<1x32xf32> to vector<128x32xf32>
    %23 = arith.mulf %21, %22 : vector<128x32xf32>
    %24 = vector.broadcast %19 : vector<1x32xf32> to vector<128x32xf32>
    %25 = arith.addf %23, %24 : vector<128x32xf32>
    %cst_12 = arith.constant 0.00999999977 : f32
    %26 = vector.broadcast %cst_12 : f32 to vector<128x32xf32>
    %27 = arith.mulf %26, %25 : vector<128x32xf32>
    %28 = arith.maximumf %25, %27 : vector<128x32xf32>
    %29 = arith.truncf %28 : vector<128x32xf32> to vector<128x32xbf16>
    %c0_13 = arith.constant 0 : index
    %c0_14 = arith.constant 0 : index
    %30 = vector.load %arg5[%c0_13, %c0_14] : memref<128x32xbf16, #tpu.memory_space<vmem>>, vector<128x32xbf16>
    tpu.vector_store %arg5[%c0_13, %c0_14], %29 {strides = array<i32>} : memref<128x32xbf16, #tpu.memory_space<vmem>>, vector<128x32xbf16>,
    return
  }
  func.func @transform_0(%arg0: i32) -> (i32, i32) {
    %c0_i32 = arith.constant 0 : i32
    %c0_i32_0 = arith.constant 0 : i32
    return %arg0, %c0_i32 : i32, i32
  }
  func.func @transform_1(%arg0: i32) -> (i32, i32, i32) {
    %c0_i32 = arith.constant 0 : i32
    %c0_i32_0 = arith.constant 0 : i32
    %c0_i32_1 = arith.constant 0 : i32
    %c0_i32_2 = arith.constant 0 : i32
    return %c0_i32, %c0_i32_0, %c0_i32_1 : i32, i32, i32
  }
  func.func @transform_2(%arg0: i32) -> (i32, i32) {
    %c0_i32 = arith.constant 0 : i32
    %c0_i32_0 = arith.constant 0 : i32
    %c0_i32_1 = arith.constant 0 : i32
    return %c0_i32, %c0_i32_0 : i32, i32
  }
  func.func @transform_3(%arg0: i32) -> (i32, i32) {
    %c0_i32 = arith.constant 0 : i32
    %c0_i32_0 = arith.constant 0 : i32
    %c0_i32_1 = arith.constant 0 : i32
    return %c0_i32, %c0_i32_0 : i32, i32
  }
  func.func @transform_4(%arg0: i32) -> (i32, i32) {
    %c0_i32 = arith.constant 0 : i32
    %c0_i32_0 = arith.constant 0 : i32
    return %arg0, %c0_i32 : i32, i32
  }
}

module attributes {stable_mosaic.version = 11 : i64} {
  func.func @_bn_lrelu_kernel(%arg0: i32, %arg1: memref<32x64xbf16, #tpu.memory_space<vmem>>, %arg2: memref<1x2x64xf32, #tpu.memory_space<vmem>>, %arg3: memref<1x64xf32, #tpu.memory_space<vmem>>, %arg4: memref<1x64xf32, #tpu.memory_space<vmem>>, %arg5: memref<32x64xbf16, #tpu.memory_space<vmem>>) attributes {dimension_semantics = [#tpu.dimension_semantics<parallel>], iteration_bounds = array<i64: 1>, scalar_prefetch = 0 : i64, scratch_operands = 0 : i64, tpu.core_type = #tpu.core_type<tc>, window_params = [{transform_indices = @transform_0, window_bounds = array<i64: 32, 64>}, {pipeline_mode = #tpu.pipeline_mode<synchronous>, transform_indices = @transform_1, window_bounds = array<i64: 1, 2, 64>}, {pipeline_mode = #tpu.pipeline_mode<synchronous>, transform_indices = @transform_2, window_bounds = array<i64: 1, 64>}, {pipeline_mode = #tpu.pipeline_mode<synchronous>, transform_indices = @transform_3, window_bounds = array<i64: 1, 64>}, {transform_indices = @transform_4, window_bounds = array<i64: 32, 64>}]} {
    %c0 = arith.constant 0 : index
    %c0_0 = arith.constant 0 : index
    %c0_1 = arith.constant 0 : index
    %0 = vector.load %arg2[%c0, %c0_0, %c0_1] : memref<1x2x64xf32, #tpu.memory_space<vmem>>, vector<1x2x64xf32>
    %cst = arith.constant dense<0.000000e+00> : vector<2x64xf32>
    %1 = vector.multi_reduction <add>, %0, %cst [0] : vector<1x2x64xf32> to vector<2x64xf32>
    %2 = vector.extract_strided_slice %1 {offsets = [0, 0], sizes = [1, 64], strides = [1, 1]} : vector<2x64xf32> to vector<1x64xf32>
    %cst_2 = arith.constant 3.125000e-02 : f32
    %3 = vector.broadcast %cst_2 : f32 to vector<1x64xf32>
    %4 = arith.mulf %2, %3 : vector<1x64xf32>
    %5 = vector.extract_strided_slice %1 {offsets = [1, 0], sizes = [1, 64], strides = [1, 1]} : vector<2x64xf32> to vector<1x64xf32>
    %cst_3 = arith.constant 3.125000e-02 : f32
    %6 = vector.broadcast %cst_3 : f32 to vector<1x64xf32>
    %7 = arith.mulf %5, %6 : vector<1x64xf32>
    %8 = arith.mulf %4, %4 : vector<1x64xf32>
    %9 = arith.subf %7, %8 : vector<1x64xf32>
    %cst_4 = arith.constant 0.000000e+00 : f32
    %10 = vector.broadcast %cst_4 : f32 to vector<1x64xf32>
    %11 = arith.maximumf %9, %10 : vector<1x64xf32>
    %c0_5 = arith.constant 0 : index
    %c0_6 = arith.constant 0 : index
    %12 = vector.load %arg3[%c0_5, %c0_6] : memref<1x64xf32, #tpu.memory_space<vmem>>, vector<1x64xf32>
    %cst_7 = arith.constant 9.99999974E-6 : f32
    %13 = vector.broadcast %cst_7 : f32 to vector<1x64xf32>
    %14 = arith.addf %11, %13 : vector<1x64xf32>
    %15 = math.rsqrt %14 : vector<1x64xf32>
    %16 = arith.mulf %12, %15 : vector<1x64xf32>
    %c0_8 = arith.constant 0 : index
    %c0_9 = arith.constant 0 : index
    %17 = vector.load %arg4[%c0_8, %c0_9] : memref<1x64xf32, #tpu.memory_space<vmem>>, vector<1x64xf32>
    %18 = arith.mulf %4, %16 : vector<1x64xf32>
    %19 = arith.subf %17, %18 : vector<1x64xf32>
    %c0_10 = arith.constant 0 : index
    %c0_11 = arith.constant 0 : index
    %20 = vector.load %arg1[%c0_10, %c0_11] : memref<32x64xbf16, #tpu.memory_space<vmem>>, vector<32x64xbf16>
    %21 = arith.extf %20 : vector<32x64xbf16> to vector<32x64xf32>
    %22 = vector.broadcast %16 : vector<1x64xf32> to vector<32x64xf32>
    %23 = arith.mulf %21, %22 : vector<32x64xf32>
    %24 = vector.broadcast %19 : vector<1x64xf32> to vector<32x64xf32>
    %25 = arith.addf %23, %24 : vector<32x64xf32>
    %cst_12 = arith.constant 0.00999999977 : f32
    %26 = vector.broadcast %cst_12 : f32 to vector<32x64xf32>
    %27 = arith.mulf %26, %25 : vector<32x64xf32>
    %28 = arith.maximumf %25, %27 : vector<32x64xf32>
    %29 = arith.truncf %28 : vector<32x64xf32> to vector<32x64xbf16>
    %c0_13 = arith.constant 0 : index
    %c0_14 = arith.constant 0 : index
    %30 = vector.load %arg5[%c0_13, %c0_14] : memref<32x64xbf16, #tpu.memory_space<vmem>>, vector<32x64xbf16>
    tpu.vector_store %arg5[%c0_13, %c0_14], %29 {strides = array<i32>} : memref<32x64xbf16, #tpu.memory_space<vmem>>, vector<32x64xbf16>,
    return
  }
  func.func @transform_0(%arg0: i32) -> (i32, i32) {
    %c0_i32 = arith.constant 0 : i32
    %c0_i32_0 = arith.constant 0 : i32
    return %arg0, %c0_i32 : i32, i32
  }
  func.func @transform_1(%arg0: i32) -> (i32, i32, i32) {
    %c0_i32 = arith.constant 0 : i32
    %c0_i32_0 = arith.constant 0 : i32
    %c0_i32_1 = arith.constant 0 : i32
    %c0_i32_2 = arith.constant 0 : i32
    return %c0_i32, %c0_i32_0, %c0_i32_1 : i32, i32, i32
  }
  func.func @transform_2(%arg0: i32) -> (i32, i32) {
    %c0_i32 = arith.constant 0 : i32
    %c0_i32_0 = arith.constant 0 : i32
    %c0_i32_1 = arith.constant 0 : i32
    return %c0_i32, %c0_i32_0 : i32, i32
  }
  func.func @transform_3(%arg0: i32) -> (i32, i32) {
    %c0_i32 = arith.constant 0 : i32
    %c0_i32_0 = arith.constant 0 : i32
    %c0_i32_1 = arith.constant 0 : i32
    return %c0_i32, %c0_i32_0 : i32, i32
  }
  func.func @transform_4(%arg0: i32) -> (i32, i32) {
    %c0_i32 = arith.constant 0 : i32
    %c0_i32_0 = arith.constant 0 : i32
    return %arg0, %c0_i32 : i32, i32
  }
}

module attributes {stable_mosaic.version = 11 : i64} {
  func.func @_conv_stats_kernel(%arg0: i32, %arg1: memref<32x512xbf16, #tpu.memory_space<vmem>>, %arg2: memref<512x64xbf16, #tpu.memory_space<vmem>>, %arg3: memref<32x64xbf16, #tpu.memory_space<vmem>>, %arg4: memref<1x2x64xf32, #tpu.memory_space<vmem>>) attributes {dimension_semantics = [#tpu.dimension_semantics<parallel>], iteration_bounds = array<i64: 1>, scalar_prefetch = 0 : i64, scratch_operands = 0 : i64, tpu.core_type = #tpu.core_type<tc>, window_params = [{transform_indices = @transform_0, window_bounds = array<i64: 32, 512>}, {pipeline_mode = #tpu.pipeline_mode<synchronous>, transform_indices = @transform_1, window_bounds = array<i64: 512, 64>}, {transform_indices = @transform_2, window_bounds = array<i64: 32, 64>}, {transform_indices = @transform_3, window_bounds = array<i64: 1, 2, 64>}]} {
    %c0 = arith.constant 0 : index
    %c0_0 = arith.constant 0 : index
    %0 = vector.load %arg1[%c0, %c0_0] : memref<32x512xbf16, #tpu.memory_space<vmem>>, vector<32x512xbf16>
    %c0_1 = arith.constant 0 : index
    %c0_2 = arith.constant 0 : index
    %1 = vector.load %arg2[%c0_1, %c0_2] : memref<512x64xbf16, #tpu.memory_space<vmem>>, vector<512x64xbf16>
    %cst = arith.constant dense<0.000000e+00> : vector<32x64xf32>
    %2 = tpu.matmul %0, %1, %cst {dimension_numbers = #tpu.dot_dimension_numbers<[1], [0], [0], [1], [0, 0, 1, 1], [], []>} : vector<32x512xbf16>, vector<512x64xbf16>, vector<32x64xf32> -> vector<32x64xf32>
    %3 = arith.truncf %2 : vector<32x64xf32> to vector<32x64xbf16>
    %c0_3 = arith.constant 0 : index
    %c0_4 = arith.constant 0 : index
    %4 = vector.load %arg3[%c0_3, %c0_4] : memref<32x64xbf16, #tpu.memory_space<vmem>>, vector<32x64xbf16>
    tpu.vector_store %arg3[%c0_3, %c0_4], %3 {strides = array<i32>} : memref<32x64xbf16, #tpu.memory_space<vmem>>, vector<32x64xbf16>,
    %cst_5 = arith.constant 1.000000e+00 : f32
    %5 = vector.broadcast %cst_5 : f32 to vector<1x32xf32>
    %cst_6 = arith.constant dense<0.000000e+00> : vector<1x64xf32>
    %6 = tpu.matmul %5, %2, %cst_6 {dimension_numbers = #tpu.dot_dimension_numbers<[1], [0], [0], [1], [0, 0, 1, 1], [], []>} : vector<1x32xf32>, vector<32x64xf32>, vector<1x64xf32> -> vector<1x64xf32>
    %c0_7 = arith.constant 0 : index
    %c0_8 = arith.constant 0 : index
    %c0_9 = arith.constant 0 : index
    %7 = vector.load %arg4[%c0_7, %c0_8, %c0_9] : memref<1x2x64xf32, #tpu.memory_space<vmem>>, vector<1x1x64xf32>
    %8 = vector.shape_cast %7 : vector<1x1x64xf32> to vector<1x64xf32>
    %9 = vector.shape_cast %6 : vector<1x64xf32> to vector<1x1x64xf32>
    tpu.vector_store %arg4[%c0_7, %c0_8, %c0_9], %9 {strides = array<i32>} : memref<1x2x64xf32, #tpu.memory_space<vmem>>, vector<1x1x64xf32>,
    %10 = arith.mulf %2, %2 : vector<32x64xf32>
    %cst_10 = arith.constant dense<0.000000e+00> : vector<1x64xf32>
    %11 = tpu.matmul %5, %10, %cst_10 {dimension_numbers = #tpu.dot_dimension_numbers<[1], [0], [0], [1], [0, 0, 1, 1], [], []>} : vector<1x32xf32>, vector<32x64xf32>, vector<1x64xf32> -> vector<1x64xf32>
    %c0_11 = arith.constant 0 : index
    %c1 = arith.constant 1 : index
    %c0_12 = arith.constant 0 : index
    %12 = vector.load %arg4[%c0_11, %c1, %c0_12] : memref<1x2x64xf32, #tpu.memory_space<vmem>>, vector<1x1x64xf32>
    %13 = vector.shape_cast %12 : vector<1x1x64xf32> to vector<1x64xf32>
    %14 = vector.shape_cast %11 : vector<1x64xf32> to vector<1x1x64xf32>
    tpu.vector_store %arg4[%c0_11, %c1, %c0_12], %14 {strides = array<i32>} : memref<1x2x64xf32, #tpu.memory_space<vmem>>, vector<1x1x64xf32>,
    return
  }
  func.func @transform_0(%arg0: i32) -> (i32, i32) {
    %c0_i32 = arith.constant 0 : i32
    %c0_i32_0 = arith.constant 0 : i32
    return %arg0, %c0_i32 : i32, i32
  }
  func.func @transform_1(%arg0: i32) -> (i32, i32) {
    %c0_i32 = arith.constant 0 : i32
    %c0_i32_0 = arith.constant 0 : i32
    %c0_i32_1 = arith.constant 0 : i32
    return %c0_i32, %c0_i32_0 : i32, i32
  }
  func.func @transform_2(%arg0: i32) -> (i32, i32) {
    %c0_i32 = arith.constant 0 : i32
    %c0_i32_0 = arith.constant 0 : i32
    return %arg0, %c0_i32 : i32, i32
  }
  func.func @transform_3(%arg0: i32) -> (i32, i32, i32) {
    %c0_i32 = arith.constant 0 : i32
    %c0_i32_0 = arith.constant 0 : i32
    %c0_i32_1 = arith.constant 0 : i32
    return %arg0, %c0_i32, %c0_i32_0 : i32, i32, i32
  }
}

module attributes {stable_mosaic.version = 11 : i64} {
  func.func @_matmul_bias_kernel(%arg0: i32, %arg1: memref<2x1024xbf16, #tpu.memory_space<vmem>>, %arg2: memref<1024x32xbf16, #tpu.memory_space<vmem>>, %arg3: memref<1x32xf32, #tpu.memory_space<vmem>>, %arg4: memref<2x32xf32, #tpu.memory_space<vmem>>) attributes {dimension_semantics = [#tpu.dimension_semantics<parallel>], iteration_bounds = array<i64: 1>, scalar_prefetch = 0 : i64, scratch_operands = 0 : i64, tpu.core_type = #tpu.core_type<tc>, window_params = [{transform_indices = @transform_0, window_bounds = array<i64: 2, 1024>}, {pipeline_mode = #tpu.pipeline_mode<synchronous>, transform_indices = @transform_1, window_bounds = array<i64: 1024, 32>}, {pipeline_mode = #tpu.pipeline_mode<synchronous>, transform_indices = @transform_2, window_bounds = array<i64: 1, 32>}, {transform_indices = @transform_3, window_bounds = array<i64: 2, 32>}]} {
    %c0 = arith.constant 0 : index
    %c0_0 = arith.constant 0 : index
    %0 = vector.load %arg1[%c0, %c0_0] : memref<2x1024xbf16, #tpu.memory_space<vmem>>, vector<2x1024xbf16>
    %c0_1 = arith.constant 0 : index
    %c0_2 = arith.constant 0 : index
    %1 = vector.load %arg2[%c0_1, %c0_2] : memref<1024x32xbf16, #tpu.memory_space<vmem>>, vector<1024x32xbf16>
    %cst = arith.constant dense<0.000000e+00> : vector<2x32xf32>
    %2 = tpu.matmul %0, %1, %cst {dimension_numbers = #tpu.dot_dimension_numbers<[1], [0], [0], [1], [0, 0, 1, 1], [], []>} : vector<2x1024xbf16>, vector<1024x32xbf16>, vector<2x32xf32> -> vector<2x32xf32>
    %c0_3 = arith.constant 0 : index
    %c0_4 = arith.constant 0 : index
    %3 = vector.load %arg3[%c0_3, %c0_4] : memref<1x32xf32, #tpu.memory_space<vmem>>, vector<1x32xf32>
    %4 = vector.broadcast %3 : vector<1x32xf32> to vector<2x32xf32>
    %5 = arith.addf %2, %4 : vector<2x32xf32>
    %c0_5 = arith.constant 0 : index
    %c0_6 = arith.constant 0 : index
    %6 = vector.load %arg4[%c0_5, %c0_6] : memref<2x32xf32, #tpu.memory_space<vmem>>, vector<2x32xf32>
    tpu.vector_store %arg4[%c0_5, %c0_6], %5 {strides = array<i32>} : memref<2x32xf32, #tpu.memory_space<vmem>>, vector<2x32xf32>,
    return
  }
  func.func @transform_0(%arg0: i32) -> (i32, i32) {
    %c0_i32 = arith.constant 0 : i32
    %c0_i32_0 = arith.constant 0 : i32
    return %arg0, %c0_i32 : i32, i32
  }
  func.func @transform_1(%arg0: i32) -> (i32, i32) {
    %c0_i32 = arith.constant 0 : i32
    %c0_i32_0 = arith.constant 0 : i32
    %c0_i32_1 = arith.constant 0 : i32
    return %c0_i32, %c0_i32_0 : i32, i32
  }
  func.func @transform_2(%arg0: i32) -> (i32, i32) {
    %c0_i32 = arith.constant 0 : i32
    %c0_i32_0 = arith.constant 0 : i32
    %c0_i32_1 = arith.constant 0 : i32
    return %c0_i32, %c0_i32_0 : i32, i32
  }
  func.func @transform_3(%arg0: i32) -> (i32, i32) {
    %c0_i32 = arith.constant 0 : i32
    %c0_i32_0 = arith.constant 0 : i32
    return %arg0, %c0_i32 : i32, i32
  }
}

</mosaic_0001>

<llo_original>
// kernel: encoder_forward.9
$region0: #{encoder_forward.9}
  #allocation0 [shape = 'u32[]', space=smem, size = 0x4, offset = 0x4, fixed_abs, tag = 'smem constant byte address 0x4 - core index']
  #allocation1 [shape = 'u32[72,128]{1,0:T(1,128)}', space=vmem, size = 0x9000, scoped, tag = 'internal scratch']
  %s0 = inlined_call_operand.vmem [shape: bf16[2048,48], index: 0, kind: input, shape index: {}]
  %s1 = inlined_call_operand.vmem [shape: bf16[48,8], index: 1, kind: input, shape index: {}]
  %s2 = inlined_call_operand.vmem [shape: bf16[2048,8], index: 2, kind: output, shape index: {0}]
  %s3 = inlined_call_operand.vmem [shape: f32[2,2,8], index: 3, kind: output, shape index: {1}]
  %4 = xla_tuple %s2, %s3
  %s5 = sld [smem:[#allocation0]]
  $region49: #{encoder_forward.9} parent=0
    _
  %s7 = ssub.s32 1, %s5
  %s8 = scalar_select 0, %s7, %s5
  loop: start=0, step=1, limit=4
  $region2: #{encoder_forward.9} parent=0 // loop_pre_header
    _
  $region3: #{encoder_forward.9} parent=0 // loop_header
    %s10 = sphi 0, %s14
    %p11 = scmp.ge.s32.totalorder %s10, 4
    %s20 = sphi 0, %s22
    %s23 = sphi 0, %s20
    %s24 = sphi 0, %s23
    %s40 = sphi 0, %s24
    %s44 = sphi 0, %s44
    %s46 = sphi 0, %s44
    %s47 = sphi 0, %s46
    %s61 = sphi 0, %s47
    %s67 = sphi 0, %s69
    %s70 = sphi 0, %s67
    %s71 = sphi 0, %s70
    %s87 = sphi 0, %s71
    %s93 = sphi 0, %s95
    %s96 = sphi 0, %s93
    %s97 = sphi 0, %s96
    %s113 = sphi 0, %s97
  $region4: #{encoder_forward.9} parent=0 // loop_header_branch
    %13 = sbr.rel (%p11) target = $region8
  $region5: #{encoder_forward.9} parent=0 // loop_body
    %s15 = ssub.s32 %s10, 1
    %s16 = ssub.s32 %s10, 2
    %s17 = sadd.s32 %s10, 1
    %s18 = ssub.s32 %s10, %s17
    %p19 = scmp.eq.s32.totalorder %s18, 0
    %s21 = sadd.s32 %s20, 1
    %s22 = scalar_select %p19, %s20, %s21
    %p25 = pneg %p19
    %p26 = scmp.eq.s32.totalorder %s10, 1
    %p27 = por %p25, %p26
    %p28 = scmp.ne.s32.totalorder %s20, %s23
    %p29 = scmp.eq.s32.totalorder %s10, 0
    %p30 = por %p28, %p29
    %p31 = scmp.ne.s32.totalorder %s20, %s23
    %p32 = scmp.eq.s32.totalorder %s15, 1
    %p33 = por %p31, %p32
    %p34 = scmp.ne.s32.totalorder %s23, %s24
    %p35 = scmp.eq.s32.totalorder %s15, 0
    %p36 = por %p34, %p35
    %p37 = scmp.ne.s32.totalorder %s23, %s24
    %p38 = scmp.eq.s32.totalorder %s16, 1
    %p39 = por %p37, %p38
    %p41 = scmp.ne.s32.totalorder %s24, %s40
    %p42 = scmp.eq.s32.totalorder %s16, 0
    %p43 = por %p41, %p42
    %s45 = sadd.s32 %s44, 1
    %p48 = scmp.eq.s32.totalorder %s10, 1
    %p49 = scmp.ne.s32.totalorder %s44, %s46
    %p50 = scmp.eq.s32.totalorder %s10, 0
    %p51 = por %p49, %p50
    %p52 = scmp.ne.s32.totalorder %s44, %s46
    %p53 = scmp.eq.s32.totalorder %s15, 1
    %p54 = por %p52, %p53
    %p55 = scmp.ne.s32.totalorder %s46, %s47
    %p56 = scmp.eq.s32.totalorder %s15, 0
    %p57 = por %p55, %p56
    %p58 = scmp.ne.s32.totalorder %s46, %s47
    %p59 = scmp.eq.s32.totalorder %s16, 1
    %p60 = por %p58, %p59
    %p62 = scmp.ne.s32.totalorder %s47, %s61
    %p63 = scmp.eq.s32.totalorder %s16, 0
    %p64 = por %p62, %p63
    %s65 = ssub.s32 %s10, %s17
    %p66 = scmp.eq.s32.totalorder %s65, 0
    %s68 = sadd.s32 %s67, 1
    %s69 = scalar_select %p66, %s67, %s68
    %p72 = pneg %p66
    %p73 = scmp.eq.s32.totalorder %s10, 1
    %p74 = por %p72, %p73
    %p75 = scmp.ne.s32.totalorder %s67, %s70
    %p76 = scmp.eq.s32.totalorder %s10, 0
    %p77 = por %p75, %p76
    %p78 = scmp.ne.s32.totalorder %s67, %s70
    %p79 = scmp.eq.s32.totalorder %s15, 1
    %p80 = por %p78, %p79
    %p81 = scmp.ne.s32.totalorder %s70, %s71
    %p82 = scmp.eq.s32.totalorder %s15, 0
    %p83 = por %p81, %p82
    %p84 = scmp.ne.s32.totalorder %s70, %s71
    %p85 = scmp.eq.s32.totalorder %s16, 1
    %p86 = por %p84, %p85
    %p88 = scmp.ne.s32.totalorder %s71, %s87
    %p89 = scmp.eq.s32.totalorder %s16, 0
    %p90 = por %p88, %p89
    %s91 = ssub.s32 %s10, %s17
    %p92 = scmp.eq.s32.totalorder %s91, 0
    %s94 = sadd.s32 %s93, 1
    %s95 = scalar_select %p92, %s93, %s94
    %p98 = pneg %p92
    %p99 = scmp.eq.s32.totalorder %s10, 1
    %p100 = por %p98, %p99
    %p101 = scmp.ne.s32.totalorder %s93, %s96
    %p102 = scmp.eq.s32.totalorder %s10, 0
    %p103 = por %p101, %p102
    %p104 = scmp.ne.s32.totalorder %s93, %s96
    %p105 = scmp.eq.s32.totalorder %s15, 1
    %p106 = por %p104, %p105
    %p107 = scmp.ne.s32.totalorder %s96, %s97
    %p108 = scmp.eq.s32.totalorder %s15, 0
    %p109 = por %p107, %p108
    %p110 = scmp.ne.s32.totalorder %s96, %s97
    %p111 = scmp.eq.s32.totalorder %s16, 1
    %p112 = por %p110, %p111
    %p114 = scmp.ne.s32.totalorder %s97, %s113
    %p115 = scmp.eq.s32.totalorder %s16, 0
    %p116 = por %p114, %p115
    %p117 = scmp.le.s32.totalorder 1, %s10
    %p118 = scmp.lt.s32.totalorder %s10, 3
    %p119 = pnand %p117, %p118
    %p120 = pneg %p119
    // Predicated region
    $region9: #{encoder_forward.9} parent=5 // pred_check
      _
    $region10: #{encoder_forward.9} parent=5 // pred_check_branch
      %122 = sbr.rel (%p119) target = $region12
    $region11: #{encoder_forward.9} parent=5 // pred_region
      %s123 = ssub.s32 %s10, 1
      // Predicated region
      $region13: #{encoder_forward.9} parent=11 // pred_check
        %p124 = pneg %p57
      $region14: #{encoder_forward.9} parent=11 // pred_check_branch
        %126 = sbr.rel (%p124) target = $region16
      $region15: #{encoder_forward.9} parent=11 // pred_region
        _
      $region16: #{encoder_forward.9} parent=11 // pred_fallthru
        _
    $region12: #{encoder_forward.9} parent=5 // pred_fallthru
      _
    %p127 = scmp.lt.s32.totalorder %s10, 2
    // Predicated region
    $region17: #{encoder_forward.9} parent=5 // pred_check
      %p128 = pneg %p127
    $region18: #{encoder_forward.9} parent=5 // pred_check_branch
      %130 = sbr.rel (%p128) target = $region20
    $region19: #{encoder_forward.9} parent=5 // pred_region
      // Predicated region
      $region21: #{encoder_forward.9} parent=19 // pred_check
        %p131 = pneg %p30
      $region22: #{encoder_forward.9} parent=19 // pred_check_branch
        %133 = sbr.rel (%p131) target = $region24
      $region23: #{encoder_forward.9} parent=19 // pred_region
        %s134 = smul.u32 128, %s10
        %p135 = scmp.lt.s32.totalorder %s134, 255
        %s136 = scalar_select %p135, %s134, 255
        %s137 = smul.addr %s136, 4
        %s138 = scalar_lea.vmem %s0, %s137
        %s139 = smul.u32 128, %s10
      $region24: #{encoder_forward.9} parent=19 // pred_fallthru
        _
    $region20: #{encoder_forward.9} parent=5 // pred_fallthru
      _
    %p140 = scmp.le.s32.totalorder 1, %s10
    %p141 = scmp.lt.s32.totalorder %s10, 3
    %p142 = pnand %p140, %p141
    %p143 = pneg %p142
    // Predicated region
    $region25: #{encoder_forward.9} parent=5 // pred_check
      _
    $region26: #{encoder_forward.9} parent=5 // pred_check_branch
      %145 = sbr.rel (%p142) target = $region28
    $region27: #{encoder_forward.9} parent=5 // pred_region
      %s146 = ssub.s32 %s10, 1
      %s147 = smul.u32 128, %s15
      %p148 = scmp.lt.s32.totalorder %s147, 255
      %s149 = scalar_select %p148, %s147, 255
      %s150 = smul.addr %s149, 4
      %s151 = scalar_lea.vmem %s0, %s150
      %p152 = pneg %p36
      %p153 = pneg %p33
      %p154 = pneg %p57
      %p155 = pneg %p54
      %p156 = pneg %p83
      %p157 = pneg %p80
      %s158 = smul.u32 128, %s15
      %p159 = scmp.lt.s32.totalorder %s158, 255
      %s160 = scalar_select %p159, %s158, 255
      %s161 = smul.addr %s160, 4
      %s162 = scalar_lea.vmem %s2, %s161
      %p163 = pneg %p109
      %p164 = pneg %p106
      %p165 = scmp.lt.s32.totalorder %s15, 1
      %s166 = scalar_select %p165, %s15, 1
      %s167 = smul.addr %s166, 2
      %s168 = scalar_lea.vmem %s3, %s167
      %s169 = smul.u32 128, %s15
      %p170 = scmp.lt.s32.totalorder %s169, 255
      %s171 = scalar_select %p170, %s169, 255
      %s172 = smul.addr %s171, 4
      %s173 = scalar_lea.vmem %s0, %s172
      %s174 = smul.u32 128, %s15
      %s175 = smul.u32 128, %s15
      %p176 = scmp.lt.s32.totalorder %s175, 255
      %s177 = scalar_select %p176, %s175, 255
      %s178 = smul.addr %s177, 4
      %s179 = scalar_lea.vmem %s2, %s178
      %s180 = smul.u32 128, %s15
      %p181 = scmp.lt.s32.totalorder %s15, 1
      %s182 = scalar_select %p181, %s15, 1
      %s183 = smul.addr %s182, 2
      %s184 = scalar_lea.vmem %s3, %s183
      %v186 = vld [vmem:[%s173] sm:$0xf]
      %v187 = vld [vmem:[%s173 + $0x4] sm:$0xf]
      %v188 = vld [vmem:[%s173 + $0x8] sm:$0xf]
      %v189 = vld [vmem:[%s173 + $0xc] sm:$0xf]
      %v190 = vld [vmem:[%s173 + $0x10] sm:$0xf]
      %v191 = vld [vmem:[%s173 + $0x14] sm:$0xf]
      %v192 = vld [vmem:[%s173 + $0x18] sm:$0xf]
      %v193 = vld [vmem:[%s173 + $0x1c] sm:$0xf]
      %v194 = vld [vmem:[%s173 + $0x20] sm:$0xf]
      %v195 = vld [vmem:[%s173 + $0x24] sm:$0xf]
      %v196 = vld [vmem:[%s173 + $0x28] sm:$0xf]
      %v197 = vld [vmem:[%s173 + $0x2c] sm:$0xf]
      %v198 = vld [vmem:[%s173 + $0x30] sm:$0xf]
      %v199 = vld [vmem:[%s173 + $0x34] sm:$0xf]
      %v200 = vld [vmem:[%s173 + $0x38] sm:$0xf]
      %v201 = vld [vmem:[%s173 + $0x3c] sm:$0xf]
      %v202 = vld [vmem:[%s173 + $0x40] sm:$0xf]
      %v203 = vld [vmem:[%s173 + $0x44] sm:$0xf]
      %v204 = vld [vmem:[%s173 + $0x48] sm:$0xf]
      %v205 = vld [vmem:[%s173 + $0x4c] sm:$0xf]
      %v206 = vld [vmem:[%s173 + $0x50] sm:$0xf]
      %v207 = vld [vmem:[%s173 + $0x54] sm:$0xf]
      %v208 = vld [vmem:[%s173 + $0x58] sm:$0xf]
      %v209 = vld [vmem:[%s173 + $0x5c] sm:$0xf]
      %v210 = vld [vmem:[%s173 + $0x60] sm:$0xf]
      %v211 = vld [vmem:[%s173 + $0x64] sm:$0xf]
      %v212 = vld [vmem:[%s173 + $0x68] sm:$0xf]
      %v213 = vld [vmem:[%s173 + $0x6c] sm:$0xf]
      %v214 = vld [vmem:[%s173 + $0x70] sm:$0xf]
      %v215 = vld [vmem:[%s173 + $0x74] sm:$0xf]
      %v216 = vld [vmem:[%s173 + $0x78] sm:$0xf]
      %v217 = vld [vmem:[%s173 + $0x7c] sm:$0xf]
      %v218 = vld [vmem:[%s173 + $0x80] sm:$0xf]
      %v219 = vld [vmem:[%s173 + $0x84] sm:$0xf]
      %v220 = vld [vmem:[%s173 + $0x88] sm:$0xf]
      %v221 = vld [vmem:[%s173 + $0x8c] sm:$0xf]
      %v222 = vld [vmem:[%s173 + $0x90] sm:$0xf]
      %v223 = vld [vmem:[%s173 + $0x94] sm:$0xf]
      %v224 = vld [vmem:[%s173 + $0x98] sm:$0xf]
      %v225 = vld [vmem:[%s173 + $0x9c] sm:$0xf]
      %v226 = vld [vmem:[%s173 + $0xa0] sm:$0xf]
      %v227 = vld [vmem:[%s173 + $0xa4] sm:$0xf]
      %v228 = vld [vmem:[%s173 + $0xa8] sm:$0xf]
      %v229 = vld [vmem:[%s173 + $0xac] sm:$0xf]
      %v230 = vld [vmem:[%s173 + $0xb0] sm:$0xf]
      %v231 = vld [vmem:[%s173 + $0xb4] sm:$0xf]
      %v232 = vld [vmem:[%s173 + $0xb8] sm:$0xf]
      %v233 = vld [vmem:[%s173 + $0xbc] sm:$0xf]
      %v234 = vld [vmem:[%s173 + $0xc0] sm:$0xf]
      %v235 = vld [vmem:[%s173 + $0xc4] sm:$0xf]
      %v236 = vld [vmem:[%s173 + $0xc8] sm:$0xf]
      %v237 = vld [vmem:[%s173 + $0xcc] sm:$0xf]
      %v238 = vld [vmem:[%s173 + $0xd0] sm:$0xf]
      %v239 = vld [vmem:[%s173 + $0xd4] sm:$0xf]
      %v240 = vld [vmem:[%s173 + $0xd8] sm:$0xf]
      %v241 = vld [vmem:[%s173 + $0xdc] sm:$0xf]
      %v242 = vld [vmem:[%s173 + $0xe0] sm:$0xf]
      %v243 = vld [vmem:[%s173 + $0xe4] sm:$0xf]
      %v244 = vld [vmem:[%s173 + $0xe8] sm:$0xf]
      %v245 = vld [vmem:[%s173 + $0xec] sm:$0xf]
      %v246 = vld [vmem:[%s173 + $0xf0] sm:$0xf]
      %v247 = vld [vmem:[%s173 + $0xf4] sm:$0xf]
      %v248 = vld [vmem:[%s173 + $0xf8] sm:$0xf]
      %v249 = vld [vmem:[%s173 + $0xfc] sm:$0xf]
      %v250 = vld [vmem:[%s173 + $0x100] sm:$0xf]
      %v251 = vld [vmem:[%s173 + $0x104] sm:$0xf]
      %v252 = vld [vmem:[%s173 + $0x108] sm:$0xf]
      %v253 = vld [vmem:[%s173 + $0x10c] sm:$0xf]
      %v254 = vld [vmem:[%s173 + $0x110] sm:$0xf]
      %v255 = vld [vmem:[%s173 + $0x114] sm:$0xf]
      %v256 = vld [vmem:[%s173 + $0x118] sm:$0xf]
      %v257 = vld [vmem:[%s173 + $0x11c] sm:$0xf]
      %v258 = vld [vmem:[%s173 + $0x120] sm:$0xf]
      %v259 = vld [vmem:[%s173 + $0x124] sm:$0xf]
      %v260 = vld [vmem:[%s173 + $0x128] sm:$0xf]
      %v261 = vld [vmem:[%s173 + $0x12c] sm:$0xf]
      %v262 = vld [vmem:[%s173 + $0x130] sm:$0xf]
      %v263 = vld [vmem:[%s173 + $0x134] sm:$0xf]
      %v264 = vld [vmem:[%s173 + $0x138] sm:$0xf]
      %v265 = vld [vmem:[%s173 + $0x13c] sm:$0xf]
      %v266 = vld [vmem:[%s173 + $0x140] sm:$0xf]
      %v267 = vld [vmem:[%s173 + $0x144] sm:$0xf]
      %v268 = vld [vmem:[%s173 + $0x148] sm:$0xf]
      %v269 = vld [vmem:[%s173 + $0x14c] sm:$0xf]
      %v270 = vld [vmem:[%s173 + $0x150] sm:$0xf]
      %v271 = vld [vmem:[%s173 + $0x154] sm:$0xf]
      %v272 = vld [vmem:[%s173 + $0x158] sm:$0xf]
      %v273 = vld [vmem:[%s173 + $0x15c] sm:$0xf]
      %v274 = vld [vmem:[%s173 + $0x160] sm:$0xf]
      %v275 = vld [vmem:[%s173 + $0x164] sm:$0xf]
      %v276 = vld [vmem:[%s173 + $0x168] sm:$0xf]
      %v277 = vld [vmem:[%s173 + $0x16c] sm:$0xf]
      %v278 = vld [vmem:[%s173 + $0x170] sm:$0xf]
      %v279 = vld [vmem:[%s173 + $0x174] sm:$0xf]
      %v280 = vld [vmem:[%s173 + $0x178] sm:$0xf]
      %v281 = vld [vmem:[%s173 + $0x17c] sm:$0xf]
      %v282 = vld [vmem:[%s173 + $0x180] sm:$0xf]
      %v283 = vld [vmem:[%s173 + $0x184] sm:$0xf]
      %v284 = vld [vmem:[%s173 + $0x188] sm:$0xf]
      %v285 = vld [vmem:[%s173 + $0x18c] sm:$0xf]
      %v286 = vld [vmem:[%s173 + $0x190] sm:$0xf]
      %v287 = vld [vmem:[%s173 + $0x194] sm:$0xf]
      %v288 = vld [vmem:[%s173 + $0x198] sm:$0xf]
      %v289 = vld [vmem:[%s173 + $0x19c] sm:$0xf]
      %v290 = vld [vmem:[%s173 + $0x1a0] sm:$0xf]
      %v291 = vld [vmem:[%s173 + $0x1a4] sm:$0xf]
      %v292 = vld [vmem:[%s173 + $0x1a8] sm:$0xf]
      %v293 = vld [vmem:[%s173 + $0x1ac] sm:$0xf]
      %v294 = vld [vmem:[%s173 + $0x1b0] sm:$0xf]
      %v295 = vld [vmem:[%s173 + $0x1b4] sm:$0xf]
      %v296 = vld [vmem:[%s173 + $0x1b8] sm:$0xf]
      %v297 = vld [vmem:[%s173 + $0x1bc] sm:$0xf]
      %v298 = vld [vmem:[%s173 + $0x1c0] sm:$0xf]
      %v299 = vld [vmem:[%s173 + $0x1c4] sm:$0xf]
      %v300 = vld [vmem:[%s173 + $0x1c8] sm:$0xf]
      %v301 = vld [vmem:[%s173 + $0x1cc] sm:$0xf]
      %v302 = vld [vmem:[%s173 + $0x1d0] sm:$0xf]
      %v303 = vld [vmem:[%s173 + $0x1d4] sm:$0xf]
      %v304 = vld [vmem:[%s173 + $0x1d8] sm:$0xf]
      %v305 = vld [vmem:[%s173 + $0x1dc] sm:$0xf]
      %v306 = vld [vmem:[%s173 + $0x1e0] sm:$0xf]
      %v307 = vld [vmem:[%s173 + $0x1e4] sm:$0xf]
      %v308 = vld [vmem:[%s173 + $0x1e8] sm:$0xf]
      %v309 = vld [vmem:[%s173 + $0x1ec] sm:$0xf]
      %v310 = vld [vmem:[%s173 + $0x1f0] sm:$0xf]
      %v311 = vld [vmem:[%s173 + $0x1f4] sm:$0xf]
      %v312 = vld [vmem:[%s173 + $0x1f8] sm:$0xf]
      %v313 = vld [vmem:[%s173 + $0x1fc] sm:$0xf]
      %v314 = vld [vmem:[%s1] sm:$0xf]
      %v315 = vld [vmem:[%s1 + $0x4] sm:$0xf]
      %v316 = vld [vmem:[%s1 + $0x8] sm:$0xf]
      %v317 = vld [vmem:[%s1 + $0xc] sm:$0xf]
      %v318 = vld [vmem:[%s1 + $0x10] sm:$0xf]
      %v319 = vld [vmem:[%s1 + $0x14] sm:$0xf]
      %v448 = vunpack.c.l.b16 %v186
      %v449 = vunpack.c.l.b16 %v187
      %v450 = vunpack.c.l.b16 %v188
      %v451 = vunpack.c.l.b16 %v189
      %v452 = vunpack.c.l.b16 %v190
      %v453 = vunpack.c.l.b16 %v191
      %v454 = vunpack.c.l.b16 %v192
      %v455 = vunpack.c.l.b16 %v193
      %v456 = vunpack.c.l.b16 %v194
      %v457 = vunpack.c.l.b16 %v195
      %v458 = vunpack.c.l.b16 %v196
      %v459 = vunpack.c.l.b16 %v197
      %v460 = vunpack.c.l.b16 %v198
      %v461 = vunpack.c.l.b16 %v199
      %v462 = vunpack.c.l.b16 %v200
      %v463 = vunpack.c.l.b16 %v201
      %v464 = vunpack.c.l.b16 %v202
      %v465 = vunpack.c.l.b16 %v203
      %v466 = vunpack.c.l.b16 %v204
      %v467 = vunpack.c.l.b16 %v205
      %v468 = vunpack.c.l.b16 %v206
      %v469 = vunpack.c.l.b16 %v207
      %v470 = vunpack.c.l.b16 %v208
      %v471 = vunpack.c.l.b16 %v209
      %v472 = vunpack.c.l.b16 %v210
      %v473 = vunpack.c.l.b16 %v211
      %v474 = vunpack.c.l.b16 %v212
      %v475 = vunpack.c.l.b16 %v213
      %v476 = vunpack.c.l.b16 %v214
      %v477 = vunpack.c.l.b16 %v215
      %v478 = vunpack.c.l.b16 %v216
      %v479 = vunpack.c.l.b16 %v217
      %v480 = vunpack.c.l.b16 %v218
      %v481 = vunpack.c.l.b16 %v219
      %v482 = vunpack.c.l.b16 %v220
      %v483 = vunpack.c.l.b16 %v221
      %v484 = vunpack.c.l.b16 %v222
      %v485 = vunpack.c.l.b16 %v223
      %v486 = vunpack.c.l.b16 %v224
      %v487 = vunpack.c.l.b16 %v225
      %v488 = vunpack.c.l.b16 %v226
      %v489 = vunpack.c.l.b16 %v227
      %v490 = vunpack.c.l.b16 %v228
      %v491 = vunpack.c.l.b16 %v229
      %v492 = vunpack.c.l.b16 %v230
      %v493 = vunpack.c.l.b16 %v231
      %v494 = vunpack.c.l.b16 %v232
      %v495 = vunpack.c.l.b16 %v233
      %v496 = vunpack.c.l.b16 %v234
      %v497 = vunpack.c.l.b16 %v235
      %v498 = vunpack.c.l.b16 %v236
      %v499 = vunpack.c.l.b16 %v237
      %v500 = vunpack.c.l.b16 %v238
      %v501 = vunpack.c.l.b16 %v239
      %v502 = vunpack.c.l.b16 %v240
      %v503 = vunpack.c.l.b16 %v241
      %v504 = vunpack.c.l.b16 %v242
      %v505 = vunpack.c.l.b16 %v243
      %v506 = vunpack.c.l.b16 %v244
      %v507 = vunpack.c.l.b16 %v245
      %v508 = vunpack.c.l.b16 %v246
      %v509 = vunpack.c.l.b16 %v247
      %v510 = vunpack.c.l.b16 %v248
      %v511 = vunpack.c.l.b16 %v249
      %v512 = vunpack.c.l.b16 %v250
      %v513 = vunpack.c.l.b16 %v251
      %v514 = vunpack.c.l.b16 %v252
      %v515 = vunpack.c.l.b16 %v253
      %v516 = vunpack.c.l.b16 %v254
      %v517 = vunpack.c.l.b16 %v255
      %v518 = vunpack.c.l.b16 %v256
      %v519 = vunpack.c.l.b16 %v257
      %v520 = vunpack.c.l.b16 %v258
      %v521 = vunpack.c.l.b16 %v259
      %v522 = vunpack.c.l.b16 %v260
      %v523 = vunpack.c.l.b16 %v261
      %v524 = vunpack.c.l.b16 %v262
      %v525 = vunpack.c.l.b16 %v263
      %v526 = vunpack.c.l.b16 %v264
      %v527 = vunpack.c.l.b16 %v265
      %v528 = vunpack.c.l.b16 %v266
      %v529 = vunpack.c.l.b16 %v267
      %v530 = vunpack.c.l.b16 %v268
      %v531 = vunpack.c.l.b16 %v269
      %v532 = vunpack.c.l.b16 %v270
      %v533 = vunpack.c.l.b16 %v271
      %v534 = vunpack.c.l.b16 %v272
      %v535 = vunpack.c.l.b16 %v273
      %v536 = vunpack.c.l.b16 %v274
      %v537 = vunpack.c.l.b16 %v275
      %v538 = vunpack.c.l.b16 %v276
      %v539 = vunpack.c.l.b16 %v277
      %v540 = vunpack.c.l.b16 %v278
      %v541 = vunpack.c.l.b16 %v279
      %v542 = vunpack.c.l.b16 %v280
      %v543 = vunpack.c.l.b16 %v281
      %v544 = vunpack.c.l.b16 %v282
      %v545 = vunpack.c.l.b16 %v283
      %v546 = vunpack.c.l.b16 %v284
      %v547 = vunpack.c.l.b16 %v285
      %v548 = vunpack.c.l.b16 %v286
      %v549 = vunpack.c.l.b16 %v287
      %v550 = vunpack.c.l.b16 %v288
      %v551 = vunpack.c.l.b16 %v289
      %v552 = vunpack.c.l.b16 %v290
      %v553 = vunpack.c.l.b16 %v291
      %v554 = vunpack.c.l.b16 %v292
      %v555 = vunpack.c.l.b16 %v293
      %v556 = vunpack.c.l.b16 %v294
      %v557 = vunpack.c.l.b16 %v295
      %v558 = vunpack.c.l.b16 %v296
      %v559 = vunpack.c.l.b16 %v297
      %v560 = vunpack.c.l.b16 %v298
      %v561 = vunpack.c.l.b16 %v299
      %v562 = vunpack.c.l.b16 %v300
      %v563 = vunpack.c.l.b16 %v301
      %v564 = vunpack.c.l.b16 %v302
      %v565 = vunpack.c.l.b16 %v303
      %v566 = vunpack.c.l.b16 %v304
      %v567 = vunpack.c.l.b16 %v305
      %v568 = vunpack.c.l.b16 %v306
      %v569 = vunpack.c.l.b16 %v307
      %v570 = vunpack.c.l.b16 %v308
      %v571 = vunpack.c.l.b16 %v309
      %v572 = vunpack.c.l.b16 %v310
      %v573 = vunpack.c.l.b16 %v311
      %v574 = vunpack.c.l.b16 %v312
      %v575 = vunpack.c.l.b16 %v313
      %v576 = vpack.c.b16 %v449, %v448
      %v577 = vpack.c.b16 %v451, %v450
      %v578 = vpack.c.b16 %v453, %v452
      %v579 = vpack.c.b16 %v455, %v454
      %v580 = vpack.c.b16 %v457, %v456
      %v581 = vpack.c.b16 %v459, %v458
      %v582 = vpack.c.b16 %v461, %v460
      %v583 = vpack.c.b16 %v463, %v462
      %v584 = vpack.c.b16 %v465, %v464
      %v585 = vpack.c.b16 %v467, %v466
      %v586 = vpack.c.b16 %v469, %v468
      %v587 = vpack.c.b16 %v471, %v470
      %v588 = vpack.c.b16 %v473, %v472
      %v589 = vpack.c.b16 %v475, %v474
      %v590 = vpack.c.b16 %v477, %v476
      %v591 = vpack.c.b16 %v479, %v478
      %v592 = vpack.c.b16 %v481, %v480
      %v593 = vpack.c.b16 %v483, %v482
      %v594 = vpack.c.b16 %v485, %v484
      %v595 = vpack.c.b16 %v487, %v486
      %v596 = vpack.c.b16 %v489, %v488
      %v597 = vpack.c.b16 %v491, %v490
      %v598 = vpack.c.b16 %v493, %v492
      %v599 = vpack.c.b16 %v495, %v494
      %v600 = vpack.c.b16 %v497, %v496
      %v601 = vpack.c.b16 %v499, %v498
      %v602 = vpack.c.b16 %v501, %v500
      %v603 = vpack.c.b16 %v503, %v502
      %v604 = vpack.c.b16 %v505, %v504
      %v605 = vpack.c.b16 %v507, %v506
      %v606 = vpack.c.b16 %v509, %v508
      %v607 = vpack.c.b16 %v511, %v510
      %v608 = vpack.c.b16 %v513, %v512
      %v609 = vpack.c.b16 %v515, %v514
      %v610 = vpack.c.b16 %v517, %v516
      %v611 = vpack.c.b16 %v519, %v518
      %v612 = vpack.c.b16 %v521, %v520
      %v613 = vpack.c.b16 %v523, %v522
      %v614 = vpack.c.b16 %v525, %v524
      %v615 = vpack.c.b16 %v527, %v526
      %v616 = vpack.c.b16 %v529, %v528
      %v617 = vpack.c.b16 %v531, %v530
      %v618 = vpack.c.b16 %v533, %v532
      %v619 = vpack.c.b16 %v535, %v534
      %v620 = vpack.c.b16 %v537, %v536
      %v621 = vpack.c.b16 %v539, %v538
      %v622 = vpack.c.b16 %v541, %v540
      %v623 = vpack.c.b16 %v543, %v542
      %v624 = vpack.c.b16 %v545, %v544
      %v625 = vpack.c.b16 %v547, %v546
      %v626 = vpack.c.b16 %v549, %v548
      %v627 = vpack.c.b16 %v551, %v550
      %v628 = vpack.c.b16 %v553, %v552
      %v629 = vpack.c.b16 %v555, %v554
      %v630 = vpack.c.b16 %v557, %v556
      %v631 = vpack.c.b16 %v559, %v558
      %v632 = vpack.c.b16 %v561, %v560
      %v633 = vpack.c.b16 %v563, %v562
      %v634 = vpack.c.b16 %v565, %v564
      %v635 = vpack.c.b16 %v567, %v566
      %v636 = vpack.c.b16 %v569, %v568
      %v637 = vpack.c.b16 %v571, %v570
      %v638 = vpack.c.b16 %v573, %v572
      %v639 = vpack.c.b16 %v575, %v574
      %v646 = vunpack.c.l.b16 %v314
      %v647 = vunpack.c.l.b16 %v315
      %v648 = vunpack.c.l.b16 %v316
      %v649 = vunpack.c.l.b16 %v317
      %v650 = vunpack.c.l.b16 %v318
      %v651 = vunpack.c.l.b16 %v319
      %v652 = vpack.c.b16 %v647, %v646
      %v653 = vpack.c.b16 %v649, %v648
      %v654 = vpack.c.b16 %v651, %v650
      %vm658 = vcmask 392192
      %v660 = vsel %vm658, %v576, 0
      %v663 = vsel %vm658, %v577, 0
      %v666 = vsel %vm658, %v578, 0
      %v669 = vsel %vm658, %v579, 0
      %v672 = vsel %vm658, %v580, 0
      %v675 = vsel %vm658, %v581, 0
      %v678 = vsel %vm658, %v582, 0
      %v681 = vsel %vm658, %v583, 0
      %v684 = vsel %vm658, %v584, 0
      %v687 = vsel %vm658, %v585, 0
      %v690 = vsel %vm658, %v586, 0
      %v693 = vsel %vm658, %v587, 0
      %v696 = vsel %vm658, %v588, 0
      %v699 = vsel %vm658, %v589, 0
      %v702 = vsel %vm658, %v590, 0
      %v705 = vsel %vm658, %v591, 0
      %v708 = vsel %vm658, %v592, 0
      %v711 = vsel %vm658, %v593, 0
      %v714 = vsel %vm658, %v594, 0
      %v717 = vsel %vm658, %v595, 0
      %v720 = vsel %vm658, %v596, 0
      %v723 = vsel %vm658, %v597, 0
      %v726 = vsel %vm658, %v598, 0
      %v729 = vsel %vm658, %v599, 0
      %v732 = vsel %vm658, %v600, 0
      %v735 = vsel %vm658, %v601, 0
      %v738 = vsel %vm658, %v602, 0
      %v741 = vsel %vm658, %v603, 0
      %v744 = vsel %vm658, %v604, 0
      %v747 = vsel %vm658, %v605, 0
      %v750 = vsel %vm658, %v606, 0
      %v753 = vsel %vm658, %v607, 0
      %v756 = vsel %vm658, %v608, 0
      %v759 = vsel %vm658, %v609, 0
      %v762 = vsel %vm658, %v610, 0
      %v765 = vsel %vm658, %v611, 0
      %v768 = vsel %vm658, %v612, 0
      %v771 = vsel %vm658, %v613, 0
      %v774 = vsel %vm658, %v614, 0
      %v777 = vsel %vm658, %v615, 0
      %v780 = vsel %vm658, %v616, 0
      %v783 = vsel %vm658, %v617, 0
      %v786 = vsel %vm658, %v618, 0
      %v789 = vsel %vm658, %v619, 0
      %v792 = vsel %vm658, %v620, 0
      %v795 = vsel %vm658, %v621, 0
      %v798 = vsel %vm658, %v622, 0
      %v801 = vsel %vm658, %v623, 0
      %v804 = vsel %vm658, %v624, 0
      %v807 = vsel %vm658, %v625, 0
      %v810 = vsel %vm658, %v626, 0
      %v813 = vsel %vm658, %v627, 0
      %v816 = vsel %vm658, %v628, 0
      %v819 = vsel %vm658, %v629, 0
      %v822 = vsel %vm658, %v630, 0
      %v825 = vsel %vm658, %v631, 0
      %v828 = vsel %vm658, %v632, 0
      %v831 = vsel %vm658, %v633, 0
      %v834 = vsel %vm658, %v634, 0
      %v837 = vsel %vm658, %v635, 0
      %v840 = vsel %vm658, %v636, 0
      %v843 = vsel %vm658, %v637, 0
      %v846 = vsel %vm658, %v638, 0
      %v849 = vsel %vm658, %v639, 0
      %851 = vmatpush.bf16.msra.mxu0 0
      %852 = vmatpush.bf16.msra.mxu0 0
      %853 = vmatpush.bf16.msra.mxu0 0
      %854 = vmatpush.bf16.msra.mxu0 0
      %855 = vmatpush.bf16.msra.mxu0 0
      %856 = vmatpush.bf16.msra.mxu0 %v654
      %857 = vmatpush.bf16.msra.mxu0 %v653
      %858 = vmatpush.bf16.msra.mxu0 %v652
      %859 = vmatmul.bf16.gmra.mxu0 %v660
      %v860 = vpop.f32.mrf.mxu0
      %v861 = vadd.f32 0.0, %v860
      %v862 = vpop.f32.mrf.mxu0
      %v863 = vadd.f32 0.0, %v862
      %864 = vmatmul.bf16.gmra.mxu0 %v663
      %v865 = vpop.f32.mrf.mxu0
      %v866 = vadd.f32 0.0, %v865
      %v867 = vpop.f32.mrf.mxu0
      %v868 = vadd.f32 0.0, %v867
      %869 = vmatmul.bf16.gmra.mxu0 %v666
      %v870 = vpop.f32.mrf.mxu0
      %v871 = vadd.f32 0.0, %v870
      %v872 = vpop.f32.mrf.mxu0
      %v873 = vadd.f32 0.0, %v872
      %874 = vmatmul.bf16.gmra.mxu0 %v669
      %v875 = vpop.f32.mrf.mxu0
      %v876 = vadd.f32 0.0, %v875
      %v877 = vpop.f32.mrf.mxu0
      %v878 = vadd.f32 0.0, %v877
      %879 = vmatmul.bf16.gmra.mxu0 %v672
      %v880 = vpop.f32.mrf.mxu0
      %v881 = vadd.f32 0.0, %v880
      %v882 = vpop.f32.mrf.mxu0
      %v883 = vadd.f32 0.0, %v882
      %884 = vmatmul.bf16.gmra.mxu0 %v675
      %v885 = vpop.f32.mrf.mxu0
      %v886 = vadd.f32 0.0, %v885
      %v887 = vpop.f32.mrf.mxu0
      %v888 = vadd.f32 0.0, %v887
      %889 = vmatmul.bf16.gmra.mxu0 %v678
      %v890 = vpop.f32.mrf.mxu0
      %v891 = vadd.f32 0.0, %v890
      %v892 = vpop.f32.mrf.mxu0
      %v893 = vadd.f32 0.0, %v892
      %894 = vmatmul.bf16.gmra.mxu0 %v681
      %v895 = vpop.f32.mrf.mxu0
      %v896 = vadd.f32 0.0, %v895
      %v897 = vpop.f32.mrf.mxu0
      %v898 = vadd.f32 0.0, %v897
      %899 = vmatmul.bf16.gmra.mxu0 %v684
      %v900 = vpop.f32.mrf.mxu0
      %v901 = vadd.f32 0.0, %v900
      %v902 = vpop.f32.mrf.mxu0
      %v903 = vadd.f32 0.0, %v902
      %904 = vmatmul.bf16.gmra.mxu0 %v687
      %v905 = vpop.f32.mrf.mxu0
      %v906 = vadd.f32 0.0, %v905
      %v907 = vpop.f32.mrf.mxu0
      %v908 = vadd.f32 0.0, %v907
      %909 = vmatmul.bf16.gmra.mxu0 %v690
      %v910 = vpop.f32.mrf.mxu0
      %v911 = vadd.f32 0.0, %v910
      %v912 = vpop.f32.mrf.mxu0
      %v913 = vadd.f32 0.0, %v912
      %914 = vmatmul.bf16.gmra.mxu0 %v693
      %v915 = vpop.f32.mrf.mxu0
      %v916 = vadd.f32 0.0, %v915
      %v917 = vpop.f32.mrf.mxu0
      %v918 = vadd.f32 0.0, %v917
      %919 = vmatmul.bf16.gmra.mxu0 %v696
      %v920 = vpop.f32.mrf.mxu0
      %v921 = vadd.f32 0.0, %v920
      %v922 = vpop.f32.mrf.mxu0
      %v923 = vadd.f32 0.0, %v922
      %924 = vmatmul.bf16.gmra.mxu0 %v699
      %v925 = vpop.f32.mrf.mxu0
      %v926 = vadd.f32 0.0, %v925
      %v927 = vpop.f32.mrf.mxu0
      %v928 = vadd.f32 0.0, %v927
      %929 = vmatmul.bf16.gmra.mxu0 %v702
      %v930 = vpop.f32.mrf.mxu0
      %v931 = vadd.f32 0.0, %v930
      %v932 = vpop.f32.mrf.mxu0
      %v933 = vadd.f32 0.0, %v932
      %934 = vmatmul.bf16.gmra.mxu0 %v705
      %v935 = vpop.f32.mrf.mxu0
      %v936 = vadd.f32 0.0, %v935
      %v937 = vpop.f32.mrf.mxu0
      %v938 = vadd.f32 0.0, %v937
      %939 = vmatmul.bf16.gmra.mxu0 %v708
      %v940 = vpop.f32.mrf.mxu0
      %v941 = vadd.f32 0.0, %v940
      %v942 = vpop.f32.mrf.mxu0
      %v943 = vadd.f32 0.0, %v942
      %944 = vmatmul.bf16.gmra.mxu0 %v711
      %v945 = vpop.f32.mrf.mxu0
      %v946 = vadd.f32 0.0, %v945
      %v947 = vpop.f32.mrf.mxu0
      %v948 = vadd.f32 0.0, %v947
      %949 = vmatmul.bf16.gmra.mxu0 %v714
      %v950 = vpop.f32.mrf.mxu0
      %v951 = vadd.f32 0.0, %v950
      %v952 = vpop.f32.mrf.mxu0
      %v953 = vadd.f32 0.0, %v952
      %954 = vmatmul.bf16.gmra.mxu0 %v717
      %v955 = vpop.f32.mrf.mxu0
      %v956 = vadd.f32 0.0, %v955
      %v957 = vpop.f32.mrf.mxu0
      %v958 = vadd.f32 0.0, %v957
      %959 = vmatmul.bf16.gmra.mxu0 %v720
      %v960 = vpop.f32.mrf.mxu0
      %v961 = vadd.f32 0.0, %v960
      %v962 = vpop.f32.mrf.mxu0
      %v963 = vadd.f32 0.0, %v962
      %964 = vmatmul.bf16.gmra.mxu0 %v723
      %v965 = vpop.f32.mrf.mxu0
      %v966 = vadd.f32 0.0, %v965
      %v967 = vpop.f32.mrf.mxu0
      %v968 = vadd.f32 0.0, %v967
      %969 = vmatmul.bf16.gmra.mxu0 %v726
      %v970 = vpop.f32.mrf.mxu0
      %v971 = vadd.f32 0.0, %v970
      %v972 = vpop.f32.mrf.mxu0
      %v973 = vadd.f32 0.0, %v972
      %974 = vmatmul.bf16.gmra.mxu0 %v729
      %v975 = vpop.f32.mrf.mxu0
      %v976 = vadd.f32 0.0, %v975
      %v977 = vpop.f32.mrf.mxu0
      %v978 = vadd.f32 0.0, %v977
      %979 = vmatmul.bf16.gmra.mxu0 %v732
      %v980 = vpop.f32.mrf.mxu0
      %v981 = vadd.f32 0.0, %v980
      %v982 = vpop.f32.mrf.mxu0
      %v983 = vadd.f32 0.0, %v982
      %984 = vmatmul.bf16.gmra.mxu0 %v735
      %v985 = vpop.f32.mrf.mxu0
      %v986 = vadd.f32 0.0, %v985
      %v987 = vpop.f32.mrf.mxu0
      %v988 = vadd.f32 0.0, %v987
      %989 = vmatmul.bf16.gmra.mxu0 %v738
      %v990 = vpop.f32.mrf.mxu0
      %v991 = vadd.f32 0.0, %v990
      %v992 = vpop.f32.mrf.mxu0
      %v993 = vadd.f32 0.0, %v992
      %994 = vmatmul.bf16.gmra.mxu0 %v741
      %v995 = vpop.f32.mrf.mxu0
      %v996 = vadd.f32 0.0, %v995
      %v997 = vpop.f32.mrf.mxu0
      %v998 = vadd.f32 0.0, %v997
      %999 = vmatmul.bf16.gmra.mxu0 %v744
      %v1000 = vpop.f32.mrf.mxu0
      %v1001 = vadd.f32 0.0, %v1000
      %v1002 = vpop.f32.mrf.mxu0
      %v1003 = vadd.f32 0.0, %v1002
      %1004 = vmatmul.bf16.gmra.mxu0 %v747
      %v1005 = vpop.f32.mrf.mxu0
      %v1006 = vadd.f32 0.0, %v1005
      %v1007 = vpop.f32.mrf.mxu0
      %v1008 = vadd.f32 0.0, %v1007
      %1009 = vmatmul.bf16.gmra.mxu0 %v750
      %v1010 = vpop.f32.mrf.mxu0
      %v1011 = vadd.f32 0.0, %v1010
      %v1012 = vpop.f32.mrf.mxu0
      %v1013 = vadd.f32 0.0, %v1012
      %1014 = vmatmul.bf16.gmra.mxu0 %v753
      %v1015 = vpop.f32.mrf.mxu0
      %v1016 = vadd.f32 0.0, %v1015
      %v1017 = vpop.f32.mrf.mxu0
      %v1018 = vadd.f32 0.0, %v1017
      %1019 = vmatmul.bf16.gmra.mxu0 %v756
      %v1020 = vpop.f32.mrf.mxu0
      %v1021 = vadd.f32 0.0, %v1020
      %v1022 = vpop.f32.mrf.mxu0
      %v1023 = vadd.f32 0.0, %v1022
      %1024 = vmatmul.bf16.gmra.mxu0 %v759
      %v1025 = vpop.f32.mrf.mxu0
      %v1026 = vadd.f32 0.0, %v1025
      %v1027 = vpop.f32.mrf.mxu0
      %v1028 = vadd.f32 0.0, %v1027
      %1029 = vmatmul.bf16.gmra.mxu0 %v762
      %v1030 = vpop.f32.mrf.mxu0
      %v1031 = vadd.f32 0.0, %v1030
      %v1032 = vpop.f32.mrf.mxu0
      %v1033 = vadd.f32 0.0, %v1032
      %1034 = vmatmul.bf16.gmra.mxu0 %v765
      %v1035 = vpop.f32.mrf.mxu0
      %v1036 = vadd.f32 0.0, %v1035
      %v1037 = vpop.f32.mrf.mxu0
      %v1038 = vadd.f32 0.0, %v1037
      %1039 = vmatmul.bf16.gmra.mxu0 %v768
      %v1040 = vpop.f32.mrf.mxu0
      %v1041 = vadd.f32 0.0, %v1040
      %v1042 = vpop.f32.mrf.mxu0
      %v1043 = vadd.f32 0.0, %v1042
      %1044 = vmatmul.bf16.gmra.mxu0 %v771
      %v1045 = vpop.f32.mrf.mxu0
      %v1046 = vadd.f32 0.0, %v1045
      %v1047 = vpop.f32.mrf.mxu0
      %v1048 = vadd.f32 0.0, %v1047
      %1049 = vmatmul.bf16.gmra.mxu0 %v774
      %v1050 = vpop.f32.mrf.mxu0
      %v1051 = vadd.f32 0.0, %v1050
      %v1052 = vpop.f32.mrf.mxu0
      %v1053 = vadd.f32 0.0, %v1052
      %1054 = vmatmul.bf16.gmra.mxu0 %v777
      %v1055 = vpop.f32.mrf.mxu0
      %v1056 = vadd.f32 0.0, %v1055
      %v1057 = vpop.f32.mrf.mxu0
      %v1058 = vadd.f32 0.0, %v1057
      %1059 = vmatmul.bf16.gmra.mxu0 %v780
      %v1060 = vpop.f32.mrf.mxu0
      %v1061 = vadd.f32 0.0, %v1060
      %v1062 = vpop.f32.mrf.mxu0
      %v1063 = vadd.f32 0.0, %v1062
      %1064 = vmatmul.bf16.gmra.mxu0 %v783
      %v1065 = vpop.f32.mrf.mxu0
      %v1066 = vadd.f32 0.0, %v1065
      %v1067 = vpop.f32.mrf.mxu0
      %v1068 = vadd.f32 0.0, %v1067
      %1069 = vmatmul.bf16.gmra.mxu0 %v786
      %v1070 = vpop.f32.mrf.mxu0
      %v1071 = vadd.f32 0.0, %v1070
      %v1072 = vpop.f32.mrf.mxu0
      %v1073 = vadd.f32 0.0, %v1072
      %1074 = vmatmul.bf16.gmra.mxu0 %v789
      %v1075 = vpop.f32.mrf.mxu0
      %v1076 = vadd.f32 0.0, %v1075
      %v1077 = vpop.f32.mrf.mxu0
      %v1078 = vadd.f32 0.0, %v1077
      %1079 = vmatmul.bf16.gmra.mxu0 %v792
      %v1080 = vpop.f32.mrf.mxu0
      %v1081 = vadd.f32 0.0, %v1080
      %v1082 = vpop.f32.mrf.mxu0
      %v1083 = vadd.f32 0.0, %v1082
      %1084 = vmatmul.bf16.gmra.mxu0 %v795
      %v1085 = vpop.f32.mrf.mxu0
      %v1086 = vadd.f32 0.0, %v1085
      %v1087 = vpop.f32.mrf.mxu0
      %v1088 = vadd.f32 0.0, %v1087
      %1089 = vmatmul.bf16.gmra.mxu0 %v798
      %v1090 = vpop.f32.mrf.mxu0
      %v1091 = vadd.f32 0.0, %v1090
      %v1092 = vpop.f32.mrf.mxu0
      %v1093 = vadd.f32 0.0, %v1092
      %1094 = vmatmul.bf16.gmra.mxu0 %v801
      %v1095 = vpop.f32.mrf.mxu0
      %v1096 = vadd.f32 0.0, %v1095
      %v1097 = vpop.f32.mrf.mxu0
      %v1098 = vadd.f32 0.0, %v1097
      %1099 = vmatmul.bf16.gmra.mxu0 %v804
      %v1100 = vpop.f32.mrf.mxu0
      %v1101 = vadd.f32 0.0, %v1100
      %v1102 = vpop.f32.mrf.mxu0
      %v1103 = vadd.f32 0.0, %v1102
      %1104 = vmatmul.bf16.gmra.mxu0 %v807
      %v1105 = vpop.f32.mrf.mxu0
      %v1106 = vadd.f32 0.0, %v1105
      %v1107 = vpop.f32.mrf.mxu0
      %v1108 = vadd.f32 0.0, %v1107
      %1109 = vmatmul.bf16.gmra.mxu0 %v810
      %v1110 = vpop.f32.mrf.mxu0
      %v1111 = vadd.f32 0.0, %v1110
      %v1112 = vpop.f32.mrf.mxu0
      %v1113 = vadd.f32 0.0, %v1112
      %1114 = vmatmul.bf16.gmra.mxu0 %v813
      %v1115 = vpop.f32.mrf.mxu0
      %v1116 = vadd.f32 0.0, %v1115
      %v1117 = vpop.f32.mrf.mxu0
      %v1118 = vadd.f32 0.0, %v1117
      %1119 = vmatmul.bf16.gmra.mxu0 %v816
      %v1120 = vpop.f32.mrf.mxu0
      %v1121 = vadd.f32 0.0, %v1120
      %v1122 = vpop.f32.mrf.mxu0
      %v1123 = vadd.f32 0.0, %v1122
      %1124 = vmatmul.bf16.gmra.mxu0 %v819
      %v1125 = vpop.f32.mrf.mxu0
      %v1126 = vadd.f32 0.0, %v1125
      %v1127 = vpop.f32.mrf.mxu0
      %v1128 = vadd.f32 0.0, %v1127
      %1129 = vmatmul.bf16.gmra.mxu0 %v822
      %v1130 = vpop.f32.mrf.mxu0
      %v1131 = vadd.f32 0.0, %v1130
      %v1132 = vpop.f32.mrf.mxu0
      %v1133 = vadd.f32 0.0, %v1132
      %1134 = vmatmul.bf16.gmra.mxu0 %v825
      %v1135 = vpop.f32.mrf.mxu0
      %v1136 = vadd.f32 0.0, %v1135
      %v1137 = vpop.f32.mrf.mxu0
      %v1138 = vadd.f32 0.0, %v1137
      %1139 = vmatmul.bf16.gmra.mxu0 %v828
      %v1140 = vpop.f32.mrf.mxu0
      %v1141 = vadd.f32 0.0, %v1140
      %v1142 = vpop.f32.mrf.mxu0
      %v1143 = vadd.f32 0.0, %v1142
      %1144 = vmatmul.bf16.gmra.mxu0 %v831
      %v1145 = vpop.f32.mrf.mxu0
      %v1146 = vadd.f32 0.0, %v1145
      %v1147 = vpop.f32.mrf.mxu0
      %v1148 = vadd.f32 0.0, %v1147
      %1149 = vmatmul.bf16.gmra.mxu0 %v834
      %v1150 = vpop.f32.mrf.mxu0
      %v1151 = vadd.f32 0.0, %v1150
      %v1152 = vpop.f32.mrf.mxu0
      %v1153 = vadd.f32 0.0, %v1152
      %1154 = vmatmul.bf16.gmra.mxu0 %v837
      %v1155 = vpop.f32.mrf.mxu0
      %v1156 = vadd.f32 0.0, %v1155
      %v1157 = vpop.f32.mrf.mxu0
      %v1158 = vadd.f32 0.0, %v1157
      %1159 = vmatmul.bf16.gmra.mxu0 %v840
      %v1160 = vpop.f32.mrf.mxu0
      %v1161 = vadd.f32 0.0, %v1160
      %v1162 = vpop.f32.mrf.mxu0
      %v1163 = vadd.f32 0.0, %v1162
      %1164 = vmatmul.bf16.gmra.mxu0 %v843
      %v1165 = vpop.f32.mrf.mxu0
      %v1166 = vadd.f32 0.0, %v1165
      %v1167 = vpop.f32.mrf.mxu0
      %v1168 = vadd.f32 0.0, %v1167
      %1169 = vmatmul.bf16.gmra.mxu0 %v846
      %v1170 = vpop.f32.mrf.mxu0
      %v1171 = vadd.f32 0.0, %v1170
      %v1172 = vpop.f32.mrf.mxu0
      %v1173 = vadd.f32 0.0, %v1172
      %1174 = vmatmul.bf16.gmra.mxu0 %v849
      %v1175 = vpop.f32.mrf.mxu0
      %v1176 = vadd.f32 0.0, %v1175
      %v1177 = vpop.f32.mrf.mxu0
      %v1178 = vadd.f32 0.0, %v1177
      %1179 = vdwg.mxu0
      %v1180 = vpack.c.bf16 %v861, %v861
      %v1181 = vpack.c.bf16 %v863, %v863
      %v1182 = vpack.c.bf16 %v866, %v866
      %v1183 = vpack.c.bf16 %v868, %v868
      %v1184 = vpack.c.bf16 %v871, %v871
      %v1185 = vpack.c.bf16 %v873, %v873
      %v1186 = vpack.c.bf16 %v876, %v876
      %v1187 = vpack.c.bf16 %v878, %v878
      %v1188 = vpack.c.bf16 %v881, %v881
      %v1189 = vpack.c.bf16 %v883, %v883
      %v1190 = vpack.c.bf16 %v886, %v886
      %v1191 = vpack.c.bf16 %v888, %v888
      %v1192 = vpack.c.bf16 %v891, %v891
      %v1193 = vpack.c.bf16 %v893, %v893
      %v1194 = vpack.c.bf16 %v896, %v896
      %v1195 = vpack.c.bf16 %v898, %v898
      %v1196 = vpack.c.bf16 %v901, %v901
      %v1197 = vpack.c.bf16 %v903, %v903
      %v1198 = vpack.c.bf16 %v906, %v906
      %v1199 = vpack.c.bf16 %v908, %v908
      %v1200 = vpack.c.bf16 %v911, %v911
      %v1201 = vpack.c.bf16 %v913, %v913
      %v1202 = vpack.c.bf16 %v916, %v916
      %v1203 = vpack.c.bf16 %v918, %v918
      %v1204 = vpack.c.bf16 %v921, %v921
      %v1205 = vpack.c.bf16 %v923, %v923
      %v1206 = vpack.c.bf16 %v926, %v926
      %v1207 = vpack.c.bf16 %v928, %v928
      %v1208 = vpack.c.bf16 %v931, %v931
      %v1209 = vpack.c.bf16 %v933, %v933
      %v1210 = vpack.c.bf16 %v936, %v936
      %v1211 = vpack.c.bf16 %v938, %v938
      %v1212 = vpack.c.bf16 %v941, %v941
      %v1213 = vpack.c.bf16 %v943, %v943
      %v1214 = vpack.c.bf16 %v946, %v946
      %v1215 = vpack.c.bf16 %v948, %v948
      %v1216 = vpack.c.bf16 %v951, %v951
      %v1217 = vpack.c.bf16 %v953, %v953
      %v1218 = vpack.c.bf16 %v956, %v956
      %v1219 = vpack.c.bf16 %v958, %v958
      %v1220 = vpack.c.bf16 %v961, %v961
      %v1221 = vpack.c.bf16 %v963, %v963
      %v1222 = vpack.c.bf16 %v966, %v966
      %v1223 = vpack.c.bf16 %v968, %v968
      %v1224 = vpack.c.bf16 %v971, %v971
      %v1225 = vpack.c.bf16 %v973, %v973
      %v1226 = vpack.c.bf16 %v976, %v976
      %v1227 = vpack.c.bf16 %v978, %v978
      %v1228 = vpack.c.bf16 %v981, %v981
      %v1229 = vpack.c.bf16 %v983, %v983
      %v1230 = vpack.c.bf16 %v986, %v986
      %v1231 = vpack.c.bf16 %v988, %v988
      %v1232 = vpack.c.bf16 %v991, %v991
      %v1233 = vpack.c.bf16 %v993, %v993
      %v1234 = vpack.c.bf16 %v996, %v996
      %v1235 = vpack.c.bf16 %v998, %v998
      %v1236 = vpack.c.bf16 %v1001, %v1001
      %v1237 = vpack.c.bf16 %v1003, %v1003
      %v1238 = vpack.c.bf16 %v1006, %v1006
      %v1239 = vpack.c.bf16 %v1008, %v1008
      %v1240 = vpack.c.bf16 %v1011, %v1011
      %v1241 = vpack.c.bf16 %v1013, %v1013
      %v1242 = vpack.c.bf16 %v1016, %v1016
      %v1243 = vpack.c.bf16 %v1018, %v1018
      %v1244 = vpack.c.bf16 %v1021, %v1021
      %v1245 = vpack.c.bf16 %v1023, %v1023
      %v1246 = vpack.c.bf16 %v1026, %v1026
      %v1247 = vpack.c.bf16 %v1028, %v1028
      %v1248 = vpack.c.bf16 %v1031, %v1031
      %v1249 = vpack.c.bf16 %v1033, %v1033
      %v1250 = vpack.c.bf16 %v1036, %v1036
      %v1251 = vpack.c.bf16 %v1038, %v1038
      %v1252 = vpack.c.bf16 %v1041, %v1041
      %v1253 = vpack.c.bf16 %v1043, %v1043
      %v1254 = vpack.c.bf16 %v1046, %v1046
      %v1255 = vpack.c.bf16 %v1048, %v1048
      %v1256 = vpack.c.bf16 %v1051, %v1051
      %v1257 = vpack.c.bf16 %v1053, %v1053
      %v1258 = vpack.c.bf16 %v1056, %v1056
      %v1259 = vpack.c.bf16 %v1058, %v1058
      %v1260 = vpack.c.bf16 %v1061, %v1061
      %v1261 = vpack.c.bf16 %v1063, %v1063
      %v1262 = vpack.c.bf16 %v1066, %v1066
      %v1263 = vpack.c.bf16 %v1068, %v1068
      %v1264 = vpack.c.bf16 %v1071, %v1071
      %v1265 = vpack.c.bf16 %v1073, %v1073
      %v1266 = vpack.c.bf16 %v1076, %v1076
      %v1267 = vpack.c.bf16 %v1078, %v1078
      %v1268 = vpack.c.bf16 %v1081, %v1081
      %v1269 = vpack.c.bf16 %v1083, %v1083
      %v1270 = vpack.c.bf16 %v1086, %v1086
      %v1271 = vpack.c.bf16 %v1088, %v1088
      %v1272 = vpack.c.bf16 %v1091, %v1091
      %v1273 = vpack.c.bf16 %v1093, %v1093
      %v1274 = vpack.c.bf16 %v1096, %v1096
      %v1275 = vpack.c.bf16 %v1098, %v1098
      %v1276 = vpack.c.bf16 %v1101, %v1101
      %v1277 = vpack.c.bf16 %v1103, %v1103
      %v1278 = vpack.c.bf16 %v1106, %v1106
      %v1279 = vpack.c.bf16 %v1108, %v1108
      %v1280 = vpack.c.bf16 %v1111, %v1111
      %v1281 = vpack.c.bf16 %v1113, %v1113
      %v1282 = vpack.c.bf16 %v1116, %v1116
      %v1283 = vpack.c.bf16 %v1118, %v1118
      %v1284 = vpack.c.bf16 %v1121, %v1121
      %v1285 = vpack.c.bf16 %v1123, %v1123
      %v1286 = vpack.c.bf16 %v1126, %v1126
      %v1287 = vpack.c.bf16 %v1128, %v1128
      %v1288 = vpack.c.bf16 %v1131, %v1131
      %v1289 = vpack.c.bf16 %v1133, %v1133
      %v1290 = vpack.c.bf16 %v1136, %v1136
      %v1291 = vpack.c.bf16 %v1138, %v1138
      %v1292 = vpack.c.bf16 %v1141, %v1141
      %v1293 = vpack.c.bf16 %v1143, %v1143
      %v1294 = vpack.c.bf16 %v1146, %v1146
      %v1295 = vpack.c.bf16 %v1148, %v1148
      %v1296 = vpack.c.bf16 %v1151, %v1151
      %v1297 = vpack.c.bf16 %v1153, %v1153
      %v1298 = vpack.c.bf16 %v1156, %v1156
      %v1299 = vpack.c.bf16 %v1158, %v1158
      %v1300 = vpack.c.bf16 %v1161, %v1161
      %v1301 = vpack.c.bf16 %v1163, %v1163
      %v1302 = vpack.c.bf16 %v1166, %v1166
      %v1303 = vpack.c.bf16 %v1168, %v1168
      %v1304 = vpack.c.bf16 %v1171, %v1171
      %v1305 = vpack.c.bf16 %v1173, %v1173
      %v1306 = vpack.c.bf16 %v1176, %v1176
      %v1307 = vpack.c.bf16 %v1178, %v1178
      %vm1308 = vcmask 60416
      %1309 = vst.msk [vmem:[%s179] sm:$0xf] %vm1308, %v1180
      %1310 = vst.msk [vmem:[%s179 + $0x4] sm:$0xf] %vm1308, %v1181
      %1311 = vst.msk [vmem:[%s179 + $0x8] sm:$0xf] %vm1308, %v1182
      %1312 = vst.msk [vmem:[%s179 + $0xc] sm:$0xf] %vm1308, %v1183
      %1313 = vst.msk [vmem:[%s179 + $0x10] sm:$0xf] %vm1308, %v1184
      %1314 = vst.msk [vmem:[%s179 + $0x14] sm:$0xf] %vm1308, %v1185
      %1315 = vst.msk [vmem:[%s179 + $0x18] sm:$0xf] %vm1308, %v1186
      %1316 = vst.msk [vmem:[%s179 + $0x1c] sm:$0xf] %vm1308, %v1187
      %1317 = vst.msk [vmem:[%s179 + $0x20] sm:$0xf] %vm1308, %v1188
      %1318 = vst.msk [vmem:[%s179 + $0x24] sm:$0xf] %vm1308, %v1189
      %1319 = vst.msk [vmem:[%s179 + $0x28] sm:$0xf] %vm1308, %v1190
      %1320 = vst.msk [vmem:[%s179 + $0x2c] sm:$0xf] %vm1308, %v1191
      %1321 = vst.msk [vmem:[%s179 + $0x30] sm:$0xf] %vm1308, %v1192
      %1322 = vst.msk [vmem:[%s179 + $0x34] sm:$0xf] %vm1308, %v1193
      %1323 = vst.msk [vmem:[%s179 + $0x38] sm:$0xf] %vm1308, %v1194
      %1324 = vst.msk [vmem:[%s179 + $0x3c] sm:$0xf] %vm1308, %v1195
      %1325 = vst.msk [vmem:[%s179 + $0x40] sm:$0xf] %vm1308, %v1196
      %1326 = vst.msk [vmem:[%s179 + $0x44] sm:$0xf] %vm1308, %v1197
      %1327 = vst.msk [vmem:[%s179 + $0x48] sm:$0xf] %vm1308, %v1198
      %1328 = vst.msk [vmem:[%s179 + $0x4c] sm:$0xf] %vm1308, %v1199
      %1329 = vst.msk [vmem:[%s179 + $0x50] sm:$0xf] %vm1308, %v1200
      %1330 = vst.msk [vmem:[%s179 + $0x54] sm:$0xf] %vm1308, %v1201
      %1331 = vst.msk [vmem:[%s179 + $0x58] sm:$0xf] %vm1308, %v1202
      %1332 = vst.msk [vmem:[%s179 + $0x5c] sm:$0xf] %vm1308, %v1203
      %1333 = vst.msk [vmem:[%s179 + $0x60] sm:$0xf] %vm1308, %v1204
      %1334 = vst.msk [vmem:[%s179 + $0x64] sm:$0xf] %vm1308, %v1205
      %1335 = vst.msk [vmem:[%s179 + $0x68] sm:$0xf] %vm1308, %v1206
      %1336 = vst.msk [vmem:[%s179 + $0x6c] sm:$0xf] %vm1308, %v1207
      %1337 = vst.msk [vmem:[%s179 + $0x70] sm:$0xf] %vm1308, %v1208
      %1338 = vst.msk [vmem:[%s179 + $0x74] sm:$0xf] %vm1308, %v1209
      %1339 = vst.msk [vmem:[%s179 + $0x78] sm:$0xf] %vm1308, %v1210
      %1340 = vst.msk [vmem:[%s179 + $0x7c] sm:$0xf] %vm1308, %v1211
      %1341 = vst.msk [vmem:[%s179 + $0x80] sm:$0xf] %vm1308, %v1212
      %1342 = vst.msk [vmem:[%s179 + $0x84] sm:$0xf] %vm1308, %v1213
      %1343 = vst.msk [vmem:[%s179 + $0x88] sm:$0xf] %vm1308, %v1214
      %1344 = vst.msk [vmem:[%s179 + $0x8c] sm:$0xf] %vm1308, %v1215
      %1345 = vst.msk [vmem:[%s179 + $0x90] sm:$0xf] %vm1308, %v1216
      %1346 = vst.msk [vmem:[%s179 + $0x94] sm:$0xf] %vm1308, %v1217
      %1347 = vst.msk [vmem:[%s179 + $0x98] sm:$0xf] %vm1308, %v1218
      %1348 = vst.msk [vmem:[%s179 + $0x9c] sm:$0xf] %vm1308, %v1219
      %1349 = vst.msk [vmem:[%s179 + $0xa0] sm:$0xf] %vm1308, %v1220
      %1350 = vst.msk [vmem:[%s179 + $0xa4] sm:$0xf] %vm1308, %v1221
      %1351 = vst.msk [vmem:[%s179 + $0xa8] sm:$0xf] %vm1308, %v1222
      %1352 = vst.msk [vmem:[%s179 + $0xac] sm:$0xf] %vm1308, %v1223
      %1353 = vst.msk [vmem:[%s179 + $0xb0] sm:$0xf] %vm1308, %v1224
      %1354 = vst.msk [vmem:[%s179 + $0xb4] sm:$0xf] %vm1308, %v1225
      %1355 = vst.msk [vmem:[%s179 + $0xb8] sm:$0xf] %vm1308, %v1226
      %1356 = vst.msk [vmem:[%s179 + $0xbc] sm:$0xf] %vm1308, %v1227
      %1357 = vst.msk [vmem:[%s179 + $0xc0] sm:$0xf] %vm1308, %v1228
      %1358 = vst.msk [vmem:[%s179 + $0xc4] sm:$0xf] %vm1308, %v1229
      %1359 = vst.msk [vmem:[%s179 + $0xc8] sm:$0xf] %vm1308, %v1230
      %1360 = vst.msk [vmem:[%s179 + $0xcc] sm:$0xf] %vm1308, %v1231
      %1361 = vst.msk [vmem:[%s179 + $0xd0] sm:$0xf] %vm1308, %v1232
      %1362 = vst.msk [vmem:[%s179 + $0xd4] sm:$0xf] %vm1308, %v1233
      %1363 = vst.msk [vmem:[%s179 + $0xd8] sm:$0xf] %vm1308, %v1234
      %1364 = vst.msk [vmem:[%s179 + $0xdc] sm:$0xf] %vm1308, %v1235
      %1365 = vst.msk [vmem:[%s179 + $0xe0] sm:$0xf] %vm1308, %v1236
      %1366 = vst.msk [vmem:[%s179 + $0xe4] sm:$0xf] %vm1308, %v1237
      %1367 = vst.msk [vmem:[%s179 + $0xe8] sm:$0xf] %vm1308, %v1238
      %1368 = vst.msk [vmem:[%s179 + $0xec] sm:$0xf] %vm1308, %v1239
      %1369 = vst.msk [vmem:[%s179 + $0xf0] sm:$0xf] %vm1308, %v1240
      %1370 = vst.msk [vmem:[%s179 + $0xf4] sm:$0xf] %vm1308, %v1241
      %1371 = vst.msk [vmem:[%s179 + $0xf8] sm:$0xf] %vm1308, %v1242
      %1372 = vst.msk [vmem:[%s179 + $0xfc] sm:$0xf] %vm1308, %v1243
      %1373 = vst.msk [vmem:[%s179 + $0x100] sm:$0xf] %vm1308, %v1244
      %1374 = vst.msk [vmem:[%s179 + $0x104] sm:$0xf] %vm1308, %v1245
      %1375 = vst.msk [vmem:[%s179 + $0x108] sm:$0xf] %vm1308, %v1246
      %1376 = vst.msk [vmem:[%s179 + $0x10c] sm:$0xf] %vm1308, %v1247
      %1377 = vst.msk [vmem:[%s179 + $0x110] sm:$0xf] %vm1308, %v1248
      %1378 = vst.msk [vmem:[%s179 + $0x114] sm:$0xf] %vm1308, %v1249
      %1379 = vst.msk [vmem:[%s179 + $0x118] sm:$0xf] %vm1308, %v1250
      %1380 = vst.msk [vmem:[%s179 + $0x11c] sm:$0xf] %vm1308, %v1251
      %1381 = vst.msk [vmem:[%s179 + $0x120] sm:$0xf] %vm1308, %v1252
      %1382 = vst.msk [vmem:[%s179 + $0x124] sm:$0xf] %vm1308, %v1253
      %1383 = vst.msk [vmem:[%s179 + $0x128] sm:$0xf] %vm1308, %v1254
      %1384 = vst.msk [vmem:[%s179 + $0x12c] sm:$0xf] %vm1308, %v1255
      %1385 = vst.msk [vmem:[%s179 + $0x130] sm:$0xf] %vm1308, %v1256
      %1386 = vst.msk [vmem:[%s179 + $0x134] sm:$0xf] %vm1308, %v1257
      %1387 = vst.msk [vmem:[%s179 + $0x138] sm:$0xf] %vm1308, %v1258
      %1388 = vst.msk [vmem:[%s179 + $0x13c] sm:$0xf] %vm1308, %v1259
      %1389 = vst.msk [vmem:[%s179 + $0x140] sm:$0xf] %vm1308, %v1260
      %1390 = vst.msk [vmem:[%s179 + $0x144] sm:$0xf] %vm1308, %v1261
      %1391 = vst.msk [vmem:[%s179 + $0x148] sm:$0xf] %vm1308, %v1262
      %1392 = vst.msk [vmem:[%s179 + $0x14c] sm:$0xf] %vm1308, %v1263
      %1393 = vst.msk [vmem:[%s179 + $0x150] sm:$0xf] %vm1308, %v1264
      %1394 = vst.msk [vmem:[%s179 + $0x154] sm:$0xf] %vm1308, %v1265
      %1395 = vst.msk [vmem:[%s179 + $0x158] sm:$0xf] %vm1308, %v1266
      %1396 = vst.msk [vmem:[%s179 + $0x15c] sm:$0xf] %vm1308, %v1267
      %1397 = vst.msk [vmem:[%s179 + $0x160] sm:$0xf] %vm1308, %v1268
      %1398 = vst.msk [vmem:[%s179 + $0x164] sm:$0xf] %vm1308, %v1269
      %1399 = vst.msk [vmem:[%s179 + $0x168] sm:$0xf] %vm1308, %v1270
      %1400 = vst.msk [vmem:[%s179 + $0x16c] sm:$0xf] %vm1308, %v1271
      %1401 = vst.msk [vmem:[%s179 + $0x170] sm:$0xf] %vm1308, %v1272
      %1402 = vst.msk [vmem:[%s179 + $0x174] sm:$0xf] %vm1308, %v1273
      %1403 = vst.msk [vmem:[%s179 + $0x178] sm:$0xf] %vm1308, %v1274
      %1404 = vst.msk [vmem:[%s179 + $0x17c] sm:$0xf] %vm1308, %v1275
      %1405 = vst.msk [vmem:[%s179 + $0x180] sm:$0xf] %vm1308, %v1276
      %1406 = vst.msk [vmem:[%s179 + $0x184] sm:$0xf] %vm1308, %v1277
      %1407 = vst.msk [vmem:[%s179 + $0x188] sm:$0xf] %vm1308, %v1278
      %1408 = vst.msk [vmem:[%s179 + $0x18c] sm:$0xf] %vm1308, %v1279
      %1409 = vst.msk [vmem:[%s179 + $0x190] sm:$0xf] %vm1308, %v1280
      %1410 = vst.msk [vmem:[%s179 + $0x194] sm:$0xf] %vm1308, %v1281
      %1411 = vst.msk [vmem:[%s179 + $0x198] sm:$0xf] %vm1308, %v1282
      %1412 = vst.msk [vmem:[%s179 + $0x19c] sm:$0xf] %vm1308, %v1283
      %1413 = vst.msk [vmem:[%s179 + $0x1a0] sm:$0xf] %vm1308, %v1284
      %1414 = vst.msk [vmem:[%s179 + $0x1a4] sm:$0xf] %vm1308, %v1285
      %1415 = vst.msk [vmem:[%s179 + $0x1a8] sm:$0xf] %vm1308, %v1286
      %1416 = vst.msk [vmem:[%s179 + $0x1ac] sm:$0xf] %vm1308, %v1287
      %1417 = vst.msk [vmem:[%s179 + $0x1b0] sm:$0xf] %vm1308, %v1288
      %1418 = vst.msk [vmem:[%s179 + $0x1b4] sm:$0xf] %vm1308, %v1289
      %1419 = vst.msk [vmem:[%s179 + $0x1b8] sm:$0xf] %vm1308, %v1290
      %1420 = vst.msk [vmem:[%s179 + $0x1bc] sm:$0xf] %vm1308, %v1291
      %1421 = vst.msk [vmem:[%s179 + $0x1c0] sm:$0xf] %vm1308, %v1292
      %1422 = vst.msk [vmem:[%s179 + $0x1c4] sm:$0xf] %vm1308, %v1293
      %1423 = vst.msk [vmem:[%s179 + $0x1c8] sm:$0xf] %vm1308, %v1294
      %1424 = vst.msk [vmem:[%s179 + $0x1cc] sm:$0xf] %vm1308, %v1295
      %1425 = vst.msk [vmem:[%s179 + $0x1d0] sm:$0xf] %vm1308, %v1296
      %1426 = vst.msk [vmem:[%s179 + $0x1d4] sm:$0xf] %vm1308, %v1297
      %1427 = vst.msk [vmem:[%s179 + $0x1d8] sm:$0xf] %vm1308, %v1298
      %1428 = vst.msk [vmem:[%s179 + $0x1dc] sm:$0xf] %vm1308, %v1299
      %1429 = vst.msk [vmem:[%s179 + $0x1e0] sm:$0xf] %vm1308, %v1300
      %1430 = vst.msk [vmem:[%s179 + $0x1e4] sm:$0xf] %vm1308, %v1301
      %1431 = vst.msk [vmem:[%s179 + $0x1e8] sm:$0xf] %vm1308, %v1302
      %1432 = vst.msk [vmem:[%s179 + $0x1ec] sm:$0xf] %vm1308, %v1303
      %1433 = vst.msk [vmem:[%s179 + $0x1f0] sm:$0xf] %vm1308, %v1304
      %1434 = vst.msk [vmem:[%s179 + $0x1f4] sm:$0xf] %vm1308, %v1305
      %1435 = vst.msk [vmem:[%s179 + $0x1f8] sm:$0xf] %vm1308, %v1306
      %1436 = vst.msk [vmem:[%s179 + $0x1fc] sm:$0xf] %vm1308, %v1307
      %1437 = vmatpush.msra.mxu0 %v898
      %1438 = vmatpush.msra.mxu0 %v896
      %1439 = vmatpush.msra.mxu0 %v893
      %1440 = vmatpush.msra.mxu0 %v891
      %1441 = vmatpush.msra.mxu0 %v888
      %1442 = vmatpush.msra.mxu0 %v886
      %1443 = vmatpush.msra.mxu0 %v883
      %1444 = vmatpush.msra.mxu0 %v881
      %1445 = vmatpush.msra.mxu0 %v878
      %1446 = vmatpush.msra.mxu0 %v876
      %1447 = vmatpush.msra.mxu0 %v873
      %1448 = vmatpush.msra.mxu0 %v871
      %1449 = vmatpush.msra.mxu0 %v868
      %1450 = vmatpush.msra.mxu0 %v866
      %1451 = vmatpush.msra.mxu0 %v863
      %1452 = vmatpush.msra.mxu0 %v861
      %1453 = vmatmul.f32.gmra.mxu0 1.0
      %v1454 = vpop.f32.mrf.mxu0
      %v1455 = vadd.f32 0.0, %v1454
      %1456 = vdwg.mxu0
      %1457 = vmatpush.msra.mxu0 %v938
      %1458 = vmatpush.msra.mxu0 %v936
      %1459 = vmatpush.msra.mxu0 %v933
      %1460 = vmatpush.msra.mxu0 %v931
      %1461 = vmatpush.msra.mxu0 %v928
      %1462 = vmatpush.msra.mxu0 %v926
      %1463 = vmatpush.msra.mxu0 %v923
      %1464 = vmatpush.msra.mxu0 %v921
      %1465 = vmatpush.msra.mxu0 %v918
      %1466 = vmatpush.msra.mxu0 %v916
      %1467 = vmatpush.msra.mxu0 %v913
      %1468 = vmatpush.msra.mxu0 %v911
      %1469 = vmatpush.msra.mxu0 %v908
      %1470 = vmatpush.msra.mxu0 %v906
      %1471 = vmatpush.msra.mxu0 %v903
      %1472 = vmatpush.msra.mxu0 %v901
      %1473 = vmatmul.f32.gmra.mxu0 1.0
      %v1474 = vpop.f32.mrf.mxu0
      %v1475 = vadd.f32 %v1455, %v1474
      %1476 = vdwg.mxu0
      %1477 = vmatpush.msra.mxu0 %v978
      %1478 = vmatpush.msra.mxu0 %v976
      %1479 = vmatpush.msra.mxu0 %v973
      %1480 = vmatpush.msra.mxu0 %v971
      %1481 = vmatpush.msra.mxu0 %v968
      %1482 = vmatpush.msra.mxu0 %v966
      %1483 = vmatpush.msra.mxu0 %v963
      %1484 = vmatpush.msra.mxu0 %v961
      %1485 = vmatpush.msra.mxu0 %v958
      %1486 = vmatpush.msra.mxu0 %v956
      %1487 = vmatpush.msra.mxu0 %v953
      %1488 = vmatpush.msra.mxu0 %v951
      %1489 = vmatpush.msra.mxu0 %v948
      %1490 = vmatpush.msra.mxu0 %v946
      %1491 = vmatpush.msra.mxu0 %v943
      %1492 = vmatpush.msra.mxu0 %v941
      %1493 = vmatmul.f32.gmra.mxu0 1.0
      %v1494 = vpop.f32.mrf.mxu0
      %v1495 = vadd.f32 %v1475, %v1494
      %1496 = vdwg.mxu0
      %1497 = vmatpush.msra.mxu0 %v1018
      %1498 = vmatpush.msra.mxu0 %v1016
      %1499 = vmatpush.msra.mxu0 %v1013
      %1500 = vmatpush.msra.mxu0 %v1011
      %1501 = vmatpush.msra.mxu0 %v1008
      %1502 = vmatpush.msra.mxu0 %v1006
      %1503 = vmatpush.msra.mxu0 %v1003
      %1504 = vmatpush.msra.mxu0 %v1001
      %1505 = vmatpush.msra.mxu0 %v998
      %1506 = vmatpush.msra.mxu0 %v996
      %1507 = vmatpush.msra.mxu0 %v993
      %1508 = vmatpush.msra.mxu0 %v991
      %1509 = vmatpush.msra.mxu0 %v988
      %1510 = vmatpush.msra.mxu0 %v986
      %1511 = vmatpush.msra.mxu0 %v983
      %1512 = vmatpush.msra.mxu0 %v981
      %1513 = vmatmul.f32.gmra.mxu0 1.0
      %v1514 = vpop.f32.mrf.mxu0
      %v1515 = vadd.f32 %v1495, %v1514
      %1516 = vdwg.mxu0
      %1517 = vmatpush.msra.mxu0 %v1058
      %1518 = vmatpush.msra.mxu0 %v1056
      %1519 = vmatpush.msra.mxu0 %v1053
      %1520 = vmatpush.msra.mxu0 %v1051
      %1521 = vmatpush.msra.mxu0 %v1048
      %1522 = vmatpush.msra.mxu0 %v1046
      %1523 = vmatpush.msra.mxu0 %v1043
      %1524 = vmatpush.msra.mxu0 %v1041
      %1525 = vmatpush.msra.mxu0 %v1038
      %1526 = vmatpush.msra.mxu0 %v1036
      %1527 = vmatpush.msra.mxu0 %v1033
      %1528 = vmatpush.msra.mxu0 %v1031
      %1529 = vmatpush.msra.mxu0 %v1028
      %1530 = vmatpush.msra.mxu0 %v1026
      %1531 = vmatpush.msra.mxu0 %v1023
      %1532 = vmatpush.msra.mxu0 %v1021
      %1533 = vmatmul.f32.gmra.mxu0 1.0
      %v1534 = vpop.f32.mrf.mxu0
      %v1535 = vadd.f32 %v1515, %v1534
      %1536 = vdwg.mxu0
      %1537 = vmatpush.msra.mxu0 %v1098
      %1538 = vmatpush.msra.mxu0 %v1096
      %1539 = vmatpush.msra.mxu0 %v1093
      %1540 = vmatpush.msra.mxu0 %v1091
      %1541 = vmatpush.msra.mxu0 %v1088
      %1542 = vmatpush.msra.mxu0 %v1086
      %1543 = vmatpush.msra.mxu0 %v1083
      %1544 = vmatpush.msra.mxu0 %v1081
      %1545 = vmatpush.msra.mxu0 %v1078
      %1546 = vmatpush.msra.mxu0 %v1076
      %1547 = vmatpush.msra.mxu0 %v1073
      %1548 = vmatpush.msra.mxu0 %v1071
      %1549 = vmatpush.msra.mxu0 %v1068
      %1550 = vmatpush.msra.mxu0 %v1066
      %1551 = vmatpush.msra.mxu0 %v1063
      %1552 = vmatpush.msra.mxu0 %v1061
      %1553 = vmatmul.f32.gmra.mxu0 1.0
      %v1554 = vpop.f32.mrf.mxu0
      %v1555 = vadd.f32 %v1535, %v1554
      %1556 = vdwg.mxu0
      %1557 = vmatpush.msra.mxu0 %v1138
      %1558 = vmatpush.msra.mxu0 %v1136
      %1559 = vmatpush.msra.mxu0 %v1133
      %1560 = vmatpush.msra.mxu0 %v1131
      %1561 = vmatpush.msra.mxu0 %v1128
      %1562 = vmatpush.msra.mxu0 %v1126
      %1563 = vmatpush.msra.mxu0 %v1123
      %1564 = vmatpush.msra.mxu0 %v1121
      %1565 = vmatpush.msra.mxu0 %v1118
      %1566 = vmatpush.msra.mxu0 %v1116
      %1567 = vmatpush.msra.mxu0 %v1113
      %1568 = vmatpush.msra.mxu0 %v1111
      %1569 = vmatpush.msra.mxu0 %v1108
      %1570 = vmatpush.msra.mxu0 %v1106
      %1571 = vmatpush.msra.mxu0 %v1103
      %1572 = vmatpush.msra.mxu0 %v1101
      %1573 = vmatmul.f32.gmra.mxu0 1.0
      %v1574 = vpop.f32.mrf.mxu0
      %v1575 = vadd.f32 %v1555, %v1574
      %1576 = vdwg.mxu0
      %1577 = vmatpush.msra.mxu0 %v1178
      %1578 = vmatpush.msra.mxu0 %v1176
      %1579 = vmatpush.msra.mxu0 %v1173
      %1580 = vmatpush.msra.mxu0 %v1171
      %1581 = vmatpush.msra.mxu0 %v1168
      %1582 = vmatpush.msra.mxu0 %v1166
      %1583 = vmatpush.msra.mxu0 %v1163
      %1584 = vmatpush.msra.mxu0 %v1161
      %1585 = vmatpush.msra.mxu0 %v1158
      %1586 = vmatpush.msra.mxu0 %v1156
      %1587 = vmatpush.msra.mxu0 %v1153
      %1588 = vmatpush.msra.mxu0 %v1151
      %1589 = vmatpush.msra.mxu0 %v1148
      %1590 = vmatpush.msra.mxu0 %v1146
      %1591 = vmatpush.msra.mxu0 %v1143
      %1592 = vmatpush.msra.mxu0 %v1141
      %1593 = vmatmul.f32.gmra.mxu0 1.0
      %v1594 = vpop.f32.mrf.mxu0
      %v1595 = vadd.f32 %v1575, %v1594
      %1596 = vdwg.mxu0
      %vm1597 = vcmask 57344
      %1598 = vst.msk [vmem:[%s184] sm:$0x1] %vm1597, %v1595
      %v1599 = vmul.f32 %v861, %v861
      %v1600 = vmul.f32 %v863, %v863
      %v1601 = vmul.f32 %v866, %v866
      %v1602 = vmul.f32 %v868, %v868
      %v1603 = vmul.f32 %v871, %v871
      %v1604 = vmul.f32 %v873, %v873
      %v1605 = vmul.f32 %v876, %v876
      %v1606 = vmul.f32 %v878, %v878
      %v1607 = vmul.f32 %v881, %v881
      %v1608 = vmul.f32 %v883, %v883
      %v1609 = vmul.f32 %v886, %v886
      %v1610 = vmul.f32 %v888, %v888
      %v1611 = vmul.f32 %v891, %v891
      %v1612 = vmul.f32 %v893, %v893
      %v1613 = vmul.f32 %v896, %v896
      %v1614 = vmul.f32 %v898, %v898
      %v1615 = vmul.f32 %v901, %v901
      %v1616 = vmul.f32 %v903, %v903
      %v1617 = vmul.f32 %v906, %v906
      %v1618 = vmul.f32 %v908, %v908
      %v1619 = vmul.f32 %v911, %v911
      %v1620 = vmul.f32 %v913, %v913
      %v1621 = vmul.f32 %v916, %v916
      %v1622 = vmul.f32 %v918, %v918
      %v1623 = vmul.f32 %v921, %v921
      %v1624 = vmul.f32 %v923, %v923
      %v1625 = vmul.f32 %v926, %v926
      %v1626 = vmul.f32 %v928, %v928
      %v1627 = vmul.f32 %v931, %v931
      %v1628 = vmul.f32 %v933, %v933
      %v1629 = vmul.f32 %v936, %v936
      %v1630 = vmul.f32 %v938, %v938
      %v1631 = vmul.f32 %v941, %v941
      %v1632 = vmul.f32 %v943, %v943
      %v1633 = vmul.f32 %v946, %v946
      %v1634 = vmul.f32 %v948, %v948
      %v1635 = vmul.f32 %v951, %v951
      %v1636 = vmul.f32 %v953, %v953
      %v1637 = vmul.f32 %v956, %v956
      %v1638 = vmul.f32 %v958, %v958
      %v1639 = vmul.f32 %v961, %v961
      %v1640 = vmul.f32 %v963, %v963
      %v1641 = vmul.f32 %v966, %v966
      %v1642 = vmul.f32 %v968, %v968
      %v1643 = vmul.f32 %v971, %v971
      %v1644 = vmul.f32 %v973, %v973
      %v1645 = vmul.f32 %v976, %v976
      %v1646 = vmul.f32 %v978, %v978
      %v1647 = vmul.f32 %v981, %v981
      %v1648 = vmul.f32 %v983, %v983
      %v1649 = vmul.f32 %v986, %v986
      %v1650 = vmul.f32 %v988, %v988
      %v1651 = vmul.f32 %v991, %v991
      %v1652 = vmul.f32 %v993, %v993
      %v1653 = vmul.f32 %v996, %v996
      %v1654 = vmul.f32 %v998, %v998
      %v1655 = vmul.f32 %v1001, %v1001
      %v1656 = vmul.f32 %v1003, %v1003
      %v1657 = vmul.f32 %v1006, %v1006
      %v1658 = vmul.f32 %v1008, %v1008
      %v1659 = vmul.f32 %v1011, %v1011
      %v1660 = vmul.f32 %v1013, %v1013
      %v1661 = vmul.f32 %v1016, %v1016
      %v1662 = vmul.f32 %v1018, %v1018
      %v1663 = vmul.f32 %v1021, %v1021
      %v1664 = vmul.f32 %v1023, %v1023
      %v1665 = vmul.f32 %v1026, %v1026
      %v1666 = vmul.f32 %v1028, %v1028
      %v1667 = vmul.f32 %v1031, %v1031
      %v1668 = vmul.f32 %v1033, %v1033
      %v1669 = vmul.f32 %v1036, %v1036
      %v1670 = vmul.f32 %v1038, %v1038
      %v1671 = vmul.f32 %v1041, %v1041
      %v1672 = vmul.f32 %v1043, %v1043
      %v1673 = vmul.f32 %v1046, %v1046
      %v1674 = vmul.f32 %v1048, %v1048
      %v1675 = vmul.f32 %v1051, %v1051
      %v1676 = vmul.f32 %v1053, %v1053
      %v1677 = vmul.f32 %v1056, %v1056
      %v1678 = vmul.f32 %v1058, %v1058
      %v1679 = vmul.f32 %v1061, %v1061
      %v1680 = vmul.f32 %v1063, %v1063
      %v1681 = vmul.f32 %v1066, %v1066
      %v1682 = vmul.f32 %v1068, %v1068
      %v1683 = vmul.f32 %v1071, %v1071
      %v1684 = vmul.f32 %v1073, %v1073
      %v1685 = vmul.f32 %v1076, %v1076
      %v1686 = vmul.f32 %v1078, %v1078
      %v1687 = vmul.f32 %v1081, %v1081
      %v1688 = vmul.f32 %v1083, %v1083
      %v1689 = vmul.f32 %v1086, %v1086
      %v1690 = vmul.f32 %v1088, %v1088
      %v1691 = vmul.f32 %v1091, %v1091
      %v1692 = vmul.f32 %v1093, %v1093
      %v1693 = vmul.f32 %v1096, %v1096
      %v1694 = vmul.f32 %v1098, %v1098
      %v1695 = vmul.f32 %v1101, %v1101
      %v1696 = vmul.f32 %v1103, %v1103
      %v1697 = vmul.f32 %v1106, %v1106
      %v1698 = vmul.f32 %v1108, %v1108
      %v1699 = vmul.f32 %v1111, %v1111
      %v1700 = vmul.f32 %v1113, %v1113
      %v1701 = vmul.f32 %v1116, %v1116
      %v1702 = vmul.f32 %v1118, %v1118
      %v1703 = vmul.f32 %v1121, %v1121
      %v1704 = vmul.f32 %v1123, %v1123
      %v1705 = vmul.f32 %v1126, %v1126
      %v1706 = vmul.f32 %v1128, %v1128
      %v1707 = vmul.f32 %v1131, %v1131
      %v1708 = vmul.f32 %v1133, %v1133
      %v1709 = vmul.f32 %v1136, %v1136
      %v1710 = vmul.f32 %v1138, %v1138
      %v1711 = vmul.f32 %v1141, %v1141
      %v1712 = vmul.f32 %v1143, %v1143
      %v1713 = vmul.f32 %v1146, %v1146
      %v1714 = vmul.f32 %v1148, %v1148
      %v1715 = vmul.f32 %v1151, %v1151
      %v1716 = vmul.f32 %v1153, %v1153
      %v1717 = vmul.f32 %v1156, %v1156
      %v1718 = vmul.f32 %v1158, %v1158
      %v1719 = vmul.f32 %v1161, %v1161
      %v1720 = vmul.f32 %v1163, %v1163
      %v1721 = vmul.f32 %v1166, %v1166
      %v1722 = vmul.f32 %v1168, %v1168
      %v1723 = vmul.f32 %v1171, %v1171
      %v1724 = vmul.f32 %v1173, %v1173
      %v1725 = vmul.f32 %v1176, %v1176
      %v1726 = vmul.f32 %v1178, %v1178
      %1727 = vmatpush.msra.mxu0 %v1614
      %1728 = vmatpush.msra.mxu0 %v1613
      %1729 = vmatpush.msra.mxu0 %v1612
      %1730 = vmatpush.msra.mxu0 %v1611
      %1731 = vmatpush.msra.mxu0 %v1610
      %1732 = vmatpush.msra.mxu0 %v1609
      %1733 = vmatpush.msra.mxu0 %v1608
      %1734 = vmatpush.msra.mxu0 %v1607
      %1735 = vmatpush.msra.mxu0 %v1606
      %1736 = vmatpush.msra.mxu0 %v1605
      %1737 = vmatpush.msra.mxu0 %v1604
      %1738 = vmatpush.msra.mxu0 %v1603
      %1739 = vmatpush.msra.mxu0 %v1602
      %1740 = vmatpush.msra.mxu0 %v1601
      %1741 = vmatpush.msra.mxu0 %v1600
      %1742 = vmatpush.msra.mxu0 %v1599
      %1743 = vmatmul.f32.gmra.mxu0 1.0
      %v1744 = vpop.f32.mrf.mxu0
      %v1745 = vadd.f32 0.0, %v1744
      %1746 = vdwg.mxu0
      %1747 = vmatpush.msra.mxu0 %v1630
      %1748 = vmatpush.msra.mxu0 %v1629
      %1749 = vmatpush.msra.mxu0 %v1628
      %1750 = vmatpush.msra.mxu0 %v1627
      %1751 = vmatpush.msra.mxu0 %v1626
      %1752 = vmatpush.msra.mxu0 %v1625
      %1753 = vmatpush.msra.mxu0 %v1624
      %1754 = vmatpush.msra.mxu0 %v1623
      %1755 = vmatpush.msra.mxu0 %v1622
      %1756 = vmatpush.msra.mxu0 %v1621
      %1757 = vmatpush.msra.mxu0 %v1620
      %1758 = vmatpush.msra.mxu0 %v1619
      %1759 = vmatpush.msra.mxu0 %v1618
      %1760 = vmatpush.msra.mxu0 %v1617
      %1761 = vmatpush.msra.mxu0 %v1616
      %1762 = vmatpush.msra.mxu0 %v1615
      %1763 = vmatmul.f32.gmra.mxu0 1.0
      %v1764 = vpop.f32.mrf.mxu0
      %v1765 = vadd.f32 %v1745, %v1764
      %1766 = vdwg.mxu0
      %1767 = vmatpush.msra.mxu0 %v1646
      %1768 = vmatpush.msra.mxu0 %v1645
      %1769 = vmatpush.msra.mxu0 %v1644
      %1770 = vmatpush.msra.mxu0 %v1643
      %1771 = vmatpush.msra.mxu0 %v1642
      %1772 = vmatpush.msra.mxu0 %v1641
      %1773 = vmatpush.msra.mxu0 %v1640
      %1774 = vmatpush.msra.mxu0 %v1639
      %1775 = vmatpush.msra.mxu0 %v1638
      %1776 = vmatpush.msra.mxu0 %v1637
      %1777 = vmatpush.msra.mxu0 %v1636
      %1778 = vmatpush.msra.mxu0 %v1635
      %1779 = vmatpush.msra.mxu0 %v1634
      %1780 = vmatpush.msra.mxu0 %v1633
      %1781 = vmatpush.msra.mxu0 %v1632
      %1782 = vmatpush.msra.mxu0 %v1631
      %1783 = vmatmul.f32.gmra.mxu0 1.0
      %v1784 = vpop.f32.mrf.mxu0
      %v1785 = vadd.f32 %v1765, %v1784
      %1786 = vdwg.mxu0
      %1787 = vmatpush.msra.mxu0 %v1662
      %1788 = vmatpush.msra.mxu0 %v1661
      %1789 = vmatpush.msra.mxu0 %v1660
      %1790 = vmatpush.msra.mxu0 %v1659
      %1791 = vmatpush.msra.mxu0 %v1658
      %1792 = vmatpush.msra.mxu0 %v1657
      %1793 = vmatpush.msra.mxu0 %v1656
      %1794 = vmatpush.msra.mxu0 %v1655
      %1795 = vmatpush.msra.mxu0 %v1654
      %1796 = vmatpush.msra.mxu0 %v1653
      %1797 = vmatpush.msra.mxu0 %v1652
      %1798 = vmatpush.msra.mxu0 %v1651
      %1799 = vmatpush.msra.mxu0 %v1650
      %1800 = vmatpush.msra.mxu0 %v1649
      %1801 = vmatpush.msra.mxu0 %v1648
      %1802 = vmatpush.msra.mxu0 %v1647
      %1803 = vmatmul.f32.gmra.mxu0 1.0
      %v1804 = vpop.f32.mrf.mxu0
      %v1805 = vadd.f32 %v1785, %v1804
      %1806 = vdwg.mxu0
      %1807 = vmatpush.msra.mxu0 %v1678
      %1808 = vmatpush.msra.mxu0 %v1677
      %1809 = vmatpush.msra.mxu0 %v1676
      %1810 = vmatpush.msra.mxu0 %v1675
      %1811 = vmatpush.msra.mxu0 %v1674
      %1812 = vmatpush.msra.mxu0 %v1673
      %1813 = vmatpush.msra.mxu0 %v1672
      %1814 = vmatpush.msra.mxu0 %v1671
      %1815 = vmatpush.msra.mxu0 %v1670
      %1816 = vmatpush.msra.mxu0 %v1669
      %1817 = vmatpush.msra.mxu0 %v1668
      %1818 = vmatpush.msra.mxu0 %v1667
      %1819 = vmatpush.msra.mxu0 %v1666
      %1820 = vmatpush.msra.mxu0 %v1665
      %1821 = vmatpush.msra.mxu0 %v1664
      %1822 = vmatpush.msra.mxu0 %v1663
      %1823 = vmatmul.f32.gmra.mxu0 1.0
      %v1824 = vpop.f32.mrf.mxu0
      %v1825 = vadd.f32 %v1805, %v1824
      %1826 = vdwg.mxu0
      %1827 = vmatpush.msra.mxu0 %v1694
      %1828 = vmatpush.msra.mxu0 %v1693
      %1829 = vmatpush.msra.mxu0 %v1692
      %1830 = vmatpush.msra.mxu0 %v1691
      %1831 = vmatpush.msra.mxu0 %v1690
      %1832 = vmatpush.msra.mxu0 %v1689
      %1833 = vmatpush.msra.mxu0 %v1688
      %1834 = vmatpush.msra.mxu0 %v1687
      %1835 = vmatpush.msra.mxu0 %v1686
      %1836 = vmatpush.msra.mxu0 %v1685
      %1837 = vmatpush.msra.mxu0 %v1684
      %1838 = vmatpush.msra.mxu0 %v1683
      %1839 = vmatpush.msra.mxu0 %v1682
      %1840 = vmatpush.msra.mxu0 %v1681
      %1841 = vmatpush.msra.mxu0 %v1680
      %1842 = vmatpush.msra.mxu0 %v1679
      %1843 = vmatmul.f32.gmra.mxu0 1.0
      %v1844 = vpop.f32.mrf.mxu0
      %v1845 = vadd.f32 %v1825, %v1844
      %1846 = vdwg.mxu0
      %1847 = vmatpush.msra.mxu0 %v1710
      %1848 = vmatpush.msra.mxu0 %v1709
      %1849 = vmatpush.msra.mxu0 %v1708
      %1850 = vmatpush.msra.mxu0 %v1707
      %1851 = vmatpush.msra.mxu0 %v1706
      %1852 = vmatpush.msra.mxu0 %v1705
      %1853 = vmatpush.msra.mxu0 %v1704
      %1854 = vmatpush.msra.mxu0 %v1703
      %1855 = vmatpush.msra.mxu0 %v1702
      %1856 = vmatpush.msra.mxu0 %v1701
      %1857 = vmatpush.msra.mxu0 %v1700
      %1858 = vmatpush.msra.mxu0 %v1699
      %1859 = vmatpush.msra.mxu0 %v1698
      %1860 = vmatpush.msra.mxu0 %v1697
      %1861 = vmatpush.msra.mxu0 %v1696
      %1862 = vmatpush.msra.mxu0 %v1695
      %1863 = vmatmul.f32.gmra.mxu0 1.0
      %v1864 = vpop.f32.mrf.mxu0
      %v1865 = vadd.f32 %v1845, %v1864
      %1866 = vdwg.mxu0
      %1867 = vmatpush.msra.mxu0 %v1726
      %1868 = vmatpush.msra.mxu0 %v1725
      %1869 = vmatpush.msra.mxu0 %v1724
      %1870 = vmatpush.msra.mxu0 %v1723
      %1871 = vmatpush.msra.mxu0 %v1722
      %1872 = vmatpush.msra.mxu0 %v1721
      %1873 = vmatpush.msra.mxu0 %v1720
      %1874 = vmatpush.msra.mxu0 %v1719
      %1875 = vmatpush.msra.mxu0 %v1718
      %1876 = vmatpush.msra.mxu0 %v1717
      %1877 = vmatpush.msra.mxu0 %v1716
      %1878 = vmatpush.msra.mxu0 %v1715
      %1879 = vmatpush.msra.mxu0 %v1714
      %1880 = vmatpush.msra.mxu0 %v1713
      %1881 = vmatpush.msra.mxu0 %v1712
      %1882 = vmatpush.msra.mxu0 %v1711
      %1883 = vmatmul.f32.gmra.mxu0 1.0
      %v1884 = vpop.f32.mrf.mxu0
      %v1885 = vadd.f32 %v1865, %v1884
      %1886 = vdwg.mxu0
      %1887 = vst.msk [vmem:[%s184 + $0x1] sm:$0x1] %vm1597, %v1885
      %s1888 = smul.u32 128, %s15
      %p1889 = scmp.lt.s32.totalorder %s1888, 255
      %s1890 = scalar_select %p1889, %s1888, 255
      %s1891 = smul.addr %s1890, 4
      %s1892 = scalar_lea.vmem %s2, %s1891
      %p1893 = scmp.lt.s32.totalorder %s15, 1
      %s1894 = scalar_select %p1893, %s15, 1
      %s1895 = smul.addr %s1894, 2
      %s1896 = scalar_lea.vmem %s3, %s1895
      // Predicated region
      $region29: #{encoder_forward.9} parent=27 // pred_check
        %p1897 = pneg %p80
      $region30: #{encoder_forward.9} parent=27 // pred_check_branch
        %1899 = sbr.rel (%p1897) target = $region32
      $region31: #{encoder_forward.9} parent=27 // pred_region
        %s1900 = smul.u32 128, %s15
      $region32: #{encoder_forward.9} parent=27 // pred_fallthru
        _
      // Predicated region
      $region33: #{encoder_forward.9} parent=27 // pred_check
        %p1901 = pneg %p106
      $region34: #{encoder_forward.9} parent=27 // pred_check_branch
        %1903 = sbr.rel (%p1901) target = $region36
      $region35: #{encoder_forward.9} parent=27 // pred_region
        _
      $region36: #{encoder_forward.9} parent=27 // pred_fallthru
        _
    $region28: #{encoder_forward.9} parent=5 // pred_fallthru
      _
    %p1904 = scmp.le.s32.totalorder 2, %s10
    // Predicated region
    $region37: #{encoder_forward.9} parent=5 // pred_check
      %p1905 = pneg %p1904
    $region38: #{encoder_forward.9} parent=5 // pred_check_branch
      %1907 = sbr.rel (%p1905) target = $region40
    $region39: #{encoder_forward.9} parent=5 // pred_region
      %s1908 = ssub.s32 %s10, 2
      // Predicated region
      $region41: #{encoder_forward.9} parent=39 // pred_check
        %p1909 = pneg %p86
      $region42: #{encoder_forward.9} parent=39 // pred_check_branch
        %1911 = sbr.rel (%p1909) target = $region44
      $region43: #{encoder_forward.9} parent=39 // pred_region
        %s1912 = smul.u32 128, %s16
        %p1913 = scmp.lt.s32.totalorder %s1912, 255
        %s1914 = scalar_select %p1913, %s1912, 255
        %s1915 = smul.addr %s1914, 4
        %s1916 = scalar_lea.vmem %s2, %s1915
      $region44: #{encoder_forward.9} parent=39 // pred_fallthru
        _
      // Predicated region
      $region45: #{encoder_forward.9} parent=39 // pred_check
        %p1917 = pneg %p112
      $region46: #{encoder_forward.9} parent=39 // pred_check_branch
        %1919 = sbr.rel (%p1917) target = $region48
      $region47: #{encoder_forward.9} parent=39 // pred_region
        %p1920 = scmp.lt.s32.totalorder %s16, 1
        %s1921 = scalar_select %p1920, %s16, 1
        %s1922 = smul.addr %s1921, 2
        %s1923 = scalar_lea.vmem %s3, %s1922
      $region48: #{encoder_forward.9} parent=39 // pred_fallthru
        _
    $region40: #{encoder_forward.9} parent=5 // pred_fallthru
      _
  $region6: #{encoder_forward.9} parent=0 // loop_footer
    %s14 = sadd.s32 1, %s10
  $region7: #{encoder_forward.9} parent=0 // loop_footer_branch
    %9 = sbr.rel target = $region3
  $region8: #{encoder_forward.9} parent=0 // loop_exit
    _

// kernel: encoder_forward.10
$region0: #{encoder_forward.10}
  #allocation0 [shape = 'u32[]', space=smem, size = 0x4, offset = 0x4, fixed_abs, tag = 'smem constant byte address 0x4 - core index']
  #allocation1 [shape = 'u32[72,128]{1,0:T(1,128)}', space=vmem, size = 0x9000, scoped, tag = 'internal scratch']
  %s0 = inlined_call_operand.vmem [shape: bf16[2048,8], index: 0, kind: input, shape index: {}]
  %s1 = inlined_call_operand.vmem [shape: f32[2,2,8], index: 1, kind: input, shape index: {}]
  %s2 = inlined_call_operand.vmem [shape: f32[1,8], index: 2, kind: input, shape index: {}]
  %s3 = inlined_call_operand.vmem [shape: f32[1,8], index: 3, kind: input, shape index: {}]
  %s4 = inlined_call_operand.vmem [shape: bf16[2048,8], index: 4, kind: output, shape index: {}]
  %s5 = sld [smem:[#allocation0]]
  $region49: #{encoder_forward.10} parent=0
    _
  %s7 = ssub.s32 1, %s5
  %s8 = scalar_select 0, %s7, %s5
  loop: start=0, step=1, limit=4
  $region2: #{encoder_forward.10} parent=0 // loop_pre_header
    _
  $region3: #{encoder_forward.10} parent=0 // loop_header
    %s10 = sphi 0, %s14
    %p11 = scmp.ge.s32.totalorder %s10, 4
    %s20 = sphi 0, %s22
    %s23 = sphi 0, %s20
    %s24 = sphi 0, %s23
    %s40 = sphi 0, %s24
    %s44 = sphi 0, %s44
    %s46 = sphi 0, %s44
    %s47 = sphi 0, %s46
    %s61 = sphi 0, %s47
    %s65 = sphi 0, %s65
    %s67 = sphi 0, %s65
    %s68 = sphi 0, %s67
    %s82 = sphi 0, %s68
    %s86 = sphi 0, %s86
    %s88 = sphi 0, %s86
    %s89 = sphi 0, %s88
    %s103 = sphi 0, %s89
    %s109 = sphi 0, %s111
    %s112 = sphi 0, %s109
    %s113 = sphi 0, %s112
    %s129 = sphi 0, %s113
  $region4: #{encoder_forward.10} parent=0 // loop_header_branch
    %13 = sbr.rel (%p11) target = $region8
  $region5: #{encoder_forward.10} parent=0 // loop_body
    %s15 = ssub.s32 %s10, 1
    %s16 = ssub.s32 %s10, 2
    %s17 = sadd.s32 %s10, 1
    %s18 = ssub.s32 %s10, %s17
    %p19 = scmp.eq.s32.totalorder %s18, 0
    %s21 = sadd.s32 %s20, 1
    %s22 = scalar_select %p19, %s20, %s21
    %p25 = pneg %p19
    %p26 = scmp.eq.s32.totalorder %s10, 1
    %p27 = por %p25, %p26
    %p28 = scmp.ne.s32.totalorder %s20, %s23
    %p29 = scmp.eq.s32.totalorder %s10, 0
    %p30 = por %p28, %p29
    %p31 = scmp.ne.s32.totalorder %s20, %s23
    %p32 = scmp.eq.s32.totalorder %s15, 1
    %p33 = por %p31, %p32
    %p34 = scmp.ne.s32.totalorder %s23, %s24
    %p35 = scmp.eq.s32.totalorder %s15, 0
    %p36 = por %p34, %p35
    %p37 = scmp.ne.s32.totalorder %s23, %s24
    %p38 = scmp.eq.s32.totalorder %s16, 1
    %p39 = por %p37, %p38
    %p41 = scmp.ne.s32.totalorder %s24, %s40
    %p42 = scmp.eq.s32.totalorder %s16, 0
    %p43 = por %p41, %p42
    %s45 = sadd.s32 %s44, 1
    %p48 = scmp.eq.s32.totalorder %s10, 1
    %p49 = scmp.ne.s32.totalorder %s44, %s46
    %p50 = scmp.eq.s32.totalorder %s10, 0
    %p51 = por %p49, %p50
    %p52 = scmp.ne.s32.totalorder %s44, %s46
    %p53 = scmp.eq.s32.totalorder %s15, 1
    %p54 = por %p52, %p53
    %p55 = scmp.ne.s32.totalorder %s46, %s47
    %p56 = scmp.eq.s32.totalorder %s15, 0
    %p57 = por %p55, %p56
    %p58 = scmp.ne.s32.totalorder %s46, %s47
    %p59 = scmp.eq.s32.totalorder %s16, 1
    %p60 = por %p58, %p59
    %p62 = scmp.ne.s32.totalorder %s47, %s61
    %p63 = scmp.eq.s32.totalorder %s16, 0
    %p64 = por %p62, %p63
    %s66 = sadd.s32 %s65, 1
    %p69 = scmp.eq.s32.totalorder %s10, 1
    %p70 = scmp.ne.s32.totalorder %s65, %s67
    %p71 = scmp.eq.s32.totalorder %s10, 0
    %p72 = por %p70, %p71
    %p73 = scmp.ne.s32.totalorder %s65, %s67
    %p74 = scmp.eq.s32.totalorder %s15, 1
    %p75 = por %p73, %p74
    %p76 = scmp.ne.s32.totalorder %s67, %s68
    %p77 = scmp.eq.s32.totalorder %s15, 0
    %p78 = por %p76, %p77
    %p79 = scmp.ne.s32.totalorder %s67, %s68
    %p80 = scmp.eq.s32.totalorder %s16, 1
    %p81 = por %p79, %p80
    %p83 = scmp.ne.s32.totalorder %s68, %s82
    %p84 = scmp.eq.s32.totalorder %s16, 0
    %p85 = por %p83, %p84
    %s87 = sadd.s32 %s86, 1
    %p90 = scmp.eq.s32.totalorder %s10, 1
    %p91 = scmp.ne.s32.totalorder %s86, %s88
    %p92 = scmp.eq.s32.totalorder %s10, 0
    %p93 = por %p91, %p92
    %p94 = scmp.ne.s32.totalorder %s86, %s88
    %p95 = scmp.eq.s32.totalorder %s15, 1
    %p96 = por %p94, %p95
    %p97 = scmp.ne.s32.totalorder %s88, %s89
    %p98 = scmp.eq.s32.totalorder %s15, 0
    %p99 = por %p97, %p98
    %p100 = scmp.ne.s32.totalorder %s88, %s89
    %p101 = scmp.eq.s32.totalorder %s16, 1
    %p102 = por %p100, %p101
    %p104 = scmp.ne.s32.totalorder %s89, %s103
    %p105 = scmp.eq.s32.totalorder %s16, 0
    %p106 = por %p104, %p105
    %s107 = ssub.s32 %s10, %s17
    %p108 = scmp.eq.s32.totalorder %s107, 0
    %s110 = sadd.s32 %s109, 1
    %s111 = scalar_select %p108, %s109, %s110
    %p114 = pneg %p108
    %p115 = scmp.eq.s32.totalorder %s10, 1
    %p116 = por %p114, %p115
    %p117 = scmp.ne.s32.totalorder %s109, %s112
    %p118 = scmp.eq.s32.totalorder %s10, 0
    %p119 = por %p117, %p118
    %p120 = scmp.ne.s32.totalorder %s109, %s112
    %p121 = scmp.eq.s32.totalorder %s15, 1
    %p122 = por %p120, %p121
    %p123 = scmp.ne.s32.totalorder %s112, %s113
    %p124 = scmp.eq.s32.totalorder %s15, 0
    %p125 = por %p123, %p124
    %p126 = scmp.ne.s32.totalorder %s112, %s113
    %p127 = scmp.eq.s32.totalorder %s16, 1
    %p128 = por %p126, %p127
    %p130 = scmp.ne.s32.totalorder %s113, %s129
    %p131 = scmp.eq.s32.totalorder %s16, 0
    %p132 = por %p130, %p131
    %p133 = scmp.le.s32.totalorder 1, %s10
    %p134 = scmp.lt.s32.totalorder %s10, 3
    %p135 = pnand %p133, %p134
    %p136 = pneg %p135
    // Predicated region
    $region9: #{encoder_forward.10} parent=5 // pred_check
      _
    $region10: #{encoder_forward.10} parent=5 // pred_check_branch
      %138 = sbr.rel (%p135) target = $region12
    $region11: #{encoder_forward.10} parent=5 // pred_region
      %s139 = ssub.s32 %s10, 1
      // Predicated region
      $region13: #{encoder_forward.10} parent=11 // pred_check
        %p140 = pneg %p57
      $region14: #{encoder_forward.10} parent=11 // pred_check_branch
        %142 = sbr.rel (%p140) target = $region16
      $region15: #{encoder_forward.10} parent=11 // pred_region
        _
      $region16: #{encoder_forward.10} parent=11 // pred_fallthru
        _
      // Predicated region
      $region17: #{encoder_forward.10} parent=11 // pred_check
        %p143 = pneg %p78
      $region18: #{encoder_forward.10} parent=11 // pred_check_branch
        %145 = sbr.rel (%p143) target = $region20
      $region19: #{encoder_forward.10} parent=11 // pred_region
        _
      $region20: #{encoder_forward.10} parent=11 // pred_fallthru
        _
      // Predicated region
      $region21: #{encoder_forward.10} parent=11 // pred_check
        %p146 = pneg %p99
      $region22: #{encoder_forward.10} parent=11 // pred_check_branch
        %148 = sbr.rel (%p146) target = $region24
      $region23: #{encoder_forward.10} parent=11 // pred_region
        _
      $region24: #{encoder_forward.10} parent=11 // pred_fallthru
        _
    $region12: #{encoder_forward.10} parent=5 // pred_fallthru
      _
    %p149 = scmp.lt.s32.totalorder %s10, 2
    // Predicated region
    $region25: #{encoder_forward.10} parent=5 // pred_check
      %p150 = pneg %p149
    $region26: #{encoder_forward.10} parent=5 // pred_check_branch
      %152 = sbr.rel (%p150) target = $region28
    $region27: #{encoder_forward.10} parent=5 // pred_region
      // Predicated region
      $region29: #{encoder_forward.10} parent=27 // pred_check
        %p153 = pneg %p30
      $region30: #{encoder_forward.10} parent=27 // pred_check_branch
        %155 = sbr.rel (%p153) target = $region32
      $region31: #{encoder_forward.10} parent=27 // pred_region
        %s156 = smul.u32 128, %s10
        %p157 = scmp.lt.s32.totalorder %s156, 255
        %s158 = scalar_select %p157, %s156, 255
        %s159 = smul.addr %s158, 4
        %s160 = scalar_lea.vmem %s0, %s159
        %s161 = smul.u32 128, %s10
      $region32: #{encoder_forward.10} parent=27 // pred_fallthru
        _
    $region28: #{encoder_forward.10} parent=5 // pred_fallthru
      _
    %p162 = scmp.le.s32.totalorder 1, %s10
    %p163 = scmp.lt.s32.totalorder %s10, 3
    %p164 = pnand %p162, %p163
    %p165 = pneg %p164
    // Predicated region
    $region33: #{encoder_forward.10} parent=5 // pred_check
      _
    $region34: #{encoder_forward.10} parent=5 // pred_check_branch
      %167 = sbr.rel (%p164) target = $region36
    $region35: #{encoder_forward.10} parent=5 // pred_region
      %s168 = ssub.s32 %s10, 1
      %s169 = smul.u32 128, %s15
      %p170 = scmp.lt.s32.totalorder %s169, 255
      %s171 = scalar_select %p170, %s169, 255
      %s172 = smul.addr %s171, 4
      %s173 = scalar_lea.vmem %s0, %s172
      %p174 = pneg %p36
      %p175 = pneg %p33
      %p176 = pneg %p57
      %p177 = pneg %p54
      %p178 = pneg %p78
      %p179 = pneg %p75
      %p180 = pneg %p99
      %p181 = pneg %p96
      %p182 = pneg %p125
      %p183 = pneg %p122
      %s184 = smul.u32 128, %s15
      %p185 = scmp.lt.s32.totalorder %s184, 255
      %s186 = scalar_select %p185, %s184, 255
      %s187 = smul.addr %s186, 4
      %s188 = scalar_lea.vmem %s4, %s187
      %s189 = smul.u32 128, %s15
      %p190 = scmp.lt.s32.totalorder %s189, 255
      %s191 = scalar_select %p190, %s189, 255
      %s192 = smul.addr %s191, 4
      %s193 = scalar_lea.vmem %s0, %s192
      %s194 = smul.u32 128, %s15
      %s195 = smul.u32 128, %s15
      %p196 = scmp.lt.s32.totalorder %s195, 255
      %s197 = scalar_select %p196, %s195, 255
      %s198 = smul.addr %s197, 4
      %s199 = scalar_lea.vmem %s4, %s198
      %s200 = smul.u32 128, %s15
      %v201 = vld [vmem:[%s1] sm:$0x3]
      %v202 = vld [vmem:[%s1 + $0x2] sm:$0x3]
      %vm203 = vcmask 58368
      %v204 = vsel %vm203, %v201, 0.0
      %v205 = vsel %vm203, %v202, 0.0
      %v206 = vadd.f32 %v204, %v205
      %v207 = vmul.f32 %v206, 0.00048828125
      %v208 = vmul.f32 %v207, %v207
      %v210 = vrot.slane %v208, 7
      %v212 = vsub.f32 %v207, %v210
      %v213 = vmax.f32 %v212, 0.0
      %v214 = vld [vmem:[%s2] sm:$0x1]
      %v215 = vadd.f32 %v213, 1e-05
      %v216 = vrsqrt.pop %v215
      %v217 = vmul.f32 %v216, %v215
      %v218 = vmul.f32 %v217, %v216
      %v219 = vmul.f32 0.5, %v218
      %v220 = vsub.f32 1.5, %v219
      %v221 = vmul.f32 %v216, %v220
      %vm222 = vweird.f32 %v215
      %vm223 = vweird.f32 %v216
      %vm224 = vmor %vm222, %vm223
      %v225 = vsel %vm224, %v216, %v221
      %227 = vst [vmem:[#allocation1] sm:$0xff] %v225
      %s228 = scalar_lea.vmem [#allocation1], 1
      %v229 = vld [vmem:[%s228] ss:$9 sm:$0xff]
      %v231 = vmul.f32 %v214, %v229
      %v232 = vld [vmem:[%s3] sm:$0x1]
      %v233 = vmul.f32 %v207, %v231
      %v234 = vsub.f32 %v232, %v233
      %v235 = vld [vmem:[%s193] sm:$0xf]
      %v236 = vld [vmem:[%s193 + $0x4] sm:$0xf]
      %v237 = vld [vmem:[%s193 + $0x8] sm:$0xf]
      %v238 = vld [vmem:[%s193 + $0xc] sm:$0xf]
      %v239 = vld [vmem:[%s193 + $0x10] sm:$0xf]
      %v240 = vld [vmem:[%s193 + $0x14] sm:$0xf]
      %v241 = vld [vmem:[%s193 + $0x18] sm:$0xf]
      %v242 = vld [vmem:[%s193 + $0x1c] sm:$0xf]
      %v243 = vld [vmem:[%s193 + $0x20] sm:$0xf]
      %v244 = vld [vmem:[%s193 + $0x24] sm:$0xf]
      %v245 = vld [vmem:[%s193 + $0x28] sm:$0xf]
      %v246 = vld [vmem:[%s193 + $0x2c] sm:$0xf]
      %v247 = vld [vmem:[%s193 + $0x30] sm:$0xf]
      %v248 = vld [vmem:[%s193 + $0x34] sm:$0xf]
      %v249 = vld [vmem:[%s193 + $0x38] sm:$0xf]
      %v250 = vld [vmem:[%s193 + $0x3c] sm:$0xf]
      %v251 = vld [vmem:[%s193 + $0x40] sm:$0xf]
      %v252 = vld [vmem:[%s193 + $0x44] sm:$0xf]
      %v253 = vld [vmem:[%s193 + $0x48] sm:$0xf]
      %v254 = vld [vmem:[%s193 + $0x4c] sm:$0xf]
      %v255 = vld [vmem:[%s193 + $0x50] sm:$0xf]
      %v256 = vld [vmem:[%s193 + $0x54] sm:$0xf]
      %v257 = vld [vmem:[%s193 + $0x58] sm:$0xf]
      %v258 = vld [vmem:[%s193 + $0x5c] sm:$0xf]
      %v259 = vld [vmem:[%s193 + $0x60] sm:$0xf]
      %v260 = vld [vmem:[%s193 + $0x64] sm:$0xf]
      %v261 = vld [vmem:[%s193 + $0x68] sm:$0xf]
      %v262 = vld [vmem:[%s193 + $0x6c] sm:$0xf]
      %v263 = vld [vmem:[%s193 + $0x70] sm:$0xf]
      %v264 = vld [vmem:[%s193 + $0x74] sm:$0xf]
      %v265 = vld [vmem:[%s193 + $0x78] sm:$0xf]
      %v266 = vld [vmem:[%s193 + $0x7c] sm:$0xf]
      %v267 = vld [vmem:[%s193 + $0x80] sm:$0xf]
      %v268 = vld [vmem:[%s193 + $0x84] sm:$0xf]
      %v269 = vld [vmem:[%s193 + $0x88] sm:$0xf]
      %v270 = vld [vmem:[%s193 + $0x8c] sm:$0xf]
      %v271 = vld [vmem:[%s193 + $0x90] sm:$0xf]
      %v272 = vld [vmem:[%s193 + $0x94] sm:$0xf]
      %v273 = vld [vmem:[%s193 + $0x98] sm:$0xf]
      %v274 = vld [vmem:[%s193 + $0x9c] sm:$0xf]
      %v275 = vld [vmem:[%s193 + $0xa0] sm:$0xf]
      %v276 = vld [vmem:[%s193 + $0xa4] sm:$0xf]
      %v277 = vld [vmem:[%s193 + $0xa8] sm:$0xf]
      %v278 = vld [vmem:[%s193 + $0xac] sm:$0xf]
      %v279 = vld [vmem:[%s193 + $0xb0] sm:$0xf]
      %v280 = vld [vmem:[%s193 + $0xb4] sm:$0xf]
      %v281 = vld [vmem:[%s193 + $0xb8] sm:$0xf]
      %v282 = vld [vmem:[%s193 + $0xbc] sm:$0xf]
      %v283 = vld [vmem:[%s193 + $0xc0] sm:$0xf]
      %v284 = vld [vmem:[%s193 + $0xc4] sm:$0xf]
      %v285 = vld [vmem:[%s193 + $0xc8] sm:$0xf]
      %v286 = vld [vmem:[%s193 + $0xcc] sm:$0xf]
      %v287 = vld [vmem:[%s193 + $0xd0] sm:$0xf]
      %v288 = vld [vmem:[%s193 + $0xd4] sm:$0xf]
      %v289 = vld [vmem:[%s193 + $0xd8] sm:$0xf]
      %v290 = vld [vmem:[%s193 + $0xdc] sm:$0xf]
      %v291 = vld [vmem:[%s193 + $0xe0] sm:$0xf]
      %v292 = vld [vmem:[%s193 + $0xe4] sm:$0xf]
      %v293 = vld [vmem:[%s193 + $0xe8] sm:$0xf]
      %v294 = vld [vmem:[%s193 + $0xec] sm:$0xf]
      %v295 = vld [vmem:[%s193 + $0xf0] sm:$0xf]
      %v296 = vld [vmem:[%s193 + $0xf4] sm:$0xf]
      %v297 = vld [vmem:[%s193 + $0xf8] sm:$0xf]
      %v298 = vld [vmem:[%s193 + $0xfc] sm:$0xf]
      %v299 = vld [vmem:[%s193 + $0x100] sm:$0xf]
      %v300 = vld [vmem:[%s193 + $0x104] sm:$0xf]
      %v301 = vld [vmem:[%s193 + $0x108] sm:$0xf]
      %v302 = vld [vmem:[%s193 + $0x10c] sm:$0xf]
      %v303 = vld [vmem:[%s193 + $0x110] sm:$0xf]
      %v304 = vld [vmem:[%s193 + $0x114] sm:$0xf]
      %v305 = vld [vmem:[%s193 + $0x118] sm:$0xf]
      %v306 = vld [vmem:[%s193 + $0x11c] sm:$0xf]
      %v307 = vld [vmem:[%s193 + $0x120] sm:$0xf]
      %v308 = vld [vmem:[%s193 + $0x124] sm:$0xf]
      %v309 = vld [vmem:[%s193 + $0x128] sm:$0xf]
      %v310 = vld [vmem:[%s193 + $0x12c] sm:$0xf]
      %v311 = vld [vmem:[%s193 + $0x130] sm:$0xf]
      %v312 = vld [vmem:[%s193 + $0x134] sm:$0xf]
      %v313 = vld [vmem:[%s193 + $0x138] sm:$0xf]
      %v314 = vld [vmem:[%s193 + $0x13c] sm:$0xf]
      %v315 = vld [vmem:[%s193 + $0x140] sm:$0xf]
      %v316 = vld [vmem:[%s193 + $0x144] sm:$0xf]
      %v317 = vld [vmem:[%s193 + $0x148] sm:$0xf]
      %v318 = vld [vmem:[%s193 + $0x14c] sm:$0xf]
      %v319 = vld [vmem:[%s193 + $0x150] sm:$0xf]
      %v320 = vld [vmem:[%s193 + $0x154] sm:$0xf]
      %v321 = vld [vmem:[%s193 + $0x158] sm:$0xf]
      %v322 = vld [vmem:[%s193 + $0x15c] sm:$0xf]
      %v323 = vld [vmem:[%s193 + $0x160] sm:$0xf]
      %v324 = vld [vmem:[%s193 + $0x164] sm:$0xf]
      %v325 = vld [vmem:[%s193 + $0x168] sm:$0xf]
      %v326 = vld [vmem:[%s193 + $0x16c] sm:$0xf]
      %v327 = vld [vmem:[%s193 + $0x170] sm:$0xf]
      %v328 = vld [vmem:[%s193 + $0x174] sm:$0xf]
      %v329 = vld [vmem:[%s193 + $0x178] sm:$0xf]
      %v330 = vld [vmem:[%s193 + $0x17c] sm:$0xf]
      %v331 = vld [vmem:[%s193 + $0x180] sm:$0xf]
      %v332 = vld [vmem:[%s193 + $0x184] sm:$0xf]
      %v333 = vld [vmem:[%s193 + $0x188] sm:$0xf]
      %v334 = vld [vmem:[%s193 + $0x18c] sm:$0xf]
      %v335 = vld [vmem:[%s193 + $0x190] sm:$0xf]
      %v336 = vld [vmem:[%s193 + $0x194] sm:$0xf]
      %v337 = vld [vmem:[%s193 + $0x198] sm:$0xf]
      %v338 = vld [vmem:[%s193 + $0x19c] sm:$0xf]
      %v339 = vld [vmem:[%s193 + $0x1a0] sm:$0xf]
      %v340 = vld [vmem:[%s193 + $0x1a4] sm:$0xf]
      %v341 = vld [vmem:[%s193 + $0x1a8] sm:$0xf]
      %v342 = vld [vmem:[%s193 + $0x1ac] sm:$0xf]
      %v343 = vld [vmem:[%s193 + $0x1b0] sm:$0xf]
      %v344 = vld [vmem:[%s193 + $0x1b4] sm:$0xf]
      %v345 = vld [vmem:[%s193 + $0x1b8] sm:$0xf]
      %v346 = vld [vmem:[%s193 + $0x1bc] sm:$0xf]
      %v347 = vld [vmem:[%s193 + $0x1c0] sm:$0xf]
      %v348 = vld [vmem:[%s193 + $0x1c4] sm:$0xf]
      %v349 = vld [vmem:[%s193 + $0x1c8] sm:$0xf]
      %v350 = vld [vmem:[%s193 + $0x1cc] sm:$0xf]
      %v351 = vld [vmem:[%s193 + $0x1d0] sm:$0xf]
      %v352 = vld [vmem:[%s193 + $0x1d4] sm:$0xf]
      %v353 = vld [vmem:[%s193 + $0x1d8] sm:$0xf]
      %v354 = vld [vmem:[%s193 + $0x1dc] sm:$0xf]
      %v355 = vld [vmem:[%s193 + $0x1e0] sm:$0xf]
      %v356 = vld [vmem:[%s193 + $0x1e4] sm:$0xf]
      %v357 = vld [vmem:[%s193 + $0x1e8] sm:$0xf]
      %v358 = vld [vmem:[%s193 + $0x1ec] sm:$0xf]
      %v359 = vld [vmem:[%s193 + $0x1f0] sm:$0xf]
      %v360 = vld [vmem:[%s193 + $0x1f4] sm:$0xf]
      %v361 = vld [vmem:[%s193 + $0x1f8] sm:$0xf]
      %v362 = vld [vmem:[%s193 + $0x1fc] sm:$0xf]
      %v363 = vunpack.c.l.bf16 %v235
      %v364 = vunpack.c.l.bf16 %v236
      %v365 = vunpack.c.l.bf16 %v237
      %v366 = vunpack.c.l.bf16 %v238
      %v367 = vunpack.c.l.bf16 %v239
      %v368 = vunpack.c.l.bf16 %v240
      %v369 = vunpack.c.l.bf16 %v241
      %v370 = vunpack.c.l.bf16 %v242
      %v371 = vunpack.c.l.bf16 %v243
      %v372 = vunpack.c.l.bf16 %v244
      %v373 = vunpack.c.l.bf16 %v245
      %v374 = vunpack.c.l.bf16 %v246
      %v375 = vunpack.c.l.bf16 %v247
      %v376 = vunpack.c.l.bf16 %v248
      %v377 = vunpack.c.l.bf16 %v249
      %v378 = vunpack.c.l.bf16 %v250
      %v379 = vunpack.c.l.bf16 %v251
      %v380 = vunpack.c.l.bf16 %v252
      %v381 = vunpack.c.l.bf16 %v253
      %v382 = vunpack.c.l.bf16 %v254
      %v383 = vunpack.c.l.bf16 %v255
      %v384 = vunpack.c.l.bf16 %v256
      %v385 = vunpack.c.l.bf16 %v257
      %v386 = vunpack.c.l.bf16 %v258
      %v387 = vunpack.c.l.bf16 %v259
      %v388 = vunpack.c.l.bf16 %v260
      %v389 = vunpack.c.l.bf16 %v261
      %v390 = vunpack.c.l.bf16 %v262
      %v391 = vunpack.c.l.bf16 %v263
      %v392 = vunpack.c.l.bf16 %v264
      %v393 = vunpack.c.l.bf16 %v265
      %v394 = vunpack.c.l.bf16 %v266
      %v395 = vunpack.c.l.bf16 %v267
      %v396 = vunpack.c.l.bf16 %v268
      %v397 = vunpack.c.l.bf16 %v269
      %v398 = vunpack.c.l.bf16 %v270
      %v399 = vunpack.c.l.bf16 %v271
      %v400 = vunpack.c.l.bf16 %v272
      %v401 = vunpack.c.l.bf16 %v273
      %v402 = vunpack.c.l.bf16 %v274
      %v403 = vunpack.c.l.bf16 %v275
      %v404 = vunpack.c.l.bf16 %v276
      %v405 = vunpack.c.l.bf16 %v277
      %v406 = vunpack.c.l.bf16 %v278
      %v407 = vunpack.c.l.bf16 %v279
      %v408 = vunpack.c.l.bf16 %v280
      %v409 = vunpack.c.l.bf16 %v281
      %v410 = vunpack.c.l.bf16 %v282
      %v411 = vunpack.c.l.bf16 %v283
      %v412 = vunpack.c.l.bf16 %v284
      %v413 = vunpack.c.l.bf16 %v285
      %v414 = vunpack.c.l.bf16 %v286
      %v415 = vunpack.c.l.bf16 %v287
      %v416 = vunpack.c.l.bf16 %v288
      %v417 = vunpack.c.l.bf16 %v289
      %v418 = vunpack.c.l.bf16 %v290
      %v419 = vunpack.c.l.bf16 %v291
      %v420 = vunpack.c.l.bf16 %v292
      %v421 = vunpack.c.l.bf16 %v293
      %v422 = vunpack.c.l.bf16 %v294
      %v423 = vunpack.c.l.bf16 %v295
      %v424 = vunpack.c.l.bf16 %v296
      %v425 = vunpack.c.l.bf16 %v297
      %v426 = vunpack.c.l.bf16 %v298
      %v427 = vunpack.c.l.bf16 %v299
      %v428 = vunpack.c.l.bf16 %v300
      %v429 = vunpack.c.l.bf16 %v301
      %v430 = vunpack.c.l.bf16 %v302
      %v431 = vunpack.c.l.bf16 %v303
      %v432 = vunpack.c.l.bf16 %v304
      %v433 = vunpack.c.l.bf16 %v305
      %v434 = vunpack.c.l.bf16 %v306
      %v435 = vunpack.c.l.bf16 %v307
      %v436 = vunpack.c.l.bf16 %v308
      %v437 = vunpack.c.l.bf16 %v309
      %v438 = vunpack.c.l.bf16 %v310
      %v439 = vunpack.c.l.bf16 %v311
      %v440 = vunpack.c.l.bf16 %v312
      %v441 = vunpack.c.l.bf16 %v313
      %v442 = vunpack.c.l.bf16 %v314
      %v443 = vunpack.c.l.bf16 %v315
      %v444 = vunpack.c.l.bf16 %v316
      %v445 = vunpack.c.l.bf16 %v317
      %v446 = vunpack.c.l.bf16 %v318
      %v447 = vunpack.c.l.bf16 %v319
      %v448 = vunpack.c.l.bf16 %v320
      %v449 = vunpack.c.l.bf16 %v321
      %v450 = vunpack.c.l.bf16 %v322
      %v451 = vunpack.c.l.bf16 %v323
      %v452 = vunpack.c.l.bf16 %v324
      %v453 = vunpack.c.l.bf16 %v325
      %v454 = vunpack.c.l.bf16 %v326
      %v455 = vunpack.c.l.bf16 %v327
      %v456 = vunpack.c.l.bf16 %v328
      %v457 = vunpack.c.l.bf16 %v329
      %v458 = vunpack.c.l.bf16 %v330
      %v459 = vunpack.c.l.bf16 %v331
      %v460 = vunpack.c.l.bf16 %v332
      %v461 = vunpack.c.l.bf16 %v333
      %v462 = vunpack.c.l.bf16 %v334
      %v463 = vunpack.c.l.bf16 %v335
      %v464 = vunpack.c.l.bf16 %v336
      %v465 = vunpack.c.l.bf16 %v337
      %v466 = vunpack.c.l.bf16 %v338
      %v467 = vunpack.c.l.bf16 %v339
      %v468 = vunpack.c.l.bf16 %v340
      %v469 = vunpack.c.l.bf16 %v341
      %v470 = vunpack.c.l.bf16 %v342
      %v471 = vunpack.c.l.bf16 %v343
      %v472 = vunpack.c.l.bf16 %v344
      %v473 = vunpack.c.l.bf16 %v345
      %v474 = vunpack.c.l.bf16 %v346
      %v475 = vunpack.c.l.bf16 %v347
      %v476 = vunpack.c.l.bf16 %v348
      %v477 = vunpack.c.l.bf16 %v349
      %v478 = vunpack.c.l.bf16 %v350
      %v479 = vunpack.c.l.bf16 %v351
      %v480 = vunpack.c.l.bf16 %v352
      %v481 = vunpack.c.l.bf16 %v353
      %v482 = vunpack.c.l.bf16 %v354
      %v483 = vunpack.c.l.bf16 %v355
      %v484 = vunpack.c.l.bf16 %v356
      %v485 = vunpack.c.l.bf16 %v357
      %v486 = vunpack.c.l.bf16 %v358
      %v487 = vunpack.c.l.bf16 %v359
      %v488 = vunpack.c.l.bf16 %v360
      %v489 = vunpack.c.l.bf16 %v361
      %v490 = vunpack.c.l.bf16 %v362
      %v492 = vperm.slane %v231, 0
      %v494 = vmul.f32 %v363, %v492
      %v495 = vmul.f32 %v364, %v492
      %v496 = vmul.f32 %v365, %v492
      %v497 = vmul.f32 %v366, %v492
      %v498 = vmul.f32 %v367, %v492
      %v499 = vmul.f32 %v368, %v492
      %v500 = vmul.f32 %v369, %v492
      %v501 = vmul.f32 %v370, %v492
      %v502 = vmul.f32 %v371, %v492
      %v503 = vmul.f32 %v372, %v492
      %v504 = vmul.f32 %v373, %v492
      %v505 = vmul.f32 %v374, %v492
      %v506 = vmul.f32 %v375, %v492
      %v507 = vmul.f32 %v376, %v492
      %v508 = vmul.f32 %v377, %v492
      %v509 = vmul.f32 %v378, %v492
      %v510 = vmul.f32 %v379, %v492
      %v511 = vmul.f32 %v380, %v492
      %v512 = vmul.f32 %v381, %v492
      %v513 = vmul.f32 %v382, %v492
      %v514 = vmul.f32 %v383, %v492
      %v515 = vmul.f32 %v384, %v492
      %v516 = vmul.f32 %v385, %v492
      %v517 = vmul.f32 %v386, %v492
      %v518 = vmul.f32 %v387, %v492
      %v519 = vmul.f32 %v388, %v492
      %v520 = vmul.f32 %v389, %v492
      %v521 = vmul.f32 %v390, %v492
      %v522 = vmul.f32 %v391, %v492
      %v523 = vmul.f32 %v392, %v492
      %v524 = vmul.f32 %v393, %v492
      %v525 = vmul.f32 %v394, %v492
      %v526 = vmul.f32 %v395, %v492
      %v527 = vmul.f32 %v396, %v492
      %v528 = vmul.f32 %v397, %v492
      %v529 = vmul.f32 %v398, %v492
      %v530 = vmul.f32 %v399, %v492
      %v531 = vmul.f32 %v400, %v492
      %v532 = vmul.f32 %v401, %v492
      %v533 = vmul.f32 %v402, %v492
      %v534 = vmul.f32 %v403, %v492
      %v535 = vmul.f32 %v404, %v492
      %v536 = vmul.f32 %v405, %v492
      %v537 = vmul.f32 %v406, %v492
      %v538 = vmul.f32 %v407, %v492
      %v539 = vmul.f32 %v408, %v492
      %v540 = vmul.f32 %v409, %v492
      %v541 = vmul.f32 %v410, %v492
      %v542 = vmul.f32 %v411, %v492
      %v543 = vmul.f32 %v412, %v492
      %v544 = vmul.f32 %v413, %v492
      %v545 = vmul.f32 %v414, %v492
      %v546 = vmul.f32 %v415, %v492
      %v547 = vmul.f32 %v416, %v492
      %v548 = vmul.f32 %v417, %v492
      %v549 = vmul.f32 %v418, %v492
      %v550 = vmul.f32 %v419, %v492
      %v551 = vmul.f32 %v420, %v492
      %v552 = vmul.f32 %v421, %v492
      %v553 = vmul.f32 %v422, %v492
      %v554 = vmul.f32 %v423, %v492
      %v555 = vmul.f32 %v424, %v492
      %v556 = vmul.f32 %v425, %v492
      %v557 = vmul.f32 %v426, %v492
      %v558 = vmul.f32 %v427, %v492
      %v559 = vmul.f32 %v428, %v492
      %v560 = vmul.f32 %v429, %v492
      %v561 = vmul.f32 %v430, %v492
      %v562 = vmul.f32 %v431, %v492
      %v563 = vmul.f32 %v432, %v492
      %v564 = vmul.f32 %v433, %v492
      %v565 = vmul.f32 %v434, %v492
      %v566 = vmul.f32 %v435, %v492
      %v567 = vmul.f32 %v436, %v492
      %v568 = vmul.f32 %v437, %v492
      %v569 = vmul.f32 %v438, %v492
      %v570 = vmul.f32 %v439, %v492
      %v571 = vmul.f32 %v440, %v492
      %v572 = vmul.f32 %v441, %v492
      %v573 = vmul.f32 %v442, %v492
      %v574 = vmul.f32 %v443, %v492
      %v575 = vmul.f32 %v444, %v492
      %v576 = vmul.f32 %v445, %v492
      %v577 = vmul.f32 %v446, %v492
      %v578 = vmul.f32 %v447, %v492
      %v579 = vmul.f32 %v448, %v492
      %v580 = vmul.f32 %v449, %v492
      %v581 = vmul.f32 %v450, %v492
      %v582 = vmul.f32 %v451, %v492
      %v583 = vmul.f32 %v452, %v492
      %v584 = vmul.f32 %v453, %v492
      %v585 = vmul.f32 %v454, %v492
      %v586 = vmul.f32 %v455, %v492
      %v587 = vmul.f32 %v456, %v492
      %v588 = vmul.f32 %v457, %v492
      %v589 = vmul.f32 %v458, %v492
      %v590 = vmul.f32 %v459, %v492
      %v591 = vmul.f32 %v460, %v492
      %v592 = vmul.f32 %v461, %v492
      %v593 = vmul.f32 %v462, %v492
      %v594 = vmul.f32 %v463, %v492
      %v595 = vmul.f32 %v464, %v492
      %v596 = vmul.f32 %v465, %v492
      %v597 = vmul.f32 %v466, %v492
      %v598 = vmul.f32 %v467, %v492
      %v599 = vmul.f32 %v468, %v492
      %v600 = vmul.f32 %v469, %v492
      %v601 = vmul.f32 %v470, %v492
      %v602 = vmul.f32 %v471, %v492
      %v603 = vmul.f32 %v472, %v492
      %v604 = vmul.f32 %v473, %v492
      %v605 = vmul.f32 %v474, %v492
      %v606 = vmul.f32 %v475, %v492
      %v607 = vmul.f32 %v476, %v492
      %v608 = vmul.f32 %v477, %v492
      %v609 = vmul.f32 %v478, %v492
      %v610 = vmul.f32 %v479, %v492
      %v611 = vmul.f32 %v480, %v492
      %v612 = vmul.f32 %v481, %v492
      %v613 = vmul.f32 %v482, %v492
      %v614 = vmul.f32 %v483, %v492
      %v615 = vmul.f32 %v484, %v492
      %v616 = vmul.f32 %v485, %v492
      %v617 = vmul.f32 %v486, %v492
      %v618 = vmul.f32 %v487, %v492
      %v619 = vmul.f32 %v488, %v492
      %v620 = vmul.f32 %v489, %v492
      %v621 = vmul.f32 %v490, %v492
      %v623 = vperm.slane %v234, 0
      %v625 = vadd.f32 %v494, %v623
      %v626 = vadd.f32 %v495, %v623
      %v627 = vadd.f32 %v496, %v623
      %v628 = vadd.f32 %v497, %v623
      %v629 = vadd.f32 %v498, %v623
      %v630 = vadd.f32 %v499, %v623
      %v631 = vadd.f32 %v500, %v623
      %v632 = vadd.f32 %v501, %v623
      %v633 = vadd.f32 %v502, %v623
      %v634 = vadd.f32 %v503, %v623
      %v635 = vadd.f32 %v504, %v623
      %v636 = vadd.f32 %v505, %v623
      %v637 = vadd.f32 %v506, %v623
      %v638 = vadd.f32 %v507, %v623
      %v639 = vadd.f32 %v508, %v623
      %v640 = vadd.f32 %v509, %v623
      %v641 = vadd.f32 %v510, %v623
      %v642 = vadd.f32 %v511, %v623
      %v643 = vadd.f32 %v512, %v623
      %v644 = vadd.f32 %v513, %v623
      %v645 = vadd.f32 %v514, %v623
      %v646 = vadd.f32 %v515, %v623
      %v647 = vadd.f32 %v516, %v623
      %v648 = vadd.f32 %v517, %v623
      %v649 = vadd.f32 %v518, %v623
      %v650 = vadd.f32 %v519, %v623
      %v651 = vadd.f32 %v520, %v623
      %v652 = vadd.f32 %v521, %v623
      %v653 = vadd.f32 %v522, %v623
      %v654 = vadd.f32 %v523, %v623
      %v655 = vadd.f32 %v524, %v623
      %v656 = vadd.f32 %v525, %v623
      %v657 = vadd.f32 %v526, %v623
      %v658 = vadd.f32 %v527, %v623
      %v659 = vadd.f32 %v528, %v623
      %v660 = vadd.f32 %v529, %v623
      %v661 = vadd.f32 %v530, %v623
      %v662 = vadd.f32 %v531, %v623
      %v663 = vadd.f32 %v532, %v623
      %v664 = vadd.f32 %v533, %v623
      %v665 = vadd.f32 %v534, %v623
      %v666 = vadd.f32 %v535, %v623
      %v667 = vadd.f32 %v536, %v623
      %v668 = vadd.f32 %v537, %v623
      %v669 = vadd.f32 %v538, %v623
      %v670 = vadd.f32 %v539, %v623
      %v671 = vadd.f32 %v540, %v623
      %v672 = vadd.f32 %v541, %v623
      %v673 = vadd.f32 %v542, %v623
      %v674 = vadd.f32 %v543, %v623
      %v675 = vadd.f32 %v544, %v623
      %v676 = vadd.f32 %v545, %v623
      %v677 = vadd.f32 %v546, %v623
      %v678 = vadd.f32 %v547, %v623
      %v679 = vadd.f32 %v548, %v623
      %v680 = vadd.f32 %v549, %v623
      %v681 = vadd.f32 %v550, %v623
      %v682 = vadd.f32 %v551, %v623
      %v683 = vadd.f32 %v552, %v623
      %v684 = vadd.f32 %v553, %v623
      %v685 = vadd.f32 %v554, %v623
      %v686 = vadd.f32 %v555, %v623
      %v687 = vadd.f32 %v556, %v623
      %v688 = vadd.f32 %v557, %v623
      %v689 = vadd.f32 %v558, %v623
      %v690 = vadd.f32 %v559, %v623
      %v691 = vadd.f32 %v560, %v623
      %v692 = vadd.f32 %v561, %v623
      %v693 = vadd.f32 %v562, %v623
      %v694 = vadd.f32 %v563, %v623
      %v695 = vadd.f32 %v564, %v623
      %v696 = vadd.f32 %v565, %v623
      %v697 = vadd.f32 %v566, %v623
      %v698 = vadd.f32 %v567, %v623
      %v699 = vadd.f32 %v568, %v623
      %v700 = vadd.f32 %v569, %v623
      %v701 = vadd.f32 %v570, %v623
      %v702 = vadd.f32 %v571, %v623
      %v703 = vadd.f32 %v572, %v623
      %v704 = vadd.f32 %v573, %v623
      %v705 = vadd.f32 %v574, %v623
      %v706 = vadd.f32 %v575, %v623
      %v707 = vadd.f32 %v576, %v623
      %v708 = vadd.f32 %v577, %v623
      %v709 = vadd.f32 %v578, %v623
      %v710 = vadd.f32 %v579, %v623
      %v711 = vadd.f32 %v580, %v623
      %v712 = vadd.f32 %v581, %v623
      %v713 = vadd.f32 %v582, %v623
      %v714 = vadd.f32 %v583, %v623
      %v715 = vadd.f32 %v584, %v623
      %v716 = vadd.f32 %v585, %v623
      %v717 = vadd.f32 %v586, %v623
      %v718 = vadd.f32 %v587, %v623
      %v719 = vadd.f32 %v588, %v623
      %v720 = vadd.f32 %v589, %v623
      %v721 = vadd.f32 %v590, %v623
      %v722 = vadd.f32 %v591, %v623
      %v723 = vadd.f32 %v592, %v623
      %v724 = vadd.f32 %v593, %v623
      %v725 = vadd.f32 %v594, %v623
      %v726 = vadd.f32 %v595, %v623
      %v727 = vadd.f32 %v596, %v623
      %v728 = vadd.f32 %v597, %v623
      %v729 = vadd.f32 %v598, %v623
      %v730 = vadd.f32 %v599, %v623
      %v731 = vadd.f32 %v600, %v623
      %v732 = vadd.f32 %v601, %v623
      %v733 = vadd.f32 %v602, %v623
      %v734 = vadd.f32 %v603, %v623
      %v735 = vadd.f32 %v604, %v623
      %v736 = vadd.f32 %v605, %v623
      %v737 = vadd.f32 %v606, %v623
      %v738 = vadd.f32 %v607, %v623
      %v739 = vadd.f32 %v608, %v623
      %v740 = vadd.f32 %v609, %v623
      %v741 = vadd.f32 %v610, %v623
      %v742 = vadd.f32 %v611, %v623
      %v743 = vadd.f32 %v612, %v623
      %v744 = vadd.f32 %v613, %v623
      %v745 = vadd.f32 %v614, %v623
      %v746 = vadd.f32 %v615, %v623
      %v747 = vadd.f32 %v616, %v623
      %v748 = vadd.f32 %v617, %v623
      %v749 = vadd.f32 %v618, %v623
      %v750 = vadd.f32 %v619, %v623
      %v751 = vadd.f32 %v620, %v623
      %v752 = vadd.f32 %v621, %v623
      %v753 = vmul.f32 %v625, 0.01
      %v754 = vmul.f32 %v626, 0.01
      %v755 = vmul.f32 %v627, 0.01
      %v756 = vmul.f32 %v628, 0.01
      %v757 = vmul.f32 %v629, 0.01
      %v758 = vmul.f32 %v630, 0.01
      %v759 = vmul.f32 %v631, 0.01
      %v760 = vmul.f32 %v632, 0.01
      %v761 = vmul.f32 %v633, 0.01
      %v762 = vmul.f32 %v634, 0.01
      %v763 = vmul.f32 %v635, 0.01
      %v764 = vmul.f32 %v636, 0.01
      %v765 = vmul.f32 %v637, 0.01
      %v766 = vmul.f32 %v638, 0.01
      %v767 = vmul.f32 %v639, 0.01
      %v768 = vmul.f32 %v640, 0.01
      %v769 = vmul.f32 %v641, 0.01
      %v770 = vmul.f32 %v642, 0.01
      %v771 = vmul.f32 %v643, 0.01
      %v772 = vmul.f32 %v644, 0.01
      %v773 = vmul.f32 %v645, 0.01
      %v774 = vmul.f32 %v646, 0.01
      %v775 = vmul.f32 %v647, 0.01
      %v776 = vmul.f32 %v648, 0.01
      %v777 = vmul.f32 %v649, 0.01
      %v778 = vmul.f32 %v650, 0.01
      %v779 = vmul.f32 %v651, 0.01
      %v780 = vmul.f32 %v652, 0.01
      %v781 = vmul.f32 %v653, 0.01
      %v782 = vmul.f32 %v654, 0.01
      %v783 = vmul.f32 %v655, 0.01
      %v784 = vmul.f32 %v656, 0.01
      %v785 = vmul.f32 %v657, 0.01
      %v786 = vmul.f32 %v658, 0.01
      %v787 = vmul.f32 %v659, 0.01
      %v788 = vmul.f32 %v660, 0.01
      %v789 = vmul.f32 %v661, 0.01
      %v790 = vmul.f32 %v662, 0.01
      %v791 = vmul.f32 %v663, 0.01
      %v792 = vmul.f32 %v664, 0.01
      %v793 = vmul.f32 %v665, 0.01
      %v794 = vmul.f32 %v666, 0.01
      %v795 = vmul.f32 %v667, 0.01
      %v796 = vmul.f32 %v668, 0.01
      %v797 = vmul.f32 %v669, 0.01
      %v798 = vmul.f32 %v670, 0.01
      %v799 = vmul.f32 %v671, 0.01
      %v800 = vmul.f32 %v672, 0.01
      %v801 = vmul.f32 %v673, 0.01
      %v802 = vmul.f32 %v674, 0.01
      %v803 = vmul.f32 %v675, 0.01
      %v804 = vmul.f32 %v676, 0.01
      %v805 = vmul.f32 %v677, 0.01
      %v806 = vmul.f32 %v678, 0.01
      %v807 = vmul.f32 %v679, 0.01
      %v808 = vmul.f32 %v680, 0.01
      %v809 = vmul.f32 %v681, 0.01
      %v810 = vmul.f32 %v682, 0.01
      %v811 = vmul.f32 %v683, 0.01
      %v812 = vmul.f32 %v684, 0.01
      %v813 = vmul.f32 %v685, 0.01
      %v814 = vmul.f32 %v686, 0.01
      %v815 = vmul.f32 %v687, 0.01
      %v816 = vmul.f32 %v688, 0.01
      %v817 = vmul.f32 %v689, 0.01
      %v818 = vmul.f32 %v690, 0.01
      %v819 = vmul.f32 %v691, 0.01
      %v820 = vmul.f32 %v692, 0.01
      %v821 = vmul.f32 %v693, 0.01
      %v822 = vmul.f32 %v694, 0.01
      %v823 = vmul.f32 %v695, 0.01
      %v824 = vmul.f32 %v696, 0.01
      %v825 = vmul.f32 %v697, 0.01
      %v826 = vmul.f32 %v698, 0.01
      %v827 = vmul.f32 %v699, 0.01
      %v828 = vmul.f32 %v700, 0.01
      %v829 = vmul.f32 %v701, 0.01
      %v830 = vmul.f32 %v702, 0.01
      %v831 = vmul.f32 %v703, 0.01
      %v832 = vmul.f32 %v704, 0.01
      %v833 = vmul.f32 %v705, 0.01
      %v834 = vmul.f32 %v706, 0.01
      %v835 = vmul.f32 %v707, 0.01
      %v836 = vmul.f32 %v708, 0.01
      %v837 = vmul.f32 %v709, 0.01
      %v838 = vmul.f32 %v710, 0.01
      %v839 = vmul.f32 %v711, 0.01
      %v840 = vmul.f32 %v712, 0.01
      %v841 = vmul.f32 %v713, 0.01
      %v842 = vmul.f32 %v714, 0.01
      %v843 = vmul.f32 %v715, 0.01
      %v844 = vmul.f32 %v716, 0.01
      %v845 = vmul.f32 %v717, 0.01
      %v846 = vmul.f32 %v718, 0.01
      %v847 = vmul.f32 %v719, 0.01
      %v848 = vmul.f32 %v720, 0.01
      %v849 = vmul.f32 %v721, 0.01
      %v850 = vmul.f32 %v722, 0.01
      %v851 = vmul.f32 %v723, 0.01
      %v852 = vmul.f32 %v724, 0.01
      %v853 = vmul.f32 %v725, 0.01
      %v854 = vmul.f32 %v726, 0.01
      %v855 = vmul.f32 %v727, 0.01
      %v856 = vmul.f32 %v728, 0.01
      %v857 = vmul.f32 %v729, 0.01
      %v858 = vmul.f32 %v730, 0.01
      %v859 = vmul.f32 %v731, 0.01
      %v860 = vmul.f32 %v732, 0.01
      %v861 = vmul.f32 %v733, 0.01
      %v862 = vmul.f32 %v734, 0.01
      %v863 = vmul.f32 %v735, 0.01
      %v864 = vmul.f32 %v736, 0.01
      %v865 = vmul.f32 %v737, 0.01
      %v866 = vmul.f32 %v738, 0.01
      %v867 = vmul.f32 %v739, 0.01
      %v868 = vmul.f32 %v740, 0.01
      %v869 = vmul.f32 %v741, 0.01
      %v870 = vmul.f32 %v742, 0.01
      %v871 = vmul.f32 %v743, 0.01
      %v872 = vmul.f32 %v744, 0.01
      %v873 = vmul.f32 %v745, 0.01
      %v874 = vmul.f32 %v746, 0.01
      %v875 = vmul.f32 %v747, 0.01
      %v876 = vmul.f32 %v748, 0.01
      %v877 = vmul.f32 %v749, 0.01
      %v878 = vmul.f32 %v750, 0.01
      %v879 = vmul.f32 %v751, 0.01
      %v880 = vmul.f32 %v752, 0.01
      %v881 = vmax.f32 %v625, %v753
      %v882 = vmax.f32 %v626, %v754
      %v883 = vmax.f32 %v627, %v755
      %v884 = vmax.f32 %v628, %v756
      %v885 = vmax.f32 %v629, %v757
      %v886 = vmax.f32 %v630, %v758
      %v887 = vmax.f32 %v631, %v759
      %v888 = vmax.f32 %v632, %v760
      %v889 = vmax.f32 %v633, %v761
      %v890 = vmax.f32 %v634, %v762
      %v891 = vmax.f32 %v635, %v763
      %v892 = vmax.f32 %v636, %v764
      %v893 = vmax.f32 %v637, %v765
      %v894 = vmax.f32 %v638, %v766
      %v895 = vmax.f32 %v639, %v767
      %v896 = vmax.f32 %v640, %v768
      %v897 = vmax.f32 %v641, %v769
      %v898 = vmax.f32 %v642, %v770
      %v899 = vmax.f32 %v643, %v771
      %v900 = vmax.f32 %v644, %v772
      %v901 = vmax.f32 %v645, %v773
      %v902 = vmax.f32 %v646, %v774
      %v903 = vmax.f32 %v647, %v775
      %v904 = vmax.f32 %v648, %v776
      %v905 = vmax.f32 %v649, %v777
      %v906 = vmax.f32 %v650, %v778
      %v907 = vmax.f32 %v651, %v779
      %v908 = vmax.f32 %v652, %v780
      %v909 = vmax.f32 %v653, %v781
      %v910 = vmax.f32 %v654, %v782
      %v911 = vmax.f32 %v655, %v783
      %v912 = vmax.f32 %v656, %v784
      %v913 = vmax.f32 %v657, %v785
      %v914 = vmax.f32 %v658, %v786
      %v915 = vmax.f32 %v659, %v787
      %v916 = vmax.f32 %v660, %v788
      %v917 = vmax.f32 %v661, %v789
      %v918 = vmax.f32 %v662, %v790
      %v919 = vmax.f32 %v663, %v791
      %v920 = vmax.f32 %v664, %v792
      %v921 = vmax.f32 %v665, %v793
      %v922 = vmax.f32 %v666, %v794
      %v923 = vmax.f32 %v667, %v795
      %v924 = vmax.f32 %v668, %v796
      %v925 = vmax.f32 %v669, %v797
      %v926 = vmax.f32 %v670, %v798
      %v927 = vmax.f32 %v671, %v799
      %v928 = vmax.f32 %v672, %v800
      %v929 = vmax.f32 %v673, %v801
      %v930 = vmax.f32 %v674, %v802
      %v931 = vmax.f32 %v675, %v803
      %v932 = vmax.f32 %v676, %v804
      %v933 = vmax.f32 %v677, %v805
      %v934 = vmax.f32 %v678, %v806
      %v935 = vmax.f32 %v679, %v807
      %v936 = vmax.f32 %v680, %v808
      %v937 = vmax.f32 %v681, %v809
      %v938 = vmax.f32 %v682, %v810
      %v939 = vmax.f32 %v683, %v811
      %v940 = vmax.f32 %v684, %v812
      %v941 = vmax.f32 %v685, %v813
      %v942 = vmax.f32 %v686, %v814
      %v943 = vmax.f32 %v687, %v815
      %v944 = vmax.f32 %v688, %v816
      %v945 = vmax.f32 %v689, %v817
      %v946 = vmax.f32 %v690, %v818
      %v947 = vmax.f32 %v691, %v819
      %v948 = vmax.f32 %v692, %v820
      %v949 = vmax.f32 %v693, %v821
      %v950 = vmax.f32 %v694, %v822
      %v951 = vmax.f32 %v695, %v823
      %v952 = vmax.f32 %v696, %v824
      %v953 = vmax.f32 %v697, %v825
      %v954 = vmax.f32 %v698, %v826
      %v955 = vmax.f32 %v699, %v827
      %v956 = vmax.f32 %v700, %v828
      %v957 = vmax.f32 %v701, %v829
      %v958 = vmax.f32 %v702, %v830
      %v959 = vmax.f32 %v703, %v831
      %v960 = vmax.f32 %v704, %v832
      %v961 = vmax.f32 %v705, %v833
      %v962 = vmax.f32 %v706, %v834
      %v963 = vmax.f32 %v707, %v835
      %v964 = vmax.f32 %v708, %v836
      %v965 = vmax.f32 %v709, %v837
      %v966 = vmax.f32 %v710, %v838
      %v967 = vmax.f32 %v711, %v839
      %v968 = vmax.f32 %v712, %v840
      %v969 = vmax.f32 %v713, %v841
      %v970 = vmax.f32 %v714, %v842
      %v971 = vmax.f32 %v715, %v843
      %v972 = vmax.f32 %v716, %v844
      %v973 = vmax.f32 %v717, %v845
      %v974 = vmax.f32 %v718, %v846
      %v975 = vmax.f32 %v719, %v847
      %v976 = vmax.f32 %v720, %v848
      %v977 = vmax.f32 %v721, %v849
      %v978 = vmax.f32 %v722, %v850
      %v979 = vmax.f32 %v723, %v851
      %v980 = vmax.f32 %v724, %v852
      %v981 = vmax.f32 %v725, %v853
      %v982 = vmax.f32 %v726, %v854
      %v983 = vmax.f32 %v727, %v855
      %v984 = vmax.f32 %v728, %v856
      %v985 = vmax.f32 %v729, %v857
      %v986 = vmax.f32 %v730, %v858
      %v987 = vmax.f32 %v731, %v859
      %v988 = vmax.f32 %v732, %v860
      %v989 = vmax.f32 %v733, %v861
      %v990 = vmax.f32 %v734, %v862
      %v991 = vmax.f32 %v735, %v863
      %v992 = vmax.f32 %v736, %v864
      %v993 = vmax.f32 %v737, %v865
      %v994 = vmax.f32 %v738, %v866
      %v995 = vmax.f32 %v739, %v867
      %v996 = vmax.f32 %v740, %v868
      %v997 = vmax.f32 %v741, %v869
      %v998 = vmax.f32 %v742, %v870
      %v999 = vmax.f32 %v743, %v871
      %v1000 = vmax.f32 %v744, %v872
      %v1001 = vmax.f32 %v745, %v873
      %v1002 = vmax.f32 %v746, %v874
      %v1003 = vmax.f32 %v747, %v875
      %v1004 = vmax.f32 %v748, %v876
      %v1005 = vmax.f32 %v749, %v877
      %v1006 = vmax.f32 %v750, %v878
      %v1007 = vmax.f32 %v751, %v879
      %v1008 = vmax.f32 %v752, %v880
      %v1009 = vpack.c.bf16 %v881, %v881
      %v1010 = vpack.c.bf16 %v882, %v882
      %v1011 = vpack.c.bf16 %v883, %v883
      %v1012 = vpack.c.bf16 %v884, %v884
      %v1013 = vpack.c.bf16 %v885, %v885
      %v1014 = vpack.c.bf16 %v886, %v886
      %v1015 = vpack.c.bf16 %v887, %v887
      %v1016 = vpack.c.bf16 %v888, %v888
      %v1017 = vpack.c.bf16 %v889, %v889
      %v1018 = vpack.c.bf16 %v890, %v890
      %v1019 = vpack.c.bf16 %v891, %v891
      %v1020 = vpack.c.bf16 %v892, %v892
      %v1021 = vpack.c.bf16 %v893, %v893
      %v1022 = vpack.c.bf16 %v894, %v894
      %v1023 = vpack.c.bf16 %v895, %v895
      %v1024 = vpack.c.bf16 %v896, %v896
      %v1025 = vpack.c.bf16 %v897, %v897
      %v1026 = vpack.c.bf16 %v898, %v898
      %v1027 = vpack.c.bf16 %v899, %v899
      %v1028 = vpack.c.bf16 %v900, %v900
      %v1029 = vpack.c.bf16 %v901, %v901
      %v1030 = vpack.c.bf16 %v902, %v902
      %v1031 = vpack.c.bf16 %v903, %v903
      %v1032 = vpack.c.bf16 %v904, %v904
      %v1033 = vpack.c.bf16 %v905, %v905
      %v1034 = vpack.c.bf16 %v906, %v906
      %v1035 = vpack.c.bf16 %v907, %v907
      %v1036 = vpack.c.bf16 %v908, %v908
      %v1037 = vpack.c.bf16 %v909, %v909
      %v1038 = vpack.c.bf16 %v910, %v910
      %v1039 = vpack.c.bf16 %v911, %v911
      %v1040 = vpack.c.bf16 %v912, %v912
      %v1041 = vpack.c.bf16 %v913, %v913
      %v1042 = vpack.c.bf16 %v914, %v914
      %v1043 = vpack.c.bf16 %v915, %v915
      %v1044 = vpack.c.bf16 %v916, %v916
      %v1045 = vpack.c.bf16 %v917, %v917
      %v1046 = vpack.c.bf16 %v918, %v918
      %v1047 = vpack.c.bf16 %v919, %v919
      %v1048 = vpack.c.bf16 %v920, %v920
      %v1049 = vpack.c.bf16 %v921, %v921
      %v1050 = vpack.c.bf16 %v922, %v922
      %v1051 = vpack.c.bf16 %v923, %v923
      %v1052 = vpack.c.bf16 %v924, %v924
      %v1053 = vpack.c.bf16 %v925, %v925
      %v1054 = vpack.c.bf16 %v926, %v926
      %v1055 = vpack.c.bf16 %v927, %v927
      %v1056 = vpack.c.bf16 %v928, %v928
      %v1057 = vpack.c.bf16 %v929, %v929
      %v1058 = vpack.c.bf16 %v930, %v930
      %v1059 = vpack.c.bf16 %v931, %v931
      %v1060 = vpack.c.bf16 %v932, %v932
      %v1061 = vpack.c.bf16 %v933, %v933
      %v1062 = vpack.c.bf16 %v934, %v934
      %v1063 = vpack.c.bf16 %v935, %v935
      %v1064 = vpack.c.bf16 %v936, %v936
      %v1065 = vpack.c.bf16 %v937, %v937
      %v1066 = vpack.c.bf16 %v938, %v938
      %v1067 = vpack.c.bf16 %v939, %v939
      %v1068 = vpack.c.bf16 %v940, %v940
      %v1069 = vpack.c.bf16 %v941, %v941
      %v1070 = vpack.c.bf16 %v942, %v942
      %v1071 = vpack.c.bf16 %v943, %v943
      %v1072 = vpack.c.bf16 %v944, %v944
      %v1073 = vpack.c.bf16 %v945, %v945
      %v1074 = vpack.c.bf16 %v946, %v946
      %v1075 = vpack.c.bf16 %v947, %v947
      %v1076 = vpack.c.bf16 %v948, %v948
      %v1077 = vpack.c.bf16 %v949, %v949
      %v1078 = vpack.c.bf16 %v950, %v950
      %v1079 = vpack.c.bf16 %v951, %v951
      %v1080 = vpack.c.bf16 %v952, %v952
      %v1081 = vpack.c.bf16 %v953, %v953
      %v1082 = vpack.c.bf16 %v954, %v954
      %v1083 = vpack.c.bf16 %v955, %v955
      %v1084 = vpack.c.bf16 %v956, %v956
      %v1085 = vpack.c.bf16 %v957, %v957
      %v1086 = vpack.c.bf16 %v958, %v958
      %v1087 = vpack.c.bf16 %v959, %v959
      %v1088 = vpack.c.bf16 %v960, %v960
      %v1089 = vpack.c.bf16 %v961, %v961
      %v1090 = vpack.c.bf16 %v962, %v962
      %v1091 = vpack.c.bf16 %v963, %v963
      %v1092 = vpack.c.bf16 %v964, %v964
      %v1093 = vpack.c.bf16 %v965, %v965
      %v1094 = vpack.c.bf16 %v966, %v966
      %v1095 = vpack.c.bf16 %v967, %v967
      %v1096 = vpack.c.bf16 %v968, %v968
      %v1097 = vpack.c.bf16 %v969, %v969
      %v1098 = vpack.c.bf16 %v970, %v970
      %v1099 = vpack.c.bf16 %v971, %v971
      %v1100 = vpack.c.bf16 %v972, %v972
      %v1101 = vpack.c.bf16 %v973, %v973
      %v1102 = vpack.c.bf16 %v974, %v974
      %v1103 = vpack.c.bf16 %v975, %v975
      %v1104 = vpack.c.bf16 %v976, %v976
      %v1105 = vpack.c.bf16 %v977, %v977
      %v1106 = vpack.c.bf16 %v978, %v978
      %v1107 = vpack.c.bf16 %v979, %v979
      %v1108 = vpack.c.bf16 %v980, %v980
      %v1109 = vpack.c.bf16 %v981, %v981
      %v1110 = vpack.c.bf16 %v982, %v982
      %v1111 = vpack.c.bf16 %v983, %v983
      %v1112 = vpack.c.bf16 %v984, %v984
      %v1113 = vpack.c.bf16 %v985, %v985
      %v1114 = vpack.c.bf16 %v986, %v986
      %v1115 = vpack.c.bf16 %v987, %v987
      %v1116 = vpack.c.bf16 %v988, %v988
      %v1117 = vpack.c.bf16 %v989, %v989
      %v1118 = vpack.c.bf16 %v990, %v990
      %v1119 = vpack.c.bf16 %v991, %v991
      %v1120 = vpack.c.bf16 %v992, %v992
      %v1121 = vpack.c.bf16 %v993, %v993
      %v1122 = vpack.c.bf16 %v994, %v994
      %v1123 = vpack.c.bf16 %v995, %v995
      %v1124 = vpack.c.bf16 %v996, %v996
      %v1125 = vpack.c.bf16 %v997, %v997
      %v1126 = vpack.c.bf16 %v998, %v998
      %v1127 = vpack.c.bf16 %v999, %v999
      %v1128 = vpack.c.bf16 %v1000, %v1000
      %v1129 = vpack.c.bf16 %v1001, %v1001
      %v1130 = vpack.c.bf16 %v1002, %v1002
      %v1131 = vpack.c.bf16 %v1003, %v1003
      %v1132 = vpack.c.bf16 %v1004, %v1004
      %v1133 = vpack.c.bf16 %v1005, %v1005
      %v1134 = vpack.c.bf16 %v1006, %v1006
      %v1135 = vpack.c.bf16 %v1007, %v1007
      %v1136 = vpack.c.bf16 %v1008, %v1008
      %vm1137 = vcmask 60416
      %1138 = vst.msk [vmem:[%s199] sm:$0xf] %vm1137, %v1009
      %1139 = vst.msk [vmem:[%s199 + $0x4] sm:$0xf] %vm1137, %v1010
      %1140 = vst.msk [vmem:[%s199 + $0x8] sm:$0xf] %vm1137, %v1011
      %1141 = vst.msk [vmem:[%s199 + $0xc] sm:$0xf] %vm1137, %v1012
      %1142 = vst.msk [vmem:[%s199 + $0x10] sm:$0xf] %vm1137, %v1013
      %1143 = vst.msk [vmem:[%s199 + $0x14] sm:$0xf] %vm1137, %v1014
      %1144 = vst.msk [vmem:[%s199 + $0x18] sm:$0xf] %vm1137, %v1015
      %1145 = vst.msk [vmem:[%s199 + $0x1c] sm:$0xf] %vm1137, %v1016
      %1146 = vst.msk [vmem:[%s199 + $0x20] sm:$0xf] %vm1137, %v1017
      %1147 = vst.msk [vmem:[%s199 + $0x24] sm:$0xf] %vm1137, %v1018
      %1148 = vst.msk [vmem:[%s199 + $0x28] sm:$0xf] %vm1137, %v1019
      %1149 = vst.msk [vmem:[%s199 + $0x2c] sm:$0xf] %vm1137, %v1020
      %1150 = vst.msk [vmem:[%s199 + $0x30] sm:$0xf] %vm1137, %v1021
      %1151 = vst.msk [vmem:[%s199 + $0x34] sm:$0xf] %vm1137, %v1022
      %1152 = vst.msk [vmem:[%s199 + $0x38] sm:$0xf] %vm1137, %v1023
      %1153 = vst.msk [vmem:[%s199 + $0x3c] sm:$0xf] %vm1137, %v1024
      %1154 = vst.msk [vmem:[%s199 + $0x40] sm:$0xf] %vm1137, %v1025
      %1155 = vst.msk [vmem:[%s199 + $0x44] sm:$0xf] %vm1137, %v1026
      %1156 = vst.msk [vmem:[%s199 + $0x48] sm:$0xf] %vm1137, %v1027
      %1157 = vst.msk [vmem:[%s199 + $0x4c] sm:$0xf] %vm1137, %v1028
      %1158 = vst.msk [vmem:[%s199 + $0x50] sm:$0xf] %vm1137, %v1029
      %1159 = vst.msk [vmem:[%s199 + $0x54] sm:$0xf] %vm1137, %v1030
      %1160 = vst.msk [vmem:[%s199 + $0x58] sm:$0xf] %vm1137, %v1031
      %1161 = vst.msk [vmem:[%s199 + $0x5c] sm:$0xf] %vm1137, %v1032
      %1162 = vst.msk [vmem:[%s199 + $0x60] sm:$0xf] %vm1137, %v1033
      %1163 = vst.msk [vmem:[%s199 + $0x64] sm:$0xf] %vm1137, %v1034
      %1164 = vst.msk [vmem:[%s199 + $0x68] sm:$0xf] %vm1137, %v1035
      %1165 = vst.msk [vmem:[%s199 + $0x6c] sm:$0xf] %vm1137, %v1036
      %1166 = vst.msk [vmem:[%s199 + $0x70] sm:$0xf] %vm1137, %v1037
      %1167 = vst.msk [vmem:[%s199 + $0x74] sm:$0xf] %vm1137, %v1038
      %1168 = vst.msk [vmem:[%s199 + $0x78] sm:$0xf] %vm1137, %v1039
      %1169 = vst.msk [vmem:[%s199 + $0x7c] sm:$0xf] %vm1137, %v1040
      %1170 = vst.msk [vmem:[%s199 + $0x80] sm:$0xf] %vm1137, %v1041
      %1171 = vst.msk [vmem:[%s199 + $0x84] sm:$0xf] %vm1137, %v1042
      %1172 = vst.msk [vmem:[%s199 + $0x88] sm:$0xf] %vm1137, %v1043
      %1173 = vst.msk [vmem:[%s199 + $0x8c] sm:$0xf] %vm1137, %v1044
      %1174 = vst.msk [vmem:[%s199 + $0x90] sm:$0xf] %vm1137, %v1045
      %1175 = vst.msk [vmem:[%s199 + $0x94] sm:$0xf] %vm1137, %v1046
      %1176 = vst.msk [vmem:[%s199 + $0x98] sm:$0xf] %vm1137, %v1047
      %1177 = vst.msk [vmem:[%s199 + $0x9c] sm:$0xf] %vm1137, %v1048
      %1178 = vst.msk [vmem:[%s199 + $0xa0] sm:$0xf] %vm1137, %v1049
      %1179 = vst.msk [vmem:[%s199 + $0xa4] sm:$0xf] %vm1137, %v1050
      %1180 = vst.msk [vmem:[%s199 + $0xa8] sm:$0xf] %vm1137, %v1051
      %1181 = vst.msk [vmem:[%s199 + $0xac] sm:$0xf] %vm1137, %v1052
      %1182 = vst.msk [vmem:[%s199 + $0xb0] sm:$0xf] %vm1137, %v1053
      %1183 = vst.msk [vmem:[%s199 + $0xb4] sm:$0xf] %vm1137, %v1054
      %1184 = vst.msk [vmem:[%s199 + $0xb8] sm:$0xf] %vm1137, %v1055
      %1185 = vst.msk [vmem:[%s199 + $0xbc] sm:$0xf] %vm1137, %v1056
      %1186 = vst.msk [vmem:[%s199 + $0xc0] sm:$0xf] %vm1137, %v1057
      %1187 = vst.msk [vmem:[%s199 + $0xc4] sm:$0xf] %vm1137, %v1058
      %1188 = vst.msk [vmem:[%s199 + $0xc8] sm:$0xf] %vm1137, %v1059
      %1189 = vst.msk [vmem:[%s199 + $0xcc] sm:$0xf] %vm1137, %v1060
      %1190 = vst.msk [vmem:[%s199 + $0xd0] sm:$0xf] %vm1137, %v1061
      %1191 = vst.msk [vmem:[%s199 + $0xd4] sm:$0xf] %vm1137, %v1062
      %1192 = vst.msk [vmem:[%s199 + $0xd8] sm:$0xf] %vm1137, %v1063
      %1193 = vst.msk [vmem:[%s199 + $0xdc] sm:$0xf] %vm1137, %v1064
      %1194 = vst.msk [vmem:[%s199 + $0xe0] sm:$0xf] %vm1137, %v1065
      %1195 = vst.msk [vmem:[%s199 + $0xe4] sm:$0xf] %vm1137, %v1066
      %1196 = vst.msk [vmem:[%s199 + $0xe8] sm:$0xf] %vm1137, %v1067
      %1197 = vst.msk [vmem:[%s199 + $0xec] sm:$0xf] %vm1137, %v1068
      %1198 = vst.msk [vmem:[%s199 + $0xf0] sm:$0xf] %vm1137, %v1069
      %1199 = vst.msk [vmem:[%s199 + $0xf4] sm:$0xf] %vm1137, %v1070
      %1200 = vst.msk [vmem:[%s199 + $0xf8] sm:$0xf] %vm1137, %v1071
      %1201 = vst.msk [vmem:[%s199 + $0xfc] sm:$0xf] %vm1137, %v1072
      %1202 = vst.msk [vmem:[%s199 + $0x100] sm:$0xf] %vm1137, %v1073
      %1203 = vst.msk [vmem:[%s199 + $0x104] sm:$0xf] %vm1137, %v1074
      %1204 = vst.msk [vmem:[%s199 + $0x108] sm:$0xf] %vm1137, %v1075
      %1205 = vst.msk [vmem:[%s199 + $0x10c] sm:$0xf] %vm1137, %v1076
      %1206 = vst.msk [vmem:[%s199 + $0x110] sm:$0xf] %vm1137, %v1077
      %1207 = vst.msk [vmem:[%s199 + $0x114] sm:$0xf] %vm1137, %v1078
      %1208 = vst.msk [vmem:[%s199 + $0x118] sm:$0xf] %vm1137, %v1079
      %1209 = vst.msk [vmem:[%s199 + $0x11c] sm:$0xf] %vm1137, %v1080
      %1210 = vst.msk [vmem:[%s199 + $0x120] sm:$0xf] %vm1137, %v1081
      %1211 = vst.msk [vmem:[%s199 + $0x124] sm:$0xf] %vm1137, %v1082
      %1212 = vst.msk [vmem:[%s199 + $0x128] sm:$0xf] %vm1137, %v1083
      %1213 = vst.msk [vmem:[%s199 + $0x12c] sm:$0xf] %vm1137, %v1084
      %1214 = vst.msk [vmem:[%s199 + $0x130] sm:$0xf] %vm1137, %v1085
      %1215 = vst.msk [vmem:[%s199 + $0x134] sm:$0xf] %vm1137, %v1086
      %1216 = vst.msk [vmem:[%s199 + $0x138] sm:$0xf] %vm1137, %v1087
      %1217 = vst.msk [vmem:[%s199 + $0x13c] sm:$0xf] %vm1137, %v1088
      %1218 = vst.msk [vmem:[%s199 + $0x140] sm:$0xf] %vm1137, %v1089
      %1219 = vst.msk [vmem:[%s199 + $0x144] sm:$0xf] %vm1137, %v1090
      %1220 = vst.msk [vmem:[%s199 + $0x148] sm:$0xf] %vm1137, %v1091
      %1221 = vst.msk [vmem:[%s199 + $0x14c] sm:$0xf] %vm1137, %v1092
      %1222 = vst.msk [vmem:[%s199 + $0x150] sm:$0xf] %vm1137, %v1093
      %1223 = vst.msk [vmem:[%s199 + $0x154] sm:$0xf] %vm1137, %v1094
      %1224 = vst.msk [vmem:[%s199 + $0x158] sm:$0xf] %vm1137, %v1095
      %1225 = vst.msk [vmem:[%s199 + $0x15c] sm:$0xf] %vm1137, %v1096
      %1226 = vst.msk [vmem:[%s199 + $0x160] sm:$0xf] %vm1137, %v1097
      %1227 = vst.msk [vmem:[%s199 + $0x164] sm:$0xf] %vm1137, %v1098
      %1228 = vst.msk [vmem:[%s199 + $0x168] sm:$0xf] %vm1137, %v1099
      %1229 = vst.msk [vmem:[%s199 + $0x16c] sm:$0xf] %vm1137, %v1100
      %1230 = vst.msk [vmem:[%s199 + $0x170] sm:$0xf] %vm1137, %v1101
      %1231 = vst.msk [vmem:[%s199 + $0x174] sm:$0xf] %vm1137, %v1102
      %1232 = vst.msk [vmem:[%s199 + $0x178] sm:$0xf] %vm1137, %v1103
      %1233 = vst.msk [vmem:[%s199 + $0x17c] sm:$0xf] %vm1137, %v1104
      %1234 = vst.msk [vmem:[%s199 + $0x180] sm:$0xf] %vm1137, %v1105
      %1235 = vst.msk [vmem:[%s199 + $0x184] sm:$0xf] %vm1137, %v1106
      %1236 = vst.msk [vmem:[%s199 + $0x188] sm:$0xf] %vm1137, %v1107
      %1237 = vst.msk [vmem:[%s199 + $0x18c] sm:$0xf] %vm1137, %v1108
      %1238 = vst.msk [vmem:[%s199 + $0x190] sm:$0xf] %vm1137, %v1109
      %1239 = vst.msk [vmem:[%s199 + $0x194] sm:$0xf] %vm1137, %v1110
      %1240 = vst.msk [vmem:[%s199 + $0x198] sm:$0xf] %vm1137, %v1111
      %1241 = vst.msk [vmem:[%s199 + $0x19c] sm:$0xf] %vm1137, %v1112
      %1242 = vst.msk [vmem:[%s199 + $0x1a0] sm:$0xf] %vm1137, %v1113
      %1243 = vst.msk [vmem:[%s199 + $0x1a4] sm:$0xf] %vm1137, %v1114
      %1244 = vst.msk [vmem:[%s199 + $0x1a8] sm:$0xf] %vm1137, %v1115
      %1245 = vst.msk [vmem:[%s199 + $0x1ac] sm:$0xf] %vm1137, %v1116
      %1246 = vst.msk [vmem:[%s199 + $0x1b0] sm:$0xf] %vm1137, %v1117
      %1247 = vst.msk [vmem:[%s199 + $0x1b4] sm:$0xf] %vm1137, %v1118
      %1248 = vst.msk [vmem:[%s199 + $0x1b8] sm:$0xf] %vm1137, %v1119
      %1249 = vst.msk [vmem:[%s199 + $0x1bc] sm:$0xf] %vm1137, %v1120
      %1250 = vst.msk [vmem:[%s199 + $0x1c0] sm:$0xf] %vm1137, %v1121
      %1251 = vst.msk [vmem:[%s199 + $0x1c4] sm:$0xf] %vm1137, %v1122
      %1252 = vst.msk [vmem:[%s199 + $0x1c8] sm:$0xf] %vm1137, %v1123
      %1253 = vst.msk [vmem:[%s199 + $0x1cc] sm:$0xf] %vm1137, %v1124
      %1254 = vst.msk [vmem:[%s199 + $0x1d0] sm:$0xf] %vm1137, %v1125
      %1255 = vst.msk [vmem:[%s199 + $0x1d4] sm:$0xf] %vm1137, %v1126
      %1256 = vst.msk [vmem:[%s199 + $0x1d8] sm:$0xf] %vm1137, %v1127
      %1257 = vst.msk [vmem:[%s199 + $0x1dc] sm:$0xf] %vm1137, %v1128
      %1258 = vst.msk [vmem:[%s199 + $0x1e0] sm:$0xf] %vm1137, %v1129
      %1259 = vst.msk [vmem:[%s199 + $0x1e4] sm:$0xf] %vm1137, %v1130
      %1260 = vst.msk [vmem:[%s199 + $0x1e8] sm:$0xf] %vm1137, %v1131
      %1261 = vst.msk [vmem:[%s199 + $0x1ec] sm:$0xf] %vm1137, %v1132
      %1262 = vst.msk [vmem:[%s199 + $0x1f0] sm:$0xf] %vm1137, %v1133
      %1263 = vst.msk [vmem:[%s199 + $0x1f4] sm:$0xf] %vm1137, %v1134
      %1264 = vst.msk [vmem:[%s199 + $0x1f8] sm:$0xf] %vm1137, %v1135
      %1265 = vst.msk [vmem:[%s199 + $0x1fc] sm:$0xf] %vm1137, %v1136
      %s1266 = smul.u32 128, %s15
      %p1267 = scmp.lt.s32.totalorder %s1266, 255
      %s1268 = scalar_select %p1267, %s1266, 255
      %s1269 = smul.addr %s1268, 4
      %s1270 = scalar_lea.vmem %s4, %s1269
      // Predicated region
      $region37: #{encoder_forward.10} parent=35 // pred_check
        %p1271 = pneg %p122
      $region38: #{encoder_forward.10} parent=35 // pred_check_branch
        %1273 = sbr.rel (%p1271) target = $region40
      $region39: #{encoder_forward.10} parent=35 // pred_region
        %s1274 = smul.u32 128, %s15
      $region40: #{encoder_forward.10} parent=35 // pred_fallthru
        _
    $region36: #{encoder_forward.10} parent=5 // pred_fallthru
      _
    %p1275 = scmp.le.s32.totalorder 2, %s10
    // Predicated region
    $region41: #{encoder_forward.10} parent=5 // pred_check
      %p1276 = pneg %p1275
    $region42: #{encoder_forward.10} parent=5 // pred_check_branch
      %1278 = sbr.rel (%p1276) target = $region44
    $region43: #{encoder_forward.10} parent=5 // pred_region
      %s1279 = ssub.s32 %s10, 2
      // Predicated region
      $region45: #{encoder_forward.10} parent=43 // pred_check
        %p1280 = pneg %p128
      $region46: #{encoder_forward.10} parent=43 // pred_check_branch
        %1282 = sbr.rel (%p1280) target = $region48
      $region47: #{encoder_forward.10} parent=43 // pred_region
        %s1283 = smul.u32 128, %s16
        %p1284 = scmp.lt.s32.totalorder %s1283, 255
        %s1285 = scalar_select %p1284, %s1283, 255
        %s1286 = smul.addr %s1285, 4
        %s1287 = scalar_lea.vmem %s4, %s1286
      $region48: #{encoder_forward.10} parent=43 // pred_fallthru
        _
    $region44: #{encoder_forward.10} parent=5 // pred_fallthru
      _
  $region6: #{encoder_forward.10} parent=0 // loop_footer
    %s14 = sadd.s32 1, %s10
  $region7: #{encoder_forward.10} parent=0 // loop_footer_branch
    %9 = sbr.rel target = $region3
  $region8: #{encoder_forward.10} parent=0 // loop_exit
    _

// kernel: encoder_forward.11
$region0: #{encoder_forward.11}
  #allocation0 [shape = 'u32[]', space=smem, size = 0x4, offset = 0x4, fixed_abs, tag = 'smem constant byte address 0x4 - core index']
  #allocation1 [shape = 'u32[72,128]{1,0:T(1,128)}', space=vmem, size = 0x9000, scoped, tag = 'internal scratch']
  %s0 = inlined_call_operand.vmem [shape: bf16[512,128], index: 0, kind: input, shape index: {}]
  %s1 = inlined_call_operand.vmem [shape: bf16[128,16], index: 1, kind: input, shape index: {}]
  %s2 = inlined_call_operand.vmem [shape: bf16[512,16], index: 2, kind: output, shape index: {0}]
  %s3 = inlined_call_operand.vmem [shape: f32[1,2,16], index: 3, kind: output, shape index: {1}]
  %4 = xla_tuple %s2, %s3
  %s5 = sld [smem:[#allocation0]]
  $region26: #{encoder_forward.11} parent=0
    _
  %s7 = ssub.s32 1, %s5
  %s8 = scalar_select 0, %s7, %s5
  // Predicated region
  $region2: #{encoder_forward.11} parent=0 // pred_check
    _
  $region3: #{encoder_forward.11} parent=0 // pred_check_branch
    %10 = sbr.rel (0) target = $region5
  $region4: #{encoder_forward.11} parent=0 // pred_region
    _
  $region5: #{encoder_forward.11} parent=0 // pred_fallthru
    _
  // Predicated region
  $region6: #{encoder_forward.11} parent=0 // pred_check
    _
  $region7: #{encoder_forward.11} parent=0 // pred_check_branch
    %12 = sbr.rel (0) target = $region9
  $region8: #{encoder_forward.11} parent=0 // pred_region
    _
  $region9: #{encoder_forward.11} parent=0 // pred_fallthru
    _
  %v13 = vld [vmem:[%s0] sm:$0xf]
  %v14 = vld [vmem:[%s0 + $0x4] sm:$0xf]
  %v15 = vld [vmem:[%s0 + $0x8] sm:$0xf]
  %v16 = vld [vmem:[%s0 + $0xc] sm:$0xf]
  %v17 = vld [vmem:[%s0 + $0x10] sm:$0xf]
  %v18 = vld [vmem:[%s0 + $0x14] sm:$0xf]
  %v19 = vld [vmem:[%s0 + $0x18] sm:$0xf]
  %v20 = vld [vmem:[%s0 + $0x1c] sm:$0xf]
  %v21 = vld [vmem:[%s0 + $0x20] sm:$0xf]
  %v22 = vld [vmem:[%s0 + $0x24] sm:$0xf]
  %v23 = vld [vmem:[%s0 + $0x28] sm:$0xf]
  %v24 = vld [vmem:[%s0 + $0x2c] sm:$0xf]
  %v25 = vld [vmem:[%s0 + $0x30] sm:$0xf]
  %v26 = vld [vmem:[%s0 + $0x34] sm:$0xf]
  %v27 = vld [vmem:[%s0 + $0x38] sm:$0xf]
  %v28 = vld [vmem:[%s0 + $0x3c] sm:$0xf]
  %v29 = vld [vmem:[%s0 + $0x40] sm:$0xf]
  %v30 = vld [vmem:[%s0 + $0x44] sm:$0xf]
  %v31 = vld [vmem:[%s0 + $0x48] sm:$0xf]
  %v32 = vld [vmem:[%s0 + $0x4c] sm:$0xf]
  %v33 = vld [vmem:[%s0 + $0x50] sm:$0xf]
  %v34 = vld [vmem:[%s0 + $0x54] sm:$0xf]
  %v35 = vld [vmem:[%s0 + $0x58] sm:$0xf]
  %v36 = vld [vmem:[%s0 + $0x5c] sm:$0xf]
  %v37 = vld [vmem:[%s0 + $0x60] sm:$0xf]
  %v38 = vld [vmem:[%s0 + $0x64] sm:$0xf]
  %v39 = vld [vmem:[%s0 + $0x68] sm:$0xf]
  %v40 = vld [vmem:[%s0 + $0x6c] sm:$0xf]
  %v41 = vld [vmem:[%s0 + $0x70] sm:$0xf]
  %v42 = vld [vmem:[%s0 + $0x74] sm:$0xf]
  %v43 = vld [vmem:[%s0 + $0x78] sm:$0xf]
  %v44 = vld [vmem:[%s0 + $0x7c] sm:$0xf]
  %v45 = vld [vmem:[%s0 + $0x80] sm:$0xf]
  %v46 = vld [vmem:[%s0 + $0x84] sm:$0xf]
  %v47 = vld [vmem:[%s0 + $0x88] sm:$0xf]
  %v48 = vld [vmem:[%s0 + $0x8c] sm:$0xf]
  %v49 = vld [vmem:[%s0 + $0x90] sm:$0xf]
  %v50 = vld [vmem:[%s0 + $0x94] sm:$0xf]
  %v51 = vld [vmem:[%s0 + $0x98] sm:$0xf]
  %v52 = vld [vmem:[%s0 + $0x9c] sm:$0xf]
  %v53 = vld [vmem:[%s0 + $0xa0] sm:$0xf]
  %v54 = vld [vmem:[%s0 + $0xa4] sm:$0xf]
  %v55 = vld [vmem:[%s0 + $0xa8] sm:$0xf]
  %v56 = vld [vmem:[%s0 + $0xac] sm:$0xf]
  %v57 = vld [vmem:[%s0 + $0xb0] sm:$0xf]
  %v58 = vld [vmem:[%s0 + $0xb4] sm:$0xf]
  %v59 = vld [vmem:[%s0 + $0xb8] sm:$0xf]
  %v60 = vld [vmem:[%s0 + $0xbc] sm:$0xf]
  %v61 = vld [vmem:[%s0 + $0xc0] sm:$0xf]
  %v62 = vld [vmem:[%s0 + $0xc4] sm:$0xf]
  %v63 = vld [vmem:[%s0 + $0xc8] sm:$0xf]
  %v64 = vld [vmem:[%s0 + $0xcc] sm:$0xf]
  %v65 = vld [vmem:[%s0 + $0xd0] sm:$0xf]
  %v66 = vld [vmem:[%s0 + $0xd4] sm:$0xf]
  %v67 = vld [vmem:[%s0 + $0xd8] sm:$0xf]
  %v68 = vld [vmem:[%s0 + $0xdc] sm:$0xf]
  %v69 = vld [vmem:[%s0 + $0xe0] sm:$0xf]
  %v70 = vld [vmem:[%s0 + $0xe4] sm:$0xf]
  %v71 = vld [vmem:[%s0 + $0xe8] sm:$0xf]
  %v72 = vld [vmem:[%s0 + $0xec] sm:$0xf]
  %v73 = vld [vmem:[%s0 + $0xf0] sm:$0xf]
  %v74 = vld [vmem:[%s0 + $0xf4] sm:$0xf]
  %v75 = vld [vmem:[%s0 + $0xf8] sm:$0xf]
  %v76 = vld [vmem:[%s0 + $0xfc] sm:$0xf]
  %v77 = vld [vmem:[%s1] sm:$0xf]
  %v78 = vld [vmem:[%s1 + $0x4] sm:$0xf]
  %v79 = vld [vmem:[%s1 + $0x8] sm:$0xf]
  %v80 = vld [vmem:[%s1 + $0xc] sm:$0xf]
  %v81 = vld [vmem:[%s1 + $0x10] sm:$0xf]
  %v82 = vld [vmem:[%s1 + $0x14] sm:$0xf]
  %v83 = vld [vmem:[%s1 + $0x18] sm:$0xf]
  %v84 = vld [vmem:[%s1 + $0x1c] sm:$0xf]
  %v85 = vld [vmem:[%s1 + $0x20] sm:$0xf]
  %v86 = vld [vmem:[%s1 + $0x24] sm:$0xf]
  %v87 = vld [vmem:[%s1 + $0x28] sm:$0xf]
  %v88 = vld [vmem:[%s1 + $0x2c] sm:$0xf]
  %v89 = vld [vmem:[%s1 + $0x30] sm:$0xf]
  %v90 = vld [vmem:[%s1 + $0x34] sm:$0xf]
  %v91 = vld [vmem:[%s1 + $0x38] sm:$0xf]
  %v92 = vld [vmem:[%s1 + $0x3c] sm:$0xf]
  %v157 = vunpack.c.l.b16 %v13
  %v158 = vunpack.c.l.b16 %v14
  %v159 = vunpack.c.l.b16 %v15
  %v160 = vunpack.c.l.b16 %v16
  %v161 = vunpack.c.l.b16 %v17
  %v162 = vunpack.c.l.b16 %v18
  %v163 = vunpack.c.l.b16 %v19
  %v164 = vunpack.c.l.b16 %v20
  %v165 = vunpack.c.l.b16 %v21
  %v166 = vunpack.c.l.b16 %v22
  %v167 = vunpack.c.l.b16 %v23
  %v168 = vunpack.c.l.b16 %v24
  %v169 = vunpack.c.l.b16 %v25
  %v170 = vunpack.c.l.b16 %v26
  %v171 = vunpack.c.l.b16 %v27
  %v172 = vunpack.c.l.b16 %v28
  %v173 = vunpack.c.l.b16 %v29
  %v174 = vunpack.c.l.b16 %v30
  %v175 = vunpack.c.l.b16 %v31
  %v176 = vunpack.c.l.b16 %v32
  %v177 = vunpack.c.l.b16 %v33
  %v178 = vunpack.c.l.b16 %v34
  %v179 = vunpack.c.l.b16 %v35
  %v180 = vunpack.c.l.b16 %v36
  %v181 = vunpack.c.l.b16 %v37
  %v182 = vunpack.c.l.b16 %v38
  %v183 = vunpack.c.l.b16 %v39
  %v184 = vunpack.c.l.b16 %v40
  %v185 = vunpack.c.l.b16 %v41
  %v186 = vunpack.c.l.b16 %v42
  %v187 = vunpack.c.l.b16 %v43
  %v188 = vunpack.c.l.b16 %v44
  %v189 = vunpack.c.l.b16 %v45
  %v190 = vunpack.c.l.b16 %v46
  %v191 = vunpack.c.l.b16 %v47
  %v192 = vunpack.c.l.b16 %v48
  %v193 = vunpack.c.l.b16 %v49
  %v194 = vunpack.c.l.b16 %v50
  %v195 = vunpack.c.l.b16 %v51
  %v196 = vunpack.c.l.b16 %v52
  %v197 = vunpack.c.l.b16 %v53
  %v198 = vunpack.c.l.b16 %v54
  %v199 = vunpack.c.l.b16 %v55
  %v200 = vunpack.c.l.b16 %v56
  %v201 = vunpack.c.l.b16 %v57
  %v202 = vunpack.c.l.b16 %v58
  %v203 = vunpack.c.l.b16 %v59
  %v204 = vunpack.c.l.b16 %v60
  %v205 = vunpack.c.l.b16 %v61
  %v206 = vunpack.c.l.b16 %v62
  %v207 = vunpack.c.l.b16 %v63
  %v208 = vunpack.c.l.b16 %v64
  %v209 = vunpack.c.l.b16 %v65
  %v210 = vunpack.c.l.b16 %v66
  %v211 = vunpack.c.l.b16 %v67
  %v212 = vunpack.c.l.b16 %v68
  %v213 = vunpack.c.l.b16 %v69
  %v214 = vunpack.c.l.b16 %v70
  %v215 = vunpack.c.l.b16 %v71
  %v216 = vunpack.c.l.b16 %v72
  %v217 = vunpack.c.l.b16 %v73
  %v218 = vunpack.c.l.b16 %v74
  %v219 = vunpack.c.l.b16 %v75
  %v220 = vunpack.c.l.b16 %v76
  %v221 = vpack.c.b16 %v158, %v157
  %v222 = vpack.c.b16 %v160, %v159
  %v223 = vpack.c.b16 %v162, %v161
  %v224 = vpack.c.b16 %v164, %v163
  %v225 = vpack.c.b16 %v166, %v165
  %v226 = vpack.c.b16 %v168, %v167
  %v227 = vpack.c.b16 %v170, %v169
  %v228 = vpack.c.b16 %v172, %v171
  %v229 = vpack.c.b16 %v174, %v173
  %v230 = vpack.c.b16 %v176, %v175
  %v231 = vpack.c.b16 %v178, %v177
  %v232 = vpack.c.b16 %v180, %v179
  %v233 = vpack.c.b16 %v182, %v181
  %v234 = vpack.c.b16 %v184, %v183
  %v235 = vpack.c.b16 %v186, %v185
  %v236 = vpack.c.b16 %v188, %v187
  %v237 = vpack.c.b16 %v190, %v189
  %v238 = vpack.c.b16 %v192, %v191
  %v239 = vpack.c.b16 %v194, %v193
  %v240 = vpack.c.b16 %v196, %v195
  %v241 = vpack.c.b16 %v198, %v197
  %v242 = vpack.c.b16 %v200, %v199
  %v243 = vpack.c.b16 %v202, %v201
  %v244 = vpack.c.b16 %v204, %v203
  %v245 = vpack.c.b16 %v206, %v205
  %v246 = vpack.c.b16 %v208, %v207
  %v247 = vpack.c.b16 %v210, %v209
  %v248 = vpack.c.b16 %v212, %v211
  %v249 = vpack.c.b16 %v214, %v213
  %v250 = vpack.c.b16 %v216, %v215
  %v251 = vpack.c.b16 %v218, %v217
  %v252 = vpack.c.b16 %v220, %v219
  %v301 = vunpack.c.l.b16 %v77
  %v302 = vunpack.c.l.b16 %v78
  %v303 = vunpack.c.l.b16 %v79
  %v304 = vunpack.c.l.b16 %v80
  %v305 = vunpack.c.l.b16 %v81
  %v306 = vunpack.c.l.b16 %v82
  %v307 = vunpack.c.l.b16 %v83
  %v308 = vunpack.c.l.b16 %v84
  %v309 = vunpack.c.l.b16 %v85
  %v310 = vunpack.c.l.b16 %v86
  %v311 = vunpack.c.l.b16 %v87
  %v312 = vunpack.c.l.b16 %v88
  %v313 = vunpack.c.l.b16 %v89
  %v314 = vunpack.c.l.b16 %v90
  %v315 = vunpack.c.l.b16 %v91
  %v316 = vunpack.c.l.b16 %v92
  %v317 = vpack.c.b16 %v302, %v301
  %v318 = vpack.c.b16 %v304, %v303
  %v319 = vpack.c.b16 %v306, %v305
  %v320 = vpack.c.b16 %v308, %v307
  %v321 = vpack.c.b16 %v310, %v309
  %v322 = vpack.c.b16 %v312, %v311
  %v323 = vpack.c.b16 %v314, %v313
  %v324 = vpack.c.b16 %v316, %v315
  %333 = vmatpush.bf16.msra.mxu0 %v324
  %334 = vmatpush.bf16.msra.mxu0 %v323
  %335 = vmatpush.bf16.msra.mxu0 %v322
  %336 = vmatpush.bf16.msra.mxu0 %v321
  %337 = vmatpush.bf16.msra.mxu0 %v320
  %338 = vmatpush.bf16.msra.mxu0 %v319
  %339 = vmatpush.bf16.msra.mxu0 %v318
  %340 = vmatpush.bf16.msra.mxu0 %v317
  %341 = vmatmul.bf16.gmra.mxu0 %v221
  %v342 = vpop.f32.mrf.mxu0
  %v343 = vadd.f32 0.0, %v342
  %v344 = vpop.f32.mrf.mxu0
  %v345 = vadd.f32 0.0, %v344
  %346 = vmatmul.bf16.gmra.mxu0 %v222
  %v347 = vpop.f32.mrf.mxu0
  %v348 = vadd.f32 0.0, %v347
  %v349 = vpop.f32.mrf.mxu0
  %v350 = vadd.f32 0.0, %v349
  %351 = vmatmul.bf16.gmra.mxu0 %v223
  %v352 = vpop.f32.mrf.mxu0
  %v353 = vadd.f32 0.0, %v352
  %v354 = vpop.f32.mrf.mxu0
  %v355 = vadd.f32 0.0, %v354
  %356 = vmatmul.bf16.gmra.mxu0 %v224
  %v357 = vpop.f32.mrf.mxu0
  %v358 = vadd.f32 0.0, %v357
  %v359 = vpop.f32.mrf.mxu0
  %v360 = vadd.f32 0.0, %v359
  %361 = vmatmul.bf16.gmra.mxu0 %v225
  %v362 = vpop.f32.mrf.mxu0
  %v363 = vadd.f32 0.0, %v362
  %v364 = vpop.f32.mrf.mxu0
  %v365 = vadd.f32 0.0, %v364
  %366 = vmatmul.bf16.gmra.mxu0 %v226
  %v367 = vpop.f32.mrf.mxu0
  %v368 = vadd.f32 0.0, %v367
  %v369 = vpop.f32.mrf.mxu0
  %v370 = vadd.f32 0.0, %v369
  %371 = vmatmul.bf16.gmra.mxu0 %v227
  %v372 = vpop.f32.mrf.mxu0
  %v373 = vadd.f32 0.0, %v372
  %v374 = vpop.f32.mrf.mxu0
  %v375 = vadd.f32 0.0, %v374
  %376 = vmatmul.bf16.gmra.mxu0 %v228
  %v377 = vpop.f32.mrf.mxu0
  %v378 = vadd.f32 0.0, %v377
  %v379 = vpop.f32.mrf.mxu0
  %v380 = vadd.f32 0.0, %v379
  %381 = vmatmul.bf16.gmra.mxu0 %v229
  %v382 = vpop.f32.mrf.mxu0
  %v383 = vadd.f32 0.0, %v382
  %v384 = vpop.f32.mrf.mxu0
  %v385 = vadd.f32 0.0, %v384
  %386 = vmatmul.bf16.gmra.mxu0 %v230
  %v387 = vpop.f32.mrf.mxu0
  %v388 = vadd.f32 0.0, %v387
  %v389 = vpop.f32.mrf.mxu0
  %v390 = vadd.f32 0.0, %v389
  %391 = vmatmul.bf16.gmra.mxu0 %v231
  %v392 = vpop.f32.mrf.mxu0
  %v393 = vadd.f32 0.0, %v392
  %v394 = vpop.f32.mrf.mxu0
  %v395 = vadd.f32 0.0, %v394
  %396 = vmatmul.bf16.gmra.mxu0 %v232
  %v397 = vpop.f32.mrf.mxu0
  %v398 = vadd.f32 0.0, %v397
  %v399 = vpop.f32.mrf.mxu0
  %v400 = vadd.f32 0.0, %v399
  %401 = vmatmul.bf16.gmra.mxu0 %v233
  %v402 = vpop.f32.mrf.mxu0
  %v403 = vadd.f32 0.0, %v402
  %v404 = vpop.f32.mrf.mxu0
  %v405 = vadd.f32 0.0, %v404
  %406 = vmatmul.bf16.gmra.mxu0 %v234
  %v407 = vpop.f32.mrf.mxu0
  %v408 = vadd.f32 0.0, %v407
  %v409 = vpop.f32.mrf.mxu0
  %v410 = vadd.f32 0.0, %v409
  %411 = vmatmul.bf16.gmra.mxu0 %v235
  %v412 = vpop.f32.mrf.mxu0
  %v413 = vadd.f32 0.0, %v412
  %v414 = vpop.f32.mrf.mxu0
  %v415 = vadd.f32 0.0, %v414
  %416 = vmatmul.bf16.gmra.mxu0 %v236
  %v417 = vpop.f32.mrf.mxu0
  %v418 = vadd.f32 0.0, %v417
  %v419 = vpop.f32.mrf.mxu0
  %v420 = vadd.f32 0.0, %v419
  %421 = vmatmul.bf16.gmra.mxu0 %v237
  %v422 = vpop.f32.mrf.mxu0
  %v423 = vadd.f32 0.0, %v422
  %v424 = vpop.f32.mrf.mxu0
  %v425 = vadd.f32 0.0, %v424
  %426 = vmatmul.bf16.gmra.mxu0 %v238
  %v427 = vpop.f32.mrf.mxu0
  %v428 = vadd.f32 0.0, %v427
  %v429 = vpop.f32.mrf.mxu0
  %v430 = vadd.f32 0.0, %v429
  %431 = vmatmul.bf16.gmra.mxu0 %v239
  %v432 = vpop.f32.mrf.mxu0
  %v433 = vadd.f32 0.0, %v432
  %v434 = vpop.f32.mrf.mxu0
  %v435 = vadd.f32 0.0, %v434
  %436 = vmatmul.bf16.gmra.mxu0 %v240
  %v437 = vpop.f32.mrf.mxu0
  %v438 = vadd.f32 0.0, %v437
  %v439 = vpop.f32.mrf.mxu0
  %v440 = vadd.f32 0.0, %v439
  %441 = vmatmul.bf16.gmra.mxu0 %v241
  %v442 = vpop.f32.mrf.mxu0
  %v443 = vadd.f32 0.0, %v442
  %v444 = vpop.f32.mrf.mxu0
  %v445 = vadd.f32 0.0, %v444
  %446 = vmatmul.bf16.gmra.mxu0 %v242
  %v447 = vpop.f32.mrf.mxu0
  %v448 = vadd.f32 0.0, %v447
  %v449 = vpop.f32.mrf.mxu0
  %v450 = vadd.f32 0.0, %v449
  %451 = vmatmul.bf16.gmra.mxu0 %v243
  %v452 = vpop.f32.mrf.mxu0
  %v453 = vadd.f32 0.0, %v452
  %v454 = vpop.f32.mrf.mxu0
  %v455 = vadd.f32 0.0, %v454
  %456 = vmatmul.bf16.gmra.mxu0 %v244
  %v457 = vpop.f32.mrf.mxu0
  %v458 = vadd.f32 0.0, %v457
  %v459 = vpop.f32.mrf.mxu0
  %v460 = vadd.f32 0.0, %v459
  %461 = vmatmul.bf16.gmra.mxu0 %v245
  %v462 = vpop.f32.mrf.mxu0
  %v463 = vadd.f32 0.0, %v462
  %v464 = vpop.f32.mrf.mxu0
  %v465 = vadd.f32 0.0, %v464
  %466 = vmatmul.bf16.gmra.mxu0 %v246
  %v467 = vpop.f32.mrf.mxu0
  %v468 = vadd.f32 0.0, %v467
  %v469 = vpop.f32.mrf.mxu0
  %v470 = vadd.f32 0.0, %v469
  %471 = vmatmul.bf16.gmra.mxu0 %v247
  %v472 = vpop.f32.mrf.mxu0
  %v473 = vadd.f32 0.0, %v472
  %v474 = vpop.f32.mrf.mxu0
  %v475 = vadd.f32 0.0, %v474
  %476 = vmatmul.bf16.gmra.mxu0 %v248
  %v477 = vpop.f32.mrf.mxu0
  %v478 = vadd.f32 0.0, %v477
  %v479 = vpop.f32.mrf.mxu0
  %v480 = vadd.f32 0.0, %v479
  %481 = vmatmul.bf16.gmra.mxu0 %v249
  %v482 = vpop.f32.mrf.mxu0
  %v483 = vadd.f32 0.0, %v482
  %v484 = vpop.f32.mrf.mxu0
  %v485 = vadd.f32 0.0, %v484
  %486 = vmatmul.bf16.gmra.mxu0 %v250
  %v487 = vpop.f32.mrf.mxu0
  %v488 = vadd.f32 0.0, %v487
  %v489 = vpop.f32.mrf.mxu0
  %v490 = vadd.f32 0.0, %v489
  %491 = vmatmul.bf16.gmra.mxu0 %v251
  %v492 = vpop.f32.mrf.mxu0
  %v493 = vadd.f32 0.0, %v492
  %v494 = vpop.f32.mrf.mxu0
  %v495 = vadd.f32 0.0, %v494
  %496 = vmatmul.bf16.gmra.mxu0 %v252
  %v497 = vpop.f32.mrf.mxu0
  %v498 = vadd.f32 0.0, %v497
  %v499 = vpop.f32.mrf.mxu0
  %v500 = vadd.f32 0.0, %v499
  %501 = vdwg.mxu0
  %v502 = vpack.c.bf16 %v343, %v343
  %v503 = vpack.c.bf16 %v345, %v345
  %v504 = vpack.c.bf16 %v348, %v348
  %v505 = vpack.c.bf16 %v350, %v350
  %v506 = vpack.c.bf16 %v353, %v353
  %v507 = vpack.c.bf16 %v355, %v355
  %v508 = vpack.c.bf16 %v358, %v358
  %v509 = vpack.c.bf16 %v360, %v360
  %v510 = vpack.c.bf16 %v363, %v363
  %v511 = vpack.c.bf16 %v365, %v365
  %v512 = vpack.c.bf16 %v368, %v368
  %v513 = vpack.c.bf16 %v370, %v370
  %v514 = vpack.c.bf16 %v373, %v373
  %v515 = vpack.c.bf16 %v375, %v375
  %v516 = vpack.c.bf16 %v378, %v378
  %v517 = vpack.c.bf16 %v380, %v380
  %v518 = vpack.c.bf16 %v383, %v383
  %v519 = vpack.c.bf16 %v385, %v385
  %v520 = vpack.c.bf16 %v388, %v388
  %v521 = vpack.c.bf16 %v390, %v390
  %v522 = vpack.c.bf16 %v393, %v393
  %v523 = vpack.c.bf16 %v395, %v395
  %v524 = vpack.c.bf16 %v398, %v398
  %v525 = vpack.c.bf16 %v400, %v400
  %v526 = vpack.c.bf16 %v403, %v403
  %v527 = vpack.c.bf16 %v405, %v405
  %v528 = vpack.c.bf16 %v408, %v408
  %v529 = vpack.c.bf16 %v410, %v410
  %v530 = vpack.c.bf16 %v413, %v413
  %v531 = vpack.c.bf16 %v415, %v415
  %v532 = vpack.c.bf16 %v418, %v418
  %v533 = vpack.c.bf16 %v420, %v420
  %v534 = vpack.c.bf16 %v423, %v423
  %v535 = vpack.c.bf16 %v425, %v425
  %v536 = vpack.c.bf16 %v428, %v428
  %v537 = vpack.c.bf16 %v430, %v430
  %v538 = vpack.c.bf16 %v433, %v433
  %v539 = vpack.c.bf16 %v435, %v435
  %v540 = vpack.c.bf16 %v438, %v438
  %v541 = vpack.c.bf16 %v440, %v440
  %v542 = vpack.c.bf16 %v443, %v443
  %v543 = vpack.c.bf16 %v445, %v445
  %v544 = vpack.c.bf16 %v448, %v448
  %v545 = vpack.c.bf16 %v450, %v450
  %v546 = vpack.c.bf16 %v453, %v453
  %v547 = vpack.c.bf16 %v455, %v455
  %v548 = vpack.c.bf16 %v458, %v458
  %v549 = vpack.c.bf16 %v460, %v460
  %v550 = vpack.c.bf16 %v463, %v463
  %v551 = vpack.c.bf16 %v465, %v465
  %v552 = vpack.c.bf16 %v468, %v468
  %v553 = vpack.c.bf16 %v470, %v470
  %v554 = vpack.c.bf16 %v473, %v473
  %v555 = vpack.c.bf16 %v475, %v475
  %v556 = vpack.c.bf16 %v478, %v478
  %v557 = vpack.c.bf16 %v480, %v480
  %v558 = vpack.c.bf16 %v483, %v483
  %v559 = vpack.c.bf16 %v485, %v485
  %v560 = vpack.c.bf16 %v488, %v488
  %v561 = vpack.c.bf16 %v490, %v490
  %v562 = vpack.c.bf16 %v493, %v493
  %v563 = vpack.c.bf16 %v495, %v495
  %v564 = vpack.c.bf16 %v498, %v498
  %v565 = vpack.c.bf16 %v500, %v500
  %vm566 = vcmask 125952
  %567 = vst.msk [vmem:[%s2] sm:$0xf] %vm566, %v502
  %568 = vst.msk [vmem:[%s2 + $0x4] sm:$0xf] %vm566, %v503
  %569 = vst.msk [vmem:[%s2 + $0x8] sm:$0xf] %vm566, %v504
  %570 = vst.msk [vmem:[%s2 + $0xc] sm:$0xf] %vm566, %v505
  %571 = vst.msk [vmem:[%s2 + $0x10] sm:$0xf] %vm566, %v506
  %572 = vst.msk [vmem:[%s2 + $0x14] sm:$0xf] %vm566, %v507
  %573 = vst.msk [vmem:[%s2 + $0x18] sm:$0xf] %vm566, %v508
  %574 = vst.msk [vmem:[%s2 + $0x1c] sm:$0xf] %vm566, %v509
  %575 = vst.msk [vmem:[%s2 + $0x20] sm:$0xf] %vm566, %v510
  %576 = vst.msk [vmem:[%s2 + $0x24] sm:$0xf] %vm566, %v511
  %577 = vst.msk [vmem:[%s2 + $0x28] sm:$0xf] %vm566, %v512
  %578 = vst.msk [vmem:[%s2 + $0x2c] sm:$0xf] %vm566, %v513
  %579 = vst.msk [vmem:[%s2 + $0x30] sm:$0xf] %vm566, %v514
  %580 = vst.msk [vmem:[%s2 + $0x34] sm:$0xf] %vm566, %v515
  %581 = vst.msk [vmem:[%s2 + $0x38] sm:$0xf] %vm566, %v516
  %582 = vst.msk [vmem:[%s2 + $0x3c] sm:$0xf] %vm566, %v517
  %583 = vst.msk [vmem:[%s2 + $0x40] sm:$0xf] %vm566, %v518
  %584 = vst.msk [vmem:[%s2 + $0x44] sm:$0xf] %vm566, %v519
  %585 = vst.msk [vmem:[%s2 + $0x48] sm:$0xf] %vm566, %v520
  %586 = vst.msk [vmem:[%s2 + $0x4c] sm:$0xf] %vm566, %v521
  %587 = vst.msk [vmem:[%s2 + $0x50] sm:$0xf] %vm566, %v522
  %588 = vst.msk [vmem:[%s2 + $0x54] sm:$0xf] %vm566, %v523
  %589 = vst.msk [vmem:[%s2 + $0x58] sm:$0xf] %vm566, %v524
  %590 = vst.msk [vmem:[%s2 + $0x5c] sm:$0xf] %vm566, %v525
  %591 = vst.msk [vmem:[%s2 + $0x60] sm:$0xf] %vm566, %v526
  %592 = vst.msk [vmem:[%s2 + $0x64] sm:$0xf] %vm566, %v527
  %593 = vst.msk [vmem:[%s2 + $0x68] sm:$0xf] %vm566, %v528
  %594 = vst.msk [vmem:[%s2 + $0x6c] sm:$0xf] %vm566, %v529
  %595 = vst.msk [vmem:[%s2 + $0x70] sm:$0xf] %vm566, %v530
  %596 = vst.msk [vmem:[%s2 + $0x74] sm:$0xf] %vm566, %v531
  %597 = vst.msk [vmem:[%s2 + $0x78] sm:$0xf] %vm566, %v532
  %598 = vst.msk [vmem:[%s2 + $0x7c] sm:$0xf] %vm566, %v533
  %599 = vst.msk [vmem:[%s2 + $0x80] sm:$0xf] %vm566, %v534
  %600 = vst.msk [vmem:[%s2 + $0x84] sm:$0xf] %vm566, %v535
  %601 = vst.msk [vmem:[%s2 + $0x88] sm:$0xf] %vm566, %v536
  %602 = vst.msk [vmem:[%s2 + $0x8c] sm:$0xf] %vm566, %v537
  %603 = vst.msk [vmem:[%s2 + $0x90] sm:$0xf] %vm566, %v538
  %604 = vst.msk [vmem:[%s2 + $0x94] sm:$0xf] %vm566, %v539
  %605 = vst.msk [vmem:[%s2 + $0x98] sm:$0xf] %vm566, %v540
  %606 = vst.msk [vmem:[%s2 + $0x9c] sm:$0xf] %vm566, %v541
  %607 = vst.msk [vmem:[%s2 + $0xa0] sm:$0xf] %vm566, %v542
  %608 = vst.msk [vmem:[%s2 + $0xa4] sm:$0xf] %vm566, %v543
  %609 = vst.msk [vmem:[%s2 + $0xa8] sm:$0xf] %vm566, %v544
  %610 = vst.msk [vmem:[%s2 + $0xac] sm:$0xf] %vm566, %v545
  %611 = vst.msk [vmem:[%s2 + $0xb0] sm:$0xf] %vm566, %v546
  %612 = vst.msk [vmem:[%s2 + $0xb4] sm:$0xf] %vm566, %v547
  %613 = vst.msk [vmem:[%s2 + $0xb8] sm:$0xf] %vm566, %v548
  %614 = vst.msk [vmem:[%s2 + $0xbc] sm:$0xf] %vm566, %v549
  %615 = vst.msk [vmem:[%s2 + $0xc0] sm:$0xf] %vm566, %v550
  %616 = vst.msk [vmem:[%s2 + $0xc4] sm:$0xf] %vm566, %v551
  %617 = vst.msk [vmem:[%s2 + $0xc8] sm:$0xf] %vm566, %v552
  %618 = vst.msk [vmem:[%s2 + $0xcc] sm:$0xf] %vm566, %v553
  %619 = vst.msk [vmem:[%s2 + $0xd0] sm:$0xf] %vm566, %v554
  %620 = vst.msk [vmem:[%s2 + $0xd4] sm:$0xf] %vm566, %v555
  %621 = vst.msk [vmem:[%s2 + $0xd8] sm:$0xf] %vm566, %v556
  %622 = vst.msk [vmem:[%s2 + $0xdc] sm:$0xf] %vm566, %v557
  %623 = vst.msk [vmem:[%s2 + $0xe0] sm:$0xf] %vm566, %v558
  %624 = vst.msk [vmem:[%s2 + $0xe4] sm:$0xf] %vm566, %v559
  %625 = vst.msk [vmem:[%s2 + $0xe8] sm:$0xf] %vm566, %v560
  %626 = vst.msk [vmem:[%s2 + $0xec] sm:$0xf] %vm566, %v561
  %627 = vst.msk [vmem:[%s2 + $0xf0] sm:$0xf] %vm566, %v562
  %628 = vst.msk [vmem:[%s2 + $0xf4] sm:$0xf] %vm566, %v563
  %629 = vst.msk [vmem:[%s2 + $0xf8] sm:$0xf] %vm566, %v564
  %630 = vst.msk [vmem:[%s2 + $0xfc] sm:$0xf] %vm566, %v565
  %631 = vmatpush.msra.mxu0 %v380
  %632 = vmatpush.msra.mxu0 %v378
  %633 = vmatpush.msra.mxu0 %v375
  %634 = vmatpush.msra.mxu0 %v373
  %635 = vmatpush.msra.mxu0 %v370
  %636 = vmatpush.msra.mxu0 %v368
  %637 = vmatpush.msra.mxu0 %v365
  %638 = vmatpush.msra.mxu0 %v363
  %639 = vmatpush.msra.mxu0 %v360
  %640 = vmatpush.msra.mxu0 %v358
  %641 = vmatpush.msra.mxu0 %v355
  %642 = vmatpush.msra.mxu0 %v353
  %643 = vmatpush.msra.mxu0 %v350
  %644 = vmatpush.msra.mxu0 %v348
  %645 = vmatpush.msra.mxu0 %v345
  %646 = vmatpush.msra.mxu0 %v343
  %647 = vmatmul.f32.gmra.mxu0 1.0
  %v648 = vpop.f32.mrf.mxu0
  %v649 = vadd.f32 0.0, %v648
  %650 = vdwg.mxu0
  %651 = vmatpush.msra.mxu0 %v420
  %652 = vmatpush.msra.mxu0 %v418
  %653 = vmatpush.msra.mxu0 %v415
  %654 = vmatpush.msra.mxu0 %v413
  %655 = vmatpush.msra.mxu0 %v410
  %656 = vmatpush.msra.mxu0 %v408
  %657 = vmatpush.msra.mxu0 %v405
  %658 = vmatpush.msra.mxu0 %v403
  %659 = vmatpush.msra.mxu0 %v400
  %660 = vmatpush.msra.mxu0 %v398
  %661 = vmatpush.msra.mxu0 %v395
  %662 = vmatpush.msra.mxu0 %v393
  %663 = vmatpush.msra.mxu0 %v390
  %664 = vmatpush.msra.mxu0 %v388
  %665 = vmatpush.msra.mxu0 %v385
  %666 = vmatpush.msra.mxu0 %v383
  %667 = vmatmul.f32.gmra.mxu0 1.0
  %v668 = vpop.f32.mrf.mxu0
  %v669 = vadd.f32 %v649, %v668
  %670 = vdwg.mxu0
  %671 = vmatpush.msra.mxu0 %v460
  %672 = vmatpush.msra.mxu0 %v458
  %673 = vmatpush.msra.mxu0 %v455
  %674 = vmatpush.msra.mxu0 %v453
  %675 = vmatpush.msra.mxu0 %v450
  %676 = vmatpush.msra.mxu0 %v448
  %677 = vmatpush.msra.mxu0 %v445
  %678 = vmatpush.msra.mxu0 %v443
  %679 = vmatpush.msra.mxu0 %v440
  %680 = vmatpush.msra.mxu0 %v438
  %681 = vmatpush.msra.mxu0 %v435
  %682 = vmatpush.msra.mxu0 %v433
  %683 = vmatpush.msra.mxu0 %v430
  %684 = vmatpush.msra.mxu0 %v428
  %685 = vmatpush.msra.mxu0 %v425
  %686 = vmatpush.msra.mxu0 %v423
  %687 = vmatmul.f32.gmra.mxu0 1.0
  %v688 = vpop.f32.mrf.mxu0
  %v689 = vadd.f32 %v669, %v688
  %690 = vdwg.mxu0
  %691 = vmatpush.msra.mxu0 %v500
  %692 = vmatpush.msra.mxu0 %v498
  %693 = vmatpush.msra.mxu0 %v495
  %694 = vmatpush.msra.mxu0 %v493
  %695 = vmatpush.msra.mxu0 %v490
  %696 = vmatpush.msra.mxu0 %v488
  %697 = vmatpush.msra.mxu0 %v485
  %698 = vmatpush.msra.mxu0 %v483
  %699 = vmatpush.msra.mxu0 %v480
  %700 = vmatpush.msra.mxu0 %v478
  %701 = vmatpush.msra.mxu0 %v475
  %702 = vmatpush.msra.mxu0 %v473
  %703 = vmatpush.msra.mxu0 %v470
  %704 = vmatpush.msra.mxu0 %v468
  %705 = vmatpush.msra.mxu0 %v465
  %706 = vmatpush.msra.mxu0 %v463
  %707 = vmatmul.f32.gmra.mxu0 1.0
  %v708 = vpop.f32.mrf.mxu0
  %v709 = vadd.f32 %v689, %v708
  %710 = vdwg.mxu0
  %vm711 = vcmask 122880
  %712 = vst.msk [vmem:[%s3] sm:$0x1] %vm711, %v709
  %v713 = vmul.f32 %v343, %v343
  %v714 = vmul.f32 %v345, %v345
  %v715 = vmul.f32 %v348, %v348
  %v716 = vmul.f32 %v350, %v350
  %v717 = vmul.f32 %v353, %v353
  %v718 = vmul.f32 %v355, %v355
  %v719 = vmul.f32 %v358, %v358
  %v720 = vmul.f32 %v360, %v360
  %v721 = vmul.f32 %v363, %v363
  %v722 = vmul.f32 %v365, %v365
  %v723 = vmul.f32 %v368, %v368
  %v724 = vmul.f32 %v370, %v370
  %v725 = vmul.f32 %v373, %v373
  %v726 = vmul.f32 %v375, %v375
  %v727 = vmul.f32 %v378, %v378
  %v728 = vmul.f32 %v380, %v380
  %v729 = vmul.f32 %v383, %v383
  %v730 = vmul.f32 %v385, %v385
  %v731 = vmul.f32 %v388, %v388
  %v732 = vmul.f32 %v390, %v390
  %v733 = vmul.f32 %v393, %v393
  %v734 = vmul.f32 %v395, %v395
  %v735 = vmul.f32 %v398, %v398
  %v736 = vmul.f32 %v400, %v400
  %v737 = vmul.f32 %v403, %v403
  %v738 = vmul.f32 %v405, %v405
  %v739 = vmul.f32 %v408, %v408
  %v740 = vmul.f32 %v410, %v410
  %v741 = vmul.f32 %v413, %v413
  %v742 = vmul.f32 %v415, %v415
  %v743 = vmul.f32 %v418, %v418
  %v744 = vmul.f32 %v420, %v420
  %v745 = vmul.f32 %v423, %v423
  %v746 = vmul.f32 %v425, %v425
  %v747 = vmul.f32 %v428, %v428
  %v748 = vmul.f32 %v430, %v430
  %v749 = vmul.f32 %v433, %v433
  %v750 = vmul.f32 %v435, %v435
  %v751 = vmul.f32 %v438, %v438
  %v752 = vmul.f32 %v440, %v440
  %v753 = vmul.f32 %v443, %v443
  %v754 = vmul.f32 %v445, %v445
  %v755 = vmul.f32 %v448, %v448
  %v756 = vmul.f32 %v450, %v450
  %v757 = vmul.f32 %v453, %v453
  %v758 = vmul.f32 %v455, %v455
  %v759 = vmul.f32 %v458, %v458
  %v760 = vmul.f32 %v460, %v460
  %v761 = vmul.f32 %v463, %v463
  %v762 = vmul.f32 %v465, %v465
  %v763 = vmul.f32 %v468, %v468
  %v764 = vmul.f32 %v470, %v470
  %v765 = vmul.f32 %v473, %v473
  %v766 = vmul.f32 %v475, %v475
  %v767 = vmul.f32 %v478, %v478
  %v768 = vmul.f32 %v480, %v480
  %v769 = vmul.f32 %v483, %v483
  %v770 = vmul.f32 %v485, %v485
  %v771 = vmul.f32 %v488, %v488
  %v772 = vmul.f32 %v490, %v490
  %v773 = vmul.f32 %v493, %v493
  %v774 = vmul.f32 %v495, %v495
  %v775 = vmul.f32 %v498, %v498
  %v776 = vmul.f32 %v500, %v500
  %777 = vmatpush.msra.mxu0 %v728
  %778 = vmatpush.msra.mxu0 %v727
  %779 = vmatpush.msra.mxu0 %v726
  %780 = vmatpush.msra.mxu0 %v725
  %781 = vmatpush.msra.mxu0 %v724
  %782 = vmatpush.msra.mxu0 %v723
  %783 = vmatpush.msra.mxu0 %v722
  %784 = vmatpush.msra.mxu0 %v721
  %785 = vmatpush.msra.mxu0 %v720
  %786 = vmatpush.msra.mxu0 %v719
  %787 = vmatpush.msra.mxu0 %v718
  %788 = vmatpush.msra.mxu0 %v717
  %789 = vmatpush.msra.mxu0 %v716
  %790 = vmatpush.msra.mxu0 %v715
  %791 = vmatpush.msra.mxu0 %v714
  %792 = vmatpush.msra.mxu0 %v713
  %793 = vmatmul.f32.gmra.mxu0 1.0
  %v794 = vpop.f32.mrf.mxu0
  %v795 = vadd.f32 0.0, %v794
  %796 = vdwg.mxu0
  %797 = vmatpush.msra.mxu0 %v744
  %798 = vmatpush.msra.mxu0 %v743
  %799 = vmatpush.msra.mxu0 %v742
  %800 = vmatpush.msra.mxu0 %v741
  %801 = vmatpush.msra.mxu0 %v740
  %802 = vmatpush.msra.mxu0 %v739
  %803 = vmatpush.msra.mxu0 %v738
  %804 = vmatpush.msra.mxu0 %v737
  %805 = vmatpush.msra.mxu0 %v736
  %806 = vmatpush.msra.mxu0 %v735
  %807 = vmatpush.msra.mxu0 %v734
  %808 = vmatpush.msra.mxu0 %v733
  %809 = vmatpush.msra.mxu0 %v732
  %810 = vmatpush.msra.mxu0 %v731
  %811 = vmatpush.msra.mxu0 %v730
  %812 = vmatpush.msra.mxu0 %v729
  %813 = vmatmul.f32.gmra.mxu0 1.0
  %v814 = vpop.f32.mrf.mxu0
  %v815 = vadd.f32 %v795, %v814
  %816 = vdwg.mxu0
  %817 = vmatpush.msra.mxu0 %v760
  %818 = vmatpush.msra.mxu0 %v759
  %819 = vmatpush.msra.mxu0 %v758
  %820 = vmatpush.msra.mxu0 %v757
  %821 = vmatpush.msra.mxu0 %v756
  %822 = vmatpush.msra.mxu0 %v755
  %823 = vmatpush.msra.mxu0 %v754
  %824 = vmatpush.msra.mxu0 %v753
  %825 = vmatpush.msra.mxu0 %v752
  %826 = vmatpush.msra.mxu0 %v751
  %827 = vmatpush.msra.mxu0 %v750
  %828 = vmatpush.msra.mxu0 %v749
  %829 = vmatpush.msra.mxu0 %v748
  %830 = vmatpush.msra.mxu0 %v747
  %831 = vmatpush.msra.mxu0 %v746
  %832 = vmatpush.msra.mxu0 %v745
  %833 = vmatmul.f32.gmra.mxu0 1.0
  %v834 = vpop.f32.mrf.mxu0
  %v835 = vadd.f32 %v815, %v834
  %836 = vdwg.mxu0
  %837 = vmatpush.msra.mxu0 %v776
  %838 = vmatpush.msra.mxu0 %v775
  %839 = vmatpush.msra.mxu0 %v774
  %840 = vmatpush.msra.mxu0 %v773
  %841 = vmatpush.msra.mxu0 %v772
  %842 = vmatpush.msra.mxu0 %v771
  %843 = vmatpush.msra.mxu0 %v770
  %844 = vmatpush.msra.mxu0 %v769
  %845 = vmatpush.msra.mxu0 %v768
  %846 = vmatpush.msra.mxu0 %v767
  %847 = vmatpush.msra.mxu0 %v766
  %848 = vmatpush.msra.mxu0 %v765
  %849 = vmatpush.msra.mxu0 %v764
  %850 = vmatpush.msra.mxu0 %v763
  %851 = vmatpush.msra.mxu0 %v762
  %852 = vmatpush.msra.mxu0 %v761
  %853 = vmatmul.f32.gmra.mxu0 1.0
  %v854 = vpop.f32.mrf.mxu0
  %v855 = vadd.f32 %v835, %v854
  %856 = vdwg.mxu0
  %857 = vst.msk [vmem:[%s3 + $0x1] sm:$0x1] %vm711, %v855
  // Predicated region
  $region10: #{encoder_forward.11} parent=0 // pred_check
    _
  $region11: #{encoder_forward.11} parent=0 // pred_check_branch
    %859 = sbr.rel (0) target = $region13
  $region12: #{encoder_forward.11} parent=0 // pred_region
    _
  $region13: #{encoder_forward.11} parent=0 // pred_fallthru
    _
  // Predicated region
  $region14: #{encoder_forward.11} parent=0 // pred_check
    _
  $region15: #{encoder_forward.11} parent=0 // pred_check_branch
    %861 = sbr.rel (0) target = $region17
  $region16: #{encoder_forward.11} parent=0 // pred_region
    _
  $region17: #{encoder_forward.11} parent=0 // pred_fallthru
    _
  // Predicated region
  $region18: #{encoder_forward.11} parent=0 // pred_check
    _
  $region19: #{encoder_forward.11} parent=0 // pred_check_branch
    %863 = sbr.rel (0) target = $region21
  $region20: #{encoder_forward.11} parent=0 // pred_region
    _
  $region21: #{encoder_forward.11} parent=0 // pred_fallthru
    _
  // Predicated region
  $region22: #{encoder_forward.11} parent=0 // pred_check
    _
  $region23: #{encoder_forward.11} parent=0 // pred_check_branch
    %865 = sbr.rel (0) target = $region25
  $region24: #{encoder_forward.11} parent=0 // pred_region
    _
  $region25: #{encoder_forward.11} parent=0 // pred_fallthru
    _

// kernel: encoder_forward.12
$region0: #{encoder_forward.12}
  #allocation0 [shape = 'u32[]', space=smem, size = 0x4, offset = 0x4, fixed_abs, tag = 'smem constant byte address 0x4 - core index']
  #allocation1 [shape = 'u32[72,128]{1,0:T(1,128)}', space=vmem, size = 0x9000, scoped, tag = 'internal scratch']
  %s0 = inlined_call_operand.vmem [shape: bf16[512,16], index: 0, kind: input, shape index: {}]
  %s1 = inlined_call_operand.vmem [shape: f32[1,2,16], index: 1, kind: input, shape index: {}]
  %s2 = inlined_call_operand.vmem [shape: f32[1,16], index: 2, kind: input, shape index: {}]
  %s3 = inlined_call_operand.vmem [shape: f32[1,16], index: 3, kind: input, shape index: {}]
  %s4 = inlined_call_operand.vmem [shape: bf16[512,16], index: 4, kind: output, shape index: {}]
  %s5 = sld [smem:[#allocation0]]
  $region26: #{encoder_forward.12} parent=0
    _
  %s7 = ssub.s32 1, %s5
  %s8 = scalar_select 0, %s7, %s5
  // Predicated region
  $region2: #{encoder_forward.12} parent=0 // pred_check
    _
  $region3: #{encoder_forward.12} parent=0 // pred_check_branch
    %10 = sbr.rel (0) target = $region5
  $region4: #{encoder_forward.12} parent=0 // pred_region
    _
  $region5: #{encoder_forward.12} parent=0 // pred_fallthru
    _
  // Predicated region
  $region6: #{encoder_forward.12} parent=0 // pred_check
    _
  $region7: #{encoder_forward.12} parent=0 // pred_check_branch
    %12 = sbr.rel (0) target = $region9
  $region8: #{encoder_forward.12} parent=0 // pred_region
    _
  $region9: #{encoder_forward.12} parent=0 // pred_fallthru
    _
  // Predicated region
  $region10: #{encoder_forward.12} parent=0 // pred_check
    _
  $region11: #{encoder_forward.12} parent=0 // pred_check_branch
    %14 = sbr.rel (0) target = $region13
  $region12: #{encoder_forward.12} parent=0 // pred_region
    _
  $region13: #{encoder_forward.12} parent=0 // pred_fallthru
    _
  // Predicated region
  $region14: #{encoder_forward.12} parent=0 // pred_check
    _
  $region15: #{encoder_forward.12} parent=0 // pred_check_branch
    %16 = sbr.rel (0) target = $region17
  $region16: #{encoder_forward.12} parent=0 // pred_region
    _
  $region17: #{encoder_forward.12} parent=0 // pred_fallthru
    _
  %v17 = vld [vmem:[%s1] sm:$0x3]
  %v18 = vadd.f32 %v17, 0.0
  %v19 = vmul.f32 %v18, 0.001953125
  %v20 = vmul.f32 %v19, %v19
  %v22 = vrot.slane %v20, 7
  %v24 = vsub.f32 %v19, %v22
  %v25 = vmax.f32 %v24, 0.0
  %v26 = vld [vmem:[%s2] sm:$0x1]
  %v27 = vadd.f32 %v25, 1e-05
  %v28 = vrsqrt.pop %v27
  %v29 = vmul.f32 %v28, %v27
  %v30 = vmul.f32 %v29, %v28
  %v31 = vmul.f32 0.5, %v30
  %v32 = vsub.f32 1.5, %v31
  %v33 = vmul.f32 %v28, %v32
  %vm34 = vweird.f32 %v27
  %vm35 = vweird.f32 %v28
  %vm36 = vmor %vm34, %vm35
  %v37 = vsel %vm36, %v28, %v33
  %39 = vst [vmem:[#allocation1] sm:$0xff] %v37
  %s40 = scalar_lea.vmem [#allocation1], 1
  %v41 = vld [vmem:[%s40] ss:$9 sm:$0xff]
  %v43 = vmul.f32 %v26, %v41
  %v44 = vld [vmem:[%s3] sm:$0x1]
  %v45 = vmul.f32 %v19, %v43
  %v46 = vsub.f32 %v44, %v45
  %v47 = vld [vmem:[%s0] sm:$0xf]
  %v48 = vld [vmem:[%s0 + $0x4] sm:$0xf]
  %v49 = vld [vmem:[%s0 + $0x8] sm:$0xf]
  %v50 = vld [vmem:[%s0 + $0xc] sm:$0xf]
  %v51 = vld [vmem:[%s0 + $0x10] sm:$0xf]
  %v52 = vld [vmem:[%s0 + $0x14] sm:$0xf]
  %v53 = vld [vmem:[%s0 + $0x18] sm:$0xf]
  %v54 = vld [vmem:[%s0 + $0x1c] sm:$0xf]
  %v55 = vld [vmem:[%s0 + $0x20] sm:$0xf]
  %v56 = vld [vmem:[%s0 + $0x24] sm:$0xf]
  %v57 = vld [vmem:[%s0 + $0x28] sm:$0xf]
  %v58 = vld [vmem:[%s0 + $0x2c] sm:$0xf]
  %v59 = vld [vmem:[%s0 + $0x30] sm:$0xf]
  %v60 = vld [vmem:[%s0 + $0x34] sm:$0xf]
  %v61 = vld [vmem:[%s0 + $0x38] sm:$0xf]
  %v62 = vld [vmem:[%s0 + $0x3c] sm:$0xf]
  %v63 = vld [vmem:[%s0 + $0x40] sm:$0xf]
  %v64 = vld [vmem:[%s0 + $0x44] sm:$0xf]
  %v65 = vld [vmem:[%s0 + $0x48] sm:$0xf]
  %v66 = vld [vmem:[%s0 + $0x4c] sm:$0xf]
  %v67 = vld [vmem:[%s0 + $0x50] sm:$0xf]
  %v68 = vld [vmem:[%s0 + $0x54] sm:$0xf]
  %v69 = vld [vmem:[%s0 + $0x58] sm:$0xf]
  %v70 = vld [vmem:[%s0 + $0x5c] sm:$0xf]
  %v71 = vld [vmem:[%s0 + $0x60] sm:$0xf]
  %v72 = vld [vmem:[%s0 + $0x64] sm:$0xf]
  %v73 = vld [vmem:[%s0 + $0x68] sm:$0xf]
  %v74 = vld [vmem:[%s0 + $0x6c] sm:$0xf]
  %v75 = vld [vmem:[%s0 + $0x70] sm:$0xf]
  %v76 = vld [vmem:[%s0 + $0x74] sm:$0xf]
  %v77 = vld [vmem:[%s0 + $0x78] sm:$0xf]
  %v78 = vld [vmem:[%s0 + $0x7c] sm:$0xf]
  %v79 = vld [vmem:[%s0 + $0x80] sm:$0xf]
  %v80 = vld [vmem:[%s0 + $0x84] sm:$0xf]
  %v81 = vld [vmem:[%s0 + $0x88] sm:$0xf]
  %v82 = vld [vmem:[%s0 + $0x8c] sm:$0xf]
  %v83 = vld [vmem:[%s0 + $0x90] sm:$0xf]
  %v84 = vld [vmem:[%s0 + $0x94] sm:$0xf]
  %v85 = vld [vmem:[%s0 + $0x98] sm:$0xf]
  %v86 = vld [vmem:[%s0 + $0x9c] sm:$0xf]
  %v87 = vld [vmem:[%s0 + $0xa0] sm:$0xf]
  %v88 = vld [vmem:[%s0 + $0xa4] sm:$0xf]
  %v89 = vld [vmem:[%s0 + $0xa8] sm:$0xf]
  %v90 = vld [vmem:[%s0 + $0xac] sm:$0xf]
  %v91 = vld [vmem:[%s0 + $0xb0] sm:$0xf]
  %v92 = vld [vmem:[%s0 + $0xb4] sm:$0xf]
  %v93 = vld [vmem:[%s0 + $0xb8] sm:$0xf]
  %v94 = vld [vmem:[%s0 + $0xbc] sm:$0xf]
  %v95 = vld [vmem:[%s0 + $0xc0] sm:$0xf]
  %v96 = vld [vmem:[%s0 + $0xc4] sm:$0xf]
  %v97 = vld [vmem:[%s0 + $0xc8] sm:$0xf]
  %v98 = vld [vmem:[%s0 + $0xcc] sm:$0xf]
  %v99 = vld [vmem:[%s0 + $0xd0] sm:$0xf]
  %v100 = vld [vmem:[%s0 + $0xd4] sm:$0xf]
  %v101 = vld [vmem:[%s0 + $0xd8] sm:$0xf]
  %v102 = vld [vmem:[%s0 + $0xdc] sm:$0xf]
  %v103 = vld [vmem:[%s0 + $0xe0] sm:$0xf]
  %v104 = vld [vmem:[%s0 + $0xe4] sm:$0xf]
  %v105 = vld [vmem:[%s0 + $0xe8] sm:$0xf]
  %v106 = vld [vmem:[%s0 + $0xec] sm:$0xf]
  %v107 = vld [vmem:[%s0 + $0xf0] sm:$0xf]
  %v108 = vld [vmem:[%s0 + $0xf4] sm:$0xf]
  %v109 = vld [vmem:[%s0 + $0xf8] sm:$0xf]
  %v110 = vld [vmem:[%s0 + $0xfc] sm:$0xf]
  %v111 = vunpack.c.l.bf16 %v47
  %v112 = vunpack.c.l.bf16 %v48
  %v113 = vunpack.c.l.bf16 %v49
  %v114 = vunpack.c.l.bf16 %v50
  %v115 = vunpack.c.l.bf16 %v51
  %v116 = vunpack.c.l.bf16 %v52
  %v117 = vunpack.c.l.bf16 %v53
  %v118 = vunpack.c.l.bf16 %v54
  %v119 = vunpack.c.l.bf16 %v55
  %v120 = vunpack.c.l.bf16 %v56
  %v121 = vunpack.c.l.bf16 %v57
  %v122 = vunpack.c.l.bf16 %v58
  %v123 = vunpack.c.l.bf16 %v59
  %v124 = vunpack.c.l.bf16 %v60
  %v125 = vunpack.c.l.bf16 %v61
  %v126 = vunpack.c.l.bf16 %v62
  %v127 = vunpack.c.l.bf16 %v63
  %v128 = vunpack.c.l.bf16 %v64
  %v129 = vunpack.c.l.bf16 %v65
  %v130 = vunpack.c.l.bf16 %v66
  %v131 = vunpack.c.l.bf16 %v67
  %v132 = vunpack.c.l.bf16 %v68
  %v133 = vunpack.c.l.bf16 %v69
  %v134 = vunpack.c.l.bf16 %v70
  %v135 = vunpack.c.l.bf16 %v71
  %v136 = vunpack.c.l.bf16 %v72
  %v137 = vunpack.c.l.bf16 %v73
  %v138 = vunpack.c.l.bf16 %v74
  %v139 = vunpack.c.l.bf16 %v75
  %v140 = vunpack.c.l.bf16 %v76
  %v141 = vunpack.c.l.bf16 %v77
  %v142 = vunpack.c.l.bf16 %v78
  %v143 = vunpack.c.l.bf16 %v79
  %v144 = vunpack.c.l.bf16 %v80
  %v145 = vunpack.c.l.bf16 %v81
  %v146 = vunpack.c.l.bf16 %v82
  %v147 = vunpack.c.l.bf16 %v83
  %v148 = vunpack.c.l.bf16 %v84
  %v149 = vunpack.c.l.bf16 %v85
  %v150 = vunpack.c.l.bf16 %v86
  %v151 = vunpack.c.l.bf16 %v87
  %v152 = vunpack.c.l.bf16 %v88
  %v153 = vunpack.c.l.bf16 %v89
  %v154 = vunpack.c.l.bf16 %v90
  %v155 = vunpack.c.l.bf16 %v91
  %v156 = vunpack.c.l.bf16 %v92
  %v157 = vunpack.c.l.bf16 %v93
  %v158 = vunpack.c.l.bf16 %v94
  %v159 = vunpack.c.l.bf16 %v95
  %v160 = vunpack.c.l.bf16 %v96
  %v161 = vunpack.c.l.bf16 %v97
  %v162 = vunpack.c.l.bf16 %v98
  %v163 = vunpack.c.l.bf16 %v99
  %v164 = vunpack.c.l.bf16 %v100
  %v165 = vunpack.c.l.bf16 %v101
  %v166 = vunpack.c.l.bf16 %v102
  %v167 = vunpack.c.l.bf16 %v103
  %v168 = vunpack.c.l.bf16 %v104
  %v169 = vunpack.c.l.bf16 %v105
  %v170 = vunpack.c.l.bf16 %v106
  %v171 = vunpack.c.l.bf16 %v107
  %v172 = vunpack.c.l.bf16 %v108
  %v173 = vunpack.c.l.bf16 %v109
  %v174 = vunpack.c.l.bf16 %v110
  %v176 = vperm.slane %v43, 0
  %v178 = vmul.f32 %v111, %v176
  %v179 = vmul.f32 %v112, %v176
  %v180 = vmul.f32 %v113, %v176
  %v181 = vmul.f32 %v114, %v176
  %v182 = vmul.f32 %v115, %v176
  %v183 = vmul.f32 %v116, %v176
  %v184 = vmul.f32 %v117, %v176
  %v185 = vmul.f32 %v118, %v176
  %v186 = vmul.f32 %v119, %v176
  %v187 = vmul.f32 %v120, %v176
  %v188 = vmul.f32 %v121, %v176
  %v189 = vmul.f32 %v122, %v176
  %v190 = vmul.f32 %v123, %v176
  %v191 = vmul.f32 %v124, %v176
  %v192 = vmul.f32 %v125, %v176
  %v193 = vmul.f32 %v126, %v176
  %v194 = vmul.f32 %v127, %v176
  %v195 = vmul.f32 %v128, %v176
  %v196 = vmul.f32 %v129, %v176
  %v197 = vmul.f32 %v130, %v176
  %v198 = vmul.f32 %v131, %v176
  %v199 = vmul.f32 %v132, %v176
  %v200 = vmul.f32 %v133, %v176
  %v201 = vmul.f32 %v134, %v176
  %v202 = vmul.f32 %v135, %v176
  %v203 = vmul.f32 %v136, %v176
  %v204 = vmul.f32 %v137, %v176
  %v205 = vmul.f32 %v138, %v176
  %v206 = vmul.f32 %v139, %v176
  %v207 = vmul.f32 %v140, %v176
  %v208 = vmul.f32 %v141, %v176
  %v209 = vmul.f32 %v142, %v176
  %v210 = vmul.f32 %v143, %v176
  %v211 = vmul.f32 %v144, %v176
  %v212 = vmul.f32 %v145, %v176
  %v213 = vmul.f32 %v146, %v176
  %v214 = vmul.f32 %v147, %v176
  %v215 = vmul.f32 %v148, %v176
  %v216 = vmul.f32 %v149, %v176
  %v217 = vmul.f32 %v150, %v176
  %v218 = vmul.f32 %v151, %v176
  %v219 = vmul.f32 %v152, %v176
  %v220 = vmul.f32 %v153, %v176
  %v221 = vmul.f32 %v154, %v176
  %v222 = vmul.f32 %v155, %v176
  %v223 = vmul.f32 %v156, %v176
  %v224 = vmul.f32 %v157, %v176
  %v225 = vmul.f32 %v158, %v176
  %v226 = vmul.f32 %v159, %v176
  %v227 = vmul.f32 %v160, %v176
  %v228 = vmul.f32 %v161, %v176
  %v229 = vmul.f32 %v162, %v176
  %v230 = vmul.f32 %v163, %v176
  %v231 = vmul.f32 %v164, %v176
  %v232 = vmul.f32 %v165, %v176
  %v233 = vmul.f32 %v166, %v176
  %v234 = vmul.f32 %v167, %v176
  %v235 = vmul.f32 %v168, %v176
  %v236 = vmul.f32 %v169, %v176
  %v237 = vmul.f32 %v170, %v176
  %v238 = vmul.f32 %v171, %v176
  %v239 = vmul.f32 %v172, %v176
  %v240 = vmul.f32 %v173, %v176
  %v241 = vmul.f32 %v174, %v176
  %v243 = vperm.slane %v46, 0
  %v245 = vadd.f32 %v178, %v243
  %v246 = vadd.f32 %v179, %v243
  %v247 = vadd.f32 %v180, %v243
  %v248 = vadd.f32 %v181, %v243
  %v249 = vadd.f32 %v182, %v243
  %v250 = vadd.f32 %v183, %v243
  %v251 = vadd.f32 %v184, %v243
  %v252 = vadd.f32 %v185, %v243
  %v253 = vadd.f32 %v186, %v243
  %v254 = vadd.f32 %v187, %v243
  %v255 = vadd.f32 %v188, %v243
  %v256 = vadd.f32 %v189, %v243
  %v257 = vadd.f32 %v190, %v243
  %v258 = vadd.f32 %v191, %v243
  %v259 = vadd.f32 %v192, %v243
  %v260 = vadd.f32 %v193, %v243
  %v261 = vadd.f32 %v194, %v243
  %v262 = vadd.f32 %v195, %v243
  %v263 = vadd.f32 %v196, %v243
  %v264 = vadd.f32 %v197, %v243
  %v265 = vadd.f32 %v198, %v243
  %v266 = vadd.f32 %v199, %v243
  %v267 = vadd.f32 %v200, %v243
  %v268 = vadd.f32 %v201, %v243
  %v269 = vadd.f32 %v202, %v243
  %v270 = vadd.f32 %v203, %v243
  %v271 = vadd.f32 %v204, %v243
  %v272 = vadd.f32 %v205, %v243
  %v273 = vadd.f32 %v206, %v243
  %v274 = vadd.f32 %v207, %v243
  %v275 = vadd.f32 %v208, %v243
  %v276 = vadd.f32 %v209, %v243
  %v277 = vadd.f32 %v210, %v243
  %v278 = vadd.f32 %v211, %v243
  %v279 = vadd.f32 %v212, %v243
  %v280 = vadd.f32 %v213, %v243
  %v281 = vadd.f32 %v214, %v243
  %v282 = vadd.f32 %v215, %v243
  %v283 = vadd.f32 %v216, %v243
  %v284 = vadd.f32 %v217, %v243
  %v285 = vadd.f32 %v218, %v243
  %v286 = vadd.f32 %v219, %v243
  %v287 = vadd.f32 %v220, %v243
  %v288 = vadd.f32 %v221, %v243
  %v289 = vadd.f32 %v222, %v243
  %v290 = vadd.f32 %v223, %v243
  %v291 = vadd.f32 %v224, %v243
  %v292 = vadd.f32 %v225, %v243
  %v293 = vadd.f32 %v226, %v243
  %v294 = vadd.f32 %v227, %v243
  %v295 = vadd.f32 %v228, %v243
  %v296 = vadd.f32 %v229, %v243
  %v297 = vadd.f32 %v230, %v243
  %v298 = vadd.f32 %v231, %v243
  %v299 = vadd.f32 %v232, %v243
  %v300 = vadd.f32 %v233, %v243
  %v301 = vadd.f32 %v234, %v243
  %v302 = vadd.f32 %v235, %v243
  %v303 = vadd.f32 %v236, %v243
  %v304 = vadd.f32 %v237, %v243
  %v305 = vadd.f32 %v238, %v243
  %v306 = vadd.f32 %v239, %v243
  %v307 = vadd.f32 %v240, %v243
  %v308 = vadd.f32 %v241, %v243
  %v309 = vmul.f32 %v245, 0.01
  %v310 = vmul.f32 %v246, 0.01
  %v311 = vmul.f32 %v247, 0.01
  %v312 = vmul.f32 %v248, 0.01
  %v313 = vmul.f32 %v249, 0.01
  %v314 = vmul.f32 %v250, 0.01
  %v315 = vmul.f32 %v251, 0.01
  %v316 = vmul.f32 %v252, 0.01
  %v317 = vmul.f32 %v253, 0.01
  %v318 = vmul.f32 %v254, 0.01
  %v319 = vmul.f32 %v255, 0.01
  %v320 = vmul.f32 %v256, 0.01
  %v321 = vmul.f32 %v257, 0.01
  %v322 = vmul.f32 %v258, 0.01
  %v323 = vmul.f32 %v259, 0.01
  %v324 = vmul.f32 %v260, 0.01
  %v325 = vmul.f32 %v261, 0.01
  %v326 = vmul.f32 %v262, 0.01
  %v327 = vmul.f32 %v263, 0.01
  %v328 = vmul.f32 %v264, 0.01
  %v329 = vmul.f32 %v265, 0.01
  %v330 = vmul.f32 %v266, 0.01
  %v331 = vmul.f32 %v267, 0.01
  %v332 = vmul.f32 %v268, 0.01
  %v333 = vmul.f32 %v269, 0.01
  %v334 = vmul.f32 %v270, 0.01
  %v335 = vmul.f32 %v271, 0.01
  %v336 = vmul.f32 %v272, 0.01
  %v337 = vmul.f32 %v273, 0.01
  %v338 = vmul.f32 %v274, 0.01
  %v339 = vmul.f32 %v275, 0.01
  %v340 = vmul.f32 %v276, 0.01
  %v341 = vmul.f32 %v277, 0.01
  %v342 = vmul.f32 %v278, 0.01
  %v343 = vmul.f32 %v279, 0.01
  %v344 = vmul.f32 %v280, 0.01
  %v345 = vmul.f32 %v281, 0.01
  %v346 = vmul.f32 %v282, 0.01
  %v347 = vmul.f32 %v283, 0.01
  %v348 = vmul.f32 %v284, 0.01
  %v349 = vmul.f32 %v285, 0.01
  %v350 = vmul.f32 %v286, 0.01
  %v351 = vmul.f32 %v287, 0.01
  %v352 = vmul.f32 %v288, 0.01
  %v353 = vmul.f32 %v289, 0.01
  %v354 = vmul.f32 %v290, 0.01
  %v355 = vmul.f32 %v291, 0.01
  %v356 = vmul.f32 %v292, 0.01
  %v357 = vmul.f32 %v293, 0.01
  %v358 = vmul.f32 %v294, 0.01
  %v359 = vmul.f32 %v295, 0.01
  %v360 = vmul.f32 %v296, 0.01
  %v361 = vmul.f32 %v297, 0.01
  %v362 = vmul.f32 %v298, 0.01
  %v363 = vmul.f32 %v299, 0.01
  %v364 = vmul.f32 %v300, 0.01
  %v365 = vmul.f32 %v301, 0.01
  %v366 = vmul.f32 %v302, 0.01
  %v367 = vmul.f32 %v303, 0.01
  %v368 = vmul.f32 %v304, 0.01
  %v369 = vmul.f32 %v305, 0.01
  %v370 = vmul.f32 %v306, 0.01
  %v371 = vmul.f32 %v307, 0.01
  %v372 = vmul.f32 %v308, 0.01
  %v373 = vmax.f32 %v245, %v309
  %v374 = vmax.f32 %v246, %v310
  %v375 = vmax.f32 %v247, %v311
  %v376 = vmax.f32 %v248, %v312
  %v377 = vmax.f32 %v249, %v313
  %v378 = vmax.f32 %v250, %v314
  %v379 = vmax.f32 %v251, %v315
  %v380 = vmax.f32 %v252, %v316
  %v381 = vmax.f32 %v253, %v317
  %v382 = vmax.f32 %v254, %v318
  %v383 = vmax.f32 %v255, %v319
  %v384 = vmax.f32 %v256, %v320
  %v385 = vmax.f32 %v257, %v321
  %v386 = vmax.f32 %v258, %v322
  %v387 = vmax.f32 %v259, %v323
  %v388 = vmax.f32 %v260, %v324
  %v389 = vmax.f32 %v261, %v325
  %v390 = vmax.f32 %v262, %v326
  %v391 = vmax.f32 %v263, %v327
  %v392 = vmax.f32 %v264, %v328
  %v393 = vmax.f32 %v265, %v329
  %v394 = vmax.f32 %v266, %v330
  %v395 = vmax.f32 %v267, %v331
  %v396 = vmax.f32 %v268, %v332
  %v397 = vmax.f32 %v269, %v333
  %v398 = vmax.f32 %v270, %v334
  %v399 = vmax.f32 %v271, %v335
  %v400 = vmax.f32 %v272, %v336
  %v401 = vmax.f32 %v273, %v337
  %v402 = vmax.f32 %v274, %v338
  %v403 = vmax.f32 %v275, %v339
  %v404 = vmax.f32 %v276, %v340
  %v405 = vmax.f32 %v277, %v341
  %v406 = vmax.f32 %v278, %v342
  %v407 = vmax.f32 %v279, %v343
  %v408 = vmax.f32 %v280, %v344
  %v409 = vmax.f32 %v281, %v345
  %v410 = vmax.f32 %v282, %v346
  %v411 = vmax.f32 %v283, %v347
  %v412 = vmax.f32 %v284, %v348
  %v413 = vmax.f32 %v285, %v349
  %v414 = vmax.f32 %v286, %v350
  %v415 = vmax.f32 %v287, %v351
  %v416 = vmax.f32 %v288, %v352
  %v417 = vmax.f32 %v289, %v353
  %v418 = vmax.f32 %v290, %v354
  %v419 = vmax.f32 %v291, %v355
  %v420 = vmax.f32 %v292, %v356
  %v421 = vmax.f32 %v293, %v357
  %v422 = vmax.f32 %v294, %v358
  %v423 = vmax.f32 %v295, %v359
  %v424 = vmax.f32 %v296, %v360
  %v425 = vmax.f32 %v297, %v361
  %v426 = vmax.f32 %v298, %v362
  %v427 = vmax.f32 %v299, %v363
  %v428 = vmax.f32 %v300, %v364
  %v429 = vmax.f32 %v301, %v365
  %v430 = vmax.f32 %v302, %v366
  %v431 = vmax.f32 %v303, %v367
  %v432 = vmax.f32 %v304, %v368
  %v433 = vmax.f32 %v305, %v369
  %v434 = vmax.f32 %v306, %v370
  %v435 = vmax.f32 %v307, %v371
  %v436 = vmax.f32 %v308, %v372
  %v437 = vpack.c.bf16 %v373, %v373
  %v438 = vpack.c.bf16 %v374, %v374
  %v439 = vpack.c.bf16 %v375, %v375
  %v440 = vpack.c.bf16 %v376, %v376
  %v441 = vpack.c.bf16 %v377, %v377
  %v442 = vpack.c.bf16 %v378, %v378
  %v443 = vpack.c.bf16 %v379, %v379
  %v444 = vpack.c.bf16 %v380, %v380
  %v445 = vpack.c.bf16 %v381, %v381
  %v446 = vpack.c.bf16 %v382, %v382
  %v447 = vpack.c.bf16 %v383, %v383
  %v448 = vpack.c.bf16 %v384, %v384
  %v449 = vpack.c.bf16 %v385, %v385
  %v450 = vpack.c.bf16 %v386, %v386
  %v451 = vpack.c.bf16 %v387, %v387
  %v452 = vpack.c.bf16 %v388, %v388
  %v453 = vpack.c.bf16 %v389, %v389
  %v454 = vpack.c.bf16 %v390, %v390
  %v455 = vpack.c.bf16 %v391, %v391
  %v456 = vpack.c.bf16 %v392, %v392
  %v457 = vpack.c.bf16 %v393, %v393
  %v458 = vpack.c.bf16 %v394, %v394
  %v459 = vpack.c.bf16 %v395, %v395
  %v460 = vpack.c.bf16 %v396, %v396
  %v461 = vpack.c.bf16 %v397, %v397
  %v462 = vpack.c.bf16 %v398, %v398
  %v463 = vpack.c.bf16 %v399, %v399
  %v464 = vpack.c.bf16 %v400, %v400
  %v465 = vpack.c.bf16 %v401, %v401
  %v466 = vpack.c.bf16 %v402, %v402
  %v467 = vpack.c.bf16 %v403, %v403
  %v468 = vpack.c.bf16 %v404, %v404
  %v469 = vpack.c.bf16 %v405, %v405
  %v470 = vpack.c.bf16 %v406, %v406
  %v471 = vpack.c.bf16 %v407, %v407
  %v472 = vpack.c.bf16 %v408, %v408
  %v473 = vpack.c.bf16 %v409, %v409
  %v474 = vpack.c.bf16 %v410, %v410
  %v475 = vpack.c.bf16 %v411, %v411
  %v476 = vpack.c.bf16 %v412, %v412
  %v477 = vpack.c.bf16 %v413, %v413
  %v478 = vpack.c.bf16 %v414, %v414
  %v479 = vpack.c.bf16 %v415, %v415
  %v480 = vpack.c.bf16 %v416, %v416
  %v481 = vpack.c.bf16 %v417, %v417
  %v482 = vpack.c.bf16 %v418, %v418
  %v483 = vpack.c.bf16 %v419, %v419
  %v484 = vpack.c.bf16 %v420, %v420
  %v485 = vpack.c.bf16 %v421, %v421
  %v486 = vpack.c.bf16 %v422, %v422
  %v487 = vpack.c.bf16 %v423, %v423
  %v488 = vpack.c.bf16 %v424, %v424
  %v489 = vpack.c.bf16 %v425, %v425
  %v490 = vpack.c.bf16 %v426, %v426
  %v491 = vpack.c.bf16 %v427, %v427
  %v492 = vpack.c.bf16 %v428, %v428
  %v493 = vpack.c.bf16 %v429, %v429
  %v494 = vpack.c.bf16 %v430, %v430
  %v495 = vpack.c.bf16 %v431, %v431
  %v496 = vpack.c.bf16 %v432, %v432
  %v497 = vpack.c.bf16 %v433, %v433
  %v498 = vpack.c.bf16 %v434, %v434
  %v499 = vpack.c.bf16 %v435, %v435
  %v500 = vpack.c.bf16 %v436, %v436
  %vm501 = vcmask 125952
  %502 = vst.msk [vmem:[%s4] sm:$0xf] %vm501, %v437
  %503 = vst.msk [vmem:[%s4 + $0x4] sm:$0xf] %vm501, %v438
  %504 = vst.msk [vmem:[%s4 + $0x8] sm:$0xf] %vm501, %v439
  %505 = vst.msk [vmem:[%s4 + $0xc] sm:$0xf] %vm501, %v440
  %506 = vst.msk [vmem:[%s4 + $0x10] sm:$0xf] %vm501, %v441
  %507 = vst.msk [vmem:[%s4 + $0x14] sm:$0xf] %vm501, %v442
  %508 = vst.msk [vmem:[%s4 + $0x18] sm:$0xf] %vm501, %v443
  %509 = vst.msk [vmem:[%s4 + $0x1c] sm:$0xf] %vm501, %v444
  %510 = vst.msk [vmem:[%s4 + $0x20] sm:$0xf] %vm501, %v445
  %511 = vst.msk [vmem:[%s4 + $0x24] sm:$0xf] %vm501, %v446
  %512 = vst.msk [vmem:[%s4 + $0x28] sm:$0xf] %vm501, %v447
  %513 = vst.msk [vmem:[%s4 + $0x2c] sm:$0xf] %vm501, %v448
  %514 = vst.msk [vmem:[%s4 + $0x30] sm:$0xf] %vm501, %v449
  %515 = vst.msk [vmem:[%s4 + $0x34] sm:$0xf] %vm501, %v450
  %516 = vst.msk [vmem:[%s4 + $0x38] sm:$0xf] %vm501, %v451
  %517 = vst.msk [vmem:[%s4 + $0x3c] sm:$0xf] %vm501, %v452
  %518 = vst.msk [vmem:[%s4 + $0x40] sm:$0xf] %vm501, %v453
  %519 = vst.msk [vmem:[%s4 + $0x44] sm:$0xf] %vm501, %v454
  %520 = vst.msk [vmem:[%s4 + $0x48] sm:$0xf] %vm501, %v455
  %521 = vst.msk [vmem:[%s4 + $0x4c] sm:$0xf] %vm501, %v456
  %522 = vst.msk [vmem:[%s4 + $0x50] sm:$0xf] %vm501, %v457
  %523 = vst.msk [vmem:[%s4 + $0x54] sm:$0xf] %vm501, %v458
  %524 = vst.msk [vmem:[%s4 + $0x58] sm:$0xf] %vm501, %v459
  %525 = vst.msk [vmem:[%s4 + $0x5c] sm:$0xf] %vm501, %v460
  %526 = vst.msk [vmem:[%s4 + $0x60] sm:$0xf] %vm501, %v461
  %527 = vst.msk [vmem:[%s4 + $0x64] sm:$0xf] %vm501, %v462
  %528 = vst.msk [vmem:[%s4 + $0x68] sm:$0xf] %vm501, %v463
  %529 = vst.msk [vmem:[%s4 + $0x6c] sm:$0xf] %vm501, %v464
  %530 = vst.msk [vmem:[%s4 + $0x70] sm:$0xf] %vm501, %v465
  %531 = vst.msk [vmem:[%s4 + $0x74] sm:$0xf] %vm501, %v466
  %532 = vst.msk [vmem:[%s4 + $0x78] sm:$0xf] %vm501, %v467
  %533 = vst.msk [vmem:[%s4 + $0x7c] sm:$0xf] %vm501, %v468
  %534 = vst.msk [vmem:[%s4 + $0x80] sm:$0xf] %vm501, %v469
  %535 = vst.msk [vmem:[%s4 + $0x84] sm:$0xf] %vm501, %v470
  %536 = vst.msk [vmem:[%s4 + $0x88] sm:$0xf] %vm501, %v471
  %537 = vst.msk [vmem:[%s4 + $0x8c] sm:$0xf] %vm501, %v472
  %538 = vst.msk [vmem:[%s4 + $0x90] sm:$0xf] %vm501, %v473
  %539 = vst.msk [vmem:[%s4 + $0x94] sm:$0xf] %vm501, %v474
  %540 = vst.msk [vmem:[%s4 + $0x98] sm:$0xf] %vm501, %v475
  %541 = vst.msk [vmem:[%s4 + $0x9c] sm:$0xf] %vm501, %v476
  %542 = vst.msk [vmem:[%s4 + $0xa0] sm:$0xf] %vm501, %v477
  %543 = vst.msk [vmem:[%s4 + $0xa4] sm:$0xf] %vm501, %v478
  %544 = vst.msk [vmem:[%s4 + $0xa8] sm:$0xf] %vm501, %v479
  %545 = vst.msk [vmem:[%s4 + $0xac] sm:$0xf] %vm501, %v480
  %546 = vst.msk [vmem:[%s4 + $0xb0] sm:$0xf] %vm501, %v481
  %547 = vst.msk [vmem:[%s4 + $0xb4] sm:$0xf] %vm501, %v482
  %548 = vst.msk [vmem:[%s4 + $0xb8] sm:$0xf] %vm501, %v483
  %549 = vst.msk [vmem:[%s4 + $0xbc] sm:$0xf] %vm501, %v484
  %550 = vst.msk [vmem:[%s4 + $0xc0] sm:$0xf] %vm501, %v485
  %551 = vst.msk [vmem:[%s4 + $0xc4] sm:$0xf] %vm501, %v486
  %552 = vst.msk [vmem:[%s4 + $0xc8] sm:$0xf] %vm501, %v487
  %553 = vst.msk [vmem:[%s4 + $0xcc] sm:$0xf] %vm501, %v488
  %554 = vst.msk [vmem:[%s4 + $0xd0] sm:$0xf] %vm501, %v489
  %555 = vst.msk [vmem:[%s4 + $0xd4] sm:$0xf] %vm501, %v490
  %556 = vst.msk [vmem:[%s4 + $0xd8] sm:$0xf] %vm501, %v491
  %557 = vst.msk [vmem:[%s4 + $0xdc] sm:$0xf] %vm501, %v492
  %558 = vst.msk [vmem:[%s4 + $0xe0] sm:$0xf] %vm501, %v493
  %559 = vst.msk [vmem:[%s4 + $0xe4] sm:$0xf] %vm501, %v494
  %560 = vst.msk [vmem:[%s4 + $0xe8] sm:$0xf] %vm501, %v495
  %561 = vst.msk [vmem:[%s4 + $0xec] sm:$0xf] %vm501, %v496
  %562 = vst.msk [vmem:[%s4 + $0xf0] sm:$0xf] %vm501, %v497
  %563 = vst.msk [vmem:[%s4 + $0xf4] sm:$0xf] %vm501, %v498
  %564 = vst.msk [vmem:[%s4 + $0xf8] sm:$0xf] %vm501, %v499
  %565 = vst.msk [vmem:[%s4 + $0xfc] sm:$0xf] %vm501, %v500
  // Predicated region
  $region18: #{encoder_forward.12} parent=0 // pred_check
    _
  $region19: #{encoder_forward.12} parent=0 // pred_check_branch
    %567 = sbr.rel (0) target = $region21
  $region20: #{encoder_forward.12} parent=0 // pred_region
    _
  $region21: #{encoder_forward.12} parent=0 // pred_fallthru
    _
  // Predicated region
  $region22: #{encoder_forward.12} parent=0 // pred_check
    _
  $region23: #{encoder_forward.12} parent=0 // pred_check_branch
    %569 = sbr.rel (0) target = $region25
  $region24: #{encoder_forward.12} parent=0 // pred_region
    _
  $region25: #{encoder_forward.12} parent=0 // pred_fallthru
    _

// kernel: encoder_forward.13
$region0: #{encoder_forward.13}
  #allocation0 [shape = 'u32[]', space=smem, size = 0x4, offset = 0x4, fixed_abs, tag = 'smem constant byte address 0x4 - core index']
  #allocation1 [shape = 'u32[72,128]{1,0:T(1,128)}', space=vmem, size = 0x9000, scoped, tag = 'internal scratch']
  %s0 = inlined_call_operand.vmem [shape: bf16[128,256], index: 0, kind: input, shape index: {}]
  %s1 = inlined_call_operand.vmem [shape: bf16[256,32], index: 1, kind: input, shape index: {}]
  %s2 = inlined_call_operand.vmem [shape: bf16[128,32], index: 2, kind: output, shape index: {0}]
  %s3 = inlined_call_operand.vmem [shape: f32[1,2,32], index: 3, kind: output, shape index: {1}]
  %4 = xla_tuple %s2, %s3
  %s5 = sld [smem:[#allocation0]]
  $region26: #{encoder_forward.13} parent=0
    _
  %s7 = ssub.s32 1, %s5
  %s8 = scalar_select 0, %s7, %s5
  // Predicated region
  $region2: #{encoder_forward.13} parent=0 // pred_check
    _
  $region3: #{encoder_forward.13} parent=0 // pred_check_branch
    %10 = sbr.rel (0) target = $region5
  $region4: #{encoder_forward.13} parent=0 // pred_region
    _
  $region5: #{encoder_forward.13} parent=0 // pred_fallthru
    _
  // Predicated region
  $region6: #{encoder_forward.13} parent=0 // pred_check
    _
  $region7: #{encoder_forward.13} parent=0 // pred_check_branch
    %12 = sbr.rel (0) target = $region9
  $region8: #{encoder_forward.13} parent=0 // pred_region
    _
  $region9: #{encoder_forward.13} parent=0 // pred_fallthru
    _
  %v13 = vld [vmem:[%s0] sm:$0xff]
  %v14 = vld [vmem:[%s0 + $0x8] sm:$0xff]
  %v15 = vld [vmem:[%s0 + $0x10] sm:$0xff]
  %v16 = vld [vmem:[%s0 + $0x18] sm:$0xff]
  %v17 = vld [vmem:[%s0 + $0x20] sm:$0xff]
  %v18 = vld [vmem:[%s0 + $0x28] sm:$0xff]
  %v19 = vld [vmem:[%s0 + $0x30] sm:$0xff]
  %v20 = vld [vmem:[%s0 + $0x38] sm:$0xff]
  %v21 = vld [vmem:[%s0 + $0x40] sm:$0xff]
  %v22 = vld [vmem:[%s0 + $0x48] sm:$0xff]
  %v23 = vld [vmem:[%s0 + $0x50] sm:$0xff]
  %v24 = vld [vmem:[%s0 + $0x58] sm:$0xff]
  %v25 = vld [vmem:[%s0 + $0x60] sm:$0xff]
  %v26 = vld [vmem:[%s0 + $0x68] sm:$0xff]
  %v27 = vld [vmem:[%s0 + $0x70] sm:$0xff]
  %v28 = vld [vmem:[%s0 + $0x78] sm:$0xff]
  %v29 = vld [vmem:[%s1] sm:$0xf]
  %v30 = vld [vmem:[%s1 + $0x4] sm:$0xf]
  %v31 = vld [vmem:[%s1 + $0x8] sm:$0xf]
  %v32 = vld [vmem:[%s1 + $0xc] sm:$0xf]
  %v33 = vld [vmem:[%s1 + $0x10] sm:$0xf]
  %v34 = vld [vmem:[%s1 + $0x14] sm:$0xf]
  %v35 = vld [vmem:[%s1 + $0x18] sm:$0xf]
  %v36 = vld [vmem:[%s1 + $0x1c] sm:$0xf]
  %v37 = vld [vmem:[%s1 + $0x20] sm:$0xf]
  %v38 = vld [vmem:[%s1 + $0x24] sm:$0xf]
  %v39 = vld [vmem:[%s1 + $0x28] sm:$0xf]
  %v40 = vld [vmem:[%s1 + $0x2c] sm:$0xf]
  %v41 = vld [vmem:[%s1 + $0x30] sm:$0xf]
  %v42 = vld [vmem:[%s1 + $0x34] sm:$0xf]
  %v43 = vld [vmem:[%s1 + $0x38] sm:$0xf]
  %v44 = vld [vmem:[%s1 + $0x3c] sm:$0xf]
  %v45 = vld [vmem:[%s1 + $0x40] sm:$0xf]
  %v46 = vld [vmem:[%s1 + $0x44] sm:$0xf]
  %v47 = vld [vmem:[%s1 + $0x48] sm:$0xf]
  %v48 = vld [vmem:[%s1 + $0x4c] sm:$0xf]
  %v49 = vld [vmem:[%s1 + $0x50] sm:$0xf]
  %v50 = vld [vmem:[%s1 + $0x54] sm:$0xf]
  %v51 = vld [vmem:[%s1 + $0x58] sm:$0xf]
  %v52 = vld [vmem:[%s1 + $0x5c] sm:$0xf]
  %v53 = vld [vmem:[%s1 + $0x60] sm:$0xf]
  %v54 = vld [vmem:[%s1 + $0x64] sm:$0xf]
  %v55 = vld [vmem:[%s1 + $0x68] sm:$0xf]
  %v56 = vld [vmem:[%s1 + $0x6c] sm:$0xf]
  %v57 = vld [vmem:[%s1 + $0x70] sm:$0xf]
  %v58 = vld [vmem:[%s1 + $0x74] sm:$0xf]
  %v59 = vld [vmem:[%s1 + $0x78] sm:$0xf]
  %v60 = vld [vmem:[%s1 + $0x7c] sm:$0xf]
  %v77 = vunpack.c.l.b16 %v13
  %v78 = vunpack.c.h.b16 %v13
  %v79 = vunpack.c.l.b16 %v14
  %v80 = vunpack.c.h.b16 %v14
  %v81 = vunpack.c.l.b16 %v15
  %v82 = vunpack.c.h.b16 %v15
  %v83 = vunpack.c.l.b16 %v16
  %v84 = vunpack.c.h.b16 %v16
  %v85 = vunpack.c.l.b16 %v17
  %v86 = vunpack.c.h.b16 %v17
  %v87 = vunpack.c.l.b16 %v18
  %v88 = vunpack.c.h.b16 %v18
  %v89 = vunpack.c.l.b16 %v19
  %v90 = vunpack.c.h.b16 %v19
  %v91 = vunpack.c.l.b16 %v20
  %v92 = vunpack.c.h.b16 %v20
  %v93 = vunpack.c.l.b16 %v21
  %v94 = vunpack.c.h.b16 %v21
  %v95 = vunpack.c.l.b16 %v22
  %v96 = vunpack.c.h.b16 %v22
  %v97 = vunpack.c.l.b16 %v23
  %v98 = vunpack.c.h.b16 %v23
  %v99 = vunpack.c.l.b16 %v24
  %v100 = vunpack.c.h.b16 %v24
  %v101 = vunpack.c.l.b16 %v25
  %v102 = vunpack.c.h.b16 %v25
  %v103 = vunpack.c.l.b16 %v26
  %v104 = vunpack.c.h.b16 %v26
  %v105 = vunpack.c.l.b16 %v27
  %v106 = vunpack.c.h.b16 %v27
  %v107 = vunpack.c.l.b16 %v28
  %v108 = vunpack.c.h.b16 %v28
  %v109 = vpack.c.b16 %v79, %v77
  %v110 = vpack.c.b16 %v80, %v78
  %v111 = vpack.c.b16 %v83, %v81
  %v112 = vpack.c.b16 %v84, %v82
  %v113 = vpack.c.b16 %v87, %v85
  %v114 = vpack.c.b16 %v88, %v86
  %v115 = vpack.c.b16 %v91, %v89
  %v116 = vpack.c.b16 %v92, %v90
  %v117 = vpack.c.b16 %v95, %v93
  %v118 = vpack.c.b16 %v96, %v94
  %v119 = vpack.c.b16 %v99, %v97
  %v120 = vpack.c.b16 %v100, %v98
  %v121 = vpack.c.b16 %v103, %v101
  %v122 = vpack.c.b16 %v104, %v102
  %v123 = vpack.c.b16 %v107, %v105
  %v124 = vpack.c.b16 %v108, %v106
  %v173 = vunpack.c.l.b16 %v29
  %v174 = vunpack.c.l.b16 %v30
  %v175 = vunpack.c.l.b16 %v31
  %v176 = vunpack.c.l.b16 %v32
  %v177 = vunpack.c.l.b16 %v33
  %v178 = vunpack.c.l.b16 %v34
  %v179 = vunpack.c.l.b16 %v35
  %v180 = vunpack.c.l.b16 %v36
  %v181 = vunpack.c.l.b16 %v37
  %v182 = vunpack.c.l.b16 %v38
  %v183 = vunpack.c.l.b16 %v39
  %v184 = vunpack.c.l.b16 %v40
  %v185 = vunpack.c.l.b16 %v41
  %v186 = vunpack.c.l.b16 %v42
  %v187 = vunpack.c.l.b16 %v43
  %v188 = vunpack.c.l.b16 %v44
  %v189 = vunpack.c.l.b16 %v45
  %v190 = vunpack.c.l.b16 %v46
  %v191 = vunpack.c.l.b16 %v47
  %v192 = vunpack.c.l.b16 %v48
  %v193 = vunpack.c.l.b16 %v49
  %v194 = vunpack.c.l.b16 %v50
  %v195 = vunpack.c.l.b16 %v51
  %v196 = vunpack.c.l.b16 %v52
  %v197 = vunpack.c.l.b16 %v53
  %v198 = vunpack.c.l.b16 %v54
  %v199 = vunpack.c.l.b16 %v55
  %v200 = vunpack.c.l.b16 %v56
  %v201 = vunpack.c.l.b16 %v57
  %v202 = vunpack.c.l.b16 %v58
  %v203 = vunpack.c.l.b16 %v59
  %v204 = vunpack.c.l.b16 %v60
  %v205 = vpack.c.b16 %v174, %v173
  %v206 = vpack.c.b16 %v176, %v175
  %v207 = vpack.c.b16 %v178, %v177
  %v208 = vpack.c.b16 %v180, %v179
  %v209 = vpack.c.b16 %v182, %v181
  %v210 = vpack.c.b16 %v184, %v183
  %v211 = vpack.c.b16 %v186, %v185
  %v212 = vpack.c.b16 %v188, %v187
  %v213 = vpack.c.b16 %v190, %v189
  %v214 = vpack.c.b16 %v192, %v191
  %v215 = vpack.c.b16 %v194, %v193
  %v216 = vpack.c.b16 %v196, %v195
  %v217 = vpack.c.b16 %v198, %v197
  %v218 = vpack.c.b16 %v200, %v199
  %v219 = vpack.c.b16 %v202, %v201
  %v220 = vpack.c.b16 %v204, %v203
  %237 = vmatpush.bf16.msra.mxu0 %v212
  %238 = vmatpush.bf16.msra.mxu0 %v211
  %239 = vmatpush.bf16.msra.mxu0 %v210
  %240 = vmatpush.bf16.msra.mxu0 %v209
  %241 = vmatpush.bf16.msra.mxu0 %v208
  %242 = vmatpush.bf16.msra.mxu0 %v207
  %243 = vmatpush.bf16.msra.mxu0 %v206
  %244 = vmatpush.bf16.msra.mxu0 %v205
  %245 = vmatmul.bf16.gmra.mxu0 %v109
  %v246 = vpop.f32.mrf.mxu0
  %v247 = vadd.f32 0.0, %v246
  %v248 = vpop.f32.mrf.mxu0
  %v249 = vadd.f32 0.0, %v248
  %250 = vmatmul.bf16.gmra.mxu0 %v111
  %v251 = vpop.f32.mrf.mxu0
  %v252 = vadd.f32 0.0, %v251
  %v253 = vpop.f32.mrf.mxu0
  %v254 = vadd.f32 0.0, %v253
  %255 = vmatmul.bf16.gmra.mxu0 %v113
  %v256 = vpop.f32.mrf.mxu0
  %v257 = vadd.f32 0.0, %v256
  %v258 = vpop.f32.mrf.mxu0
  %v259 = vadd.f32 0.0, %v258
  %260 = vmatmul.bf16.gmra.mxu0 %v115
  %v261 = vpop.f32.mrf.mxu0
  %v262 = vadd.f32 0.0, %v261
  %v263 = vpop.f32.mrf.mxu0
  %v264 = vadd.f32 0.0, %v263
  %265 = vmatmul.bf16.gmra.mxu0 %v117
  %v266 = vpop.f32.mrf.mxu0
  %v267 = vadd.f32 0.0, %v266
  %v268 = vpop.f32.mrf.mxu0
  %v269 = vadd.f32 0.0, %v268
  %270 = vmatmul.bf16.gmra.mxu0 %v119
  %v271 = vpop.f32.mrf.mxu0
  %v272 = vadd.f32 0.0, %v271
  %v273 = vpop.f32.mrf.mxu0
  %v274 = vadd.f32 0.0, %v273
  %275 = vmatmul.bf16.gmra.mxu0 %v121
  %v276 = vpop.f32.mrf.mxu0
  %v277 = vadd.f32 0.0, %v276
  %v278 = vpop.f32.mrf.mxu0
  %v279 = vadd.f32 0.0, %v278
  %280 = vmatmul.bf16.gmra.mxu0 %v123
  %v281 = vpop.f32.mrf.mxu0
  %v282 = vadd.f32 0.0, %v281
  %v283 = vpop.f32.mrf.mxu0
  %v284 = vadd.f32 0.0, %v283
  %285 = vdwg.mxu0
  %286 = vmatpush.bf16.msra.mxu0 %v220
  %287 = vmatpush.bf16.msra.mxu0 %v219
  %288 = vmatpush.bf16.msra.mxu0 %v218
  %289 = vmatpush.bf16.msra.mxu0 %v217
  %290 = vmatpush.bf16.msra.mxu0 %v216
  %291 = vmatpush.bf16.msra.mxu0 %v215
  %292 = vmatpush.bf16.msra.mxu0 %v214
  %293 = vmatpush.bf16.msra.mxu0 %v213
  %294 = vmatmul.bf16.gmra.mxu0 %v110
  %v295 = vpop.f32.mrf.mxu0
  %v296 = vadd.f32 %v247, %v295
  %v297 = vpop.f32.mrf.mxu0
  %v298 = vadd.f32 %v249, %v297
  %299 = vmatmul.bf16.gmra.mxu0 %v112
  %v300 = vpop.f32.mrf.mxu0
  %v301 = vadd.f32 %v252, %v300
  %v302 = vpop.f32.mrf.mxu0
  %v303 = vadd.f32 %v254, %v302
  %304 = vmatmul.bf16.gmra.mxu0 %v114
  %v305 = vpop.f32.mrf.mxu0
  %v306 = vadd.f32 %v257, %v305
  %v307 = vpop.f32.mrf.mxu0
  %v308 = vadd.f32 %v259, %v307
  %309 = vmatmul.bf16.gmra.mxu0 %v116
  %v310 = vpop.f32.mrf.mxu0
  %v311 = vadd.f32 %v262, %v310
  %v312 = vpop.f32.mrf.mxu0
  %v313 = vadd.f32 %v264, %v312
  %314 = vmatmul.bf16.gmra.mxu0 %v118
  %v315 = vpop.f32.mrf.mxu0
  %v316 = vadd.f32 %v267, %v315
  %v317 = vpop.f32.mrf.mxu0
  %v318 = vadd.f32 %v269, %v317
  %319 = vmatmul.bf16.gmra.mxu0 %v120
  %v320 = vpop.f32.mrf.mxu0
  %v321 = vadd.f32 %v272, %v320
  %v322 = vpop.f32.mrf.mxu0
  %v323 = vadd.f32 %v274, %v322
  %324 = vmatmul.bf16.gmra.mxu0 %v122
  %v325 = vpop.f32.mrf.mxu0
  %v326 = vadd.f32 %v277, %v325
  %v327 = vpop.f32.mrf.mxu0
  %v328 = vadd.f32 %v279, %v327
  %329 = vmatmul.bf16.gmra.mxu0 %v124
  %v330 = vpop.f32.mrf.mxu0
  %v331 = vadd.f32 %v282, %v330
  %v332 = vpop.f32.mrf.mxu0
  %v333 = vadd.f32 %v284, %v332
  %334 = vdwg.mxu0
  %v335 = vpack.c.bf16 %v296, %v296
  %v336 = vpack.c.bf16 %v298, %v298
  %v337 = vpack.c.bf16 %v301, %v301
  %v338 = vpack.c.bf16 %v303, %v303
  %v339 = vpack.c.bf16 %v306, %v306
  %v340 = vpack.c.bf16 %v308, %v308
  %v341 = vpack.c.bf16 %v311, %v311
  %v342 = vpack.c.bf16 %v313, %v313
  %v343 = vpack.c.bf16 %v316, %v316
  %v344 = vpack.c.bf16 %v318, %v318
  %v345 = vpack.c.bf16 %v321, %v321
  %v346 = vpack.c.bf16 %v323, %v323
  %v347 = vpack.c.bf16 %v326, %v326
  %v348 = vpack.c.bf16 %v328, %v328
  %v349 = vpack.c.bf16 %v331, %v331
  %v350 = vpack.c.bf16 %v333, %v333
  %vm351 = vcmask 257024
  %352 = vst.msk [vmem:[%s2] sm:$0xf] %vm351, %v335
  %353 = vst.msk [vmem:[%s2 + $0x4] sm:$0xf] %vm351, %v336
  %354 = vst.msk [vmem:[%s2 + $0x8] sm:$0xf] %vm351, %v337
  %355 = vst.msk [vmem:[%s2 + $0xc] sm:$0xf] %vm351, %v338
  %356 = vst.msk [vmem:[%s2 + $0x10] sm:$0xf] %vm351, %v339
  %357 = vst.msk [vmem:[%s2 + $0x14] sm:$0xf] %vm351, %v340
  %358 = vst.msk [vmem:[%s2 + $0x18] sm:$0xf] %vm351, %v341
  %359 = vst.msk [vmem:[%s2 + $0x1c] sm:$0xf] %vm351, %v342
  %360 = vst.msk [vmem:[%s2 + $0x20] sm:$0xf] %vm351, %v343
  %361 = vst.msk [vmem:[%s2 + $0x24] sm:$0xf] %vm351, %v344
  %362 = vst.msk [vmem:[%s2 + $0x28] sm:$0xf] %vm351, %v345
  %363 = vst.msk [vmem:[%s2 + $0x2c] sm:$0xf] %vm351, %v346
  %364 = vst.msk [vmem:[%s2 + $0x30] sm:$0xf] %vm351, %v347
  %365 = vst.msk [vmem:[%s2 + $0x34] sm:$0xf] %vm351, %v348
  %366 = vst.msk [vmem:[%s2 + $0x38] sm:$0xf] %vm351, %v349
  %367 = vst.msk [vmem:[%s2 + $0x3c] sm:$0xf] %vm351, %v350
  %368 = vmatpush.msra.mxu0 %v333
  %369 = vmatpush.msra.mxu0 %v331
  %370 = vmatpush.msra.mxu0 %v328
  %371 = vmatpush.msra.mxu0 %v326
  %372 = vmatpush.msra.mxu0 %v323
  %373 = vmatpush.msra.mxu0 %v321
  %374 = vmatpush.msra.mxu0 %v318
  %375 = vmatpush.msra.mxu0 %v316
  %376 = vmatpush.msra.mxu0 %v313
  %377 = vmatpush.msra.mxu0 %v311
  %378 = vmatpush.msra.mxu0 %v308
  %379 = vmatpush.msra.mxu0 %v306
  %380 = vmatpush.msra.mxu0 %v303
  %381 = vmatpush.msra.mxu0 %v301
  %382 = vmatpush.msra.mxu0 %v298
  %383 = vmatpush.msra.mxu0 %v296
  %384 = vmatmul.f32.gmra.mxu0 1.0
  %v385 = vpop.f32.mrf.mxu0
  %v386 = vadd.f32 0.0, %v385
  %387 = vdwg.mxu0
  %vm388 = vcmask 253952
  %389 = vst.msk [vmem:[%s3] sm:$0x1] %vm388, %v386
  %v390 = vmul.f32 %v296, %v296
  %v391 = vmul.f32 %v298, %v298
  %v392 = vmul.f32 %v301, %v301
  %v393 = vmul.f32 %v303, %v303
  %v394 = vmul.f32 %v306, %v306
  %v395 = vmul.f32 %v308, %v308
  %v396 = vmul.f32 %v311, %v311
  %v397 = vmul.f32 %v313, %v313
  %v398 = vmul.f32 %v316, %v316
  %v399 = vmul.f32 %v318, %v318
  %v400 = vmul.f32 %v321, %v321
  %v401 = vmul.f32 %v323, %v323
  %v402 = vmul.f32 %v326, %v326
  %v403 = vmul.f32 %v328, %v328
  %v404 = vmul.f32 %v331, %v331
  %v405 = vmul.f32 %v333, %v333
  %406 = vmatpush.msra.mxu0 %v405
  %407 = vmatpush.msra.mxu0 %v404
  %408 = vmatpush.msra.mxu0 %v403
  %409 = vmatpush.msra.mxu0 %v402
  %410 = vmatpush.msra.mxu0 %v401
  %411 = vmatpush.msra.mxu0 %v400
  %412 = vmatpush.msra.mxu0 %v399
  %413 = vmatpush.msra.mxu0 %v398
  %414 = vmatpush.msra.mxu0 %v397
  %415 = vmatpush.msra.mxu0 %v396
  %416 = vmatpush.msra.mxu0 %v395
  %417 = vmatpush.msra.mxu0 %v394
  %418 = vmatpush.msra.mxu0 %v393
  %419 = vmatpush.msra.mxu0 %v392
  %420 = vmatpush.msra.mxu0 %v391
  %421 = vmatpush.msra.mxu0 %v390
  %422 = vmatmul.f32.gmra.mxu0 1.0
  %v423 = vpop.f32.mrf.mxu0
  %v424 = vadd.f32 0.0, %v423
  %425 = vdwg.mxu0
  %426 = vst.msk [vmem:[%s3 + $0x1] sm:$0x1] %vm388, %v424
  // Predicated region
  $region10: #{encoder_forward.13} parent=0 // pred_check
    _
  $region11: #{encoder_forward.13} parent=0 // pred_check_branch
    %428 = sbr.rel (0) target = $region13
  $region12: #{encoder_forward.13} parent=0 // pred_region
    _
  $region13: #{encoder_forward.13} parent=0 // pred_fallthru
    _
  // Predicated region
  $region14: #{encoder_forward.13} parent=0 // pred_check
    _
  $region15: #{encoder_forward.13} parent=0 // pred_check_branch
    %430 = sbr.rel (0) target = $region17
  $region16: #{encoder_forward.13} parent=0 // pred_region
    _
  $region17: #{encoder_forward.13} parent=0 // pred_fallthru
    _
  // Predicated region
  $region18: #{encoder_forward.13} parent=0 // pred_check
    _
  $region19: #{encoder_forward.13} parent=0 // pred_check_branch
    %432 = sbr.rel (0) target = $region21
  $region20: #{encoder_forward.13} parent=0 // pred_region
    _
  $region21: #{encoder_forward.13} parent=0 // pred_fallthru
    _
  // Predicated region
  $region22: #{encoder_forward.13} parent=0 // pred_check
    _
  $region23: #{encoder_forward.13} parent=0 // pred_check_branch
    %434 = sbr.rel (0) target = $region25
  $region24: #{encoder_forward.13} parent=0 // pred_region
    _
  $region25: #{encoder_forward.13} parent=0 // pred_fallthru
    _

// kernel: encoder_forward.14
$region0: #{encoder_forward.14}
  #allocation0 [shape = 'u32[]', space=smem, size = 0x4, offset = 0x4, fixed_abs, tag = 'smem constant byte address 0x4 - core index']
  #allocation1 [shape = 'u32[72,128]{1,0:T(1,128)}', space=vmem, size = 0x9000, scoped, tag = 'internal scratch']
  %s0 = inlined_call_operand.vmem [shape: bf16[128,32], index: 0, kind: input, shape index: {}]
  %s1 = inlined_call_operand.vmem [shape: f32[1,2,32], index: 1, kind: input, shape index: {}]
  %s2 = inlined_call_operand.vmem [shape: f32[1,32], index: 2, kind: input, shape index: {}]
  %s3 = inlined_call_operand.vmem [shape: f32[1,32], index: 3, kind: input, shape index: {}]
  %s4 = inlined_call_operand.vmem [shape: bf16[128,32], index: 4, kind: output, shape index: {}]
  %s5 = sld [smem:[#allocation0]]
  $region26: #{encoder_forward.14} parent=0
    _
  %s7 = ssub.s32 1, %s5
  %s8 = scalar_select 0, %s7, %s5
  // Predicated region
  $region2: #{encoder_forward.14} parent=0 // pred_check
    _
  $region3: #{encoder_forward.14} parent=0 // pred_check_branch
    %10 = sbr.rel (0) target = $region5
  $region4: #{encoder_forward.14} parent=0 // pred_region
    _
  $region5: #{encoder_forward.14} parent=0 // pred_fallthru
    _
  // Predicated region
  $region6: #{encoder_forward.14} parent=0 // pred_check
    _
  $region7: #{encoder_forward.14} parent=0 // pred_check_branch
    %12 = sbr.rel (0) target = $region9
  $region8: #{encoder_forward.14} parent=0 // pred_region
    _
  $region9: #{encoder_forward.14} parent=0 // pred_fallthru
    _
  // Predicated region
  $region10: #{encoder_forward.14} parent=0 // pred_check
    _
  $region11: #{encoder_forward.14} parent=0 // pred_check_branch
    %14 = sbr.rel (0) target = $region13
  $region12: #{encoder_forward.14} parent=0 // pred_region
    _
  $region13: #{encoder_forward.14} parent=0 // pred_fallthru
    _
  // Predicated region
  $region14: #{encoder_forward.14} parent=0 // pred_check
    _
  $region15: #{encoder_forward.14} parent=0 // pred_check_branch
    %16 = sbr.rel (0) target = $region17
  $region16: #{encoder_forward.14} parent=0 // pred_region
    _
  $region17: #{encoder_forward.14} parent=0 // pred_fallthru
    _
  %v17 = vld [vmem:[%s1] sm:$0x3]
  %v18 = vadd.f32 %v17, 0.0
  %v19 = vmul.f32 %v18, 0.0078125
  %v20 = vmul.f32 %v19, %v19
  %v22 = vrot.slane %v20, 7
  %v24 = vsub.f32 %v19, %v22
  %v25 = vmax.f32 %v24, 0.0
  %v26 = vld [vmem:[%s2] sm:$0x1]
  %v27 = vadd.f32 %v25, 1e-05
  %v28 = vrsqrt.pop %v27
  %v29 = vmul.f32 %v28, %v27
  %v30 = vmul.f32 %v29, %v28
  %v31 = vmul.f32 0.5, %v30
  %v32 = vsub.f32 1.5, %v31
  %v33 = vmul.f32 %v28, %v32
  %vm34 = vweird.f32 %v27
  %vm35 = vweird.f32 %v28
  %vm36 = vmor %vm34, %vm35
  %v37 = vsel %vm36, %v28, %v33
  %39 = vst [vmem:[#allocation1] sm:$0xff] %v37
  %s40 = scalar_lea.vmem [#allocation1], 1
  %v41 = vld [vmem:[%s40] ss:$9 sm:$0xff]
  %v43 = vmul.f32 %v26, %v41
  %v44 = vld [vmem:[%s3] sm:$0x1]
  %v45 = vmul.f32 %v19, %v43
  %v46 = vsub.f32 %v44, %v45
  %v47 = vld [vmem:[%s0] sm:$0xf]
  %v48 = vld [vmem:[%s0 + $0x4] sm:$0xf]
  %v49 = vld [vmem:[%s0 + $0x8] sm:$0xf]
  %v50 = vld [vmem:[%s0 + $0xc] sm:$0xf]
  %v51 = vld [vmem:[%s0 + $0x10] sm:$0xf]
  %v52 = vld [vmem:[%s0 + $0x14] sm:$0xf]
  %v53 = vld [vmem:[%s0 + $0x18] sm:$0xf]
  %v54 = vld [vmem:[%s0 + $0x1c] sm:$0xf]
  %v55 = vld [vmem:[%s0 + $0x20] sm:$0xf]
  %v56 = vld [vmem:[%s0 + $0x24] sm:$0xf]
  %v57 = vld [vmem:[%s0 + $0x28] sm:$0xf]
  %v58 = vld [vmem:[%s0 + $0x2c] sm:$0xf]
  %v59 = vld [vmem:[%s0 + $0x30] sm:$0xf]
  %v60 = vld [vmem:[%s0 + $0x34] sm:$0xf]
  %v61 = vld [vmem:[%s0 + $0x38] sm:$0xf]
  %v62 = vld [vmem:[%s0 + $0x3c] sm:$0xf]
  %v63 = vunpack.c.l.bf16 %v47
  %v64 = vunpack.c.l.bf16 %v48
  %v65 = vunpack.c.l.bf16 %v49
  %v66 = vunpack.c.l.bf16 %v50
  %v67 = vunpack.c.l.bf16 %v51
  %v68 = vunpack.c.l.bf16 %v52
  %v69 = vunpack.c.l.bf16 %v53
  %v70 = vunpack.c.l.bf16 %v54
  %v71 = vunpack.c.l.bf16 %v55
  %v72 = vunpack.c.l.bf16 %v56
  %v73 = vunpack.c.l.bf16 %v57
  %v74 = vunpack.c.l.bf16 %v58
  %v75 = vunpack.c.l.bf16 %v59
  %v76 = vunpack.c.l.bf16 %v60
  %v77 = vunpack.c.l.bf16 %v61
  %v78 = vunpack.c.l.bf16 %v62
  %v80 = vperm.slane %v43, 0
  %v82 = vmul.f32 %v63, %v80
  %v83 = vmul.f32 %v64, %v80
  %v84 = vmul.f32 %v65, %v80
  %v85 = vmul.f32 %v66, %v80
  %v86 = vmul.f32 %v67, %v80
  %v87 = vmul.f32 %v68, %v80
  %v88 = vmul.f32 %v69, %v80
  %v89 = vmul.f32 %v70, %v80
  %v90 = vmul.f32 %v71, %v80
  %v91 = vmul.f32 %v72, %v80
  %v92 = vmul.f32 %v73, %v80
  %v93 = vmul.f32 %v74, %v80
  %v94 = vmul.f32 %v75, %v80
  %v95 = vmul.f32 %v76, %v80
  %v96 = vmul.f32 %v77, %v80
  %v97 = vmul.f32 %v78, %v80
  %v99 = vperm.slane %v46, 0
  %v101 = vadd.f32 %v82, %v99
  %v102 = vadd.f32 %v83, %v99
  %v103 = vadd.f32 %v84, %v99
  %v104 = vadd.f32 %v85, %v99
  %v105 = vadd.f32 %v86, %v99
  %v106 = vadd.f32 %v87, %v99
  %v107 = vadd.f32 %v88, %v99
  %v108 = vadd.f32 %v89, %v99
  %v109 = vadd.f32 %v90, %v99
  %v110 = vadd.f32 %v91, %v99
  %v111 = vadd.f32 %v92, %v99
  %v112 = vadd.f32 %v93, %v99
  %v113 = vadd.f32 %v94, %v99
  %v114 = vadd.f32 %v95, %v99
  %v115 = vadd.f32 %v96, %v99
  %v116 = vadd.f32 %v97, %v99
  %v117 = vmul.f32 %v101, 0.01
  %v118 = vmul.f32 %v102, 0.01
  %v119 = vmul.f32 %v103, 0.01
  %v120 = vmul.f32 %v104, 0.01
  %v121 = vmul.f32 %v105, 0.01
  %v122 = vmul.f32 %v106, 0.01
  %v123 = vmul.f32 %v107, 0.01
  %v124 = vmul.f32 %v108, 0.01
  %v125 = vmul.f32 %v109, 0.01
  %v126 = vmul.f32 %v110, 0.01
  %v127 = vmul.f32 %v111, 0.01
  %v128 = vmul.f32 %v112, 0.01
  %v129 = vmul.f32 %v113, 0.01
  %v130 = vmul.f32 %v114, 0.01
  %v131 = vmul.f32 %v115, 0.01
  %v132 = vmul.f32 %v116, 0.01
  %v133 = vmax.f32 %v101, %v117
  %v134 = vmax.f32 %v102, %v118
  %v135 = vmax.f32 %v103, %v119
  %v136 = vmax.f32 %v104, %v120
  %v137 = vmax.f32 %v105, %v121
  %v138 = vmax.f32 %v106, %v122
  %v139 = vmax.f32 %v107, %v123
  %v140 = vmax.f32 %v108, %v124
  %v141 = vmax.f32 %v109, %v125
  %v142 = vmax.f32 %v110, %v126
  %v143 = vmax.f32 %v111, %v127
  %v144 = vmax.f32 %v112, %v128
  %v145 = vmax.f32 %v113, %v129
  %v146 = vmax.f32 %v114, %v130
  %v147 = vmax.f32 %v115, %v131
  %v148 = vmax.f32 %v116, %v132
  %v149 = vpack.c.bf16 %v133, %v133
  %v150 = vpack.c.bf16 %v134, %v134
  %v151 = vpack.c.bf16 %v135, %v135
  %v152 = vpack.c.bf16 %v136, %v136
  %v153 = vpack.c.bf16 %v137, %v137
  %v154 = vpack.c.bf16 %v138, %v138
  %v155 = vpack.c.bf16 %v139, %v139
  %v156 = vpack.c.bf16 %v140, %v140
  %v157 = vpack.c.bf16 %v141, %v141
  %v158 = vpack.c.bf16 %v142, %v142
  %v159 = vpack.c.bf16 %v143, %v143
  %v160 = vpack.c.bf16 %v144, %v144
  %v161 = vpack.c.bf16 %v145, %v145
  %v162 = vpack.c.bf16 %v146, %v146
  %v163 = vpack.c.bf16 %v147, %v147
  %v164 = vpack.c.bf16 %v148, %v148
  %vm165 = vcmask 257024
  %166 = vst.msk [vmem:[%s4] sm:$0xf] %vm165, %v149
  %167 = vst.msk [vmem:[%s4 + $0x4] sm:$0xf] %vm165, %v150
  %168 = vst.msk [vmem:[%s4 + $0x8] sm:$0xf] %vm165, %v151
  %169 = vst.msk [vmem:[%s4 + $0xc] sm:$0xf] %vm165, %v152
  %170 = vst.msk [vmem:[%s4 + $0x10] sm:$0xf] %vm165, %v153
  %171 = vst.msk [vmem:[%s4 + $0x14] sm:$0xf] %vm165, %v154
  %172 = vst.msk [vmem:[%s4 + $0x18] sm:$0xf] %vm165, %v155
  %173 = vst.msk [vmem:[%s4 + $0x1c] sm:$0xf] %vm165, %v156
  %174 = vst.msk [vmem:[%s4 + $0x20] sm:$0xf] %vm165, %v157
  %175 = vst.msk [vmem:[%s4 + $0x24] sm:$0xf] %vm165, %v158
  %176 = vst.msk [vmem:[%s4 + $0x28] sm:$0xf] %vm165, %v159
  %177 = vst.msk [vmem:[%s4 + $0x2c] sm:$0xf] %vm165, %v160
  %178 = vst.msk [vmem:[%s4 + $0x30] sm:$0xf] %vm165, %v161
  %179 = vst.msk [vmem:[%s4 + $0x34] sm:$0xf] %vm165, %v162
  %180 = vst.msk [vmem:[%s4 + $0x38] sm:$0xf] %vm165, %v163
  %181 = vst.msk [vmem:[%s4 + $0x3c] sm:$0xf] %vm165, %v164
  // Predicated region
  $region18: #{encoder_forward.14} parent=0 // pred_check
    _
  $region19: #{encoder_forward.14} parent=0 // pred_check_branch
    %183 = sbr.rel (0) target = $region21
  $region20: #{encoder_forward.14} parent=0 // pred_region
    _
  $region21: #{encoder_forward.14} parent=0 // pred_fallthru
    _
  // Predicated region
  $region22: #{encoder_forward.14} parent=0 // pred_check
    _
  $region23: #{encoder_forward.14} parent=0 // pred_check_branch
    %185 = sbr.rel (0) target = $region25
  $region24: #{encoder_forward.14} parent=0 // pred_region
    _
  $region25: #{encoder_forward.14} parent=0 // pred_fallthru
    _

// kernel: encoder_forward.16
$region0: #{encoder_forward.16}
  #allocation0 [shape = 'u32[]', space=smem, size = 0x4, offset = 0x4, fixed_abs, tag = 'smem constant byte address 0x4 - core index']
  #allocation1 [shape = 'u32[72,128]{1,0:T(1,128)}', space=vmem, size = 0x9000, scoped, tag = 'internal scratch']
  %s0 = inlined_call_operand.vmem [shape: bf16[32,64], index: 0, kind: input, shape index: {}]
  %s1 = inlined_call_operand.vmem [shape: f32[1,2,64], index: 1, kind: input, shape index: {}]
  %s2 = inlined_call_operand.vmem [shape: f32[1,64], index: 2, kind: input, shape index: {}]
  %s3 = inlined_call_operand.vmem [shape: f32[1,64], index: 3, kind: input, shape index: {}]
  %s4 = inlined_call_operand.vmem [shape: bf16[32,64], index: 4, kind: output, shape index: {}]
  %s5 = sld [smem:[#allocation0]]
  $region26: #{encoder_forward.16} parent=0
    _
  %s7 = ssub.s32 1, %s5
  %s8 = scalar_select 0, %s7, %s5
  // Predicated region
  $region2: #{encoder_forward.16} parent=0 // pred_check
    _
  $region3: #{encoder_forward.16} parent=0 // pred_check_branch
    %10 = sbr.rel (0) target = $region5
  $region4: #{encoder_forward.16} parent=0 // pred_region
    _
  $region5: #{encoder_forward.16} parent=0 // pred_fallthru
    _
  // Predicated region
  $region6: #{encoder_forward.16} parent=0 // pred_check
    _
  $region7: #{encoder_forward.16} parent=0 // pred_check_branch
    %12 = sbr.rel (0) target = $region9
  $region8: #{encoder_forward.16} parent=0 // pred_region
    _
  $region9: #{encoder_forward.16} parent=0 // pred_fallthru
    _
  // Predicated region
  $region10: #{encoder_forward.16} parent=0 // pred_check
    _
  $region11: #{encoder_forward.16} parent=0 // pred_check_branch
    %14 = sbr.rel (0) target = $region13
  $region12: #{encoder_forward.16} parent=0 // pred_region
    _
  $region13: #{encoder_forward.16} parent=0 // pred_fallthru
    _
  // Predicated region
  $region14: #{encoder_forward.16} parent=0 // pred_check
    _
  $region15: #{encoder_forward.16} parent=0 // pred_check_branch
    %16 = sbr.rel (0) target = $region17
  $region16: #{encoder_forward.16} parent=0 // pred_region
    _
  $region17: #{encoder_forward.16} parent=0 // pred_fallthru
    _
  %v17 = vld [vmem:[%s1] sm:$0x3]
  %v18 = vadd.f32 %v17, 0.0
  %v19 = vmul.f32 %v18, 0.03125
  %v20 = vmul.f32 %v19, %v19
  %v22 = vrot.slane %v20, 7
  %v24 = vsub.f32 %v19, %v22
  %v25 = vmax.f32 %v24, 0.0
  %v26 = vld [vmem:[%s2] sm:$0x1]
  %v27 = vadd.f32 %v25, 1e-05
  %v28 = vrsqrt.pop %v27
  %v29 = vmul.f32 %v28, %v27
  %v30 = vmul.f32 %v29, %v28
  %v31 = vmul.f32 0.5, %v30
  %v32 = vsub.f32 1.5, %v31
  %v33 = vmul.f32 %v28, %v32
  %vm34 = vweird.f32 %v27
  %vm35 = vweird.f32 %v28
  %vm36 = vmor %vm34, %vm35
  %v37 = vsel %vm36, %v28, %v33
  %39 = vst [vmem:[#allocation1] sm:$0xff] %v37
  %s40 = scalar_lea.vmem [#allocation1], 1
  %v41 = vld [vmem:[%s40] ss:$9 sm:$0xff]
  %v43 = vmul.f32 %v26, %v41
  %v44 = vld [vmem:[%s3] sm:$0x1]
  %v45 = vmul.f32 %v19, %v43
  %v46 = vsub.f32 %v44, %v45
  %v47 = vld [vmem:[%s0] sm:$0xf]
  %v48 = vld [vmem:[%s0 + $0x4] sm:$0xf]
  %v49 = vld [vmem:[%s0 + $0x8] sm:$0xf]
  %v50 = vld [vmem:[%s0 + $0xc] sm:$0xf]
  %v51 = vunpack.c.l.bf16 %v47
  %v52 = vunpack.c.l.bf16 %v48
  %v53 = vunpack.c.l.bf16 %v49
  %v54 = vunpack.c.l.bf16 %v50
  %v56 = vperm.slane %v43, 0
  %v58 = vmul.f32 %v51, %v56
  %v59 = vmul.f32 %v52, %v56
  %v60 = vmul.f32 %v53, %v56
  %v61 = vmul.f32 %v54, %v56
  %v63 = vperm.slane %v46, 0
  %v65 = vadd.f32 %v58, %v63
  %v66 = vadd.f32 %v59, %v63
  %v67 = vadd.f32 %v60, %v63
  %v68 = vadd.f32 %v61, %v63
  %v69 = vmul.f32 %v65, 0.01
  %v70 = vmul.f32 %v66, 0.01
  %v71 = vmul.f32 %v67, 0.01
  %v72 = vmul.f32 %v68, 0.01
  %v73 = vmax.f32 %v65, %v69
  %v74 = vmax.f32 %v66, %v70
  %v75 = vmax.f32 %v67, %v71
  %v76 = vmax.f32 %v68, %v72
  %v77 = vpack.c.bf16 %v73, %v73
  %v78 = vpack.c.bf16 %v74, %v74
  %v79 = vpack.c.bf16 %v75, %v75
  %v80 = vpack.c.bf16 %v76, %v76
  %vm81 = vcmask 519168
  %82 = vst.msk [vmem:[%s4] sm:$0xf] %vm81, %v77
  %83 = vst.msk [vmem:[%s4 + $0x4] sm:$0xf] %vm81, %v78
  %84 = vst.msk [vmem:[%s4 + $0x8] sm:$0xf] %vm81, %v79
  %85 = vst.msk [vmem:[%s4 + $0xc] sm:$0xf] %vm81, %v80
  // Predicated region
  $region18: #{encoder_forward.16} parent=0 // pred_check
    _
  $region19: #{encoder_forward.16} parent=0 // pred_check_branch
    %87 = sbr.rel (0) target = $region21
  $region20: #{encoder_forward.16} parent=0 // pred_region
    _
  $region21: #{encoder_forward.16} parent=0 // pred_fallthru
    _
  // Predicated region
  $region22: #{encoder_forward.16} parent=0 // pred_check
    _
  $region23: #{encoder_forward.16} parent=0 // pred_check_branch
    %89 = sbr.rel (0) target = $region25
  $region24: #{encoder_forward.16} parent=0 // pred_region
    _
  $region25: #{encoder_forward.16} parent=0 // pred_fallthru
    _

// kernel: encoder_forward.15
$region0: #{encoder_forward.15}
  #allocation0 [shape = 'u32[]', space=smem, size = 0x4, offset = 0x4, fixed_abs, tag = 'smem constant byte address 0x4 - core index']
  #allocation1 [shape = 'u32[72,128]{1,0:T(1,128)}', space=vmem, size = 0x9000, scoped, tag = 'internal scratch']
  %s0 = inlined_call_operand.vmem [shape: bf16[32,512], index: 0, kind: input, shape index: {}]
  %s1 = inlined_call_operand.vmem [shape: bf16[512,64], index: 1, kind: input, shape index: {}]
  %s2 = inlined_call_operand.vmem [shape: bf16[32,64], index: 2, kind: output, shape index: {0}]
  %s3 = inlined_call_operand.vmem [shape: f32[1,2,64], index: 3, kind: output, shape index: {1}]
  %4 = xla_tuple %s2, %s3
  %s5 = sld [smem:[#allocation0]]
  $region26: #{encoder_forward.15} parent=0
    _
  %s7 = ssub.s32 1, %s5
  %s8 = scalar_select 0, %s7, %s5
  // Predicated region
  $region2: #{encoder_forward.15} parent=0 // pred_check
    _
  $region3: #{encoder_forward.15} parent=0 // pred_check_branch
    %10 = sbr.rel (0) target = $region5
  $region4: #{encoder_forward.15} parent=0 // pred_region
    _
  $region5: #{encoder_forward.15} parent=0 // pred_fallthru
    _
  // Predicated region
  $region6: #{encoder_forward.15} parent=0 // pred_check
    _
  $region7: #{encoder_forward.15} parent=0 // pred_check_branch
    %12 = sbr.rel (0) target = $region9
  $region8: #{encoder_forward.15} parent=0 // pred_region
    _
  $region9: #{encoder_forward.15} parent=0 // pred_fallthru
    _
  %v13 = vld [vmem:[%s0] sm:$0xff]
  %v14 = vld [vmem:[%s0 + $0x8] sm:$0xff]
  %v15 = vld [vmem:[%s0 + $0x10] sm:$0xff]
  %v16 = vld [vmem:[%s0 + $0x18] sm:$0xff]
  %v17 = vld [vmem:[%s0 + $0x20] sm:$0xff]
  %v18 = vld [vmem:[%s0 + $0x28] sm:$0xff]
  %v19 = vld [vmem:[%s0 + $0x30] sm:$0xff]
  %v20 = vld [vmem:[%s0 + $0x38] sm:$0xff]
  %v21 = vld [vmem:[%s1] sm:$0xf]
  %v22 = vld [vmem:[%s1 + $0x4] sm:$0xf]
  %v23 = vld [vmem:[%s1 + $0x8] sm:$0xf]
  %v24 = vld [vmem:[%s1 + $0xc] sm:$0xf]
  %v25 = vld [vmem:[%s1 + $0x10] sm:$0xf]
  %v26 = vld [vmem:[%s1 + $0x14] sm:$0xf]
  %v27 = vld [vmem:[%s1 + $0x18] sm:$0xf]
  %v28 = vld [vmem:[%s1 + $0x1c] sm:$0xf]
  %v29 = vld [vmem:[%s1 + $0x20] sm:$0xf]
  %v30 = vld [vmem:[%s1 + $0x24] sm:$0xf]
  %v31 = vld [vmem:[%s1 + $0x28] sm:$0xf]
  %v32 = vld [vmem:[%s1 + $0x2c] sm:$0xf]
  %v33 = vld [vmem:[%s1 + $0x30] sm:$0xf]
  %v34 = vld [vmem:[%s1 + $0x34] sm:$0xf]
  %v35 = vld [vmem:[%s1 + $0x38] sm:$0xf]
  %v36 = vld [vmem:[%s1 + $0x3c] sm:$0xf]
  %v37 = vld [vmem:[%s1 + $0x40] sm:$0xf]
  %v38 = vld [vmem:[%s1 + $0x44] sm:$0xf]
  %v39 = vld [vmem:[%s1 + $0x48] sm:$0xf]
  %v40 = vld [vmem:[%s1 + $0x4c] sm:$0xf]
  %v41 = vld [vmem:[%s1 + $0x50] sm:$0xf]
  %v42 = vld [vmem:[%s1 + $0x54] sm:$0xf]
  %v43 = vld [vmem:[%s1 + $0x58] sm:$0xf]
  %v44 = vld [vmem:[%s1 + $0x5c] sm:$0xf]
  %v45 = vld [vmem:[%s1 + $0x60] sm:$0xf]
  %v46 = vld [vmem:[%s1 + $0x64] sm:$0xf]
  %v47 = vld [vmem:[%s1 + $0x68] sm:$0xf]
  %v48 = vld [vmem:[%s1 + $0x6c] sm:$0xf]
  %v49 = vld [vmem:[%s1 + $0x70] sm:$0xf]
  %v50 = vld [vmem:[%s1 + $0x74] sm:$0xf]
  %v51 = vld [vmem:[%s1 + $0x78] sm:$0xf]
  %v52 = vld [vmem:[%s1 + $0x7c] sm:$0xf]
  %v53 = vld [vmem:[%s1 + $0x80] sm:$0xf]
  %v54 = vld [vmem:[%s1 + $0x84] sm:$0xf]
  %v55 = vld [vmem:[%s1 + $0x88] sm:$0xf]
  %v56 = vld [vmem:[%s1 + $0x8c] sm:$0xf]
  %v57 = vld [vmem:[%s1 + $0x90] sm:$0xf]
  %v58 = vld [vmem:[%s1 + $0x94] sm:$0xf]
  %v59 = vld [vmem:[%s1 + $0x98] sm:$0xf]
  %v60 = vld [vmem:[%s1 + $0x9c] sm:$0xf]
  %v61 = vld [vmem:[%s1 + $0xa0] sm:$0xf]
  %v62 = vld [vmem:[%s1 + $0xa4] sm:$0xf]
  %v63 = vld [vmem:[%s1 + $0xa8] sm:$0xf]
  %v64 = vld [vmem:[%s1 + $0xac] sm:$0xf]
  %v65 = vld [vmem:[%s1 + $0xb0] sm:$0xf]
  %v66 = vld [vmem:[%s1 + $0xb4] sm:$0xf]
  %v67 = vld [vmem:[%s1 + $0xb8] sm:$0xf]
  %v68 = vld [vmem:[%s1 + $0xbc] sm:$0xf]
  %v69 = vld [vmem:[%s1 + $0xc0] sm:$0xf]
  %v70 = vld [vmem:[%s1 + $0xc4] sm:$0xf]
  %v71 = vld [vmem:[%s1 + $0xc8] sm:$0xf]
  %v72 = vld [vmem:[%s1 + $0xcc] sm:$0xf]
  %v73 = vld [vmem:[%s1 + $0xd0] sm:$0xf]
  %v74 = vld [vmem:[%s1 + $0xd4] sm:$0xf]
  %v75 = vld [vmem:[%s1 + $0xd8] sm:$0xf]
  %v76 = vld [vmem:[%s1 + $0xdc] sm:$0xf]
  %v77 = vld [vmem:[%s1 + $0xe0] sm:$0xf]
  %v78 = vld [vmem:[%s1 + $0xe4] sm:$0xf]
  %v79 = vld [vmem:[%s1 + $0xe8] sm:$0xf]
  %v80 = vld [vmem:[%s1 + $0xec] sm:$0xf]
  %v81 = vld [vmem:[%s1 + $0xf0] sm:$0xf]
  %v82 = vld [vmem:[%s1 + $0xf4] sm:$0xf]
  %v83 = vld [vmem:[%s1 + $0xf8] sm:$0xf]
  %v84 = vld [vmem:[%s1 + $0xfc] sm:$0xf]
  %v93 = vunpack.c.l.b16 %v13
  %v94 = vunpack.c.h.b16 %v13
  %v95 = vunpack.c.l.b16 %v14
  %v96 = vunpack.c.h.b16 %v14
  %v97 = vunpack.c.l.b16 %v15
  %v98 = vunpack.c.h.b16 %v15
  %v99 = vunpack.c.l.b16 %v16
  %v100 = vunpack.c.h.b16 %v16
  %v101 = vunpack.c.l.b16 %v17
  %v102 = vunpack.c.h.b16 %v17
  %v103 = vunpack.c.l.b16 %v18
  %v104 = vunpack.c.h.b16 %v18
  %v105 = vunpack.c.l.b16 %v19
  %v106 = vunpack.c.h.b16 %v19
  %v107 = vunpack.c.l.b16 %v20
  %v108 = vunpack.c.h.b16 %v20
  %v109 = vpack.c.b16 %v97, %v93
  %v110 = vpack.c.b16 %v98, %v94
  %v111 = vpack.c.b16 %v99, %v95
  %v112 = vpack.c.b16 %v100, %v96
  %v113 = vpack.c.b16 %v105, %v101
  %v114 = vpack.c.b16 %v106, %v102
  %v115 = vpack.c.b16 %v107, %v103
  %v116 = vpack.c.b16 %v108, %v104
  %v189 = vunpack.c.l.b16 %v21
  %v190 = vunpack.c.l.b16 %v22
  %v191 = vunpack.c.l.b16 %v23
  %v192 = vunpack.c.l.b16 %v24
  %v193 = vunpack.c.l.b16 %v25
  %v194 = vunpack.c.l.b16 %v26
  %v195 = vunpack.c.l.b16 %v27
  %v196 = vunpack.c.l.b16 %v28
  %v197 = vunpack.c.l.b16 %v29
  %v198 = vunpack.c.l.b16 %v30
  %v199 = vunpack.c.l.b16 %v31
  %v200 = vunpack.c.l.b16 %v32
  %v201 = vunpack.c.l.b16 %v33
  %v202 = vunpack.c.l.b16 %v34
  %v203 = vunpack.c.l.b16 %v35
  %v204 = vunpack.c.l.b16 %v36
  %v205 = vunpack.c.l.b16 %v37
  %v206 = vunpack.c.l.b16 %v38
  %v207 = vunpack.c.l.b16 %v39
  %v208 = vunpack.c.l.b16 %v40
  %v209 = vunpack.c.l.b16 %v41
  %v210 = vunpack.c.l.b16 %v42
  %v211 = vunpack.c.l.b16 %v43
  %v212 = vunpack.c.l.b16 %v44
  %v213 = vunpack.c.l.b16 %v45
  %v214 = vunpack.c.l.b16 %v46
  %v215 = vunpack.c.l.b16 %v47
  %v216 = vunpack.c.l.b16 %v48
  %v217 = vunpack.c.l.b16 %v49
  %v218 = vunpack.c.l.b16 %v50
  %v219 = vunpack.c.l.b16 %v51
  %v220 = vunpack.c.l.b16 %v52
  %v221 = vunpack.c.l.b16 %v53
  %v222 = vunpack.c.l.b16 %v54
  %v223 = vunpack.c.l.b16 %v55
  %v224 = vunpack.c.l.b16 %v56
  %v225 = vunpack.c.l.b16 %v57
  %v226 = vunpack.c.l.b16 %v58
  %v227 = vunpack.c.l.b16 %v59
  %v228 = vunpack.c.l.b16 %v60
  %v229 = vunpack.c.l.b16 %v61
  %v230 = vunpack.c.l.b16 %v62
  %v231 = vunpack.c.l.b16 %v63
  %v232 = vunpack.c.l.b16 %v64
  %v233 = vunpack.c.l.b16 %v65
  %v234 = vunpack.c.l.b16 %v66
  %v235 = vunpack.c.l.b16 %v67
  %v236 = vunpack.c.l.b16 %v68
  %v237 = vunpack.c.l.b16 %v69
  %v238 = vunpack.c.l.b16 %v70
  %v239 = vunpack.c.l.b16 %v71
  %v240 = vunpack.c.l.b16 %v72
  %v241 = vunpack.c.l.b16 %v73
  %v242 = vunpack.c.l.b16 %v74
  %v243 = vunpack.c.l.b16 %v75
  %v244 = vunpack.c.l.b16 %v76
  %v245 = vunpack.c.l.b16 %v77
  %v246 = vunpack.c.l.b16 %v78
  %v247 = vunpack.c.l.b16 %v79
  %v248 = vunpack.c.l.b16 %v80
  %v249 = vunpack.c.l.b16 %v81
  %v250 = vunpack.c.l.b16 %v82
  %v251 = vunpack.c.l.b16 %v83
  %v252 = vunpack.c.l.b16 %v84
  %v253 = vpack.c.b16 %v190, %v189
  %v254 = vpack.c.b16 %v192, %v191
  %v255 = vpack.c.b16 %v194, %v193
  %v256 = vpack.c.b16 %v196, %v195
  %v257 = vpack.c.b16 %v198, %v197
  %v258 = vpack.c.b16 %v200, %v199
  %v259 = vpack.c.b16 %v202, %v201
  %v260 = vpack.c.b16 %v204, %v203
  %v261 = vpack.c.b16 %v206, %v205
  %v262 = vpack.c.b16 %v208, %v207
  %v263 = vpack.c.b16 %v210, %v209
  %v264 = vpack.c.b16 %v212, %v211
  %v265 = vpack.c.b16 %v214, %v213
  %v266 = vpack.c.b16 %v216, %v215
  %v267 = vpack.c.b16 %v218, %v217
  %v268 = vpack.c.b16 %v220, %v219
  %v269 = vpack.c.b16 %v222, %v221
  %v270 = vpack.c.b16 %v224, %v223
  %v271 = vpack.c.b16 %v226, %v225
  %v272 = vpack.c.b16 %v228, %v227
  %v273 = vpack.c.b16 %v230, %v229
  %v274 = vpack.c.b16 %v232, %v231
  %v275 = vpack.c.b16 %v234, %v233
  %v276 = vpack.c.b16 %v236, %v235
  %v277 = vpack.c.b16 %v238, %v237
  %v278 = vpack.c.b16 %v240, %v239
  %v279 = vpack.c.b16 %v242, %v241
  %v280 = vpack.c.b16 %v244, %v243
  %v281 = vpack.c.b16 %v246, %v245
  %v282 = vpack.c.b16 %v248, %v247
  %v283 = vpack.c.b16 %v250, %v249
  %v284 = vpack.c.b16 %v252, %v251
  %317 = vmatpush.bf16.msra.mxu0 %v260
  %318 = vmatpush.bf16.msra.mxu0 %v259
  %319 = vmatpush.bf16.msra.mxu0 %v258
  %320 = vmatpush.bf16.msra.mxu0 %v257
  %321 = vmatpush.bf16.msra.mxu0 %v256
  %322 = vmatpush.bf16.msra.mxu0 %v255
  %323 = vmatpush.bf16.msra.mxu0 %v254
  %324 = vmatpush.bf16.msra.mxu0 %v253
  %325 = vmatmul.bf16.gmra.mxu0 %v109
  %v326 = vpop.f32.mrf.mxu0
  %v327 = vadd.f32 0.0, %v326
  %v328 = vpop.f32.mrf.mxu0
  %v329 = vadd.f32 0.0, %v328
  %330 = vmatmul.bf16.gmra.mxu0 %v113
  %v331 = vpop.f32.mrf.mxu0
  %v332 = vadd.f32 0.0, %v331
  %v333 = vpop.f32.mrf.mxu0
  %v334 = vadd.f32 0.0, %v333
  %335 = vdwg.mxu0
  %336 = vmatpush.bf16.msra.mxu0 %v268
  %337 = vmatpush.bf16.msra.mxu0 %v267
  %338 = vmatpush.bf16.msra.mxu0 %v266
  %339 = vmatpush.bf16.msra.mxu0 %v265
  %340 = vmatpush.bf16.msra.mxu0 %v264
  %341 = vmatpush.bf16.msra.mxu0 %v263
  %342 = vmatpush.bf16.msra.mxu0 %v262
  %343 = vmatpush.bf16.msra.mxu0 %v261
  %344 = vmatmul.bf16.gmra.mxu0 %v110
  %v345 = vpop.f32.mrf.mxu0
  %v346 = vadd.f32 %v327, %v345
  %v347 = vpop.f32.mrf.mxu0
  %v348 = vadd.f32 %v329, %v347
  %349 = vmatmul.bf16.gmra.mxu0 %v114
  %v350 = vpop.f32.mrf.mxu0
  %v351 = vadd.f32 %v332, %v350
  %v352 = vpop.f32.mrf.mxu0
  %v353 = vadd.f32 %v334, %v352
  %354 = vdwg.mxu0
  %355 = vmatpush.bf16.msra.mxu0 %v276
  %356 = vmatpush.bf16.msra.mxu0 %v275
  %357 = vmatpush.bf16.msra.mxu0 %v274
  %358 = vmatpush.bf16.msra.mxu0 %v273
  %359 = vmatpush.bf16.msra.mxu0 %v272
  %360 = vmatpush.bf16.msra.mxu0 %v271
  %361 = vmatpush.bf16.msra.mxu0 %v270
  %362 = vmatpush.bf16.msra.mxu0 %v269
  %363 = vmatmul.bf16.gmra.mxu0 %v111
  %v364 = vpop.f32.mrf.mxu0
  %v365 = vadd.f32 %v346, %v364
  %v366 = vpop.f32.mrf.mxu0
  %v367 = vadd.f32 %v348, %v366
  %368 = vmatmul.bf16.gmra.mxu0 %v115
  %v369 = vpop.f32.mrf.mxu0
  %v370 = vadd.f32 %v351, %v369
  %v371 = vpop.f32.mrf.mxu0
  %v372 = vadd.f32 %v353, %v371
  %373 = vdwg.mxu0
  %374 = vmatpush.bf16.msra.mxu0 %v284
  %375 = vmatpush.bf16.msra.mxu0 %v283
  %376 = vmatpush.bf16.msra.mxu0 %v282
  %377 = vmatpush.bf16.msra.mxu0 %v281
  %378 = vmatpush.bf16.msra.mxu0 %v280
  %379 = vmatpush.bf16.msra.mxu0 %v279
  %380 = vmatpush.bf16.msra.mxu0 %v278
  %381 = vmatpush.bf16.msra.mxu0 %v277
  %382 = vmatmul.bf16.gmra.mxu0 %v112
  %v383 = vpop.f32.mrf.mxu0
  %v384 = vadd.f32 %v365, %v383
  %v385 = vpop.f32.mrf.mxu0
  %v386 = vadd.f32 %v367, %v385
  %387 = vmatmul.bf16.gmra.mxu0 %v116
  %v388 = vpop.f32.mrf.mxu0
  %v389 = vadd.f32 %v370, %v388
  %v390 = vpop.f32.mrf.mxu0
  %v391 = vadd.f32 %v372, %v390
  %392 = vdwg.mxu0
  %v393 = vpack.c.bf16 %v384, %v384
  %v394 = vpack.c.bf16 %v386, %v386
  %v395 = vpack.c.bf16 %v389, %v389
  %v396 = vpack.c.bf16 %v391, %v391
  %vm397 = vcmask 519168
  %398 = vst.msk [vmem:[%s2] sm:$0xf] %vm397, %v393
  %399 = vst.msk [vmem:[%s2 + $0x4] sm:$0xf] %vm397, %v394
  %400 = vst.msk [vmem:[%s2 + $0x8] sm:$0xf] %vm397, %v395
  %401 = vst.msk [vmem:[%s2 + $0xc] sm:$0xf] %vm397, %v396
  %vm402 = vcmask 261120
  %v404 = vsel %vm402, 1.0, 0
  %406 = vmatpush.msra.mxu0 0.0
  %407 = vmatpush.msra.mxu0 0.0
  %408 = vmatpush.msra.mxu0 0.0
  %409 = vmatpush.msra.mxu0 0.0
  %410 = vmatpush.msra.mxu0 0.0
  %411 = vmatpush.msra.mxu0 0.0
  %412 = vmatpush.msra.mxu0 0.0
  %413 = vmatpush.msra.mxu0 0.0
  %414 = vmatpush.msra.mxu0 0.0
  %415 = vmatpush.msra.mxu0 0.0
  %416 = vmatpush.msra.mxu0 0.0
  %417 = vmatpush.msra.mxu0 0.0
  %418 = vmatpush.msra.mxu0 %v391
  %419 = vmatpush.msra.mxu0 %v389
  %420 = vmatpush.msra.mxu0 %v386
  %421 = vmatpush.msra.mxu0 %v384
  %422 = vmatmul.f32.gmra.mxu0 %v404
  %v423 = vpop.f32.mrf.mxu0
  %v424 = vadd.f32 0.0, %v423
  %425 = vdwg.mxu0
  %vm426 = vcmask 516096
  %427 = vst.msk [vmem:[%s3] sm:$0x1] %vm426, %v424
  %v428 = vmul.f32 %v384, %v384
  %v429 = vmul.f32 %v386, %v386
  %v430 = vmul.f32 %v389, %v389
  %v431 = vmul.f32 %v391, %v391
  %432 = vmatpush.msra.mxu0 0.0
  %433 = vmatpush.msra.mxu0 0.0
  %434 = vmatpush.msra.mxu0 0.0
  %435 = vmatpush.msra.mxu0 0.0
  %436 = vmatpush.msra.mxu0 0.0
  %437 = vmatpush.msra.mxu0 0.0
  %438 = vmatpush.msra.mxu0 0.0
  %439 = vmatpush.msra.mxu0 0.0
  %440 = vmatpush.msra.mxu0 0.0
  %441 = vmatpush.msra.mxu0 0.0
  %442 = vmatpush.msra.mxu0 0.0
  %443 = vmatpush.msra.mxu0 0.0
  %444 = vmatpush.msra.mxu0 %v431
  %445 = vmatpush.msra.mxu0 %v430
  %446 = vmatpush.msra.mxu0 %v429
  %447 = vmatpush.msra.mxu0 %v428
  %448 = vmatmul.f32.gmra.mxu0 %v404
  %v449 = vpop.f32.mrf.mxu0
  %v450 = vadd.f32 0.0, %v449
  %451 = vdwg.mxu0
  %452 = vst.msk [vmem:[%s3 + $0x1] sm:$0x1] %vm426, %v450
  // Predicated region
  $region10: #{encoder_forward.15} parent=0 // pred_check
    _
  $region11: #{encoder_forward.15} parent=0 // pred_check_branch
    %454 = sbr.rel (0) target = $region13
  $region12: #{encoder_forward.15} parent=0 // pred_region
    _
  $region13: #{encoder_forward.15} parent=0 // pred_fallthru
    _
  // Predicated region
  $region14: #{encoder_forward.15} parent=0 // pred_check
    _
  $region15: #{encoder_forward.15} parent=0 // pred_check_branch
    %456 = sbr.rel (0) target = $region17
  $region16: #{encoder_forward.15} parent=0 // pred_region
    _
  $region17: #{encoder_forward.15} parent=0 // pred_fallthru
    _
  // Predicated region
  $region18: #{encoder_forward.15} parent=0 // pred_check
    _
  $region19: #{encoder_forward.15} parent=0 // pred_check_branch
    %458 = sbr.rel (0) target = $region21
  $region20: #{encoder_forward.15} parent=0 // pred_region
    _
  $region21: #{encoder_forward.15} parent=0 // pred_fallthru
    _
  // Predicated region
  $region22: #{encoder_forward.15} parent=0 // pred_check
    _
  $region23: #{encoder_forward.15} parent=0 // pred_check_branch
    %460 = sbr.rel (0) target = $region25
  $region24: #{encoder_forward.15} parent=0 // pred_region
    _
  $region25: #{encoder_forward.15} parent=0 // pred_fallthru
    _

// kernel: encoder_forward.17
$region0: #{encoder_forward.17}
  #allocation0 [shape = 'u32[]', space=smem, size = 0x4, offset = 0x4, fixed_abs, tag = 'smem constant byte address 0x4 - core index']
  #allocation1 [shape = 'u32[72,128]{1,0:T(1,128)}', space=vmem, size = 0x9000, scoped, tag = 'internal scratch']
  %s0 = inlined_call_operand.vmem [shape: bf16[2,1024], index: 0, kind: input, shape index: {}]
  %s1 = inlined_call_operand.vmem [shape: bf16[1024,32], index: 1, kind: input, shape index: {}]
  %s2 = inlined_call_operand.vmem [shape: f32[1,32], index: 2, kind: input, shape index: {}]
  %s3 = inlined_call_operand.vmem [shape: f32[2,32], index: 3, kind: output, shape index: {}]
  %s4 = sld [smem:[#allocation0]]
  $region22: #{encoder_forward.17} parent=0
    _
  %s6 = ssub.s32 1, %s4
  %s7 = scalar_select 0, %s6, %s4
  // Predicated region
  $region2: #{encoder_forward.17} parent=0 // pred_check
    _
  $region3: #{encoder_forward.17} parent=0 // pred_check_branch
    %9 = sbr.rel (0) target = $region5
  $region4: #{encoder_forward.17} parent=0 // pred_region
    _
  $region5: #{encoder_forward.17} parent=0 // pred_fallthru
    _
  // Predicated region
  $region6: #{encoder_forward.17} parent=0 // pred_check
    _
  $region7: #{encoder_forward.17} parent=0 // pred_check_branch
    %11 = sbr.rel (0) target = $region9
  $region8: #{encoder_forward.17} parent=0 // pred_region
    _
  $region9: #{encoder_forward.17} parent=0 // pred_fallthru
    _
  // Predicated region
  $region10: #{encoder_forward.17} parent=0 // pred_check
    _
  $region11: #{encoder_forward.17} parent=0 // pred_check_branch
    %13 = sbr.rel (0) target = $region13
  $region12: #{encoder_forward.17} parent=0 // pred_region
    _
  $region13: #{encoder_forward.17} parent=0 // pred_fallthru
    _
  %v14 = vld [vmem:[%s0] sm:$0xff]
  %v15 = vld [vmem:[%s1] sm:$0xf]
  %v16 = vld [vmem:[%s1 + $0x4] sm:$0xf]
  %v17 = vld [vmem:[%s1 + $0x8] sm:$0xf]
  %v18 = vld [vmem:[%s1 + $0xc] sm:$0xf]
  %v19 = vld [vmem:[%s1 + $0x10] sm:$0xf]
  %v20 = vld [vmem:[%s1 + $0x14] sm:$0xf]
  %v21 = vld [vmem:[%s1 + $0x18] sm:$0xf]
  %v22 = vld [vmem:[%s1 + $0x1c] sm:$0xf]
  %v23 = vld [vmem:[%s1 + $0x20] sm:$0xf]
  %v24 = vld [vmem:[%s1 + $0x24] sm:$0xf]
  %v25 = vld [vmem:[%s1 + $0x28] sm:$0xf]
  %v26 = vld [vmem:[%s1 + $0x2c] sm:$0xf]
  %v27 = vld [vmem:[%s1 + $0x30] sm:$0xf]
  %v28 = vld [vmem:[%s1 + $0x34] sm:$0xf]
  %v29 = vld [vmem:[%s1 + $0x38] sm:$0xf]
  %v30 = vld [vmem:[%s1 + $0x3c] sm:$0xf]
  %v31 = vld [vmem:[%s1 + $0x40] sm:$0xf]
  %v32 = vld [vmem:[%s1 + $0x44] sm:$0xf]
  %v33 = vld [vmem:[%s1 + $0x48] sm:$0xf]
  %v34 = vld [vmem:[%s1 + $0x4c] sm:$0xf]
  %v35 = vld [vmem:[%s1 + $0x50] sm:$0xf]
  %v36 = vld [vmem:[%s1 + $0x54] sm:$0xf]
  %v37 = vld [vmem:[%s1 + $0x58] sm:$0xf]
  %v38 = vld [vmem:[%s1 + $0x5c] sm:$0xf]
  %v39 = vld [vmem:[%s1 + $0x60] sm:$0xf]
  %v40 = vld [vmem:[%s1 + $0x64] sm:$0xf]
  %v41 = vld [vmem:[%s1 + $0x68] sm:$0xf]
  %v42 = vld [vmem:[%s1 + $0x6c] sm:$0xf]
  %v43 = vld [vmem:[%s1 + $0x70] sm:$0xf]
  %v44 = vld [vmem:[%s1 + $0x74] sm:$0xf]
  %v45 = vld [vmem:[%s1 + $0x78] sm:$0xf]
  %v46 = vld [vmem:[%s1 + $0x7c] sm:$0xf]
  %v47 = vld [vmem:[%s1 + $0x80] sm:$0xf]
  %v48 = vld [vmem:[%s1 + $0x84] sm:$0xf]
  %v49 = vld [vmem:[%s1 + $0x88] sm:$0xf]
  %v50 = vld [vmem:[%s1 + $0x8c] sm:$0xf]
  %v51 = vld [vmem:[%s1 + $0x90] sm:$0xf]
  %v52 = vld [vmem:[%s1 + $0x94] sm:$0xf]
  %v53 = vld [vmem:[%s1 + $0x98] sm:$0xf]
  %v54 = vld [vmem:[%s1 + $0x9c] sm:$0xf]
  %v55 = vld [vmem:[%s1 + $0xa0] sm:$0xf]
  %v56 = vld [vmem:[%s1 + $0xa4] sm:$0xf]
  %v57 = vld [vmem:[%s1 + $0xa8] sm:$0xf]
  %v58 = vld [vmem:[%s1 + $0xac] sm:$0xf]
  %v59 = vld [vmem:[%s1 + $0xb0] sm:$0xf]
  %v60 = vld [vmem:[%s1 + $0xb4] sm:$0xf]
  %v61 = vld [vmem:[%s1 + $0xb8] sm:$0xf]
  %v62 = vld [vmem:[%s1 + $0xbc] sm:$0xf]
  %v63 = vld [vmem:[%s1 + $0xc0] sm:$0xf]
  %v64 = vld [vmem:[%s1 + $0xc4] sm:$0xf]
  %v65 = vld [vmem:[%s1 + $0xc8] sm:$0xf]
  %v66 = vld [vmem:[%s1 + $0xcc] sm:$0xf]
  %v67 = vld [vmem:[%s1 + $0xd0] sm:$0xf]
  %v68 = vld [vmem:[%s1 + $0xd4] sm:$0xf]
  %v69 = vld [vmem:[%s1 + $0xd8] sm:$0xf]
  %v70 = vld [vmem:[%s1 + $0xdc] sm:$0xf]
  %v71 = vld [vmem:[%s1 + $0xe0] sm:$0xf]
  %v72 = vld [vmem:[%s1 + $0xe4] sm:$0xf]
  %v73 = vld [vmem:[%s1 + $0xe8] sm:$0xf]
  %v74 = vld [vmem:[%s1 + $0xec] sm:$0xf]
  %v75 = vld [vmem:[%s1 + $0xf0] sm:$0xf]
  %v76 = vld [vmem:[%s1 + $0xf4] sm:$0xf]
  %v77 = vld [vmem:[%s1 + $0xf8] sm:$0xf]
  %v78 = vld [vmem:[%s1 + $0xfc] sm:$0xf]
  %v79 = vld [vmem:[%s1 + $0x100] sm:$0xf]
  %v80 = vld [vmem:[%s1 + $0x104] sm:$0xf]
  %v81 = vld [vmem:[%s1 + $0x108] sm:$0xf]
  %v82 = vld [vmem:[%s1 + $0x10c] sm:$0xf]
  %v83 = vld [vmem:[%s1 + $0x110] sm:$0xf]
  %v84 = vld [vmem:[%s1 + $0x114] sm:$0xf]
  %v85 = vld [vmem:[%s1 + $0x118] sm:$0xf]
  %v86 = vld [vmem:[%s1 + $0x11c] sm:$0xf]
  %v87 = vld [vmem:[%s1 + $0x120] sm:$0xf]
  %v88 = vld [vmem:[%s1 + $0x124] sm:$0xf]
  %v89 = vld [vmem:[%s1 + $0x128] sm:$0xf]
  %v90 = vld [vmem:[%s1 + $0x12c] sm:$0xf]
  %v91 = vld [vmem:[%s1 + $0x130] sm:$0xf]
  %v92 = vld [vmem:[%s1 + $0x134] sm:$0xf]
  %v93 = vld [vmem:[%s1 + $0x138] sm:$0xf]
  %v94 = vld [vmem:[%s1 + $0x13c] sm:$0xf]
  %v95 = vld [vmem:[%s1 + $0x140] sm:$0xf]
  %v96 = vld [vmem:[%s1 + $0x144] sm:$0xf]
  %v97 = vld [vmem:[%s1 + $0x148] sm:$0xf]
  %v98 = vld [vmem:[%s1 + $0x14c] sm:$0xf]
  %v99 = vld [vmem:[%s1 + $0x150] sm:$0xf]
  %v100 = vld [vmem:[%s1 + $0x154] sm:$0xf]
  %v101 = vld [vmem:[%s1 + $0x158] sm:$0xf]
  %v102 = vld [vmem:[%s1 + $0x15c] sm:$0xf]
  %v103 = vld [vmem:[%s1 + $0x160] sm:$0xf]
  %v104 = vld [vmem:[%s1 + $0x164] sm:$0xf]
  %v105 = vld [vmem:[%s1 + $0x168] sm:$0xf]
  %v106 = vld [vmem:[%s1 + $0x16c] sm:$0xf]
  %v107 = vld [vmem:[%s1 + $0x170] sm:$0xf]
  %v108 = vld [vmem:[%s1 + $0x174] sm:$0xf]
  %v109 = vld [vmem:[%s1 + $0x178] sm:$0xf]
  %v110 = vld [vmem:[%s1 + $0x17c] sm:$0xf]
  %v111 = vld [vmem:[%s1 + $0x180] sm:$0xf]
  %v112 = vld [vmem:[%s1 + $0x184] sm:$0xf]
  %v113 = vld [vmem:[%s1 + $0x188] sm:$0xf]
  %v114 = vld [vmem:[%s1 + $0x18c] sm:$0xf]
  %v115 = vld [vmem:[%s1 + $0x190] sm:$0xf]
  %v116 = vld [vmem:[%s1 + $0x194] sm:$0xf]
  %v117 = vld [vmem:[%s1 + $0x198] sm:$0xf]
  %v118 = vld [vmem:[%s1 + $0x19c] sm:$0xf]
  %v119 = vld [vmem:[%s1 + $0x1a0] sm:$0xf]
  %v120 = vld [vmem:[%s1 + $0x1a4] sm:$0xf]
  %v121 = vld [vmem:[%s1 + $0x1a8] sm:$0xf]
  %v122 = vld [vmem:[%s1 + $0x1ac] sm:$0xf]
  %v123 = vld [vmem:[%s1 + $0x1b0] sm:$0xf]
  %v124 = vld [vmem:[%s1 + $0x1b4] sm:$0xf]
  %v125 = vld [vmem:[%s1 + $0x1b8] sm:$0xf]
  %v126 = vld [vmem:[%s1 + $0x1bc] sm:$0xf]
  %v127 = vld [vmem:[%s1 + $0x1c0] sm:$0xf]
  %v128 = vld [vmem:[%s1 + $0x1c4] sm:$0xf]
  %v129 = vld [vmem:[%s1 + $0x1c8] sm:$0xf]
  %v130 = vld [vmem:[%s1 + $0x1cc] sm:$0xf]
  %v131 = vld [vmem:[%s1 + $0x1d0] sm:$0xf]
  %v132 = vld [vmem:[%s1 + $0x1d4] sm:$0xf]
  %v133 = vld [vmem:[%s1 + $0x1d8] sm:$0xf]
  %v134 = vld [vmem:[%s1 + $0x1dc] sm:$0xf]
  %v135 = vld [vmem:[%s1 + $0x1e0] sm:$0xf]
  %v136 = vld [vmem:[%s1 + $0x1e4] sm:$0xf]
  %v137 = vld [vmem:[%s1 + $0x1e8] sm:$0xf]
  %v138 = vld [vmem:[%s1 + $0x1ec] sm:$0xf]
  %v139 = vld [vmem:[%s1 + $0x1f0] sm:$0xf]
  %v140 = vld [vmem:[%s1 + $0x1f4] sm:$0xf]
  %v141 = vld [vmem:[%s1 + $0x1f8] sm:$0xf]
  %v142 = vld [vmem:[%s1 + $0x1fc] sm:$0xf]
  %v143 = vld [vmem:[%s2] sm:$0x1]
  %v145 = vperm.slane %v143, 0
  %148 = vst [vmem:[#allocation1] ss:$9 sm:$0xff] %v14
  %v149 = vld [vmem:[#allocation1] sm:$0xff]
  %v150 = vld [vmem:[#allocation1 + $0x9] sm:$0xff]
  %v151 = vld [vmem:[#allocation1 + $0x12] sm:$0xff]
  %v152 = vld [vmem:[#allocation1 + $0x1b] sm:$0xff]
  %v153 = vld [vmem:[#allocation1 + $0x24] sm:$0xff]
  %v154 = vld [vmem:[#allocation1 + $0x2d] sm:$0xff]
  %v155 = vld [vmem:[#allocation1 + $0x36] sm:$0xff]
  %v156 = vld [vmem:[#allocation1 + $0x3f] sm:$0xff]
  %v293 = vunpack.c.l.b16 %v15
  %v294 = vunpack.c.l.b16 %v16
  %v295 = vunpack.c.l.b16 %v17
  %v296 = vunpack.c.l.b16 %v18
  %v297 = vunpack.c.l.b16 %v19
  %v298 = vunpack.c.l.b16 %v20
  %v299 = vunpack.c.l.b16 %v21
  %v300 = vunpack.c.l.b16 %v22
  %v301 = vunpack.c.l.b16 %v23
  %v302 = vunpack.c.l.b16 %v24
  %v303 = vunpack.c.l.b16 %v25
  %v304 = vunpack.c.l.b16 %v26
  %v305 = vunpack.c.l.b16 %v27
  %v306 = vunpack.c.l.b16 %v28
  %v307 = vunpack.c.l.b16 %v29
  %v308 = vunpack.c.l.b16 %v30
  %v309 = vunpack.c.l.b16 %v31
  %v310 = vunpack.c.l.b16 %v32
  %v311 = vunpack.c.l.b16 %v33
  %v312 = vunpack.c.l.b16 %v34
  %v313 = vunpack.c.l.b16 %v35
  %v314 = vunpack.c.l.b16 %v36
  %v315 = vunpack.c.l.b16 %v37
  %v316 = vunpack.c.l.b16 %v38
  %v317 = vunpack.c.l.b16 %v39
  %v318 = vunpack.c.l.b16 %v40
  %v319 = vunpack.c.l.b16 %v41
  %v320 = vunpack.c.l.b16 %v42
  %v321 = vunpack.c.l.b16 %v43
  %v322 = vunpack.c.l.b16 %v44
  %v323 = vunpack.c.l.b16 %v45
  %v324 = vunpack.c.l.b16 %v46
  %v325 = vunpack.c.l.b16 %v47
  %v326 = vunpack.c.l.b16 %v48
  %v327 = vunpack.c.l.b16 %v49
  %v328 = vunpack.c.l.b16 %v50
  %v329 = vunpack.c.l.b16 %v51
  %v330 = vunpack.c.l.b16 %v52
  %v331 = vunpack.c.l.b16 %v53
  %v332 = vunpack.c.l.b16 %v54
  %v333 = vunpack.c.l.b16 %v55
  %v334 = vunpack.c.l.b16 %v56
  %v335 = vunpack.c.l.b16 %v57
  %v336 = vunpack.c.l.b16 %v58
  %v337 = vunpack.c.l.b16 %v59
  %v338 = vunpack.c.l.b16 %v60
  %v339 = vunpack.c.l.b16 %v61
  %v340 = vunpack.c.l.b16 %v62
  %v341 = vunpack.c.l.b16 %v63
  %v342 = vunpack.c.l.b16 %v64
  %v343 = vunpack.c.l.b16 %v65
  %v344 = vunpack.c.l.b16 %v66
  %v345 = vunpack.c.l.b16 %v67
  %v346 = vunpack.c.l.b16 %v68
  %v347 = vunpack.c.l.b16 %v69
  %v348 = vunpack.c.l.b16 %v70
  %v349 = vunpack.c.l.b16 %v71
  %v350 = vunpack.c.l.b16 %v72
  %v351 = vunpack.c.l.b16 %v73
  %v352 = vunpack.c.l.b16 %v74
  %v353 = vunpack.c.l.b16 %v75
  %v354 = vunpack.c.l.b16 %v76
  %v355 = vunpack.c.l.b16 %v77
  %v356 = vunpack.c.l.b16 %v78
  %v357 = vunpack.c.l.b16 %v79
  %v358 = vunpack.c.l.b16 %v80
  %v359 = vunpack.c.l.b16 %v81
  %v360 = vunpack.c.l.b16 %v82
  %v361 = vunpack.c.l.b16 %v83
  %v362 = vunpack.c.l.b16 %v84
  %v363 = vunpack.c.l.b16 %v85
  %v364 = vunpack.c.l.b16 %v86
  %v365 = vunpack.c.l.b16 %v87
  %v366 = vunpack.c.l.b16 %v88
  %v367 = vunpack.c.l.b16 %v89
  %v368 = vunpack.c.l.b16 %v90
  %v369 = vunpack.c.l.b16 %v91
  %v370 = vunpack.c.l.b16 %v92
  %v371 = vunpack.c.l.b16 %v93
  %v372 = vunpack.c.l.b16 %v94
  %v373 = vunpack.c.l.b16 %v95
  %v374 = vunpack.c.l.b16 %v96
  %v375 = vunpack.c.l.b16 %v97
  %v376 = vunpack.c.l.b16 %v98
  %v377 = vunpack.c.l.b16 %v99
  %v378 = vunpack.c.l.b16 %v100
  %v379 = vunpack.c.l.b16 %v101
  %v380 = vunpack.c.l.b16 %v102
  %v381 = vunpack.c.l.b16 %v103
  %v382 = vunpack.c.l.b16 %v104
  %v383 = vunpack.c.l.b16 %v105
  %v384 = vunpack.c.l.b16 %v106
  %v385 = vunpack.c.l.b16 %v107
  %v386 = vunpack.c.l.b16 %v108
  %v387 = vunpack.c.l.b16 %v109
  %v388 = vunpack.c.l.b16 %v110
  %v389 = vunpack.c.l.b16 %v111
  %v390 = vunpack.c.l.b16 %v112
  %v391 = vunpack.c.l.b16 %v113
  %v392 = vunpack.c.l.b16 %v114
  %v393 = vunpack.c.l.b16 %v115
  %v394 = vunpack.c.l.b16 %v116
  %v395 = vunpack.c.l.b16 %v117
  %v396 = vunpack.c.l.b16 %v118
  %v397 = vunpack.c.l.b16 %v119
  %v398 = vunpack.c.l.b16 %v120
  %v399 = vunpack.c.l.b16 %v121
  %v400 = vunpack.c.l.b16 %v122
  %v401 = vunpack.c.l.b16 %v123
  %v402 = vunpack.c.l.b16 %v124
  %v403 = vunpack.c.l.b16 %v125
  %v404 = vunpack.c.l.b16 %v126
  %v405 = vunpack.c.l.b16 %v127
  %v406 = vunpack.c.l.b16 %v128
  %v407 = vunpack.c.l.b16 %v129
  %v408 = vunpack.c.l.b16 %v130
  %v409 = vunpack.c.l.b16 %v131
  %v410 = vunpack.c.l.b16 %v132
  %v411 = vunpack.c.l.b16 %v133
  %v412 = vunpack.c.l.b16 %v134
  %v413 = vunpack.c.l.b16 %v135
  %v414 = vunpack.c.l.b16 %v136
  %v415 = vunpack.c.l.b16 %v137
  %v416 = vunpack.c.l.b16 %v138
  %v417 = vunpack.c.l.b16 %v139
  %v418 = vunpack.c.l.b16 %v140
  %v419 = vunpack.c.l.b16 %v141
  %v420 = vunpack.c.l.b16 %v142
  %v421 = vpack.c.b16 %v294, %v293
  %v422 = vpack.c.b16 %v296, %v295
  %v423 = vpack.c.b16 %v298, %v297
  %v424 = vpack.c.b16 %v300, %v299
  %v425 = vpack.c.b16 %v302, %v301
  %v426 = vpack.c.b16 %v304, %v303
  %v427 = vpack.c.b16 %v306, %v305
  %v428 = vpack.c.b16 %v308, %v307
  %v429 = vpack.c.b16 %v310, %v309
  %v430 = vpack.c.b16 %v312, %v311
  %v431 = vpack.c.b16 %v314, %v313
  %v432 = vpack.c.b16 %v316, %v315
  %v433 = vpack.c.b16 %v318, %v317
  %v434 = vpack.c.b16 %v320, %v319
  %v435 = vpack.c.b16 %v322, %v321
  %v436 = vpack.c.b16 %v324, %v323
  %v437 = vpack.c.b16 %v326, %v325
  %v438 = vpack.c.b16 %v328, %v327
  %v439 = vpack.c.b16 %v330, %v329
  %v440 = vpack.c.b16 %v332, %v331
  %v441 = vpack.c.b16 %v334, %v333
  %v442 = vpack.c.b16 %v336, %v335
  %v443 = vpack.c.b16 %v338, %v337
  %v444 = vpack.c.b16 %v340, %v339
  %v445 = vpack.c.b16 %v342, %v341
  %v446 = vpack.c.b16 %v344, %v343
  %v447 = vpack.c.b16 %v346, %v345
  %v448 = vpack.c.b16 %v348, %v347
  %v449 = vpack.c.b16 %v350, %v349
  %v450 = vpack.c.b16 %v352, %v351
  %v451 = vpack.c.b16 %v354, %v353
  %v452 = vpack.c.b16 %v356, %v355
  %v453 = vpack.c.b16 %v358, %v357
  %v454 = vpack.c.b16 %v360, %v359
  %v455 = vpack.c.b16 %v362, %v361
  %v456 = vpack.c.b16 %v364, %v363
  %v457 = vpack.c.b16 %v366, %v365
  %v458 = vpack.c.b16 %v368, %v367
  %v459 = vpack.c.b16 %v370, %v369
  %v460 = vpack.c.b16 %v372, %v371
  %v461 = vpack.c.b16 %v374, %v373
  %v462 = vpack.c.b16 %v376, %v375
  %v463 = vpack.c.b16 %v378, %v377
  %v464 = vpack.c.b16 %v380, %v379
  %v465 = vpack.c.b16 %v382, %v381
  %v466 = vpack.c.b16 %v384, %v383
  %v467 = vpack.c.b16 %v386, %v385
  %v468 = vpack.c.b16 %v388, %v387
  %v469 = vpack.c.b16 %v390, %v389
  %v470 = vpack.c.b16 %v392, %v391
  %v471 = vpack.c.b16 %v394, %v393
  %v472 = vpack.c.b16 %v396, %v395
  %v473 = vpack.c.b16 %v398, %v397
  %v474 = vpack.c.b16 %v400, %v399
  %v475 = vpack.c.b16 %v402, %v401
  %v476 = vpack.c.b16 %v404, %v403
  %v477 = vpack.c.b16 %v406, %v405
  %v478 = vpack.c.b16 %v408, %v407
  %v479 = vpack.c.b16 %v410, %v409
  %v480 = vpack.c.b16 %v412, %v411
  %v481 = vpack.c.b16 %v414, %v413
  %v482 = vpack.c.b16 %v416, %v415
  %v483 = vpack.c.b16 %v418, %v417
  %v484 = vpack.c.b16 %v420, %v419
  %549 = vmatpush.bf16.msra.mxu0 %v428
  %550 = vmatpush.bf16.msra.mxu0 %v427
  %551 = vmatpush.bf16.msra.mxu0 %v426
  %552 = vmatpush.bf16.msra.mxu0 %v425
  %553 = vmatpush.bf16.msra.mxu0 %v424
  %554 = vmatpush.bf16.msra.mxu0 %v423
  %555 = vmatpush.bf16.msra.mxu0 %v422
  %556 = vmatpush.bf16.msra.mxu0 %v421
  %557 = vmatmul.bf16.gmra.mxu0 %v149
  %v558 = vpop.f32.mrf.mxu0
  %v559 = vadd.f32 %v145, %v558
  %v560 = vpop.f32.mrf.mxu0
  %561 = vdwg.mxu0
  %562 = vmatpush.bf16.msra.mxu0 %v436
  %563 = vmatpush.bf16.msra.mxu0 %v435
  %564 = vmatpush.bf16.msra.mxu0 %v434
  %565 = vmatpush.bf16.msra.mxu0 %v433
  %566 = vmatpush.bf16.msra.mxu0 %v432
  %567 = vmatpush.bf16.msra.mxu0 %v431
  %568 = vmatpush.bf16.msra.mxu0 %v430
  %569 = vmatpush.bf16.msra.mxu0 %v429
  %570 = vmatmul.bf16.gmra.mxu0 %v150
  %v571 = vpop.f32.mrf.mxu0
  %v572 = vadd.f32 %v559, %v571
  %v573 = vpop.f32.mrf.mxu0
  %574 = vdwg.mxu0
  %575 = vmatpush.bf16.msra.mxu0 %v444
  %576 = vmatpush.bf16.msra.mxu0 %v443
  %577 = vmatpush.bf16.msra.mxu0 %v442
  %578 = vmatpush.bf16.msra.mxu0 %v441
  %579 = vmatpush.bf16.msra.mxu0 %v440
  %580 = vmatpush.bf16.msra.mxu0 %v439
  %581 = vmatpush.bf16.msra.mxu0 %v438
  %582 = vmatpush.bf16.msra.mxu0 %v437
  %583 = vmatmul.bf16.gmra.mxu0 %v151
  %v584 = vpop.f32.mrf.mxu0
  %v585 = vadd.f32 %v572, %v584
  %v586 = vpop.f32.mrf.mxu0
  %587 = vdwg.mxu0
  %588 = vmatpush.bf16.msra.mxu0 %v452
  %589 = vmatpush.bf16.msra.mxu0 %v451
  %590 = vmatpush.bf16.msra.mxu0 %v450
  %591 = vmatpush.bf16.msra.mxu0 %v449
  %592 = vmatpush.bf16.msra.mxu0 %v448
  %593 = vmatpush.bf16.msra.mxu0 %v447
  %594 = vmatpush.bf16.msra.mxu0 %v446
  %595 = vmatpush.bf16.msra.mxu0 %v445
  %596 = vmatmul.bf16.gmra.mxu0 %v152
  %v597 = vpop.f32.mrf.mxu0
  %v598 = vadd.f32 %v585, %v597
  %v599 = vpop.f32.mrf.mxu0
  %600 = vdwg.mxu0
  %601 = vmatpush.bf16.msra.mxu0 %v460
  %602 = vmatpush.bf16.msra.mxu0 %v459
  %603 = vmatpush.bf16.msra.mxu0 %v458
  %604 = vmatpush.bf16.msra.mxu0 %v457
  %605 = vmatpush.bf16.msra.mxu0 %v456
  %606 = vmatpush.bf16.msra.mxu0 %v455
  %607 = vmatpush.bf16.msra.mxu0 %v454
  %608 = vmatpush.bf16.msra.mxu0 %v453
  %609 = vmatmul.bf16.gmra.mxu0 %v153
  %v610 = vpop.f32.mrf.mxu0
  %v611 = vadd.f32 %v598, %v610
  %v612 = vpop.f32.mrf.mxu0
  %613 = vdwg.mxu0
  %614 = vmatpush.bf16.msra.mxu0 %v468
  %615 = vmatpush.bf16.msra.mxu0 %v467
  %616 = vmatpush.bf16.msra.mxu0 %v466
  %617 = vmatpush.bf16.msra.mxu0 %v465
  %618 = vmatpush.bf16.msra.mxu0 %v464
  %619 = vmatpush.bf16.msra.mxu0 %v463
  %620 = vmatpush.bf16.msra.mxu0 %v462
  %621 = vmatpush.bf16.msra.mxu0 %v461
  %622 = vmatmul.bf16.gmra.mxu0 %v154
  %v623 = vpop.f32.mrf.mxu0
  %v624 = vadd.f32 %v611, %v623
  %v625 = vpop.f32.mrf.mxu0
  %626 = vdwg.mxu0
  %627 = vmatpush.bf16.msra.mxu0 %v476
  %628 = vmatpush.bf16.msra.mxu0 %v475
  %629 = vmatpush.bf16.msra.mxu0 %v474
  %630 = vmatpush.bf16.msra.mxu0 %v473
  %631 = vmatpush.bf16.msra.mxu0 %v472
  %632 = vmatpush.bf16.msra.mxu0 %v471
  %633 = vmatpush.bf16.msra.mxu0 %v470
  %634 = vmatpush.bf16.msra.mxu0 %v469
  %635 = vmatmul.bf16.gmra.mxu0 %v155
  %v636 = vpop.f32.mrf.mxu0
  %v637 = vadd.f32 %v624, %v636
  %v638 = vpop.f32.mrf.mxu0
  %639 = vdwg.mxu0
  %640 = vmatpush.bf16.msra.mxu0 %v484
  %641 = vmatpush.bf16.msra.mxu0 %v483
  %642 = vmatpush.bf16.msra.mxu0 %v482
  %643 = vmatpush.bf16.msra.mxu0 %v481
  %644 = vmatpush.bf16.msra.mxu0 %v480
  %645 = vmatpush.bf16.msra.mxu0 %v479
  %646 = vmatpush.bf16.msra.mxu0 %v478
  %647 = vmatpush.bf16.msra.mxu0 %v477
  %648 = vmatmul.bf16.gmra.mxu0 %v156
  %v649 = vpop.f32.mrf.mxu0
  %v650 = vadd.f32 %v637, %v649
  %v651 = vpop.f32.mrf.mxu0
  %652 = vdwg.mxu0
  %vm653 = vcmask 254976
  %654 = vst.msk [vmem:[%s3] sm:$0x3] %vm653, %v650
  // Predicated region
  $region14: #{encoder_forward.17} parent=0 // pred_check
    _
  $region15: #{encoder_forward.17} parent=0 // pred_check_branch
    %656 = sbr.rel (0) target = $region17
  $region16: #{encoder_forward.17} parent=0 // pred_region
    _
  $region17: #{encoder_forward.17} parent=0 // pred_fallthru
    _
  // Predicated region
  $region18: #{encoder_forward.17} parent=0 // pred_check
    _
  $region19: #{encoder_forward.17} parent=0 // pred_check_branch
    %658 = sbr.rel (0) target = $region21
  $region20: #{encoder_forward.17} parent=0 // pred_region
    _
  $region21: #{encoder_forward.17} parent=0 // pred_fallthru
    _

</llo_original>
